<compile_context>
chip_gen: v6e
topology: v6e:2x2x1
jax: 0.10.0
libtpu: 0.0.40
codegen_flags: <defaults>
</compile_context>

<pallas_src>
import numpy as np
import jax
import jax.numpy as jnp
from jax.experimental import pallas as pl
from jax.experimental.pallas import tpu as pltpu

KSIZE = 21          # kernel size used by give_NN_model's CNN and by the merger
DEPTH = 5
CHANNELS = 20
CPAD = 24           # channels zero-padded to a sublane multiple for aligned im2col stacks
SCALER_K = 4        # down/up scaler kernel size
PAD = (KSIZE - 1) // 2


# ---------------------------------------------------------------------------
# In-kernel helpers (trace into the Pallas kernel body)
# ---------------------------------------------------------------------------
def _circ_stack(segs):
    """Per-segment circular im2col stack.

    segs: list of (Cin, ln) f32 tiles (same Cin).  Each segment is circularly padded
    independently, its K shifted taps stacked along sublanes, then the segments are
    concatenated along lanes.  Result: (Cin*K, sum(ln)) with row index k*Cin + c, matching
    the (Cout, Cin*K) weight packing in the wrapper.
    """
    parts = []
    for h in segs:
        ln = h.shape[1]
        xe = jnp.concatenate([h[:, ln - PAD:], h, h[:, :PAD]], axis=1)   # (Cin, ln + K - 1)
        cols = [xe[:, k:k + ln] for k in range(KSIZE)]                   # K shifted views
        parts.append(jnp.concatenate(cols, axis=0))                      # (Cin*K, ln)
    return parts[0] if len(parts) == 1 else jnp.concatenate(parts, axis=1)


def _conv_layer(segs, w_ref, b_ref):
    """Circular 'same' Conv1d over lane-concatenated segments as a single MXU matmul."""
    stack = _circ_stack(segs)
    out = jnp.dot(w_ref[...], stack, preferred_element_type=jnp.float32)
    return out + b_ref[...]


def shared_unet_kernel(x_ref,
                       w0, b0, w1, b1, w2, b2, w3, b3, w4, b4,   # shared 5-layer CNN (packed)
                       wm, bm,                                   # merger (packed, fused 3-ch)
                       d1, d2,                                   # downscale matrices
                       u2m, u3m, b3v,                            # upscale mats (scales folded)
                       db, ub,                                   # scaler biases (SMEM scalars)
                       o_ref):
    L = d1.shape[0]
    L2 = L // 2
    L4 = L // 4

    x1 = x_ref[0]                                                              # (1, L)
    # downscaler: Conv1d(1,1,4,s2,p1,circular) as x @ D (D precomputed in the wrapper)
    x2 = jnp.dot(x1, d1[...], preferred_element_type=jnp.float32) + db[0]      # (1, L/2)
    x3 = jnp.dot(x2, d2[...], preferred_element_type=jnp.float32) + db[0]      # (1, L/4)

    def split(h):
        return [h[:, :L], h[:, L:L + L2], h[:, L + L2:]]

    # shared CNN applied once to the lane-concatenated three scales (1.75*L lanes total)
    h = jnp.tanh(_conv_layer([x1, x2, x3], w0, b0))          # (24, 1.75L)
    h = jnp.tanh(_conv_layer(split(h), w1, b1))
    h = jnp.tanh(_conv_layer(split(h), w2, b2))
    h = jnp.tanh(_conv_layer(split(h), w3, b3))
    h = _conv_layer(split(h), w4, b4)                        # last layer: Identity, (1, 1.75L)

    mu1 = h[:, :L]                                           # (1, L)
    c2 = h[:, L:L + L2]                                      # (1, L/2)
    c3 = h[:, L + L2:]                                       # (1, L/4)

    # upscaler (ConvTranspose1d(1,1,4,s2,p1)) as precomputed matrices with the 0.5 / 0.25
    # scales folded in; the mu3 double-upscale is one matmul + precomputed bias vector.
    mu2 = jnp.dot(c2, u2m[...], preferred_element_type=jnp.float32) + ub[0]    # (1, L)
    mu3 = jnp.dot(c3, u3m[...], preferred_element_type=jnp.float32) + b3v[...]  # (1, L)

    # merger Conv1d(3,1,21,circular): fused single 3-channel im2col matmul
    mus = jnp.concatenate([mu1, mu2, mu3], axis=0)           # (3, L)
    out = _conv_layer([mus], wm, bm)                         # (1, L)
    o_ref[0] = out.astype(o_ref.dtype)


# ---------------------------------------------------------------------------
# Wrapper: weight packing, scaler-matrix precompute, pallas_call
# ---------------------------------------------------------------------------
def _down_matrix(dw, lin):
    """(Lin, Lin//2) matrix of Conv1d(1,1,4,stride=2,pad=1,circular)."""
    lout = lin // 2
    s = jnp.arange(lin)[:, None]
    t = jnp.arange(lout)[None, :]
    dmat = jnp.zeros((lin, lout), jnp.float32)
    for k in range(SCALER_K):
        src = (2 * t + k - 1) % lin
        dmat = dmat + jnp.where(s == src, dw[k], 0.0)
    return dmat


def _up_matrix(uw, lin):
    """(Lin, 2*Lin) matrix of ConvTranspose1d(1,1,4,stride=2,pad=1)."""
    lout = 2 * lin
    j = jnp.arange(lin)[:, None]
    t = jnp.arange(lout)[None, :]
    kk = t + 1 - 2 * j
    umat = jnp.zeros((lin, lout), jnp.float32)
    for k in range(SCALER_K):
        umat = umat + jnp.where(kk == k, uw[k], 0.0)
    return umat


def shared_unet_forward(x, params):
    cw, cb, mw, mb, dw, db, uw, ub = params
    B, C, L = x.shape
    assert C == 1 and L % 4 == 0 and L // 4 >= PAD
    HI = jax.lax.Precision.HIGHEST

    # --- pack CNN weights: zero-pad channels 20 -> CPAD and flatten to (Cout, Cin*K) ---
    packed = []
    for layer in range(DEPTH):
        cin = 1 if layer == 0 else CPAD
        cout = 1 if layer == DEPTH - 1 else CPAD
        w, b = cw[layer], cb[layer]
        wp = jnp.zeros((cout, cin, KSIZE), jnp.float32).at[:w.shape[0], :w.shape[1], :].set(w)
        bp = jnp.zeros((cout,), jnp.float32).at[:b.shape[0]].set(b)
        wpk = jnp.transpose(wp, (0, 2, 1)).reshape(cout, KSIZE * cin)   # [o, k*Cin + c]
        packed.append((wpk, bp.reshape(cout, 1)))

    wm = jnp.transpose(mw, (0, 2, 1)).reshape(1, 3 * KSIZE)             # (1, 63)
    bm2 = mb.reshape(1, 1)

    # --- precompute down/upscale matrices ONCE (plain JAX, outside the kernel) ---
    d1 = _down_matrix(dw, L)            # (L,   L/2)
    d2 = _down_matrix(dw, L // 2)       # (L/2, L/4)
    u1 = _up_matrix(uw, L // 2)         # (L/2, L)
    u2 = _up_matrix(uw, L // 4)         # (L/4, L/2)
    # mu2 path: up(0.5*c2) = c2 @ (0.5*u1) + ub
    u2m = 0.5 * u1                                                       # (L/2, L)
    # mu3 path: up(up(0.25*c3)) = c3 @ (0.25*u2@u1) + ub*colsum(u1) + ub
    u3m = 0.25 * jnp.einsum('ij,jk->ik', u2, u1, precision=HI)          # (L/4, L)
    b3v = (ub[0] * jnp.sum(u1, axis=0) + ub[0]).reshape(1, L)           # (1, L)

    args = [x]
    in_specs = [pl.BlockSpec((1, 1, L), lambda b: (b, 0, 0))]

    def add_const2d(a):             # resident VMEM block, same for every grid step
        args.append(a)
        in_specs.append(pl.BlockSpec(a.shape, lambda b: (0, 0)))

    for wpk, bp in packed:
        add_const2d(wpk)
        add_const2d(bp)
    add_const2d(wm)
    add_const2d(bm2)
    add_const2d(d1)
    add_const2d(d2)
    add_const2d(u2m)
    add_const2d(u3m)
    add_const2d(b3v)

    smem = pl.BlockSpec(memory_space=pltpu.MemorySpace.SMEM)
    args += [db, ub]
    in_specs += [smem, smem]

    out = pl.pallas_call(
        shared_unet_kernel,
        out_shape=jax.ShapeDtypeStruct((B, 1, L), jnp.float32),
        grid=(B,),
        in_specs=in_specs,
        out_specs=pl.BlockSpec((1, 1, L), lambda b: (b, 0, 0)),
        compiler_params=pltpu.CompilerParams(dimension_semantics=("parallel",)),
    )(*args)
    return out


# ---------------------------------------------------------------------------
# Deterministic synthetic parameters (PyTorch-style uniform init + flip symmetry)
# ---------------------------------------------------------------------------
def init_params(key):
    keys = iter(jax.random.split(key, 16))
    cnn_w, cnn_b = [], []
    for layer in range(DEPTH):
        cin = 1 if layer == 0 else CHANNELS
        cout = 1 if layer == DEPTH - 1 else CHANNELS
        bound = 1.0 / np.sqrt(cin * KSIZE)
        w = jax.random.uniform(next(keys), (cout, cin, KSIZE), jnp.float32, -bound, bound)
        w = 0.5 * (w + w[..., ::-1])                       # FlipSymmetric / set_symmetry
        b = jax.random.uniform(next(keys), (cout,), jnp.float32, -bound, bound)
        cnn_w.append(w); cnn_b.append(b)
    bound = 1.0 / np.sqrt(3 * KSIZE)
    mw = jax.random.uniform(next(keys), (1, 3, KSIZE), jnp.float32, -bound, bound)
    mb = jax.random.uniform(next(keys), (1,), jnp.float32, -bound, bound)
    bound = 1.0 / np.sqrt(SCALER_K)
    dw = jax.random.uniform(next(keys), (SCALER_K,), jnp.float32, -bound, bound)
    db = jax.random.uniform(next(keys), (1,), jnp.float32, -bound, bound)
    uw = jax.random.uniform(next(keys), (SCALER_K,), jnp.float32, -bound, bound)
    ub = jax.random.uniform(next(keys), (1,), jnp.float32, -bound, bound)
    return cnn_w, cnn_b, mw, mb, dw, db, uw, ub


# ---------------------------------------------------------------------------
# Pure-JAX reference (mirrors torch semantics) used only for validation
# ---------------------------------------------------------------------------
def ref_forward(x, params):
    cw, cb, mw, mb, dw, db, uw, ub = params
    HI = jax.lax.Precision.HIGHEST

    def circ_conv1d(h, w, b):                              # h (B,Cin,L), w (Cout,Cin,K)
        K = w.shape[-1]; P = (K - 1) // 2; L = h.shape[-1]
        hp = jnp.concatenate([h[..., L - P:], h, h[..., :K - 1 - P]], axis=-1)
        out = jnp.zeros((h.shape[0], w.shape[0], L), jnp.float32)
        for k in range(K):
            out = out + jnp.einsum('oc,bcl->bol', w[:, :, k], hp[..., k:k + L], precision=HI)
        return out + b[None, :, None]

    def cnn(h):
        for i in range(len(cw)):
            h = circ_conv1d(h, cw[i], cb[i])
            if i < len(cw) - 1:
                h = jnp.tanh(h)
        return h

    def down(h):                                           # Conv1d(1,1,4,s2,p1,circular)
        L = h.shape[-1]
        hp = jnp.concatenate([h[..., -1:], h, h[..., :1]], axis=-1)
        out = jnp.zeros((h.shape[0], 1, L // 2), jnp.float32)
        for k in range(SCALER_K):
            out = out + dw[k] * hp[..., k:k + L:2]
        return out + db[0]

    def up(h):                                             # ConvTranspose1d(1,1,4,s2,p1)
        Bn, _, Lin = h.shape
        full = jnp.zeros((Bn, 1, 2 * Lin + 2), jnp.float32)
        for j in range(Lin):
            full = full.at[..., 2 * j:2 * j + 4].add(h[..., j:j + 1] * uw[None, None, :])
        return full[..., 1:1 + 2 * Lin] + ub[0]

    x1 = x
    x2 = down(x1)
    x3 = down(x2)
    mu1 = cnn(x1)
    mu2 = 0.5 * cnn(x2)
    mu3 = 0.25 * cnn(x3)
    mu2 = up(mu2)
    mu3 = up(up(mu3))
    mus = jnp.concatenate([mu1, mu2, mu3], axis=1)
    return circ_conv1d(mus, mw, mb)


if __name__ == "__main__":
    B, L = 2, 64
    key = jax.random.PRNGKey(0)
    kx, kp = jax.random.split(key)
    params = init_params(kp)
    x = jax.random.normal(kx, (B, 1, L), dtype=jnp.float32)

    out = shared_unet_forward(x, params)
    out = jax.block_until_ready(out)
    assert out.shape == (B, 1, L)

    ref = jax.jit(lambda xx: ref_forward(xx, params))(x)
    ref = jax.block_until_ready(ref)
    np.testing.assert_allclose(np.asarray(out), np.asarray(ref), rtol=2e-2, atol=5e-3)

    print("KERNEL_OK")
</pallas_src>

<mosaic_0001>
module attributes {stable_mosaic.version = 11 : i64} {
  func.func @shared_unet_kernel(%arg0: i32, %arg1: memref<1x1x64xf32, #tpu.memory_space<vmem>>, %arg2: memref<24x21xf32, #tpu.memory_space<vmem>>, %arg3: memref<24x1xf32, #tpu.memory_space<vmem>>, %arg4: memref<24x504xf32, #tpu.memory_space<vmem>>, %arg5: memref<24x1xf32, #tpu.memory_space<vmem>>, %arg6: memref<24x504xf32, #tpu.memory_space<vmem>>, %arg7: memref<24x1xf32, #tpu.memory_space<vmem>>, %arg8: memref<24x504xf32, #tpu.memory_space<vmem>>, %arg9: memref<24x1xf32, #tpu.memory_space<vmem>>, %arg10: memref<1x504xf32, #tpu.memory_space<vmem>>, %arg11: memref<1x1xf32, #tpu.memory_space<vmem>>, %arg12: memref<1x63xf32, #tpu.memory_space<vmem>>, %arg13: memref<1x1xf32, #tpu.memory_space<vmem>>, %arg14: memref<64x32xf32, #tpu.memory_space<vmem>>, %arg15: memref<32x16xf32, #tpu.memory_space<vmem>>, %arg16: memref<32x64xf32, #tpu.memory_space<vmem>>, %arg17: memref<16x64xf32, #tpu.memory_space<vmem>>, %arg18: memref<1x64xf32, #tpu.memory_space<vmem>>, %arg19: memref<1xf32, #tpu.memory_space<smem>>, %arg20: memref<1xf32, #tpu.memory_space<smem>>, %arg21: memref<1x1x64xf32, #tpu.memory_space<vmem>>) attributes {dimension_semantics = [#tpu.dimension_semantics<parallel>], iteration_bounds = array<i64: 2>, scalar_prefetch = 0 : i64, scratch_operands = 0 : i64, tpu.core_type = #tpu.core_type<tc>, window_params = [{transform_indices = @transform_0, window_bounds = array<i64: 1, 1, 64>}, {pipeline_mode = #tpu.pipeline_mode<synchronous>, transform_indices = @transform_1, window_bounds = array<i64: 24, 21>}, {pipeline_mode = #tpu.pipeline_mode<synchronous>, transform_indices = @transform_2, window_bounds = array<i64: 24, 1>}, {pipeline_mode = #tpu.pipeline_mode<synchronous>, transform_indices = @transform_3, window_bounds = array<i64: 24, 504>}, {pipeline_mode = #tpu.pipeline_mode<synchronous>, transform_indices = @transform_4, window_bounds = array<i64: 24, 1>}, {pipeline_mode = #tpu.pipeline_mode<synchronous>, transform_indices = @transform_5, window_bounds = array<i64: 24, 504>}, {pipeline_mode = #tpu.pipeline_mode<synchronous>, transform_indices = @transform_6, window_bounds = array<i64: 24, 1>}, {pipeline_mode = #tpu.pipeline_mode<synchronous>, transform_indices = @transform_7, window_bounds = array<i64: 24, 504>}, {pipeline_mode = #tpu.pipeline_mode<synchronous>, transform_indices = @transform_8, window_bounds = array<i64: 24, 1>}, {pipeline_mode = #tpu.pipeline_mode<synchronous>, transform_indices = @transform_9, window_bounds = array<i64: 1, 504>}, {pipeline_mode = #tpu.pipeline_mode<synchronous>, transform_indices = @transform_10, window_bounds = array<i64: 1, 1>}, {pipeline_mode = #tpu.pipeline_mode<synchronous>, transform_indices = @transform_11, window_bounds = array<i64: 1, 63>}, {pipeline_mode = #tpu.pipeline_mode<synchronous>, transform_indices = @transform_12, window_bounds = array<i64: 1, 1>}, {pipeline_mode = #tpu.pipeline_mode<synchronous>, transform_indices = @transform_13, window_bounds = array<i64: 64, 32>}, {pipeline_mode = #tpu.pipeline_mode<synchronous>, transform_indices = @transform_14, window_bounds = array<i64: 32, 16>}, {pipeline_mode = #tpu.pipeline_mode<synchronous>, transform_indices = @transform_15, window_bounds = array<i64: 32, 64>}, {pipeline_mode = #tpu.pipeline_mode<synchronous>, transform_indices = @transform_16, window_bounds = array<i64: 16, 64>}, {pipeline_mode = #tpu.pipeline_mode<synchronous>, transform_indices = @transform_17, window_bounds = array<i64: 1, 64>}, {transform_indices = @transform_18, window_bounds = array<i64: 1>}, {transform_indices = @transform_19, window_bounds = array<i64: 1>}, {transform_indices = @transform_20, window_bounds = array<i64: 1, 1, 64>}]} {
    %c0 = arith.constant 0 : index
    %c0_0 = arith.constant 0 : index
    %c0_1 = arith.constant 0 : index
    %0 = vector.load %arg1[%c0, %c0_0, %c0_1] : memref<1x1x64xf32, #tpu.memory_space<vmem>>, vector<1x1x64xf32>
    %1 = vector.shape_cast %0 : vector<1x1x64xf32> to vector<1x64xf32>
    %c0_2 = arith.constant 0 : index
    %c0_3 = arith.constant 0 : index
    %2 = vector.load %arg14[%c0_2, %c0_3] : memref<64x32xf32, #tpu.memory_space<vmem>>, vector<64x32xf32>
    %cst = arith.constant dense<0.000000e+00> : vector<1x32xf32>
    %3 = tpu.matmul %1, %2, %cst {dimension_numbers = #tpu.dot_dimension_numbers<[1], [0], [0], [1], [0, 0, 1, 1], [], []>} : vector<1x64xf32>, vector<64x32xf32>, vector<1x32xf32> -> vector<1x32xf32>
    %c0_4 = arith.constant 0 : index
    %4 = memref.load %arg19[%c0_4] : memref<1xf32, #tpu.memory_space<smem>>
    %5 = vector.broadcast %4 : f32 to vector<1x32xf32>
    %6 = arith.addf %3, %5 : vector<1x32xf32>
    %c0_5 = arith.constant 0 : index
    %c0_6 = arith.constant 0 : index
    %7 = vector.load %arg15[%c0_5, %c0_6] : memref<32x16xf32, #tpu.memory_space<vmem>>, vector<32x16xf32>
    %cst_7 = arith.constant dense<0.000000e+00> : vector<1x16xf32>
    %8 = tpu.matmul %6, %7, %cst_7 {dimension_numbers = #tpu.dot_dimension_numbers<[1], [0], [0], [1], [0, 0, 1, 1], [], []>} : vector<1x32xf32>, vector<32x16xf32>, vector<1x16xf32> -> vector<1x16xf32>
    %c0_8 = arith.constant 0 : index
    %9 = memref.load %arg19[%c0_8] : memref<1xf32, #tpu.memory_space<smem>>
    %10 = vector.broadcast %9 : f32 to vector<1x16xf32>
    %11 = arith.addf %8, %10 : vector<1x16xf32>
    %12 = vector.extract_strided_slice %1 {offsets = [0, 54], sizes = [1, 10], strides = [1, 1]} : vector<1x64xf32> to vector<1x10xf32>
    %13 = vector.extract_strided_slice %1 {offsets = [0, 0], sizes = [1, 10], strides = [1, 1]} : vector<1x64xf32> to vector<1x10xf32>
    %14 = tpu.concatenate %12, %1, %13 in 1 : vector<1x10xf32>, vector<1x64xf32>, vector<1x10xf32> -> vector<1x84xf32>
    %15 = vector.extract_strided_slice %14 {offsets = [0, 0], sizes = [1, 64], strides = [1, 1]} : vector<1x84xf32> to vector<1x64xf32>
    %16 = vector.extract_strided_slice %14 {offsets = [0, 1], sizes = [1, 64], strides = [1, 1]} : vector<1x84xf32> to vector<1x64xf32>
    %17 = vector.extract_strided_slice %14 {offsets = [0, 2], sizes = [1, 64], strides = [1, 1]} : vector<1x84xf32> to vector<1x64xf32>
    %18 = vector.extract_strided_slice %14 {offsets = [0, 3], sizes = [1, 64], strides = [1, 1]} : vector<1x84xf32> to vector<1x64xf32>
    %19 = vector.extract_strided_slice %14 {offsets = [0, 4], sizes = [1, 64], strides = [1, 1]} : vector<1x84xf32> to vector<1x64xf32>
    %20 = vector.extract_strided_slice %14 {offsets = [0, 5], sizes = [1, 64], strides = [1, 1]} : vector<1x84xf32> to vector<1x64xf32>
    %21 = vector.extract_strided_slice %14 {offsets = [0, 6], sizes = [1, 64], strides = [1, 1]} : vector<1x84xf32> to vector<1x64xf32>
    %22 = vector.extract_strided_slice %14 {offsets = [0, 7], sizes = [1, 64], strides = [1, 1]} : vector<1x84xf32> to vector<1x64xf32>
    %23 = vector.extract_strided_slice %14 {offsets = [0, 8], sizes = [1, 64], strides = [1, 1]} : vector<1x84xf32> to vector<1x64xf32>
    %24 = vector.extract_strided_slice %14 {offsets = [0, 9], sizes = [1, 64], strides = [1, 1]} : vector<1x84xf32> to vector<1x64xf32>
    %25 = vector.extract_strided_slice %14 {offsets = [0, 10], sizes = [1, 64], strides = [1, 1]} : vector<1x84xf32> to vector<1x64xf32>
    %26 = vector.extract_strided_slice %14 {offsets = [0, 11], sizes = [1, 64], strides = [1, 1]} : vector<1x84xf32> to vector<1x64xf32>
    %27 = vector.extract_strided_slice %14 {offsets = [0, 12], sizes = [1, 64], strides = [1, 1]} : vector<1x84xf32> to vector<1x64xf32>
    %28 = vector.extract_strided_slice %14 {offsets = [0, 13], sizes = [1, 64], strides = [1, 1]} : vector<1x84xf32> to vector<1x64xf32>
    %29 = vector.extract_strided_slice %14 {offsets = [0, 14], sizes = [1, 64], strides = [1, 1]} : vector<1x84xf32> to vector<1x64xf32>
    %30 = vector.extract_strided_slice %14 {offsets = [0, 15], sizes = [1, 64], strides = [1, 1]} : vector<1x84xf32> to vector<1x64xf32>
    %31 = vector.extract_strided_slice %14 {offsets = [0, 16], sizes = [1, 64], strides = [1, 1]} : vector<1x84xf32> to vector<1x64xf32>
    %32 = vector.extract_strided_slice %14 {offsets = [0, 17], sizes = [1, 64], strides = [1, 1]} : vector<1x84xf32> to vector<1x64xf32>
    %33 = vector.extract_strided_slice %14 {offsets = [0, 18], sizes = [1, 64], strides = [1, 1]} : vector<1x84xf32> to vector<1x64xf32>
    %34 = vector.extract_strided_slice %14 {offsets = [0, 19], sizes = [1, 64], strides = [1, 1]} : vector<1x84xf32> to vector<1x64xf32>
    %35 = vector.extract_strided_slice %14 {offsets = [0, 20], sizes = [1, 64], strides = [1, 1]} : vector<1x84xf32> to vector<1x64xf32>
    %36 = tpu.concatenate %15, %16, %17, %18, %19, %20, %21, %22, %23, %24, %25, %26, %27, %28, %29, %30 in 0 : vector<1x64xf32>, vector<1x64xf32>, vector<1x64xf32>, vector<1x64xf32>, vector<1x64xf32>, vector<1x64xf32>, vector<1x64xf32>, vector<1x64xf32>, vector<1x64xf32>, vector<1x64xf32>, vector<1x64xf32>, vector<1x64xf32>, vector<1x64xf32>, vector<1x64xf32>, vector<1x64xf32>, vector<1x64xf32> -> vector<16x64xf32>
    %37 = tpu.concatenate %31, %32, %33, %34, %35 in 0 : vector<1x64xf32>, vector<1x64xf32>, vector<1x64xf32>, vector<1x64xf32>, vector<1x64xf32> -> vector<5x64xf32>
    %38 = tpu.concatenate %36, %37 in 0 : vector<16x64xf32>, vector<5x64xf32> -> vector<21x64xf32>
    %39 = vector.extract_strided_slice %6 {offsets = [0, 22], sizes = [1, 10], strides = [1, 1]} : vector<1x32xf32> to vector<1x10xf32>
    %40 = vector.extract_strided_slice %6 {offsets = [0, 0], sizes = [1, 10], strides = [1, 1]} : vector<1x32xf32> to vector<1x10xf32>
    %41 = tpu.concatenate %39, %6, %40 in 1 : vector<1x10xf32>, vector<1x32xf32>, vector<1x10xf32> -> vector<1x52xf32>
    %42 = vector.extract_strided_slice %41 {offsets = [0, 0], sizes = [1, 32], strides = [1, 1]} : vector<1x52xf32> to vector<1x32xf32>
    %43 = vector.extract_strided_slice %41 {offsets = [0, 1], sizes = [1, 32], strides = [1, 1]} : vector<1x52xf32> to vector<1x32xf32>
    %44 = vector.extract_strided_slice %41 {offsets = [0, 2], sizes = [1, 32], strides = [1, 1]} : vector<1x52xf32> to vector<1x32xf32>
    %45 = vector.extract_strided_slice %41 {offsets = [0, 3], sizes = [1, 32], strides = [1, 1]} : vector<1x52xf32> to vector<1x32xf32>
    %46 = vector.extract_strided_slice %41 {offsets = [0, 4], sizes = [1, 32], strides = [1, 1]} : vector<1x52xf32> to vector<1x32xf32>
    %47 = vector.extract_strided_slice %41 {offsets = [0, 5], sizes = [1, 32], strides = [1, 1]} : vector<1x52xf32> to vector<1x32xf32>
    %48 = vector.extract_strided_slice %41 {offsets = [0, 6], sizes = [1, 32], strides = [1, 1]} : vector<1x52xf32> to vector<1x32xf32>
    %49 = vector.extract_strided_slice %41 {offsets = [0, 7], sizes = [1, 32], strides = [1, 1]} : vector<1x52xf32> to vector<1x32xf32>
    %50 = vector.extract_strided_slice %41 {offsets = [0, 8], sizes = [1, 32], strides = [1, 1]} : vector<1x52xf32> to vector<1x32xf32>
    %51 = vector.extract_strided_slice %41 {offsets = [0, 9], sizes = [1, 32], strides = [1, 1]} : vector<1x52xf32> to vector<1x32xf32>
    %52 = vector.extract_strided_slice %41 {offsets = [0, 10], sizes = [1, 32], strides = [1, 1]} : vector<1x52xf32> to vector<1x32xf32>
    %53 = vector.extract_strided_slice %41 {offsets = [0, 11], sizes = [1, 32], strides = [1, 1]} : vector<1x52xf32> to vector<1x32xf32>
    %54 = vector.extract_strided_slice %41 {offsets = [0, 12], sizes = [1, 32], strides = [1, 1]} : vector<1x52xf32> to vector<1x32xf32>
    %55 = vector.extract_strided_slice %41 {offsets = [0, 13], sizes = [1, 32], strides = [1, 1]} : vector<1x52xf32> to vector<1x32xf32>
    %56 = vector.extract_strided_slice %41 {offsets = [0, 14], sizes = [1, 32], strides = [1, 1]} : vector<1x52xf32> to vector<1x32xf32>
    %57 = vector.extract_strided_slice %41 {offsets = [0, 15], sizes = [1, 32], strides = [1, 1]} : vector<1x52xf32> to vector<1x32xf32>
    %58 = vector.extract_strided_slice %41 {offsets = [0, 16], sizes = [1, 32], strides = [1, 1]} : vector<1x52xf32> to vector<1x32xf32>
    %59 = vector.extract_strided_slice %41 {offsets = [0, 17], sizes = [1, 32], strides = [1, 1]} : vector<1x52xf32> to vector<1x32xf32>
    %60 = vector.extract_strided_slice %41 {offsets = [0, 18], sizes = [1, 32], strides = [1, 1]} : vector<1x52xf32> to vector<1x32xf32>
    %61 = vector.extract_strided_slice %41 {offsets = [0, 19], sizes = [1, 32], strides = [1, 1]} : vector<1x52xf32> to vector<1x32xf32>
    %62 = vector.extract_strided_slice %41 {offsets = [0, 20], sizes = [1, 32], strides = [1, 1]} : vector<1x52xf32> to vector<1x32xf32>
    %63 = tpu.concatenate %42, %43, %44, %45, %46, %47, %48, %49, %50, %51, %52, %53, %54, %55, %56, %57 in 0 : vector<1x32xf32>, vector<1x32xf32>, vector<1x32xf32>, vector<1x32xf32>, vector<1x32xf32>, vector<1x32xf32>, vector<1x32xf32>, vector<1x32xf32>, vector<1x32xf32>, vector<1x32xf32>, vector<1x32xf32>, vector<1x32xf32>, vector<1x32xf32>, vector<1x32xf32>, vector<1x32xf32>, vector<1x32xf32> -> vector<16x32xf32>
    %64 = tpu.concatenate %58, %59, %60, %61, %62 in 0 : vector<1x32xf32>, vector<1x32xf32>, vector<1x32xf32>, vector<1x32xf32>, vector<1x32xf32> -> vector<5x32xf32>
    %65 = tpu.concatenate %63, %64 in 0 : vector<16x32xf32>, vector<5x32xf32> -> vector<21x32xf32>
    %66 = vector.extract_strided_slice %11 {offsets = [0, 6], sizes = [1, 10], strides = [1, 1]} : vector<1x16xf32> to vector<1x10xf32>
    %67 = vector.extract_strided_slice %11 {offsets = [0, 0], sizes = [1, 10], strides = [1, 1]} : vector<1x16xf32> to vector<1x10xf32>
    %68 = tpu.concatenate %66, %11, %67 in 1 : vector<1x10xf32>, vector<1x16xf32>, vector<1x10xf32> -> vector<1x36xf32>
    %69 = vector.extract_strided_slice %68 {offsets = [0, 0], sizes = [1, 16], strides = [1, 1]} : vector<1x36xf32> to vector<1x16xf32>
    %70 = vector.extract_strided_slice %68 {offsets = [0, 1], sizes = [1, 16], strides = [1, 1]} : vector<1x36xf32> to vector<1x16xf32>
    %71 = vector.extract_strided_slice %68 {offsets = [0, 2], sizes = [1, 16], strides = [1, 1]} : vector<1x36xf32> to vector<1x16xf32>
    %72 = vector.extract_strided_slice %68 {offsets = [0, 3], sizes = [1, 16], strides = [1, 1]} : vector<1x36xf32> to vector<1x16xf32>
    %73 = vector.extract_strided_slice %68 {offsets = [0, 4], sizes = [1, 16], strides = [1, 1]} : vector<1x36xf32> to vector<1x16xf32>
    %74 = vector.extract_strided_slice %68 {offsets = [0, 5], sizes = [1, 16], strides = [1, 1]} : vector<1x36xf32> to vector<1x16xf32>
    %75 = vector.extract_strided_slice %68 {offsets = [0, 6], sizes = [1, 16], strides = [1, 1]} : vector<1x36xf32> to vector<1x16xf32>
    %76 = vector.extract_strided_slice %68 {offsets = [0, 7], sizes = [1, 16], strides = [1, 1]} : vector<1x36xf32> to vector<1x16xf32>
    %77 = vector.extract_strided_slice %68 {offsets = [0, 8], sizes = [1, 16], strides = [1, 1]} : vector<1x36xf32> to vector<1x16xf32>
    %78 = vector.extract_strided_slice %68 {offsets = [0, 9], sizes = [1, 16], strides = [1, 1]} : vector<1x36xf32> to vector<1x16xf32>
    %79 = vector.extract_strided_slice %68 {offsets = [0, 10], sizes = [1, 16], strides = [1, 1]} : vector<1x36xf32> to vector<1x16xf32>
    %80 = vector.extract_strided_slice %68 {offsets = [0, 11], sizes = [1, 16], strides = [1, 1]} : vector<1x36xf32> to vector<1x16xf32>
    %81 = vector.extract_strided_slice %68 {offsets = [0, 12], sizes = [1, 16], strides = [1, 1]} : vector<1x36xf32> to vector<1x16xf32>
    %82 = vector.extract_strided_slice %68 {offsets = [0, 13], sizes = [1, 16], strides = [1, 1]} : vector<1x36xf32> to vector<1x16xf32>
    %83 = vector.extract_strided_slice %68 {offsets = [0, 14], sizes = [1, 16], strides = [1, 1]} : vector<1x36xf32> to vector<1x16xf32>
    %84 = vector.extract_strided_slice %68 {offsets = [0, 15], sizes = [1, 16], strides = [1, 1]} : vector<1x36xf32> to vector<1x16xf32>
    %85 = vector.extract_strided_slice %68 {offsets = [0, 16], sizes = [1, 16], strides = [1, 1]} : vector<1x36xf32> to vector<1x16xf32>
    %86 = vector.extract_strided_slice %68 {offsets = [0, 17], sizes = [1, 16], strides = [1, 1]} : vector<1x36xf32> to vector<1x16xf32>
    %87 = vector.extract_strided_slice %68 {offsets = [0, 18], sizes = [1, 16], strides = [1, 1]} : vector<1x36xf32> to vector<1x16xf32>
    %88 = vector.extract_strided_slice %68 {offsets = [0, 19], sizes = [1, 16], strides = [1, 1]} : vector<1x36xf32> to vector<1x16xf32>
    %89 = vector.extract_strided_slice %68 {offsets = [0, 20], sizes = [1, 16], strides = [1, 1]} : vector<1x36xf32> to vector<1x16xf32>
    %90 = tpu.concatenate %69, %70, %71, %72, %73, %74, %75, %76, %77, %78, %79, %80, %81, %82, %83, %84 in 0 : vector<1x16xf32>, vector<1x16xf32>, vector<1x16xf32>, vector<1x16xf32>, vector<1x16xf32>, vector<1x16xf32>, vector<1x16xf32>, vector<1x16xf32>, vector<1x16xf32>, vector<1x16xf32>, vector<1x16xf32>, vector<1x16xf32>, vector<1x16xf32>, vector<1x16xf32>, vector<1x16xf32>, vector<1x16xf32> -> vector<16x16xf32>
    %91 = tpu.concatenate %85, %86, %87, %88, %89 in 0 : vector<1x16xf32>, vector<1x16xf32>, vector<1x16xf32>, vector<1x16xf32>, vector<1x16xf32> -> vector<5x16xf32>
    %92 = tpu.concatenate %90, %91 in 0 : vector<16x16xf32>, vector<5x16xf32> -> vector<21x16xf32>
    %93 = tpu.concatenate %38, %65, %92 in 1 : vector<21x64xf32>, vector<21x32xf32>, vector<21x16xf32> -> vector<21x112xf32>
    %c0_9 = arith.constant 0 : index
    %c0_10 = arith.constant 0 : index
    %94 = vector.load %arg2[%c0_9, %c0_10] : memref<24x21xf32, #tpu.memory_space<vmem>>, vector<24x21xf32>
    %cst_11 = arith.constant dense<0.000000e+00> : vector<24x112xf32>
    %95 = tpu.matmul %94, %93, %cst_11 {dimension_numbers = #tpu.dot_dimension_numbers<[1], [0], [0], [1], [0, 0, 1, 1], [], []>} : vector<24x21xf32>, vector<21x112xf32>, vector<24x112xf32> -> vector<24x112xf32>
    %c0_12 = arith.constant 0 : index
    %c0_13 = arith.constant 0 : index
    %96 = vector.load %arg3[%c0_12, %c0_13] : memref<24x1xf32, #tpu.memory_space<vmem>>, vector<24x1xf32>
    %97 = vector.broadcast %96 : vector<24x1xf32> to vector<24x112xf32>
    %98 = arith.addf %95, %97 : vector<24x112xf32>
    %99 = math.tanh %98 : vector<24x112xf32>
    %100 = vector.extract_strided_slice %99 {offsets = [0, 0], sizes = [24, 64], strides = [1, 1]} : vector<24x112xf32> to vector<24x64xf32>
    %101 = vector.extract_strided_slice %99 {offsets = [0, 64], sizes = [24, 32], strides = [1, 1]} : vector<24x112xf32> to vector<24x32xf32>
    %102 = vector.extract_strided_slice %99 {offsets = [0, 96], sizes = [24, 16], strides = [1, 1]} : vector<24x112xf32> to vector<24x16xf32>
    %103 = vector.extract_strided_slice %100 {offsets = [0, 54], sizes = [24, 10], strides = [1, 1]} : vector<24x64xf32> to vector<24x10xf32>
    %104 = vector.extract_strided_slice %100 {offsets = [0, 0], sizes = [24, 10], strides = [1, 1]} : vector<24x64xf32> to vector<24x10xf32>
    %105 = tpu.concatenate %103, %100, %104 in 1 : vector<24x10xf32>, vector<24x64xf32>, vector<24x10xf32> -> vector<24x84xf32>
    %106 = vector.extract_strided_slice %105 {offsets = [0, 0], sizes = [24, 64], strides = [1, 1]} : vector<24x84xf32> to vector<24x64xf32>
    %107 = vector.extract_strided_slice %105 {offsets = [0, 1], sizes = [24, 64], strides = [1, 1]} : vector<24x84xf32> to vector<24x64xf32>
    %108 = vector.extract_strided_slice %105 {offsets = [0, 2], sizes = [24, 64], strides = [1, 1]} : vector<24x84xf32> to vector<24x64xf32>
    %109 = vector.extract_strided_slice %105 {offsets = [0, 3], sizes = [24, 64], strides = [1, 1]} : vector<24x84xf32> to vector<24x64xf32>
    %110 = vector.extract_strided_slice %105 {offsets = [0, 4], sizes = [24, 64], strides = [1, 1]} : vector<24x84xf32> to vector<24x64xf32>
    %111 = vector.extract_strided_slice %105 {offsets = [0, 5], sizes = [24, 64], strides = [1, 1]} : vector<24x84xf32> to vector<24x64xf32>
    %112 = vector.extract_strided_slice %105 {offsets = [0, 6], sizes = [24, 64], strides = [1, 1]} : vector<24x84xf32> to vector<24x64xf32>
    %113 = vector.extract_strided_slice %105 {offsets = [0, 7], sizes = [24, 64], strides = [1, 1]} : vector<24x84xf32> to vector<24x64xf32>
    %114 = vector.extract_strided_slice %105 {offsets = [0, 8], sizes = [24, 64], strides = [1, 1]} : vector<24x84xf32> to vector<24x64xf32>
    %115 = vector.extract_strided_slice %105 {offsets = [0, 9], sizes = [24, 64], strides = [1, 1]} : vector<24x84xf32> to vector<24x64xf32>
    %116 = vector.extract_strided_slice %105 {offsets = [0, 10], sizes = [24, 64], strides = [1, 1]} : vector<24x84xf32> to vector<24x64xf32>
    %117 = vector.extract_strided_slice %105 {offsets = [0, 11], sizes = [24, 64], strides = [1, 1]} : vector<24x84xf32> to vector<24x64xf32>
    %118 = vector.extract_strided_slice %105 {offsets = [0, 12], sizes = [24, 64], strides = [1, 1]} : vector<24x84xf32> to vector<24x64xf32>
    %119 = vector.extract_strided_slice %105 {offsets = [0, 13], sizes = [24, 64], strides = [1, 1]} : vector<24x84xf32> to vector<24x64xf32>
    %120 = vector.extract_strided_slice %105 {offsets = [0, 14], sizes = [24, 64], strides = [1, 1]} : vector<24x84xf32> to vector<24x64xf32>
    %121 = vector.extract_strided_slice %105 {offsets = [0, 15], sizes = [24, 64], strides = [1, 1]} : vector<24x84xf32> to vector<24x64xf32>
    %122 = vector.extract_strided_slice %105 {offsets = [0, 16], sizes = [24, 64], strides = [1, 1]} : vector<24x84xf32> to vector<24x64xf32>
    %123 = vector.extract_strided_slice %105 {offsets = [0, 17], sizes = [24, 64], strides = [1, 1]} : vector<24x84xf32> to vector<24x64xf32>
    %124 = vector.extract_strided_slice %105 {offsets = [0, 18], sizes = [24, 64], strides = [1, 1]} : vector<24x84xf32> to vector<24x64xf32>
    %125 = vector.extract_strided_slice %105 {offsets = [0, 19], sizes = [24, 64], strides = [1, 1]} : vector<24x84xf32> to vector<24x64xf32>
    %126 = vector.extract_strided_slice %105 {offsets = [0, 20], sizes = [24, 64], strides = [1, 1]} : vector<24x84xf32> to vector<24x64xf32>
    %127 = tpu.concatenate %106, %107, %108, %109, %110, %111, %112, %113, %114, %115, %116, %117, %118, %119, %120, %121 in 0 : vector<24x64xf32>, vector<24x64xf32>, vector<24x64xf32>, vector<24x64xf32>, vector<24x64xf32>, vector<24x64xf32>, vector<24x64xf32>, vector<24x64xf32>, vector<24x64xf32>, vector<24x64xf32>, vector<24x64xf32>, vector<24x64xf32>, vector<24x64xf32>, vector<24x64xf32>, vector<24x64xf32>, vector<24x64xf32> -> vector<384x64xf32>
    %128 = tpu.concatenate %122, %123, %124, %125, %126 in 0 : vector<24x64xf32>, vector<24x64xf32>, vector<24x64xf32>, vector<24x64xf32>, vector<24x64xf32> -> vector<120x64xf32>
    %129 = tpu.concatenate %127, %128 in 0 : vector<384x64xf32>, vector<120x64xf32> -> vector<504x64xf32>
    %130 = vector.extract_strided_slice %101 {offsets = [0, 22], sizes = [24, 10], strides = [1, 1]} : vector<24x32xf32> to vector<24x10xf32>
    %131 = vector.extract_strided_slice %101 {offsets = [0, 0], sizes = [24, 10], strides = [1, 1]} : vector<24x32xf32> to vector<24x10xf32>
    %132 = tpu.concatenate %130, %101, %131 in 1 : vector<24x10xf32>, vector<24x32xf32>, vector<24x10xf32> -> vector<24x52xf32>
    %133 = vector.extract_strided_slice %132 {offsets = [0, 0], sizes = [24, 32], strides = [1, 1]} : vector<24x52xf32> to vector<24x32xf32>
    %134 = vector.extract_strided_slice %132 {offsets = [0, 1], sizes = [24, 32], strides = [1, 1]} : vector<24x52xf32> to vector<24x32xf32>
    %135 = vector.extract_strided_slice %132 {offsets = [0, 2], sizes = [24, 32], strides = [1, 1]} : vector<24x52xf32> to vector<24x32xf32>
    %136 = vector.extract_strided_slice %132 {offsets = [0, 3], sizes = [24, 32], strides = [1, 1]} : vector<24x52xf32> to vector<24x32xf32>
    %137 = vector.extract_strided_slice %132 {offsets = [0, 4], sizes = [24, 32], strides = [1, 1]} : vector<24x52xf32> to vector<24x32xf32>
    %138 = vector.extract_strided_slice %132 {offsets = [0, 5], sizes = [24, 32], strides = [1, 1]} : vector<24x52xf32> to vector<24x32xf32>
    %139 = vector.extract_strided_slice %132 {offsets = [0, 6], sizes = [24, 32], strides = [1, 1]} : vector<24x52xf32> to vector<24x32xf32>
    %140 = vector.extract_strided_slice %132 {offsets = [0, 7], sizes = [24, 32], strides = [1, 1]} : vector<24x52xf32> to vector<24x32xf32>
    %141 = vector.extract_strided_slice %132 {offsets = [0, 8], sizes = [24, 32], strides = [1, 1]} : vector<24x52xf32> to vector<24x32xf32>
    %142 = vector.extract_strided_slice %132 {offsets = [0, 9], sizes = [24, 32], strides = [1, 1]} : vector<24x52xf32> to vector<24x32xf32>
    %143 = vector.extract_strided_slice %132 {offsets = [0, 10], sizes = [24, 32], strides = [1, 1]} : vector<24x52xf32> to vector<24x32xf32>
    %144 = vector.extract_strided_slice %132 {offsets = [0, 11], sizes = [24, 32], strides = [1, 1]} : vector<24x52xf32> to vector<24x32xf32>
    %145 = vector.extract_strided_slice %132 {offsets = [0, 12], sizes = [24, 32], strides = [1, 1]} : vector<24x52xf32> to vector<24x32xf32>
    %146 = vector.extract_strided_slice %132 {offsets = [0, 13], sizes = [24, 32], strides = [1, 1]} : vector<24x52xf32> to vector<24x32xf32>
    %147 = vector.extract_strided_slice %132 {offsets = [0, 14], sizes = [24, 32], strides = [1, 1]} : vector<24x52xf32> to vector<24x32xf32>
    %148 = vector.extract_strided_slice %132 {offsets = [0, 15], sizes = [24, 32], strides = [1, 1]} : vector<24x52xf32> to vector<24x32xf32>
    %149 = vector.extract_strided_slice %132 {offsets = [0, 16], sizes = [24, 32], strides = [1, 1]} : vector<24x52xf32> to vector<24x32xf32>
    %150 = vector.extract_strided_slice %132 {offsets = [0, 17], sizes = [24, 32], strides = [1, 1]} : vector<24x52xf32> to vector<24x32xf32>
    %151 = vector.extract_strided_slice %132 {offsets = [0, 18], sizes = [24, 32], strides = [1, 1]} : vector<24x52xf32> to vector<24x32xf32>
    %152 = vector.extract_strided_slice %132 {offsets = [0, 19], sizes = [24, 32], strides = [1, 1]} : vector<24x52xf32> to vector<24x32xf32>
    %153 = vector.extract_strided_slice %132 {offsets = [0, 20], sizes = [24, 32], strides = [1, 1]} : vector<24x52xf32> to vector<24x32xf32>
    %154 = tpu.concatenate %133, %134, %135, %136, %137, %138, %139, %140, %141, %142, %143, %144, %145, %146, %147, %148 in 0 : vector<24x32xf32>, vector<24x32xf32>, vector<24x32xf32>, vector<24x32xf32>, vector<24x32xf32>, vector<24x32xf32>, vector<24x32xf32>, vector<24x32xf32>, vector<24x32xf32>, vector<24x32xf32>, vector<24x32xf32>, vector<24x32xf32>, vector<24x32xf32>, vector<24x32xf32>, vector<24x32xf32>, vector<24x32xf32> -> vector<384x32xf32>
    %155 = tpu.concatenate %149, %150, %151, %152, %153 in 0 : vector<24x32xf32>, vector<24x32xf32>, vector<24x32xf32>, vector<24x32xf32>, vector<24x32xf32> -> vector<120x32xf32>
    %156 = tpu.concatenate %154, %155 in 0 : vector<384x32xf32>, vector<120x32xf32> -> vector<504x32xf32>
    %157 = vector.extract_strided_slice %102 {offsets = [0, 6], sizes = [24, 10], strides = [1, 1]} : vector<24x16xf32> to vector<24x10xf32>
    %158 = vector.extract_strided_slice %102 {offsets = [0, 0], sizes = [24, 10], strides = [1, 1]} : vector<24x16xf32> to vector<24x10xf32>
    %159 = tpu.concatenate %157, %102, %158 in 1 : vector<24x10xf32>, vector<24x16xf32>, vector<24x10xf32> -> vector<24x36xf32>
    %160 = vector.extract_strided_slice %159 {offsets = [0, 0], sizes = [24, 16], strides = [1, 1]} : vector<24x36xf32> to vector<24x16xf32>
    %161 = vector.extract_strided_slice %159 {offsets = [0, 1], sizes = [24, 16], strides = [1, 1]} : vector<24x36xf32> to vector<24x16xf32>
    %162 = vector.extract_strided_slice %159 {offsets = [0, 2], sizes = [24, 16], strides = [1, 1]} : vector<24x36xf32> to vector<24x16xf32>
    %163 = vector.extract_strided_slice %159 {offsets = [0, 3], sizes = [24, 16], strides = [1, 1]} : vector<24x36xf32> to vector<24x16xf32>
    %164 = vector.extract_strided_slice %159 {offsets = [0, 4], sizes = [24, 16], strides = [1, 1]} : vector<24x36xf32> to vector<24x16xf32>
    %165 = vector.extract_strided_slice %159 {offsets = [0, 5], sizes = [24, 16], strides = [1, 1]} : vector<24x36xf32> to vector<24x16xf32>
    %166 = vector.extract_strided_slice %159 {offsets = [0, 6], sizes = [24, 16], strides = [1, 1]} : vector<24x36xf32> to vector<24x16xf32>
    %167 = vector.extract_strided_slice %159 {offsets = [0, 7], sizes = [24, 16], strides = [1, 1]} : vector<24x36xf32> to vector<24x16xf32>
    %168 = vector.extract_strided_slice %159 {offsets = [0, 8], sizes = [24, 16], strides = [1, 1]} : vector<24x36xf32> to vector<24x16xf32>
    %169 = vector.extract_strided_slice %159 {offsets = [0, 9], sizes = [24, 16], strides = [1, 1]} : vector<24x36xf32> to vector<24x16xf32>
    %170 = vector.extract_strided_slice %159 {offsets = [0, 10], sizes = [24, 16], strides = [1, 1]} : vector<24x36xf32> to vector<24x16xf32>
    %171 = vector.extract_strided_slice %159 {offsets = [0, 11], sizes = [24, 16], strides = [1, 1]} : vector<24x36xf32> to vector<24x16xf32>
    %172 = vector.extract_strided_slice %159 {offsets = [0, 12], sizes = [24, 16], strides = [1, 1]} : vector<24x36xf32> to vector<24x16xf32>
    %173 = vector.extract_strided_slice %159 {offsets = [0, 13], sizes = [24, 16], strides = [1, 1]} : vector<24x36xf32> to vector<24x16xf32>
    %174 = vector.extract_strided_slice %159 {offsets = [0, 14], sizes = [24, 16], strides = [1, 1]} : vector<24x36xf32> to vector<24x16xf32>
    %175 = vector.extract_strided_slice %159 {offsets = [0, 15], sizes = [24, 16], strides = [1, 1]} : vector<24x36xf32> to vector<24x16xf32>
    %176 = vector.extract_strided_slice %159 {offsets = [0, 16], sizes = [24, 16], strides = [1, 1]} : vector<24x36xf32> to vector<24x16xf32>
    %177 = vector.extract_strided_slice %159 {offsets = [0, 17], sizes = [24, 16], strides = [1, 1]} : vector<24x36xf32> to vector<24x16xf32>
    %178 = vector.extract_strided_slice %159 {offsets = [0, 18], sizes = [24, 16], strides = [1, 1]} : vector<24x36xf32> to vector<24x16xf32>
    %179 = vector.extract_strided_slice %159 {offsets = [0, 19], sizes = [24, 16], strides = [1, 1]} : vector<24x36xf32> to vector<24x16xf32>
    %180 = vector.extract_strided_slice %159 {offsets = [0, 20], sizes = [24, 16], strides = [1, 1]} : vector<24x36xf32> to vector<24x16xf32>
    %181 = tpu.concatenate %160, %161, %162, %163, %164, %165, %166, %167, %168, %169, %170, %171, %172, %173, %174, %175 in 0 : vector<24x16xf32>, vector<24x16xf32>, vector<24x16xf32>, vector<24x16xf32>, vector<24x16xf32>, vector<24x16xf32>, vector<24x16xf32>, vector<24x16xf32>, vector<24x16xf32>, vector<24x16xf32>, vector<24x16xf32>, vector<24x16xf32>, vector<24x16xf32>, vector<24x16xf32>, vector<24x16xf32>, vector<24x16xf32> -> vector<384x16xf32>
    %182 = tpu.concatenate %176, %177, %178, %179, %180 in 0 : vector<24x16xf32>, vector<24x16xf32>, vector<24x16xf32>, vector<24x16xf32>, vector<24x16xf32> -> vector<120x16xf32>
    %183 = tpu.concatenate %181, %182 in 0 : vector<384x16xf32>, vector<120x16xf32> -> vector<504x16xf32>
    %184 = tpu.concatenate %129, %156, %183 in 1 : vector<504x64xf32>, vector<504x32xf32>, vector<504x16xf32> -> vector<504x112xf32>
    %c0_14 = arith.constant 0 : index
    %c0_15 = arith.constant 0 : index
    %185 = vector.load %arg4[%c0_14, %c0_15] : memref<24x504xf32, #tpu.memory_space<vmem>>, vector<24x504xf32>
    %cst_16 = arith.constant dense<0.000000e+00> : vector<24x112xf32>
    %186 = tpu.matmul %185, %184, %cst_16 {dimension_numbers = #tpu.dot_dimension_numbers<[1], [0], [0], [1], [0, 0, 1, 1], [], []>} : vector<24x504xf32>, vector<504x112xf32>, vector<24x112xf32> -> vector<24x112xf32>
    %c0_17 = arith.constant 0 : index
    %c0_18 = arith.constant 0 : index
    %187 = vector.load %arg5[%c0_17, %c0_18] : memref<24x1xf32, #tpu.memory_space<vmem>>, vector<24x1xf32>
    %188 = vector.broadcast %187 : vector<24x1xf32> to vector<24x112xf32>
    %189 = arith.addf %186, %188 : vector<24x112xf32>
    %190 = math.tanh %189 : vector<24x112xf32>
    %191 = vector.extract_strided_slice %190 {offsets = [0, 0], sizes = [24, 64], strides = [1, 1]} : vector<24x112xf32> to vector<24x64xf32>
    %192 = vector.extract_strided_slice %190 {offsets = [0, 64], sizes = [24, 32], strides = [1, 1]} : vector<24x112xf32> to vector<24x32xf32>
    %193 = vector.extract_strided_slice %190 {offsets = [0, 96], sizes = [24, 16], strides = [1, 1]} : vector<24x112xf32> to vector<24x16xf32>
    %194 = vector.extract_strided_slice %191 {offsets = [0, 54], sizes = [24, 10], strides = [1, 1]} : vector<24x64xf32> to vector<24x10xf32>
    %195 = vector.extract_strided_slice %191 {offsets = [0, 0], sizes = [24, 10], strides = [1, 1]} : vector<24x64xf32> to vector<24x10xf32>
    %196 = tpu.concatenate %194, %191, %195 in 1 : vector<24x10xf32>, vector<24x64xf32>, vector<24x10xf32> -> vector<24x84xf32>
    %197 = vector.extract_strided_slice %196 {offsets = [0, 0], sizes = [24, 64], strides = [1, 1]} : vector<24x84xf32> to vector<24x64xf32>
    %198 = vector.extract_strided_slice %196 {offsets = [0, 1], sizes = [24, 64], strides = [1, 1]} : vector<24x84xf32> to vector<24x64xf32>
    %199 = vector.extract_strided_slice %196 {offsets = [0, 2], sizes = [24, 64], strides = [1, 1]} : vector<24x84xf32> to vector<24x64xf32>
    %200 = vector.extract_strided_slice %196 {offsets = [0, 3], sizes = [24, 64], strides = [1, 1]} : vector<24x84xf32> to vector<24x64xf32>
    %201 = vector.extract_strided_slice %196 {offsets = [0, 4], sizes = [24, 64], strides = [1, 1]} : vector<24x84xf32> to vector<24x64xf32>
    %202 = vector.extract_strided_slice %196 {offsets = [0, 5], sizes = [24, 64], strides = [1, 1]} : vector<24x84xf32> to vector<24x64xf32>
    %203 = vector.extract_strided_slice %196 {offsets = [0, 6], sizes = [24, 64], strides = [1, 1]} : vector<24x84xf32> to vector<24x64xf32>
    %204 = vector.extract_strided_slice %196 {offsets = [0, 7], sizes = [24, 64], strides = [1, 1]} : vector<24x84xf32> to vector<24x64xf32>
    %205 = vector.extract_strided_slice %196 {offsets = [0, 8], sizes = [24, 64], strides = [1, 1]} : vector<24x84xf32> to vector<24x64xf32>
    %206 = vector.extract_strided_slice %196 {offsets = [0, 9], sizes = [24, 64], strides = [1, 1]} : vector<24x84xf32> to vector<24x64xf32>
    %207 = vector.extract_strided_slice %196 {offsets = [0, 10], sizes = [24, 64], strides = [1, 1]} : vector<24x84xf32> to vector<24x64xf32>
    %208 = vector.extract_strided_slice %196 {offsets = [0, 11], sizes = [24, 64], strides = [1, 1]} : vector<24x84xf32> to vector<24x64xf32>
    %209 = vector.extract_strided_slice %196 {offsets = [0, 12], sizes = [24, 64], strides = [1, 1]} : vector<24x84xf32> to vector<24x64xf32>
    %210 = vector.extract_strided_slice %196 {offsets = [0, 13], sizes = [24, 64], strides = [1, 1]} : vector<24x84xf32> to vector<24x64xf32>
    %211 = vector.extract_strided_slice %196 {offsets = [0, 14], sizes = [24, 64], strides = [1, 1]} : vector<24x84xf32> to vector<24x64xf32>
    %212 = vector.extract_strided_slice %196 {offsets = [0, 15], sizes = [24, 64], strides = [1, 1]} : vector<24x84xf32> to vector<24x64xf32>
    %213 = vector.extract_strided_slice %196 {offsets = [0, 16], sizes = [24, 64], strides = [1, 1]} : vector<24x84xf32> to vector<24x64xf32>
    %214 = vector.extract_strided_slice %196 {offsets = [0, 17], sizes = [24, 64], strides = [1, 1]} : vector<24x84xf32> to vector<24x64xf32>
    %215 = vector.extract_strided_slice %196 {offsets = [0, 18], sizes = [24, 64], strides = [1, 1]} : vector<24x84xf32> to vector<24x64xf32>
    %216 = vector.extract_strided_slice %196 {offsets = [0, 19], sizes = [24, 64], strides = [1, 1]} : vector<24x84xf32> to vector<24x64xf32>
    %217 = vector.extract_strided_slice %196 {offsets = [0, 20], sizes = [24, 64], strides = [1, 1]} : vector<24x84xf32> to vector<24x64xf32>
    %218 = tpu.concatenate %197, %198, %199, %200, %201, %202, %203, %204, %205, %206, %207, %208, %209, %210, %211, %212 in 0 : vector<24x64xf32>, vector<24x64xf32>, vector<24x64xf32>, vector<24x64xf32>, vector<24x64xf32>, vector<24x64xf32>, vector<24x64xf32>, vector<24x64xf32>, vector<24x64xf32>, vector<24x64xf32>, vector<24x64xf32>, vector<24x64xf32>, vector<24x64xf32>, vector<24x64xf32>, vector<24x64xf32>, vector<24x64xf32> -> vector<384x64xf32>
    %219 = tpu.concatenate %213, %214, %215, %216, %217 in 0 : vector<24x64xf32>, vector<24x64xf32>, vector<24x64xf32>, vector<24x64xf32>, vector<24x64xf32> -> vector<120x64xf32>
    %220 = tpu.concatenate %218, %219 in 0 : vector<384x64xf32>, vector<120x64xf32> -> vector<504x64xf32>
    %221 = vector.extract_strided_slice %192 {offsets = [0, 22], sizes = [24, 10], strides = [1, 1]} : vector<24x32xf32> to vector<24x10xf32>
    %222 = vector.extract_strided_slice %192 {offsets = [0, 0], sizes = [24, 10], strides = [1, 1]} : vector<24x32xf32> to vector<24x10xf32>
    %223 = tpu.concatenate %221, %192, %222 in 1 : vector<24x10xf32>, vector<24x32xf32>, vector<24x10xf32> -> vector<24x52xf32>
    %224 = vector.extract_strided_slice %223 {offsets = [0, 0], sizes = [24, 32], strides = [1, 1]} : vector<24x52xf32> to vector<24x32xf32>
    %225 = vector.extract_strided_slice %223 {offsets = [0, 1], sizes = [24, 32], strides = [1, 1]} : vector<24x52xf32> to vector<24x32xf32>
    %226 = vector.extract_strided_slice %223 {offsets = [0, 2], sizes = [24, 32], strides = [1, 1]} : vector<24x52xf32> to vector<24x32xf32>
    %227 = vector.extract_strided_slice %223 {offsets = [0, 3], sizes = [24, 32], strides = [1, 1]} : vector<24x52xf32> to vector<24x32xf32>
    %228 = vector.extract_strided_slice %223 {offsets = [0, 4], sizes = [24, 32], strides = [1, 1]} : vector<24x52xf32> to vector<24x32xf32>
    %229 = vector.extract_strided_slice %223 {offsets = [0, 5], sizes = [24, 32], strides = [1, 1]} : vector<24x52xf32> to vector<24x32xf32>
    %230 = vector.extract_strided_slice %223 {offsets = [0, 6], sizes = [24, 32], strides = [1, 1]} : vector<24x52xf32> to vector<24x32xf32>
    %231 = vector.extract_strided_slice %223 {offsets = [0, 7], sizes = [24, 32], strides = [1, 1]} : vector<24x52xf32> to vector<24x32xf32>
    %232 = vector.extract_strided_slice %223 {offsets = [0, 8], sizes = [24, 32], strides = [1, 1]} : vector<24x52xf32> to vector<24x32xf32>
    %233 = vector.extract_strided_slice %223 {offsets = [0, 9], sizes = [24, 32], strides = [1, 1]} : vector<24x52xf32> to vector<24x32xf32>
    %234 = vector.extract_strided_slice %223 {offsets = [0, 10], sizes = [24, 32], strides = [1, 1]} : vector<24x52xf32> to vector<24x32xf32>
    %235 = vector.extract_strided_slice %223 {offsets = [0, 11], sizes = [24, 32], strides = [1, 1]} : vector<24x52xf32> to vector<24x32xf32>
    %236 = vector.extract_strided_slice %223 {offsets = [0, 12], sizes = [24, 32], strides = [1, 1]} : vector<24x52xf32> to vector<24x32xf32>
    %237 = vector.extract_strided_slice %223 {offsets = [0, 13], sizes = [24, 32], strides = [1, 1]} : vector<24x52xf32> to vector<24x32xf32>
    %238 = vector.extract_strided_slice %223 {offsets = [0, 14], sizes = [24, 32], strides = [1, 1]} : vector<24x52xf32> to vector<24x32xf32>
    %239 = vector.extract_strided_slice %223 {offsets = [0, 15], sizes = [24, 32], strides = [1, 1]} : vector<24x52xf32> to vector<24x32xf32>
    %240 = vector.extract_strided_slice %223 {offsets = [0, 16], sizes = [24, 32], strides = [1, 1]} : vector<24x52xf32> to vector<24x32xf32>
    %241 = vector.extract_strided_slice %223 {offsets = [0, 17], sizes = [24, 32], strides = [1, 1]} : vector<24x52xf32> to vector<24x32xf32>
    %242 = vector.extract_strided_slice %223 {offsets = [0, 18], sizes = [24, 32], strides = [1, 1]} : vector<24x52xf32> to vector<24x32xf32>
    %243 = vector.extract_strided_slice %223 {offsets = [0, 19], sizes = [24, 32], strides = [1, 1]} : vector<24x52xf32> to vector<24x32xf32>
    %244 = vector.extract_strided_slice %223 {offsets = [0, 20], sizes = [24, 32], strides = [1, 1]} : vector<24x52xf32> to vector<24x32xf32>
    %245 = tpu.concatenate %224, %225, %226, %227, %228, %229, %230, %231, %232, %233, %234, %235, %236, %237, %238, %239 in 0 : vector<24x32xf32>, vector<24x32xf32>, vector<24x32xf32>, vector<24x32xf32>, vector<24x32xf32>, vector<24x32xf32>, vector<24x32xf32>, vector<24x32xf32>, vector<24x32xf32>, vector<24x32xf32>, vector<24x32xf32>, vector<24x32xf32>, vector<24x32xf32>, vector<24x32xf32>, vector<24x32xf32>, vector<24x32xf32> -> vector<384x32xf32>
    %246 = tpu.concatenate %240, %241, %242, %243, %244 in 0 : vector<24x32xf32>, vector<24x32xf32>, vector<24x32xf32>, vector<24x32xf32>, vector<24x32xf32> -> vector<120x32xf32>
    %247 = tpu.concatenate %245, %246 in 0 : vector<384x32xf32>, vector<120x32xf32> -> vector<504x32xf32>
    %248 = vector.extract_strided_slice %193 {offsets = [0, 6], sizes = [24, 10], strides = [1, 1]} : vector<24x16xf32> to vector<24x10xf32>
    %249 = vector.extract_strided_slice %193 {offsets = [0, 0], sizes = [24, 10], strides = [1, 1]} : vector<24x16xf32> to vector<24x10xf32>
    %250 = tpu.concatenate %248, %193, %249 in 1 : vector<24x10xf32>, vector<24x16xf32>, vector<24x10xf32> -> vector<24x36xf32>
    %251 = vector.extract_strided_slice %250 {offsets = [0, 0], sizes = [24, 16], strides = [1, 1]} : vector<24x36xf32> to vector<24x16xf32>
    %252 = vector.extract_strided_slice %250 {offsets = [0, 1], sizes = [24, 16], strides = [1, 1]} : vector<24x36xf32> to vector<24x16xf32>
    %253 = vector.extract_strided_slice %250 {offsets = [0, 2], sizes = [24, 16], strides = [1, 1]} : vector<24x36xf32> to vector<24x16xf32>
    %254 = vector.extract_strided_slice %250 {offsets = [0, 3], sizes = [24, 16], strides = [1, 1]} : vector<24x36xf32> to vector<24x16xf32>
    %255 = vector.extract_strided_slice %250 {offsets = [0, 4], sizes = [24, 16], strides = [1, 1]} : vector<24x36xf32> to vector<24x16xf32>
    %256 = vector.extract_strided_slice %250 {offsets = [0, 5], sizes = [24, 16], strides = [1, 1]} : vector<24x36xf32> to vector<24x16xf32>
    %257 = vector.extract_strided_slice %250 {offsets = [0, 6], sizes = [24, 16], strides = [1, 1]} : vector<24x36xf32> to vector<24x16xf32>
    %258 = vector.extract_strided_slice %250 {offsets = [0, 7], sizes = [24, 16], strides = [1, 1]} : vector<24x36xf32> to vector<24x16xf32>
    %259 = vector.extract_strided_slice %250 {offsets = [0, 8], sizes = [24, 16], strides = [1, 1]} : vector<24x36xf32> to vector<24x16xf32>
    %260 = vector.extract_strided_slice %250 {offsets = [0, 9], sizes = [24, 16], strides = [1, 1]} : vector<24x36xf32> to vector<24x16xf32>
    %261 = vector.extract_strided_slice %250 {offsets = [0, 10], sizes = [24, 16], strides = [1, 1]} : vector<24x36xf32> to vector<24x16xf32>
    %262 = vector.extract_strided_slice %250 {offsets = [0, 11], sizes = [24, 16], strides = [1, 1]} : vector<24x36xf32> to vector<24x16xf32>
    %263 = vector.extract_strided_slice %250 {offsets = [0, 12], sizes = [24, 16], strides = [1, 1]} : vector<24x36xf32> to vector<24x16xf32>
    %264 = vector.extract_strided_slice %250 {offsets = [0, 13], sizes = [24, 16], strides = [1, 1]} : vector<24x36xf32> to vector<24x16xf32>
    %265 = vector.extract_strided_slice %250 {offsets = [0, 14], sizes = [24, 16], strides = [1, 1]} : vector<24x36xf32> to vector<24x16xf32>
    %266 = vector.extract_strided_slice %250 {offsets = [0, 15], sizes = [24, 16], strides = [1, 1]} : vector<24x36xf32> to vector<24x16xf32>
    %267 = vector.extract_strided_slice %250 {offsets = [0, 16], sizes = [24, 16], strides = [1, 1]} : vector<24x36xf32> to vector<24x16xf32>
    %268 = vector.extract_strided_slice %250 {offsets = [0, 17], sizes = [24, 16], strides = [1, 1]} : vector<24x36xf32> to vector<24x16xf32>
    %269 = vector.extract_strided_slice %250 {offsets = [0, 18], sizes = [24, 16], strides = [1, 1]} : vector<24x36xf32> to vector<24x16xf32>
    %270 = vector.extract_strided_slice %250 {offsets = [0, 19], sizes = [24, 16], strides = [1, 1]} : vector<24x36xf32> to vector<24x16xf32>
    %271 = vector.extract_strided_slice %250 {offsets = [0, 20], sizes = [24, 16], strides = [1, 1]} : vector<24x36xf32> to vector<24x16xf32>
    %272 = tpu.concatenate %251, %252, %253, %254, %255, %256, %257, %258, %259, %260, %261, %262, %263, %264, %265, %266 in 0 : vector<24x16xf32>, vector<24x16xf32>, vector<24x16xf32>, vector<24x16xf32>, vector<24x16xf32>, vector<24x16xf32>, vector<24x16xf32>, vector<24x16xf32>, vector<24x16xf32>, vector<24x16xf32>, vector<24x16xf32>, vector<24x16xf32>, vector<24x16xf32>, vector<24x16xf32>, vector<24x16xf32>, vector<24x16xf32> -> vector<384x16xf32>
    %273 = tpu.concatenate %267, %268, %269, %270, %271 in 0 : vector<24x16xf32>, vector<24x16xf32>, vector<24x16xf32>, vector<24x16xf32>, vector<24x16xf32> -> vector<120x16xf32>
    %274 = tpu.concatenate %272, %273 in 0 : vector<384x16xf32>, vector<120x16xf32> -> vector<504x16xf32>
    %275 = tpu.concatenate %220, %247, %274 in 1 : vector<504x64xf32>, vector<504x32xf32>, vector<504x16xf32> -> vector<504x112xf32>
    %c0_19 = arith.constant 0 : index
    %c0_20 = arith.constant 0 : index
    %276 = vector.load %arg6[%c0_19, %c0_20] : memref<24x504xf32, #tpu.memory_space<vmem>>, vector<24x504xf32>
    %cst_21 = arith.constant dense<0.000000e+00> : vector<24x112xf32>
    %277 = tpu.matmul %276, %275, %cst_21 {dimension_numbers = #tpu.dot_dimension_numbers<[1], [0], [0], [1], [0, 0, 1, 1], [], []>} : vector<24x504xf32>, vector<504x112xf32>, vector<24x112xf32> -> vector<24x112xf32>
    %c0_22 = arith.constant 0 : index
    %c0_23 = arith.constant 0 : index
    %278 = vector.load %arg7[%c0_22, %c0_23] : memref<24x1xf32, #tpu.memory_space<vmem>>, vector<24x1xf32>
    %279 = vector.broadcast %278 : vector<24x1xf32> to vector<24x112xf32>
    %280 = arith.addf %277, %279 : vector<24x112xf32>
    %281 = math.tanh %280 : vector<24x112xf32>
    %282 = vector.extract_strided_slice %281 {offsets = [0, 0], sizes = [24, 64], strides = [1, 1]} : vector<24x112xf32> to vector<24x64xf32>
    %283 = vector.extract_strided_slice %281 {offsets = [0, 64], sizes = [24, 32], strides = [1, 1]} : vector<24x112xf32> to vector<24x32xf32>
    %284 = vector.extract_strided_slice %281 {offsets = [0, 96], sizes = [24, 16], strides = [1, 1]} : vector<24x112xf32> to vector<24x16xf32>
    %285 = vector.extract_strided_slice %282 {offsets = [0, 54], sizes = [24, 10], strides = [1, 1]} : vector<24x64xf32> to vector<24x10xf32>
    %286 = vector.extract_strided_slice %282 {offsets = [0, 0], sizes = [24, 10], strides = [1, 1]} : vector<24x64xf32> to vector<24x10xf32>
    %287 = tpu.concatenate %285, %282, %286 in 1 : vector<24x10xf32>, vector<24x64xf32>, vector<24x10xf32> -> vector<24x84xf32>
    %288 = vector.extract_strided_slice %287 {offsets = [0, 0], sizes = [24, 64], strides = [1, 1]} : vector<24x84xf32> to vector<24x64xf32>
    %289 = vector.extract_strided_slice %287 {offsets = [0, 1], sizes = [24, 64], strides = [1, 1]} : vector<24x84xf32> to vector<24x64xf32>
    %290 = vector.extract_strided_slice %287 {offsets = [0, 2], sizes = [24, 64], strides = [1, 1]} : vector<24x84xf32> to vector<24x64xf32>
    %291 = vector.extract_strided_slice %287 {offsets = [0, 3], sizes = [24, 64], strides = [1, 1]} : vector<24x84xf32> to vector<24x64xf32>
    %292 = vector.extract_strided_slice %287 {offsets = [0, 4], sizes = [24, 64], strides = [1, 1]} : vector<24x84xf32> to vector<24x64xf32>
    %293 = vector.extract_strided_slice %287 {offsets = [0, 5], sizes = [24, 64], strides = [1, 1]} : vector<24x84xf32> to vector<24x64xf32>
    %294 = vector.extract_strided_slice %287 {offsets = [0, 6], sizes = [24, 64], strides = [1, 1]} : vector<24x84xf32> to vector<24x64xf32>
    %295 = vector.extract_strided_slice %287 {offsets = [0, 7], sizes = [24, 64], strides = [1, 1]} : vector<24x84xf32> to vector<24x64xf32>
    %296 = vector.extract_strided_slice %287 {offsets = [0, 8], sizes = [24, 64], strides = [1, 1]} : vector<24x84xf32> to vector<24x64xf32>
    %297 = vector.extract_strided_slice %287 {offsets = [0, 9], sizes = [24, 64], strides = [1, 1]} : vector<24x84xf32> to vector<24x64xf32>
    %298 = vector.extract_strided_slice %287 {offsets = [0, 10], sizes = [24, 64], strides = [1, 1]} : vector<24x84xf32> to vector<24x64xf32>
    %299 = vector.extract_strided_slice %287 {offsets = [0, 11], sizes = [24, 64], strides = [1, 1]} : vector<24x84xf32> to vector<24x64xf32>
    %300 = vector.extract_strided_slice %287 {offsets = [0, 12], sizes = [24, 64], strides = [1, 1]} : vector<24x84xf32> to vector<24x64xf32>
    %301 = vector.extract_strided_slice %287 {offsets = [0, 13], sizes = [24, 64], strides = [1, 1]} : vector<24x84xf32> to vector<24x64xf32>
    %302 = vector.extract_strided_slice %287 {offsets = [0, 14], sizes = [24, 64], strides = [1, 1]} : vector<24x84xf32> to vector<24x64xf32>
    %303 = vector.extract_strided_slice %287 {offsets = [0, 15], sizes = [24, 64], strides = [1, 1]} : vector<24x84xf32> to vector<24x64xf32>
    %304 = vector.extract_strided_slice %287 {offsets = [0, 16], sizes = [24, 64], strides = [1, 1]} : vector<24x84xf32> to vector<24x64xf32>
    %305 = vector.extract_strided_slice %287 {offsets = [0, 17], sizes = [24, 64], strides = [1, 1]} : vector<24x84xf32> to vector<24x64xf32>
    %306 = vector.extract_strided_slice %287 {offsets = [0, 18], sizes = [24, 64], strides = [1, 1]} : vector<24x84xf32> to vector<24x64xf32>
    %307 = vector.extract_strided_slice %287 {offsets = [0, 19], sizes = [24, 64], strides = [1, 1]} : vector<24x84xf32> to vector<24x64xf32>
    %308 = vector.extract_strided_slice %287 {offsets = [0, 20], sizes = [24, 64], strides = [1, 1]} : vector<24x84xf32> to vector<24x64xf32>
    %309 = tpu.concatenate %288, %289, %290, %291, %292, %293, %294, %295, %296, %297, %298, %299, %300, %301, %302, %303 in 0 : vector<24x64xf32>, vector<24x64xf32>, vector<24x64xf32>, vector<24x64xf32>, vector<24x64xf32>, vector<24x64xf32>, vector<24x64xf32>, vector<24x64xf32>, vector<24x64xf32>, vector<24x64xf32>, vector<24x64xf32>, vector<24x64xf32>, vector<24x64xf32>, vector<24x64xf32>, vector<24x64xf32>, vector<24x64xf32> -> vector<384x64xf32>
    %310 = tpu.concatenate %304, %305, %306, %307, %308 in 0 : vector<24x64xf32>, vector<24x64xf32>, vector<24x64xf32>, vector<24x64xf32>, vector<24x64xf32> -> vector<120x64xf32>
    %311 = tpu.concatenate %309, %310 in 0 : vector<384x64xf32>, vector<120x64xf32> -> vector<504x64xf32>
    %312 = vector.extract_strided_slice %283 {offsets = [0, 22], sizes = [24, 10], strides = [1, 1]} : vector<24x32xf32> to vector<24x10xf32>
    %313 = vector.extract_strided_slice %283 {offsets = [0, 0], sizes = [24, 10], strides = [1, 1]} : vector<24x32xf32> to vector<24x10xf32>
    %314 = tpu.concatenate %312, %283, %313 in 1 : vector<24x10xf32>, vector<24x32xf32>, vector<24x10xf32> -> vector<24x52xf32>
    %315 = vector.extract_strided_slice %314 {offsets = [0, 0], sizes = [24, 32], strides = [1, 1]} : vector<24x52xf32> to vector<24x32xf32>
    %316 = vector.extract_strided_slice %314 {offsets = [0, 1], sizes = [24, 32], strides = [1, 1]} : vector<24x52xf32> to vector<24x32xf32>
    %317 = vector.extract_strided_slice %314 {offsets = [0, 2], sizes = [24, 32], strides = [1, 1]} : vector<24x52xf32> to vector<24x32xf32>
    %318 = vector.extract_strided_slice %314 {offsets = [0, 3], sizes = [24, 32], strides = [1, 1]} : vector<24x52xf32> to vector<24x32xf32>
    %319 = vector.extract_strided_slice %314 {offsets = [0, 4], sizes = [24, 32], strides = [1, 1]} : vector<24x52xf32> to vector<24x32xf32>
    %320 = vector.extract_strided_slice %314 {offsets = [0, 5], sizes = [24, 32], strides = [1, 1]} : vector<24x52xf32> to vector<24x32xf32>
    %321 = vector.extract_strided_slice %314 {offsets = [0, 6], sizes = [24, 32], strides = [1, 1]} : vector<24x52xf32> to vector<24x32xf32>
    %322 = vector.extract_strided_slice %314 {offsets = [0, 7], sizes = [24, 32], strides = [1, 1]} : vector<24x52xf32> to vector<24x32xf32>
    %323 = vector.extract_strided_slice %314 {offsets = [0, 8], sizes = [24, 32], strides = [1, 1]} : vector<24x52xf32> to vector<24x32xf32>
    %324 = vector.extract_strided_slice %314 {offsets = [0, 9], sizes = [24, 32], strides = [1, 1]} : vector<24x52xf32> to vector<24x32xf32>
    %325 = vector.extract_strided_slice %314 {offsets = [0, 10], sizes = [24, 32], strides = [1, 1]} : vector<24x52xf32> to vector<24x32xf32>
    %326 = vector.extract_strided_slice %314 {offsets = [0, 11], sizes = [24, 32], strides = [1, 1]} : vector<24x52xf32> to vector<24x32xf32>
    %327 = vector.extract_strided_slice %314 {offsets = [0, 12], sizes = [24, 32], strides = [1, 1]} : vector<24x52xf32> to vector<24x32xf32>
    %328 = vector.extract_strided_slice %314 {offsets = [0, 13], sizes = [24, 32], strides = [1, 1]} : vector<24x52xf32> to vector<24x32xf32>
    %329 = vector.extract_strided_slice %314 {offsets = [0, 14], sizes = [24, 32], strides = [1, 1]} : vector<24x52xf32> to vector<24x32xf32>
    %330 = vector.extract_strided_slice %314 {offsets = [0, 15], sizes = [24, 32], strides = [1, 1]} : vector<24x52xf32> to vector<24x32xf32>
    %331 = vector.extract_strided_slice %314 {offsets = [0, 16], sizes = [24, 32], strides = [1, 1]} : vector<24x52xf32> to vector<24x32xf32>
    %332 = vector.extract_strided_slice %314 {offsets = [0, 17], sizes = [24, 32], strides = [1, 1]} : vector<24x52xf32> to vector<24x32xf32>
    %333 = vector.extract_strided_slice %314 {offsets = [0, 18], sizes = [24, 32], strides = [1, 1]} : vector<24x52xf32> to vector<24x32xf32>
    %334 = vector.extract_strided_slice %314 {offsets = [0, 19], sizes = [24, 32], strides = [1, 1]} : vector<24x52xf32> to vector<24x32xf32>
    %335 = vector.extract_strided_slice %314 {offsets = [0, 20], sizes = [24, 32], strides = [1, 1]} : vector<24x52xf32> to vector<24x32xf32>
    %336 = tpu.concatenate %315, %316, %317, %318, %319, %320, %321, %322, %323, %324, %325, %326, %327, %328, %329, %330 in 0 : vector<24x32xf32>, vector<24x32xf32>, vector<24x32xf32>, vector<24x32xf32>, vector<24x32xf32>, vector<24x32xf32>, vector<24x32xf32>, vector<24x32xf32>, vector<24x32xf32>, vector<24x32xf32>, vector<24x32xf32>, vector<24x32xf32>, vector<24x32xf32>, vector<24x32xf32>, vector<24x32xf32>, vector<24x32xf32> -> vector<384x32xf32>
    %337 = tpu.concatenate %331, %332, %333, %334, %335 in 0 : vector<24x32xf32>, vector<24x32xf32>, vector<24x32xf32>, vector<24x32xf32>, vector<24x32xf32> -> vector<120x32xf32>
    %338 = tpu.concatenate %336, %337 in 0 : vector<384x32xf32>, vector<120x32xf32> -> vector<504x32xf32>
    %339 = vector.extract_strided_slice %284 {offsets = [0, 6], sizes = [24, 10], strides = [1, 1]} : vector<24x16xf32> to vector<24x10xf32>
    %340 = vector.extract_strided_slice %284 {offsets = [0, 0], sizes = [24, 10], strides = [1, 1]} : vector<24x16xf32> to vector<24x10xf32>
    %341 = tpu.concatenate %339, %284, %340 in 1 : vector<24x10xf32>, vector<24x16xf32>, vector<24x10xf32> -> vector<24x36xf32>
    %342 = vector.extract_strided_slice %341 {offsets = [0, 0], sizes = [24, 16], strides = [1, 1]} : vector<24x36xf32> to vector<24x16xf32>
    %343 = vector.extract_strided_slice %341 {offsets = [0, 1], sizes = [24, 16], strides = [1, 1]} : vector<24x36xf32> to vector<24x16xf32>
    %344 = vector.extract_strided_slice %341 {offsets = [0, 2], sizes = [24, 16], strides = [1, 1]} : vector<24x36xf32> to vector<24x16xf32>
    %345 = vector.extract_strided_slice %341 {offsets = [0, 3], sizes = [24, 16], strides = [1, 1]} : vector<24x36xf32> to vector<24x16xf32>
    %346 = vector.extract_strided_slice %341 {offsets = [0, 4], sizes = [24, 16], strides = [1, 1]} : vector<24x36xf32> to vector<24x16xf32>
    %347 = vector.extract_strided_slice %341 {offsets = [0, 5], sizes = [24, 16], strides = [1, 1]} : vector<24x36xf32> to vector<24x16xf32>
    %348 = vector.extract_strided_slice %341 {offsets = [0, 6], sizes = [24, 16], strides = [1, 1]} : vector<24x36xf32> to vector<24x16xf32>
    %349 = vector.extract_strided_slice %341 {offsets = [0, 7], sizes = [24, 16], strides = [1, 1]} : vector<24x36xf32> to vector<24x16xf32>
    %350 = vector.extract_strided_slice %341 {offsets = [0, 8], sizes = [24, 16], strides = [1, 1]} : vector<24x36xf32> to vector<24x16xf32>
    %351 = vector.extract_strided_slice %341 {offsets = [0, 9], sizes = [24, 16], strides = [1, 1]} : vector<24x36xf32> to vector<24x16xf32>
    %352 = vector.extract_strided_slice %341 {offsets = [0, 10], sizes = [24, 16], strides = [1, 1]} : vector<24x36xf32> to vector<24x16xf32>
    %353 = vector.extract_strided_slice %341 {offsets = [0, 11], sizes = [24, 16], strides = [1, 1]} : vector<24x36xf32> to vector<24x16xf32>
    %354 = vector.extract_strided_slice %341 {offsets = [0, 12], sizes = [24, 16], strides = [1, 1]} : vector<24x36xf32> to vector<24x16xf32>
    %355 = vector.extract_strided_slice %341 {offsets = [0, 13], sizes = [24, 16], strides = [1, 1]} : vector<24x36xf32> to vector<24x16xf32>
    %356 = vector.extract_strided_slice %341 {offsets = [0, 14], sizes = [24, 16], strides = [1, 1]} : vector<24x36xf32> to vector<24x16xf32>
    %357 = vector.extract_strided_slice %341 {offsets = [0, 15], sizes = [24, 16], strides = [1, 1]} : vector<24x36xf32> to vector<24x16xf32>
    %358 = vector.extract_strided_slice %341 {offsets = [0, 16], sizes = [24, 16], strides = [1, 1]} : vector<24x36xf32> to vector<24x16xf32>
    %359 = vector.extract_strided_slice %341 {offsets = [0, 17], sizes = [24, 16], strides = [1, 1]} : vector<24x36xf32> to vector<24x16xf32>
    %360 = vector.extract_strided_slice %341 {offsets = [0, 18], sizes = [24, 16], strides = [1, 1]} : vector<24x36xf32> to vector<24x16xf32>
    %361 = vector.extract_strided_slice %341 {offsets = [0, 19], sizes = [24, 16], strides = [1, 1]} : vector<24x36xf32> to vector<24x16xf32>
    %362 = vector.extract_strided_slice %341 {offsets = [0, 20], sizes = [24, 16], strides = [1, 1]} : vector<24x36xf32> to vector<24x16xf32>
    %363 = tpu.concatenate %342, %343, %344, %345, %346, %347, %348, %349, %350, %351, %352, %353, %354, %355, %356, %357 in 0 : vector<24x16xf32>, vector<24x16xf32>, vector<24x16xf32>, vector<24x16xf32>, vector<24x16xf32>, vector<24x16xf32>, vector<24x16xf32>, vector<24x16xf32>, vector<24x16xf32>, vector<24x16xf32>, vector<24x16xf32>, vector<24x16xf32>, vector<24x16xf32>, vector<24x16xf32>, vector<24x16xf32>, vector<24x16xf32> -> vector<384x16xf32>
    %364 = tpu.concatenate %358, %359, %360, %361, %362 in 0 : vector<24x16xf32>, vector<24x16xf32>, vector<24x16xf32>, vector<24x16xf32>, vector<24x16xf32> -> vector<120x16xf32>
    %365 = tpu.concatenate %363, %364 in 0 : vector<384x16xf32>, vector<120x16xf32> -> vector<504x16xf32>
    %366 = tpu.concatenate %311, %338, %365 in 1 : vector<504x64xf32>, vector<504x32xf32>, vector<504x16xf32> -> vector<504x112xf32>
    %c0_24 = arith.constant 0 : index
    %c0_25 = arith.constant 0 : index
    %367 = vector.load %arg8[%c0_24, %c0_25] : memref<24x504xf32, #tpu.memory_space<vmem>>, vector<24x504xf32>
    %cst_26 = arith.constant dense<0.000000e+00> : vector<24x112xf32>
    %368 = tpu.matmul %367, %366, %cst_26 {dimension_numbers = #tpu.dot_dimension_numbers<[1], [0], [0], [1], [0, 0, 1, 1], [], []>} : vector<24x504xf32>, vector<504x112xf32>, vector<24x112xf32> -> vector<24x112xf32>
    %c0_27 = arith.constant 0 : index
    %c0_28 = arith.constant 0 : index
    %369 = vector.load %arg9[%c0_27, %c0_28] : memref<24x1xf32, #tpu.memory_space<vmem>>, vector<24x1xf32>
    %370 = vector.broadcast %369 : vector<24x1xf32> to vector<24x112xf32>
    %371 = arith.addf %368, %370 : vector<24x112xf32>
    %372 = math.tanh %371 : vector<24x112xf32>
    %373 = vector.extract_strided_slice %372 {offsets = [0, 0], sizes = [24, 64], strides = [1, 1]} : vector<24x112xf32> to vector<24x64xf32>
    %374 = vector.extract_strided_slice %372 {offsets = [0, 64], sizes = [24, 32], strides = [1, 1]} : vector<24x112xf32> to vector<24x32xf32>
    %375 = vector.extract_strided_slice %372 {offsets = [0, 96], sizes = [24, 16], strides = [1, 1]} : vector<24x112xf32> to vector<24x16xf32>
    %376 = vector.extract_strided_slice %373 {offsets = [0, 54], sizes = [24, 10], strides = [1, 1]} : vector<24x64xf32> to vector<24x10xf32>
    %377 = vector.extract_strided_slice %373 {offsets = [0, 0], sizes = [24, 10], strides = [1, 1]} : vector<24x64xf32> to vector<24x10xf32>
    %378 = tpu.concatenate %376, %373, %377 in 1 : vector<24x10xf32>, vector<24x64xf32>, vector<24x10xf32> -> vector<24x84xf32>
    %379 = vector.extract_strided_slice %378 {offsets = [0, 0], sizes = [24, 64], strides = [1, 1]} : vector<24x84xf32> to vector<24x64xf32>
    %380 = vector.extract_strided_slice %378 {offsets = [0, 1], sizes = [24, 64], strides = [1, 1]} : vector<24x84xf32> to vector<24x64xf32>
    %381 = vector.extract_strided_slice %378 {offsets = [0, 2], sizes = [24, 64], strides = [1, 1]} : vector<24x84xf32> to vector<24x64xf32>
    %382 = vector.extract_strided_slice %378 {offsets = [0, 3], sizes = [24, 64], strides = [1, 1]} : vector<24x84xf32> to vector<24x64xf32>
    %383 = vector.extract_strided_slice %378 {offsets = [0, 4], sizes = [24, 64], strides = [1, 1]} : vector<24x84xf32> to vector<24x64xf32>
    %384 = vector.extract_strided_slice %378 {offsets = [0, 5], sizes = [24, 64], strides = [1, 1]} : vector<24x84xf32> to vector<24x64xf32>
    %385 = vector.extract_strided_slice %378 {offsets = [0, 6], sizes = [24, 64], strides = [1, 1]} : vector<24x84xf32> to vector<24x64xf32>
    %386 = vector.extract_strided_slice %378 {offsets = [0, 7], sizes = [24, 64], strides = [1, 1]} : vector<24x84xf32> to vector<24x64xf32>
    %387 = vector.extract_strided_slice %378 {offsets = [0, 8], sizes = [24, 64], strides = [1, 1]} : vector<24x84xf32> to vector<24x64xf32>
    %388 = vector.extract_strided_slice %378 {offsets = [0, 9], sizes = [24, 64], strides = [1, 1]} : vector<24x84xf32> to vector<24x64xf32>
    %389 = vector.extract_strided_slice %378 {offsets = [0, 10], sizes = [24, 64], strides = [1, 1]} : vector<24x84xf32> to vector<24x64xf32>
    %390 = vector.extract_strided_slice %378 {offsets = [0, 11], sizes = [24, 64], strides = [1, 1]} : vector<24x84xf32> to vector<24x64xf32>
    %391 = vector.extract_strided_slice %378 {offsets = [0, 12], sizes = [24, 64], strides = [1, 1]} : vector<24x84xf32> to vector<24x64xf32>
    %392 = vector.extract_strided_slice %378 {offsets = [0, 13], sizes = [24, 64], strides = [1, 1]} : vector<24x84xf32> to vector<24x64xf32>
    %393 = vector.extract_strided_slice %378 {offsets = [0, 14], sizes = [24, 64], strides = [1, 1]} : vector<24x84xf32> to vector<24x64xf32>
    %394 = vector.extract_strided_slice %378 {offsets = [0, 15], sizes = [24, 64], strides = [1, 1]} : vector<24x84xf32> to vector<24x64xf32>
    %395 = vector.extract_strided_slice %378 {offsets = [0, 16], sizes = [24, 64], strides = [1, 1]} : vector<24x84xf32> to vector<24x64xf32>
    %396 = vector.extract_strided_slice %378 {offsets = [0, 17], sizes = [24, 64], strides = [1, 1]} : vector<24x84xf32> to vector<24x64xf32>
    %397 = vector.extract_strided_slice %378 {offsets = [0, 18], sizes = [24, 64], strides = [1, 1]} : vector<24x84xf32> to vector<24x64xf32>
    %398 = vector.extract_strided_slice %378 {offsets = [0, 19], sizes = [24, 64], strides = [1, 1]} : vector<24x84xf32> to vector<24x64xf32>
    %399 = vector.extract_strided_slice %378 {offsets = [0, 20], sizes = [24, 64], strides = [1, 1]} : vector<24x84xf32> to vector<24x64xf32>
    %400 = tpu.concatenate %379, %380, %381, %382, %383, %384, %385, %386, %387, %388, %389, %390, %391, %392, %393, %394 in 0 : vector<24x64xf32>, vector<24x64xf32>, vector<24x64xf32>, vector<24x64xf32>, vector<24x64xf32>, vector<24x64xf32>, vector<24x64xf32>, vector<24x64xf32>, vector<24x64xf32>, vector<24x64xf32>, vector<24x64xf32>, vector<24x64xf32>, vector<24x64xf32>, vector<24x64xf32>, vector<24x64xf32>, vector<24x64xf32> -> vector<384x64xf32>
    %401 = tpu.concatenate %395, %396, %397, %398, %399 in 0 : vector<24x64xf32>, vector<24x64xf32>, vector<24x64xf32>, vector<24x64xf32>, vector<24x64xf32> -> vector<120x64xf32>
    %402 = tpu.concatenate %400, %401 in 0 : vector<384x64xf32>, vector<120x64xf32> -> vector<504x64xf32>
    %403 = vector.extract_strided_slice %374 {offsets = [0, 22], sizes = [24, 10], strides = [1, 1]} : vector<24x32xf32> to vector<24x10xf32>
    %404 = vector.extract_strided_slice %374 {offsets = [0, 0], sizes = [24, 10], strides = [1, 1]} : vector<24x32xf32> to vector<24x10xf32>
    %405 = tpu.concatenate %403, %374, %404 in 1 : vector<24x10xf32>, vector<24x32xf32>, vector<24x10xf32> -> vector<24x52xf32>
    %406 = vector.extract_strided_slice %405 {offsets = [0, 0], sizes = [24, 32], strides = [1, 1]} : vector<24x52xf32> to vector<24x32xf32>
    %407 = vector.extract_strided_slice %405 {offsets = [0, 1], sizes = [24, 32], strides = [1, 1]} : vector<24x52xf32> to vector<24x32xf32>
    %408 = vector.extract_strided_slice %405 {offsets = [0, 2], sizes = [24, 32], strides = [1, 1]} : vector<24x52xf32> to vector<24x32xf32>
    %409 = vector.extract_strided_slice %405 {offsets = [0, 3], sizes = [24, 32], strides = [1, 1]} : vector<24x52xf32> to vector<24x32xf32>
    %410 = vector.extract_strided_slice %405 {offsets = [0, 4], sizes = [24, 32], strides = [1, 1]} : vector<24x52xf32> to vector<24x32xf32>
    %411 = vector.extract_strided_slice %405 {offsets = [0, 5], sizes = [24, 32], strides = [1, 1]} : vector<24x52xf32> to vector<24x32xf32>
    %412 = vector.extract_strided_slice %405 {offsets = [0, 6], sizes = [24, 32], strides = [1, 1]} : vector<24x52xf32> to vector<24x32xf32>
    %413 = vector.extract_strided_slice %405 {offsets = [0, 7], sizes = [24, 32], strides = [1, 1]} : vector<24x52xf32> to vector<24x32xf32>
    %414 = vector.extract_strided_slice %405 {offsets = [0, 8], sizes = [24, 32], strides = [1, 1]} : vector<24x52xf32> to vector<24x32xf32>
    %415 = vector.extract_strided_slice %405 {offsets = [0, 9], sizes = [24, 32], strides = [1, 1]} : vector<24x52xf32> to vector<24x32xf32>
    %416 = vector.extract_strided_slice %405 {offsets = [0, 10], sizes = [24, 32], strides = [1, 1]} : vector<24x52xf32> to vector<24x32xf32>
    %417 = vector.extract_strided_slice %405 {offsets = [0, 11], sizes = [24, 32], strides = [1, 1]} : vector<24x52xf32> to vector<24x32xf32>
    %418 = vector.extract_strided_slice %405 {offsets = [0, 12], sizes = [24, 32], strides = [1, 1]} : vector<24x52xf32> to vector<24x32xf32>
    %419 = vector.extract_strided_slice %405 {offsets = [0, 13], sizes = [24, 32], strides = [1, 1]} : vector<24x52xf32> to vector<24x32xf32>
    %420 = vector.extract_strided_slice %405 {offsets = [0, 14], sizes = [24, 32], strides = [1, 1]} : vector<24x52xf32> to vector<24x32xf32>
    %421 = vector.extract_strided_slice %405 {offsets = [0, 15], sizes = [24, 32], strides = [1, 1]} : vector<24x52xf32> to vector<24x32xf32>
    %422 = vector.extract_strided_slice %405 {offsets = [0, 16], sizes = [24, 32], strides = [1, 1]} : vector<24x52xf32> to vector<24x32xf32>
    %423 = vector.extract_strided_slice %405 {offsets = [0, 17], sizes = [24, 32], strides = [1, 1]} : vector<24x52xf32> to vector<24x32xf32>
    %424 = vector.extract_strided_slice %405 {offsets = [0, 18], sizes = [24, 32], strides = [1, 1]} : vector<24x52xf32> to vector<24x32xf32>
    %425 = vector.extract_strided_slice %405 {offsets = [0, 19], sizes = [24, 32], strides = [1, 1]} : vector<24x52xf32> to vector<24x32xf32>
    %426 = vector.extract_strided_slice %405 {offsets = [0, 20], sizes = [24, 32], strides = [1, 1]} : vector<24x52xf32> to vector<24x32xf32>
    %427 = tpu.concatenate %406, %407, %408, %409, %410, %411, %412, %413, %414, %415, %416, %417, %418, %419, %420, %421 in 0 : vector<24x32xf32>, vector<24x32xf32>, vector<24x32xf32>, vector<24x32xf32>, vector<24x32xf32>, vector<24x32xf32>, vector<24x32xf32>, vector<24x32xf32>, vector<24x32xf32>, vector<24x32xf32>, vector<24x32xf32>, vector<24x32xf32>, vector<24x32xf32>, vector<24x32xf32>, vector<24x32xf32>, vector<24x32xf32> -> vector<384x32xf32>
    %428 = tpu.concatenate %422, %423, %424, %425, %426 in 0 : vector<24x32xf32>, vector<24x32xf32>, vector<24x32xf32>, vector<24x32xf32>, vector<24x32xf32> -> vector<120x32xf32>
    %429 = tpu.concatenate %427, %428 in 0 : vector<384x32xf32>, vector<120x32xf32> -> vector<504x32xf32>
    %430 = vector.extract_strided_slice %375 {offsets = [0, 6], sizes = [24, 10], strides = [1, 1]} : vector<24x16xf32> to vector<24x10xf32>
    %431 = vector.extract_strided_slice %375 {offsets = [0, 0], sizes = [24, 10], strides = [1, 1]} : vector<24x16xf32> to vector<24x10xf32>
    %432 = tpu.concatenate %430, %375, %431 in 1 : vector<24x10xf32>, vector<24x16xf32>, vector<24x10xf32> -> vector<24x36xf32>
    %433 = vector.extract_strided_slice %432 {offsets = [0, 0], sizes = [24, 16], strides = [1, 1]} : vector<24x36xf32> to vector<24x16xf32>
    %434 = vector.extract_strided_slice %432 {offsets = [0, 1], sizes = [24, 16], strides = [1, 1]} : vector<24x36xf32> to vector<24x16xf32>
    %435 = vector.extract_strided_slice %432 {offsets = [0, 2], sizes = [24, 16], strides = [1, 1]} : vector<24x36xf32> to vector<24x16xf32>
    %436 = vector.extract_strided_slice %432 {offsets = [0, 3], sizes = [24, 16], strides = [1, 1]} : vector<24x36xf32> to vector<24x16xf32>
    %437 = vector.extract_strided_slice %432 {offsets = [0, 4], sizes = [24, 16], strides = [1, 1]} : vector<24x36xf32> to vector<24x16xf32>
    %438 = vector.extract_strided_slice %432 {offsets = [0, 5], sizes = [24, 16], strides = [1, 1]} : vector<24x36xf32> to vector<24x16xf32>
    %439 = vector.extract_strided_slice %432 {offsets = [0, 6], sizes = [24, 16], strides = [1, 1]} : vector<24x36xf32> to vector<24x16xf32>
    %440 = vector.extract_strided_slice %432 {offsets = [0, 7], sizes = [24, 16], strides = [1, 1]} : vector<24x36xf32> to vector<24x16xf32>
    %441 = vector.extract_strided_slice %432 {offsets = [0, 8], sizes = [24, 16], strides = [1, 1]} : vector<24x36xf32> to vector<24x16xf32>
    %442 = vector.extract_strided_slice %432 {offsets = [0, 9], sizes = [24, 16], strides = [1, 1]} : vector<24x36xf32> to vector<24x16xf32>
    %443 = vector.extract_strided_slice %432 {offsets = [0, 10], sizes = [24, 16], strides = [1, 1]} : vector<24x36xf32> to vector<24x16xf32>
    %444 = vector.extract_strided_slice %432 {offsets = [0, 11], sizes = [24, 16], strides = [1, 1]} : vector<24x36xf32> to vector<24x16xf32>
    %445 = vector.extract_strided_slice %432 {offsets = [0, 12], sizes = [24, 16], strides = [1, 1]} : vector<24x36xf32> to vector<24x16xf32>
    %446 = vector.extract_strided_slice %432 {offsets = [0, 13], sizes = [24, 16], strides = [1, 1]} : vector<24x36xf32> to vector<24x16xf32>
    %447 = vector.extract_strided_slice %432 {offsets = [0, 14], sizes = [24, 16], strides = [1, 1]} : vector<24x36xf32> to vector<24x16xf32>
    %448 = vector.extract_strided_slice %432 {offsets = [0, 15], sizes = [24, 16], strides = [1, 1]} : vector<24x36xf32> to vector<24x16xf32>
    %449 = vector.extract_strided_slice %432 {offsets = [0, 16], sizes = [24, 16], strides = [1, 1]} : vector<24x36xf32> to vector<24x16xf32>
    %450 = vector.extract_strided_slice %432 {offsets = [0, 17], sizes = [24, 16], strides = [1, 1]} : vector<24x36xf32> to vector<24x16xf32>
    %451 = vector.extract_strided_slice %432 {offsets = [0, 18], sizes = [24, 16], strides = [1, 1]} : vector<24x36xf32> to vector<24x16xf32>
    %452 = vector.extract_strided_slice %432 {offsets = [0, 19], sizes = [24, 16], strides = [1, 1]} : vector<24x36xf32> to vector<24x16xf32>
    %453 = vector.extract_strided_slice %432 {offsets = [0, 20], sizes = [24, 16], strides = [1, 1]} : vector<24x36xf32> to vector<24x16xf32>
    %454 = tpu.concatenate %433, %434, %435, %436, %437, %438, %439, %440, %441, %442, %443, %444, %445, %446, %447, %448 in 0 : vector<24x16xf32>, vector<24x16xf32>, vector<24x16xf32>, vector<24x16xf32>, vector<24x16xf32>, vector<24x16xf32>, vector<24x16xf32>, vector<24x16xf32>, vector<24x16xf32>, vector<24x16xf32>, vector<24x16xf32>, vector<24x16xf32>, vector<24x16xf32>, vector<24x16xf32>, vector<24x16xf32>, vector<24x16xf32> -> vector<384x16xf32>
    %455 = tpu.concatenate %449, %450, %451, %452, %453 in 0 : vector<24x16xf32>, vector<24x16xf32>, vector<24x16xf32>, vector<24x16xf32>, vector<24x16xf32> -> vector<120x16xf32>
    %456 = tpu.concatenate %454, %455 in 0 : vector<384x16xf32>, vector<120x16xf32> -> vector<504x16xf32>
    %457 = tpu.concatenate %402, %429, %456 in 1 : vector<504x64xf32>, vector<504x32xf32>, vector<504x16xf32> -> vector<504x112xf32>
    %c0_29 = arith.constant 0 : index
    %c0_30 = arith.constant 0 : index
    %458 = vector.load %arg10[%c0_29, %c0_30] : memref<1x504xf32, #tpu.memory_space<vmem>>, vector<1x504xf32>
    %cst_31 = arith.constant dense<0.000000e+00> : vector<1x112xf32>
    %459 = tpu.matmul %458, %457, %cst_31 {dimension_numbers = #tpu.dot_dimension_numbers<[1], [0], [0], [1], [0, 0, 1, 1], [], []>} : vector<1x504xf32>, vector<504x112xf32>, vector<1x112xf32> -> vector<1x112xf32>
    %c0_32 = arith.constant 0 : index
    %c0_33 = arith.constant 0 : index
    %460 = vector.load %arg11[%c0_32, %c0_33] : memref<1x1xf32, #tpu.memory_space<vmem>>, vector<1x1xf32>
    %461 = vector.broadcast %460 : vector<1x1xf32> to vector<1x112xf32>
    %462 = arith.addf %459, %461 : vector<1x112xf32>
    %463 = vector.extract_strided_slice %462 {offsets = [0, 0], sizes = [1, 64], strides = [1, 1]} : vector<1x112xf32> to vector<1x64xf32>
    %464 = vector.extract_strided_slice %462 {offsets = [0, 64], sizes = [1, 32], strides = [1, 1]} : vector<1x112xf32> to vector<1x32xf32>
    %465 = vector.extract_strided_slice %462 {offsets = [0, 96], sizes = [1, 16], strides = [1, 1]} : vector<1x112xf32> to vector<1x16xf32>
    %c0_34 = arith.constant 0 : index
    %c0_35 = arith.constant 0 : index
    %466 = vector.load %arg16[%c0_34, %c0_35] : memref<32x64xf32, #tpu.memory_space<vmem>>, vector<32x64xf32>
    %cst_36 = arith.constant dense<0.000000e+00> : vector<1x64xf32>
    %467 = tpu.matmul %464, %466, %cst_36 {dimension_numbers = #tpu.dot_dimension_numbers<[1], [0], [0], [1], [0, 0, 1, 1], [], []>} : vector<1x32xf32>, vector<32x64xf32>, vector<1x64xf32> -> vector<1x64xf32>
    %c0_37 = arith.constant 0 : index
    %468 = memref.load %arg20[%c0_37] : memref<1xf32, #tpu.memory_space<smem>>
    %469 = vector.broadcast %468 : f32 to vector<1x64xf32>
    %470 = arith.addf %467, %469 : vector<1x64xf32>
    %c0_38 = arith.constant 0 : index
    %c0_39 = arith.constant 0 : index
    %471 = vector.load %arg17[%c0_38, %c0_39] : memref<16x64xf32, #tpu.memory_space<vmem>>, vector<16x64xf32>
    %cst_40 = arith.constant dense<0.000000e+00> : vector<1x64xf32>
    %472 = tpu.matmul %465, %471, %cst_40 {dimension_numbers = #tpu.dot_dimension_numbers<[1], [0], [0], [1], [0, 0, 1, 1], [], []>} : vector<1x16xf32>, vector<16x64xf32>, vector<1x64xf32> -> vector<1x64xf32>
    %c0_41 = arith.constant 0 : index
    %c0_42 = arith.constant 0 : index
    %473 = vector.load %arg18[%c0_41, %c0_42] : memref<1x64xf32, #tpu.memory_space<vmem>>, vector<1x64xf32>
    %474 = arith.addf %472, %473 : vector<1x64xf32>
    %475 = tpu.concatenate %463, %470, %474 in 0 : vector<1x64xf32>, vector<1x64xf32>, vector<1x64xf32> -> vector<3x64xf32>
    %476 = vector.extract_strided_slice %475 {offsets = [0, 54], sizes = [3, 10], strides = [1, 1]} : vector<3x64xf32> to vector<3x10xf32>
    %477 = vector.extract_strided_slice %475 {offsets = [0, 0], sizes = [3, 10], strides = [1, 1]} : vector<3x64xf32> to vector<3x10xf32>
    %478 = tpu.concatenate %476, %475, %477 in 1 : vector<3x10xf32>, vector<3x64xf32>, vector<3x10xf32> -> vector<3x84xf32>
    %479 = vector.extract_strided_slice %478 {offsets = [0, 0], sizes = [3, 64], strides = [1, 1]} : vector<3x84xf32> to vector<3x64xf32>
    %480 = vector.extract_strided_slice %478 {offsets = [0, 1], sizes = [3, 64], strides = [1, 1]} : vector<3x84xf32> to vector<3x64xf32>
    %481 = vector.extract_strided_slice %478 {offsets = [0, 2], sizes = [3, 64], strides = [1, 1]} : vector<3x84xf32> to vector<3x64xf32>
    %482 = vector.extract_strided_slice %478 {offsets = [0, 3], sizes = [3, 64], strides = [1, 1]} : vector<3x84xf32> to vector<3x64xf32>
    %483 = vector.extract_strided_slice %478 {offsets = [0, 4], sizes = [3, 64], strides = [1, 1]} : vector<3x84xf32> to vector<3x64xf32>
    %484 = vector.extract_strided_slice %478 {offsets = [0, 5], sizes = [3, 64], strides = [1, 1]} : vector<3x84xf32> to vector<3x64xf32>
    %485 = vector.extract_strided_slice %478 {offsets = [0, 6], sizes = [3, 64], strides = [1, 1]} : vector<3x84xf32> to vector<3x64xf32>
    %486 = vector.extract_strided_slice %478 {offsets = [0, 7], sizes = [3, 64], strides = [1, 1]} : vector<3x84xf32> to vector<3x64xf32>
    %487 = vector.extract_strided_slice %478 {offsets = [0, 8], sizes = [3, 64], strides = [1, 1]} : vector<3x84xf32> to vector<3x64xf32>
    %488 = vector.extract_strided_slice %478 {offsets = [0, 9], sizes = [3, 64], strides = [1, 1]} : vector<3x84xf32> to vector<3x64xf32>
    %489 = vector.extract_strided_slice %478 {offsets = [0, 10], sizes = [3, 64], strides = [1, 1]} : vector<3x84xf32> to vector<3x64xf32>
    %490 = vector.extract_strided_slice %478 {offsets = [0, 11], sizes = [3, 64], strides = [1, 1]} : vector<3x84xf32> to vector<3x64xf32>
    %491 = vector.extract_strided_slice %478 {offsets = [0, 12], sizes = [3, 64], strides = [1, 1]} : vector<3x84xf32> to vector<3x64xf32>
    %492 = vector.extract_strided_slice %478 {offsets = [0, 13], sizes = [3, 64], strides = [1, 1]} : vector<3x84xf32> to vector<3x64xf32>
    %493 = vector.extract_strided_slice %478 {offsets = [0, 14], sizes = [3, 64], strides = [1, 1]} : vector<3x84xf32> to vector<3x64xf32>
    %494 = vector.extract_strided_slice %478 {offsets = [0, 15], sizes = [3, 64], strides = [1, 1]} : vector<3x84xf32> to vector<3x64xf32>
    %495 = vector.extract_strided_slice %478 {offsets = [0, 16], sizes = [3, 64], strides = [1, 1]} : vector<3x84xf32> to vector<3x64xf32>
    %496 = vector.extract_strided_slice %478 {offsets = [0, 17], sizes = [3, 64], strides = [1, 1]} : vector<3x84xf32> to vector<3x64xf32>
    %497 = vector.extract_strided_slice %478 {offsets = [0, 18], sizes = [3, 64], strides = [1, 1]} : vector<3x84xf32> to vector<3x64xf32>
    %498 = vector.extract_strided_slice %478 {offsets = [0, 19], sizes = [3, 64], strides = [1, 1]} : vector<3x84xf32> to vector<3x64xf32>
    %499 = vector.extract_strided_slice %478 {offsets = [0, 20], sizes = [3, 64], strides = [1, 1]} : vector<3x84xf32> to vector<3x64xf32>
    %500 = tpu.concatenate %479, %480, %481, %482, %483, %484, %485, %486, %487, %488, %489, %490, %491, %492, %493, %494 in 0 : vector<3x64xf32>, vector<3x64xf32>, vector<3x64xf32>, vector<3x64xf32>, vector<3x64xf32>, vector<3x64xf32>, vector<3x64xf32>, vector<3x64xf32>, vector<3x64xf32>, vector<3x64xf32>, vector<3x64xf32>, vector<3x64xf32>, vector<3x64xf32>, vector<3x64xf32>, vector<3x64xf32>, vector<3x64xf32> -> vector<48x64xf32>
    %501 = tpu.concatenate %495, %496, %497, %498, %499 in 0 : vector<3x64xf32>, vector<3x64xf32>, vector<3x64xf32>, vector<3x64xf32>, vector<3x64xf32> -> vector<15x64xf32>
    %502 = tpu.concatenate %500, %501 in 0 : vector<48x64xf32>, vector<15x64xf32> -> vector<63x64xf32>
    %c0_43 = arith.constant 0 : index
    %c0_44 = arith.constant 0 : index
    %503 = vector.load %arg12[%c0_43, %c0_44] : memref<1x63xf32, #tpu.memory_space<vmem>>, vector<1x63xf32>
    %cst_45 = arith.constant dense<0.000000e+00> : vector<1x64xf32>
    %504 = tpu.matmul %503, %502, %cst_45 {dimension_numbers = #tpu.dot_dimension_numbers<[1], [0], [0], [1], [0, 0, 1, 1], [], []>} : vector<1x63xf32>, vector<63x64xf32>, vector<1x64xf32> -> vector<1x64xf32>
    %c0_46 = arith.constant 0 : index
    %c0_47 = arith.constant 0 : index
    %505 = vector.load %arg13[%c0_46, %c0_47] : memref<1x1xf32, #tpu.memory_space<vmem>>, vector<1x1xf32>
    %506 = vector.broadcast %505 : vector<1x1xf32> to vector<1x64xf32>
    %507 = arith.addf %504, %506 : vector<1x64xf32>
    %c0_48 = arith.constant 0 : index
    %c0_49 = arith.constant 0 : index
    %c0_50 = arith.constant 0 : index
    %508 = vector.load %arg21[%c0_48, %c0_49, %c0_50] : memref<1x1x64xf32, #tpu.memory_space<vmem>>, vector<1x1x64xf32>
    %509 = vector.shape_cast %508 : vector<1x1x64xf32> to vector<1x64xf32>
    %510 = vector.shape_cast %507 : vector<1x64xf32> to vector<1x1x64xf32>
    tpu.vector_store %arg21[%c0_48, %c0_49, %c0_50], %510 {strides = array<i32>} : memref<1x1x64xf32, #tpu.memory_space<vmem>>, vector<1x1x64xf32>,
    return
  }
  func.func @transform_0(%arg0: i32) -> (i32, i32, i32) {
    %c0_i32 = arith.constant 0 : i32
    %c0_i32_0 = arith.constant 0 : i32
    %c0_i32_1 = arith.constant 0 : i32
    return %arg0, %c0_i32, %c0_i32_0 : i32, i32, i32
  }
  func.func @transform_1(%arg0: i32) -> (i32, i32) {
    %c0_i32 = arith.constant 0 : i32
    %c0_i32_0 = arith.constant 0 : i32
    %c0_i32_1 = arith.constant 0 : i32
    return %c0_i32, %c0_i32_0 : i32, i32
  }
  func.func @transform_2(%arg0: i32) -> (i32, i32) {
    %c0_i32 = arith.constant 0 : i32
    %c0_i32_0 = arith.constant 0 : i32
    %c0_i32_1 = arith.constant 0 : i32
    return %c0_i32, %c0_i32_0 : i32, i32
  }
  func.func @transform_3(%arg0: i32) -> (i32, i32) {
    %c0_i32 = arith.constant 0 : i32
    %c0_i32_0 = arith.constant 0 : i32
    %c0_i32_1 = arith.constant 0 : i32
    return %c0_i32, %c0_i32_0 : i32, i32
  }
  func.func @transform_4(%arg0: i32) -> (i32, i32) {
    %c0_i32 = arith.constant 0 : i32
    %c0_i32_0 = arith.constant 0 : i32
    %c0_i32_1 = arith.constant 0 : i32
    return %c0_i32, %c0_i32_0 : i32, i32
  }
  func.func @transform_5(%arg0: i32) -> (i32, i32) {
    %c0_i32 = arith.constant 0 : i32
    %c0_i32_0 = arith.constant 0 : i32
    %c0_i32_1 = arith.constant 0 : i32
    return %c0_i32, %c0_i32_0 : i32, i32
  }
  func.func @transform_6(%arg0: i32) -> (i32, i32) {
    %c0_i32 = arith.constant 0 : i32
    %c0_i32_0 = arith.constant 0 : i32
    %c0_i32_1 = arith.constant 0 : i32
    return %c0_i32, %c0_i32_0 : i32, i32
  }
  func.func @transform_7(%arg0: i32) -> (i32, i32) {
    %c0_i32 = arith.constant 0 : i32
    %c0_i32_0 = arith.constant 0 : i32
    %c0_i32_1 = arith.constant 0 : i32
    return %c0_i32, %c0_i32_0 : i32, i32
  }
  func.func @transform_8(%arg0: i32) -> (i32, i32) {
    %c0_i32 = arith.constant 0 : i32
    %c0_i32_0 = arith.constant 0 : i32
    %c0_i32_1 = arith.constant 0 : i32
    return %c0_i32, %c0_i32_0 : i32, i32
  }
  func.func @transform_9(%arg0: i32) -> (i32, i32) {
    %c0_i32 = arith.constant 0 : i32
    %c0_i32_0 = arith.constant 0 : i32
    %c0_i32_1 = arith.constant 0 : i32
    return %c0_i32, %c0_i32_0 : i32, i32
  }
  func.func @transform_10(%arg0: i32) -> (i32, i32) {
    %c0_i32 = arith.constant 0 : i32
    %c0_i32_0 = arith.constant 0 : i32
    %c0_i32_1 = arith.constant 0 : i32
    return %c0_i32, %c0_i32_0 : i32, i32
  }
  func.func @transform_11(%arg0: i32) -> (i32, i32) {
    %c0_i32 = arith.constant 0 : i32
    %c0_i32_0 = arith.constant 0 : i32
    %c0_i32_1 = arith.constant 0 : i32
    return %c0_i32, %c0_i32_0 : i32, i32
  }
  func.func @transform_12(%arg0: i32) -> (i32, i32) {
    %c0_i32 = arith.constant 0 : i32
    %c0_i32_0 = arith.constant 0 : i32
    %c0_i32_1 = arith.constant 0 : i32
    return %c0_i32, %c0_i32_0 : i32, i32
  }
  func.func @transform_13(%arg0: i32) -> (i32, i32) {
    %c0_i32 = arith.constant 0 : i32
    %c0_i32_0 = arith.constant 0 : i32
    %c0_i32_1 = arith.constant 0 : i32
    return %c0_i32, %c0_i32_0 : i32, i32
  }
  func.func @transform_14(%arg0: i32) -> (i32, i32) {
    %c0_i32 = arith.constant 0 : i32
    %c0_i32_0 = arith.constant 0 : i32
    %c0_i32_1 = arith.constant 0 : i32
    return %c0_i32, %c0_i32_0 : i32, i32
  }
  func.func @transform_15(%arg0: i32) -> (i32, i32) {
    %c0_i32 = arith.constant 0 : i32
    %c0_i32_0 = arith.constant 0 : i32
    %c0_i32_1 = arith.constant 0 : i32
    return %c0_i32, %c0_i32_0 : i32, i32
  }
  func.func @transform_16(%arg0: i32) -> (i32, i32) {
    %c0_i32 = arith.constant 0 : i32
    %c0_i32_0 = arith.constant 0 : i32
    %c0_i32_1 = arith.constant 0 : i32
    return %c0_i32, %c0_i32_0 : i32, i32
  }
  func.func @transform_17(%arg0: i32) -> (i32, i32) {
    %c0_i32 = arith.constant 0 : i32
    %c0_i32_0 = arith.constant 0 : i32
    %c0_i32_1 = arith.constant 0 : i32
    return %c0_i32, %c0_i32_0 : i32, i32
  }
  func.func @transform_18(%arg0: i32) -> i32 {
    %c0_i32 = arith.constant 0 : i32
    %c0_i32_0 = arith.constant 0 : i32
    return %c0_i32 : i32
  }
  func.func @transform_19(%arg0: i32) -> i32 {
    %c0_i32 = arith.constant 0 : i32
    %c0_i32_0 = arith.constant 0 : i32
    return %c0_i32 : i32
  }
  func.func @transform_20(%arg0: i32) -> (i32, i32, i32) {
    %c0_i32 = arith.constant 0 : i32
    %c0_i32_0 = arith.constant 0 : i32
    %c0_i32_1 = arith.constant 0 : i32
    return %arg0, %c0_i32, %c0_i32_0 : i32, i32, i32
  }
}

</mosaic_0001>

<llo_original>
// kernel: tpu_custom_call.1
$region0: #{tpu_custom_call.1}
  #allocation0 [shape = 'u32[]', space=smem, size = 0x4, offset = 0x4, fixed_abs, tag = 'smem constant byte address 0x4 - core index']
  #allocation1 [shape = 'u32[144,128]{1,0:T(1,128)}', space=vmem, size = 0x12000, scoped, tag = 'internal scratch']
  #allocation2 [shape = 'f32[1,1]{1,0:T(1,128)S(1)}', space=vmem, size = 0x200, scoped, tag = 'scoped memory for tpu_custom_call.1']
  #allocation3 [shape = 'f32[1,1]{1,0:T(1,128)S(1)}', space=vmem, size = 0x200, scoped, tag = 'scoped memory for tpu_custom_call.1']
  #allocation4 [shape = 'f32[1]{0:T(128)S(6)}', space=smem, size = 0x200, scoped, tag = 'scoped memory for tpu_custom_call.1']
  #allocation5 [shape = 'f32[1]{0:T(128)S(6)}', space=smem, size = 0x200, scoped, tag = 'scoped memory for tpu_custom_call.1']
  %s0 = inlined_call_operand.hbm [shape: f32[2,1,64], index: 0, kind: input, shape index: {}]
  %s1 = inlined_call_operand.hbm [shape: f32[24,21], index: 1, kind: input, shape index: {}]
  %s2 = inlined_call_operand.vmem [shape: f32[24,1], index: 2, kind: input, shape index: {}]
  %s3 = inlined_call_operand.vmem [shape: f32[24,504], index: 3, kind: input, shape index: {}]
  %s4 = inlined_call_operand.vmem [shape: f32[24,1], index: 4, kind: input, shape index: {}]
  %s5 = inlined_call_operand.vmem [shape: f32[24,504], index: 5, kind: input, shape index: {}]
  %s6 = inlined_call_operand.vmem [shape: f32[24,1], index: 6, kind: input, shape index: {}]
  %s7 = inlined_call_operand.hbm [shape: f32[24,504], index: 7, kind: input, shape index: {}]
  %s8 = inlined_call_operand.vmem [shape: f32[24,1], index: 8, kind: input, shape index: {}]
  %s9 = inlined_call_operand.hbm [shape: f32[1,504], index: 9, kind: input, shape index: {}]
  %s10 = inlined_call_operand.<no memory space> [shape: f32[1,1], index: 10, kind: input, shape index: {}]
  %s11 = inlined_call_operand.hbm [shape: f32[1,63], index: 11, kind: input, shape index: {}]
  %s12 = inlined_call_operand.<no memory space> [shape: f32[1,1], index: 12, kind: input, shape index: {}]
  %s13 = inlined_call_operand.vmem [shape: f32[64,32], index: 13, kind: input, shape index: {}]
  %s14 = inlined_call_operand.vmem [shape: f32[32,16], index: 14, kind: input, shape index: {}]
  %s15 = inlined_call_operand.vmem [shape: f32[32,64], index: 15, kind: input, shape index: {}]
  %s16 = inlined_call_operand.hbm [shape: f32[16,64], index: 16, kind: input, shape index: {}]
  %s17 = inlined_call_operand.vmem [shape: f32[1,64], index: 17, kind: input, shape index: {}]
  %s18 = inlined_call_operand.<no memory space> [shape: f32[1], index: 18, kind: input, shape index: {}]
  %s19 = inlined_call_operand.<no memory space> [shape: f32[1], index: 19, kind: input, shape index: {}]
  %s20 = inlined_call_operand.hbm [shape: f32[2,1,64], index: 20, kind: output, shape index: {}]
  %s21 = sld [smem:[#allocation0]]
  $region137: #{tpu_custom_call.1} parent=0
    _
  %s23 = ssub.s32 1, %s21
  %s24 = scalar_select 0, %s23, %s21
  %v25 = vstv %s10
  %26 = vst [vmem:[#allocation2] sm:$0x1] %v25
  %v27 = vstv %s12
  %28 = vst [vmem:[#allocation3] sm:$0x1] %v27
  %29 = sst [smem:[#allocation4]] %s18
  %30 = sst [smem:[#allocation5]] %s19
  $region1: #{tpu_custom_call.1} parent=0
    #allocation6 [shape = 'u8[1024]{0}', space=vmem, size = 0x400, scoped, tag = 'input window, operand 0']
    #allocation7 [shape = 's32[2]{0}', space=sflag, size = 0x8, scoped, tag = 'scoped memory for tpu_custom_call.1']
    #allocation8 [shape = 's32[2]{0}', space=sflag, size = 0x8, scoped, tag = 'scoped memory for tpu_custom_call.1']
    #allocation9 [shape = 'u8[12288]{0}', space=vmem, size = 0x3000, scoped, tag = 'input window, operand 1, single buffered']
    #allocation10 [shape = 's32[1]{0}', space=sflag, size = 0x4, scoped, tag = 'scoped memory for tpu_custom_call.1']
    #allocation11 [shape = 'u8[49152]{0}', space=vmem, size = 0xc000, scoped, tag = 'input window, operand 7, single buffered']
    #allocation12 [shape = 'u8[2048]{0}', space=vmem, size = 0x800, scoped, tag = 'input window, operand 9, single buffered']
    #allocation13 [shape = 's32[1]{0}', space=sflag, size = 0x4, scoped, tag = 'scoped memory for tpu_custom_call.1']
    #allocation14 [shape = 'u8[512]{0}', space=vmem, size = 0x400, scoped, tag = 'input window, operand 11, single buffered']
    #allocation15 [shape = 'u8[8192]{0}', space=vmem, size = 0x2000, scoped, tag = 'input window, operand 16, single buffered']
    #allocation16 [shape = 's32[1]{0}', space=sflag, size = 0x4, scoped, tag = 'scoped memory for tpu_custom_call.1']
    #allocation17 [shape = 'u8[1024]{0}', space=vmem, size = 0x400, scoped, tag = 'output window, operand 0']
    %31 = vsyncpa [#allocation7], 0
    %s32 = scalar_lea.sflag [#allocation7], 1
    %33 = vsyncpa %s32, 0
    %34 = vsyncpa [#allocation10], 0
    %35 = vsyncpa [#allocation13], 0
    %36 = vsyncpa [#allocation16], 0
    %37 = vsyncpa [#allocation8], 0
    %s38 = scalar_lea.sflag [#allocation8], 1
    %39 = vsyncpa %s38, 0
    loop: start=0, step=1, limit=4
    $region2: #{tpu_custom_call.1} parent=1 // loop_pre_header
      _
    $region3: #{tpu_custom_call.1} parent=1 // loop_header
      %s41 = sphi 0, %s45
      %p42 = scmp.ge.s32.totalorder %s41, 4
      %s51 = sphi 0, %s53
      %s54 = sphi 0, %s51
      %s55 = sphi 0, %s54
      %s71 = sphi 0, %s55
      %s75 = sphi 0, %s75
      %s77 = sphi 0, %s75
      %s78 = sphi 0, %s77
      %s92 = sphi 0, %s78
      %s96 = sphi 0, %s96
      %s98 = sphi 0, %s96
      %s99 = sphi 0, %s98
      %s113 = sphi 0, %s99
      %s117 = sphi 0, %s117
      %s119 = sphi 0, %s117
      %s120 = sphi 0, %s119
      %s134 = sphi 0, %s120
      %s138 = sphi 0, %s138
      %s140 = sphi 0, %s138
      %s141 = sphi 0, %s140
      %s155 = sphi 0, %s141
      %s159 = sphi 0, %s159
      %s161 = sphi 0, %s159
      %s162 = sphi 0, %s161
      %s176 = sphi 0, %s162
      %s180 = sphi 0, %s180
      %s182 = sphi 0, %s180
      %s183 = sphi 0, %s182
      %s197 = sphi 0, %s183
      %s201 = sphi 0, %s201
      %s203 = sphi 0, %s201
      %s204 = sphi 0, %s203
      %s218 = sphi 0, %s204
      %s222 = sphi 0, %s222
      %s224 = sphi 0, %s222
      %s225 = sphi 0, %s224
      %s239 = sphi 0, %s225
      %s243 = sphi 0, %s243
      %s245 = sphi 0, %s243
      %s246 = sphi 0, %s245
      %s260 = sphi 0, %s246
      %s264 = sphi 0, %s264
      %s266 = sphi 0, %s264
      %s267 = sphi 0, %s266
      %s281 = sphi 0, %s267
      %s285 = sphi 0, %s285
      %s287 = sphi 0, %s285
      %s288 = sphi 0, %s287
      %s302 = sphi 0, %s288
      %s306 = sphi 0, %s306
      %s308 = sphi 0, %s306
      %s309 = sphi 0, %s308
      %s323 = sphi 0, %s309
      %s327 = sphi 0, %s327
      %s329 = sphi 0, %s327
      %s330 = sphi 0, %s329
      %s344 = sphi 0, %s330
      %s348 = sphi 0, %s348
      %s350 = sphi 0, %s348
      %s351 = sphi 0, %s350
      %s365 = sphi 0, %s351
      %s369 = sphi 0, %s369
      %s371 = sphi 0, %s369
      %s372 = sphi 0, %s371
      %s386 = sphi 0, %s372
      %s390 = sphi 0, %s390
      %s392 = sphi 0, %s390
      %s393 = sphi 0, %s392
      %s407 = sphi 0, %s393
      %s411 = sphi 0, %s411
      %s413 = sphi 0, %s411
      %s414 = sphi 0, %s413
      %s428 = sphi 0, %s414
      %s432 = sphi 0, %s432
      %s434 = sphi 0, %s432
      %s435 = sphi 0, %s434
      %s449 = sphi 0, %s435
      %s453 = sphi 0, %s453
      %s455 = sphi 0, %s453
      %s456 = sphi 0, %s455
      %s470 = sphi 0, %s456
      %s476 = sphi 0, %s478
      %s479 = sphi 0, %s476
      %s480 = sphi 0, %s479
      %s496 = sphi 0, %s480
    $region4: #{tpu_custom_call.1} parent=1 // loop_header_branch
      %44 = sbr.rel (%p42) target = $region8
    $region5: #{tpu_custom_call.1} parent=1 // loop_body
      %s46 = ssub.s32 %s41, 1
      %s47 = ssub.s32 %s41, 2
      %s48 = sadd.s32 %s41, 1
      %s49 = ssub.s32 %s41, %s48
      %p50 = scmp.eq.s32.totalorder %s49, 0
      %s52 = sadd.s32 %s51, 1
      %s53 = scalar_select %p50, %s51, %s52
      %p56 = pneg %p50
      %p57 = scmp.eq.s32.totalorder %s41, 1
      %p58 = por %p56, %p57
      %p59 = scmp.ne.s32.totalorder %s51, %s54
      %p60 = scmp.eq.s32.totalorder %s41, 0
      %p61 = por %p59, %p60
      %p62 = scmp.ne.s32.totalorder %s51, %s54
      %p63 = scmp.eq.s32.totalorder %s46, 1
      %p64 = por %p62, %p63
      %p65 = scmp.ne.s32.totalorder %s54, %s55
      %p66 = scmp.eq.s32.totalorder %s46, 0
      %p67 = por %p65, %p66
      %p68 = scmp.ne.s32.totalorder %s54, %s55
      %p69 = scmp.eq.s32.totalorder %s47, 1
      %p70 = por %p68, %p69
      %p72 = scmp.ne.s32.totalorder %s55, %s71
      %p73 = scmp.eq.s32.totalorder %s47, 0
      %p74 = por %p72, %p73
      %s76 = sadd.s32 %s75, 1
      %p79 = scmp.eq.s32.totalorder %s41, 1
      %p80 = scmp.ne.s32.totalorder %s75, %s77
      %p81 = scmp.eq.s32.totalorder %s41, 0
      %p82 = por %p80, %p81
      %p83 = scmp.ne.s32.totalorder %s75, %s77
      %p84 = scmp.eq.s32.totalorder %s46, 1
      %p85 = por %p83, %p84
      %p86 = scmp.ne.s32.totalorder %s77, %s78
      %p87 = scmp.eq.s32.totalorder %s46, 0
      %p88 = por %p86, %p87
      %p89 = scmp.ne.s32.totalorder %s77, %s78
      %p90 = scmp.eq.s32.totalorder %s47, 1
      %p91 = por %p89, %p90
      %p93 = scmp.ne.s32.totalorder %s78, %s92
      %p94 = scmp.eq.s32.totalorder %s47, 0
      %p95 = por %p93, %p94
      %s97 = sadd.s32 %s96, 1
      %p100 = scmp.eq.s32.totalorder %s41, 1
      %p101 = scmp.ne.s32.totalorder %s96, %s98
      %p102 = scmp.eq.s32.totalorder %s41, 0
      %p103 = por %p101, %p102
      %p104 = scmp.ne.s32.totalorder %s96, %s98
      %p105 = scmp.eq.s32.totalorder %s46, 1
      %p106 = por %p104, %p105
      %p107 = scmp.ne.s32.totalorder %s98, %s99
      %p108 = scmp.eq.s32.totalorder %s46, 0
      %p109 = por %p107, %p108
      %p110 = scmp.ne.s32.totalorder %s98, %s99
      %p111 = scmp.eq.s32.totalorder %s47, 1
      %p112 = por %p110, %p111
      %p114 = scmp.ne.s32.totalorder %s99, %s113
      %p115 = scmp.eq.s32.totalorder %s47, 0
      %p116 = por %p114, %p115
      %s118 = sadd.s32 %s117, 1
      %p121 = scmp.eq.s32.totalorder %s41, 1
      %p122 = scmp.ne.s32.totalorder %s117, %s119
      %p123 = scmp.eq.s32.totalorder %s41, 0
      %p124 = por %p122, %p123
      %p125 = scmp.ne.s32.totalorder %s117, %s119
      %p126 = scmp.eq.s32.totalorder %s46, 1
      %p127 = por %p125, %p126
      %p128 = scmp.ne.s32.totalorder %s119, %s120
      %p129 = scmp.eq.s32.totalorder %s46, 0
      %p130 = por %p128, %p129
      %p131 = scmp.ne.s32.totalorder %s119, %s120
      %p132 = scmp.eq.s32.totalorder %s47, 1
      %p133 = por %p131, %p132
      %p135 = scmp.ne.s32.totalorder %s120, %s134
      %p136 = scmp.eq.s32.totalorder %s47, 0
      %p137 = por %p135, %p136
      %s139 = sadd.s32 %s138, 1
      %p142 = scmp.eq.s32.totalorder %s41, 1
      %p143 = scmp.ne.s32.totalorder %s138, %s140
      %p144 = scmp.eq.s32.totalorder %s41, 0
      %p145 = por %p143, %p144
      %p146 = scmp.ne.s32.totalorder %s138, %s140
      %p147 = scmp.eq.s32.totalorder %s46, 1
      %p148 = por %p146, %p147
      %p149 = scmp.ne.s32.totalorder %s140, %s141
      %p150 = scmp.eq.s32.totalorder %s46, 0
      %p151 = por %p149, %p150
      %p152 = scmp.ne.s32.totalorder %s140, %s141
      %p153 = scmp.eq.s32.totalorder %s47, 1
      %p154 = por %p152, %p153
      %p156 = scmp.ne.s32.totalorder %s141, %s155
      %p157 = scmp.eq.s32.totalorder %s47, 0
      %p158 = por %p156, %p157
      %s160 = sadd.s32 %s159, 1
      %p163 = scmp.eq.s32.totalorder %s41, 1
      %p164 = scmp.ne.s32.totalorder %s159, %s161
      %p165 = scmp.eq.s32.totalorder %s41, 0
      %p166 = por %p164, %p165
      %p167 = scmp.ne.s32.totalorder %s159, %s161
      %p168 = scmp.eq.s32.totalorder %s46, 1
      %p169 = por %p167, %p168
      %p170 = scmp.ne.s32.totalorder %s161, %s162
      %p171 = scmp.eq.s32.totalorder %s46, 0
      %p172 = por %p170, %p171
      %p173 = scmp.ne.s32.totalorder %s161, %s162
      %p174 = scmp.eq.s32.totalorder %s47, 1
      %p175 = por %p173, %p174
      %p177 = scmp.ne.s32.totalorder %s162, %s176
      %p178 = scmp.eq.s32.totalorder %s47, 0
      %p179 = por %p177, %p178
      %s181 = sadd.s32 %s180, 1
      %p184 = scmp.eq.s32.totalorder %s41, 1
      %p185 = scmp.ne.s32.totalorder %s180, %s182
      %p186 = scmp.eq.s32.totalorder %s41, 0
      %p187 = por %p185, %p186
      %p188 = scmp.ne.s32.totalorder %s180, %s182
      %p189 = scmp.eq.s32.totalorder %s46, 1
      %p190 = por %p188, %p189
      %p191 = scmp.ne.s32.totalorder %s182, %s183
      %p192 = scmp.eq.s32.totalorder %s46, 0
      %p193 = por %p191, %p192
      %p194 = scmp.ne.s32.totalorder %s182, %s183
      %p195 = scmp.eq.s32.totalorder %s47, 1
      %p196 = por %p194, %p195
      %p198 = scmp.ne.s32.totalorder %s183, %s197
      %p199 = scmp.eq.s32.totalorder %s47, 0
      %p200 = por %p198, %p199
      %s202 = sadd.s32 %s201, 1
      %p205 = scmp.eq.s32.totalorder %s41, 1
      %p206 = scmp.ne.s32.totalorder %s201, %s203
      %p207 = scmp.eq.s32.totalorder %s41, 0
      %p208 = por %p206, %p207
      %p209 = scmp.ne.s32.totalorder %s201, %s203
      %p210 = scmp.eq.s32.totalorder %s46, 1
      %p211 = por %p209, %p210
      %p212 = scmp.ne.s32.totalorder %s203, %s204
      %p213 = scmp.eq.s32.totalorder %s46, 0
      %p214 = por %p212, %p213
      %p215 = scmp.ne.s32.totalorder %s203, %s204
      %p216 = scmp.eq.s32.totalorder %s47, 1
      %p217 = por %p215, %p216
      %p219 = scmp.ne.s32.totalorder %s204, %s218
      %p220 = scmp.eq.s32.totalorder %s47, 0
      %p221 = por %p219, %p220
      %s223 = sadd.s32 %s222, 1
      %p226 = scmp.eq.s32.totalorder %s41, 1
      %p227 = scmp.ne.s32.totalorder %s222, %s224
      %p228 = scmp.eq.s32.totalorder %s41, 0
      %p229 = por %p227, %p228
      %p230 = scmp.ne.s32.totalorder %s222, %s224
      %p231 = scmp.eq.s32.totalorder %s46, 1
      %p232 = por %p230, %p231
      %p233 = scmp.ne.s32.totalorder %s224, %s225
      %p234 = scmp.eq.s32.totalorder %s46, 0
      %p235 = por %p233, %p234
      %p236 = scmp.ne.s32.totalorder %s224, %s225
      %p237 = scmp.eq.s32.totalorder %s47, 1
      %p238 = por %p236, %p237
      %p240 = scmp.ne.s32.totalorder %s225, %s239
      %p241 = scmp.eq.s32.totalorder %s47, 0
      %p242 = por %p240, %p241
      %s244 = sadd.s32 %s243, 1
      %p247 = scmp.eq.s32.totalorder %s41, 1
      %p248 = scmp.ne.s32.totalorder %s243, %s245
      %p249 = scmp.eq.s32.totalorder %s41, 0
      %p250 = por %p248, %p249
      %p251 = scmp.ne.s32.totalorder %s243, %s245
      %p252 = scmp.eq.s32.totalorder %s46, 1
      %p253 = por %p251, %p252
      %p254 = scmp.ne.s32.totalorder %s245, %s246
      %p255 = scmp.eq.s32.totalorder %s46, 0
      %p256 = por %p254, %p255
      %p257 = scmp.ne.s32.totalorder %s245, %s246
      %p258 = scmp.eq.s32.totalorder %s47, 1
      %p259 = por %p257, %p258
      %p261 = scmp.ne.s32.totalorder %s246, %s260
      %p262 = scmp.eq.s32.totalorder %s47, 0
      %p263 = por %p261, %p262
      %s265 = sadd.s32 %s264, 1
      %p268 = scmp.eq.s32.totalorder %s41, 1
      %p269 = scmp.ne.s32.totalorder %s264, %s266
      %p270 = scmp.eq.s32.totalorder %s41, 0
      %p271 = por %p269, %p270
      %p272 = scmp.ne.s32.totalorder %s264, %s266
      %p273 = scmp.eq.s32.totalorder %s46, 1
      %p274 = por %p272, %p273
      %p275 = scmp.ne.s32.totalorder %s266, %s267
      %p276 = scmp.eq.s32.totalorder %s46, 0
      %p277 = por %p275, %p276
      %p278 = scmp.ne.s32.totalorder %s266, %s267
      %p279 = scmp.eq.s32.totalorder %s47, 1
      %p280 = por %p278, %p279
      %p282 = scmp.ne.s32.totalorder %s267, %s281
      %p283 = scmp.eq.s32.totalorder %s47, 0
      %p284 = por %p282, %p283
      %s286 = sadd.s32 %s285, 1
      %p289 = scmp.eq.s32.totalorder %s41, 1
      %p290 = scmp.ne.s32.totalorder %s285, %s287
      %p291 = scmp.eq.s32.totalorder %s41, 0
      %p292 = por %p290, %p291
      %p293 = scmp.ne.s32.totalorder %s285, %s287
      %p294 = scmp.eq.s32.totalorder %s46, 1
      %p295 = por %p293, %p294
      %p296 = scmp.ne.s32.totalorder %s287, %s288
      %p297 = scmp.eq.s32.totalorder %s46, 0
      %p298 = por %p296, %p297
      %p299 = scmp.ne.s32.totalorder %s287, %s288
      %p300 = scmp.eq.s32.totalorder %s47, 1
      %p301 = por %p299, %p300
      %p303 = scmp.ne.s32.totalorder %s288, %s302
      %p304 = scmp.eq.s32.totalorder %s47, 0
      %p305 = por %p303, %p304
      %s307 = sadd.s32 %s306, 1
      %p310 = scmp.eq.s32.totalorder %s41, 1
      %p311 = scmp.ne.s32.totalorder %s306, %s308
      %p312 = scmp.eq.s32.totalorder %s41, 0
      %p313 = por %p311, %p312
      %p314 = scmp.ne.s32.totalorder %s306, %s308
      %p315 = scmp.eq.s32.totalorder %s46, 1
      %p316 = por %p314, %p315
      %p317 = scmp.ne.s32.totalorder %s308, %s309
      %p318 = scmp.eq.s32.totalorder %s46, 0
      %p319 = por %p317, %p318
      %p320 = scmp.ne.s32.totalorder %s308, %s309
      %p321 = scmp.eq.s32.totalorder %s47, 1
      %p322 = por %p320, %p321
      %p324 = scmp.ne.s32.totalorder %s309, %s323
      %p325 = scmp.eq.s32.totalorder %s47, 0
      %p326 = por %p324, %p325
      %s328 = sadd.s32 %s327, 1
      %p331 = scmp.eq.s32.totalorder %s41, 1
      %p332 = scmp.ne.s32.totalorder %s327, %s329
      %p333 = scmp.eq.s32.totalorder %s41, 0
      %p334 = por %p332, %p333
      %p335 = scmp.ne.s32.totalorder %s327, %s329
      %p336 = scmp.eq.s32.totalorder %s46, 1
      %p337 = por %p335, %p336
      %p338 = scmp.ne.s32.totalorder %s329, %s330
      %p339 = scmp.eq.s32.totalorder %s46, 0
      %p340 = por %p338, %p339
      %p341 = scmp.ne.s32.totalorder %s329, %s330
      %p342 = scmp.eq.s32.totalorder %s47, 1
      %p343 = por %p341, %p342
      %p345 = scmp.ne.s32.totalorder %s330, %s344
      %p346 = scmp.eq.s32.totalorder %s47, 0
      %p347 = por %p345, %p346
      %s349 = sadd.s32 %s348, 1
      %p352 = scmp.eq.s32.totalorder %s41, 1
      %p353 = scmp.ne.s32.totalorder %s348, %s350
      %p354 = scmp.eq.s32.totalorder %s41, 0
      %p355 = por %p353, %p354
      %p356 = scmp.ne.s32.totalorder %s348, %s350
      %p357 = scmp.eq.s32.totalorder %s46, 1
      %p358 = por %p356, %p357
      %p359 = scmp.ne.s32.totalorder %s350, %s351
      %p360 = scmp.eq.s32.totalorder %s46, 0
      %p361 = por %p359, %p360
      %p362 = scmp.ne.s32.totalorder %s350, %s351
      %p363 = scmp.eq.s32.totalorder %s47, 1
      %p364 = por %p362, %p363
      %p366 = scmp.ne.s32.totalorder %s351, %s365
      %p367 = scmp.eq.s32.totalorder %s47, 0
      %p368 = por %p366, %p367
      %s370 = sadd.s32 %s369, 1
      %p373 = scmp.eq.s32.totalorder %s41, 1
      %p374 = scmp.ne.s32.totalorder %s369, %s371
      %p375 = scmp.eq.s32.totalorder %s41, 0
      %p376 = por %p374, %p375
      %p377 = scmp.ne.s32.totalorder %s369, %s371
      %p378 = scmp.eq.s32.totalorder %s46, 1
      %p379 = por %p377, %p378
      %p380 = scmp.ne.s32.totalorder %s371, %s372
      %p381 = scmp.eq.s32.totalorder %s46, 0
      %p382 = por %p380, %p381
      %p383 = scmp.ne.s32.totalorder %s371, %s372
      %p384 = scmp.eq.s32.totalorder %s47, 1
      %p385 = por %p383, %p384
      %p387 = scmp.ne.s32.totalorder %s372, %s386
      %p388 = scmp.eq.s32.totalorder %s47, 0
      %p389 = por %p387, %p388
      %s391 = sadd.s32 %s390, 1
      %p394 = scmp.eq.s32.totalorder %s41, 1
      %p395 = scmp.ne.s32.totalorder %s390, %s392
      %p396 = scmp.eq.s32.totalorder %s41, 0
      %p397 = por %p395, %p396
      %p398 = scmp.ne.s32.totalorder %s390, %s392
      %p399 = scmp.eq.s32.totalorder %s46, 1
      %p400 = por %p398, %p399
      %p401 = scmp.ne.s32.totalorder %s392, %s393
      %p402 = scmp.eq.s32.totalorder %s46, 0
      %p403 = por %p401, %p402
      %p404 = scmp.ne.s32.totalorder %s392, %s393
      %p405 = scmp.eq.s32.totalorder %s47, 1
      %p406 = por %p404, %p405
      %p408 = scmp.ne.s32.totalorder %s393, %s407
      %p409 = scmp.eq.s32.totalorder %s47, 0
      %p410 = por %p408, %p409
      %s412 = sadd.s32 %s411, 1
      %p415 = scmp.eq.s32.totalorder %s41, 1
      %p416 = scmp.ne.s32.totalorder %s411, %s413
      %p417 = scmp.eq.s32.totalorder %s41, 0
      %p418 = por %p416, %p417
      %p419 = scmp.ne.s32.totalorder %s411, %s413
      %p420 = scmp.eq.s32.totalorder %s46, 1
      %p421 = por %p419, %p420
      %p422 = scmp.ne.s32.totalorder %s413, %s414
      %p423 = scmp.eq.s32.totalorder %s46, 0
      %p424 = por %p422, %p423
      %p425 = scmp.ne.s32.totalorder %s413, %s414
      %p426 = scmp.eq.s32.totalorder %s47, 1
      %p427 = por %p425, %p426
      %p429 = scmp.ne.s32.totalorder %s414, %s428
      %p430 = scmp.eq.s32.totalorder %s47, 0
      %p431 = por %p429, %p430
      %s433 = sadd.s32 %s432, 1
      %p436 = scmp.eq.s32.totalorder %s41, 1
      %p437 = scmp.ne.s32.totalorder %s432, %s434
      %p438 = scmp.eq.s32.totalorder %s41, 0
      %p439 = por %p437, %p438
      %p440 = scmp.ne.s32.totalorder %s432, %s434
      %p441 = scmp.eq.s32.totalorder %s46, 1
      %p442 = por %p440, %p441
      %p443 = scmp.ne.s32.totalorder %s434, %s435
      %p444 = scmp.eq.s32.totalorder %s46, 0
      %p445 = por %p443, %p444
      %p446 = scmp.ne.s32.totalorder %s434, %s435
      %p447 = scmp.eq.s32.totalorder %s47, 1
      %p448 = por %p446, %p447
      %p450 = scmp.ne.s32.totalorder %s435, %s449
      %p451 = scmp.eq.s32.totalorder %s47, 0
      %p452 = por %p450, %p451
      %s454 = sadd.s32 %s453, 1
      %p457 = scmp.eq.s32.totalorder %s41, 1
      %p458 = scmp.ne.s32.totalorder %s453, %s455
      %p459 = scmp.eq.s32.totalorder %s41, 0
      %p460 = por %p458, %p459
      %p461 = scmp.ne.s32.totalorder %s453, %s455
      %p462 = scmp.eq.s32.totalorder %s46, 1
      %p463 = por %p461, %p462
      %p464 = scmp.ne.s32.totalorder %s455, %s456
      %p465 = scmp.eq.s32.totalorder %s46, 0
      %p466 = por %p464, %p465
      %p467 = scmp.ne.s32.totalorder %s455, %s456
      %p468 = scmp.eq.s32.totalorder %s47, 1
      %p469 = por %p467, %p468
      %p471 = scmp.ne.s32.totalorder %s456, %s470
      %p472 = scmp.eq.s32.totalorder %s47, 0
      %p473 = por %p471, %p472
      %s474 = ssub.s32 %s41, %s48
      %p475 = scmp.eq.s32.totalorder %s474, 0
      %s477 = sadd.s32 %s476, 1
      %s478 = scalar_select %p475, %s476, %s477
      %p481 = pneg %p475
      %p482 = scmp.eq.s32.totalorder %s41, 1
      %p483 = por %p481, %p482
      %p484 = scmp.ne.s32.totalorder %s476, %s479
      %p485 = scmp.eq.s32.totalorder %s41, 0
      %p486 = por %p484, %p485
      %p487 = scmp.ne.s32.totalorder %s476, %s479
      %p488 = scmp.eq.s32.totalorder %s46, 1
      %p489 = por %p487, %p488
      %p490 = scmp.ne.s32.totalorder %s479, %s480
      %p491 = scmp.eq.s32.totalorder %s46, 0
      %p492 = por %p490, %p491
      %p493 = scmp.ne.s32.totalorder %s479, %s480
      %p494 = scmp.eq.s32.totalorder %s47, 1
      %p495 = por %p493, %p494
      %p497 = scmp.ne.s32.totalorder %s480, %s496
      %p498 = scmp.eq.s32.totalorder %s47, 0
      %p499 = por %p497, %p498
      %p500 = scmp.le.s32.totalorder 1, %s41
      %p501 = scmp.lt.s32.totalorder %s41, 3
      %p502 = pnand %p500, %p501
      %p503 = pneg %p502
      // Predicated region
      $region9: #{tpu_custom_call.1} parent=5 // pred_check
        _
      $region10: #{tpu_custom_call.1} parent=5 // pred_check_branch
        %505 = sbr.rel (%p502) target = $region12
      $region11: #{tpu_custom_call.1} parent=5 // pred_region
        %s506 = ssub.s32 %s41, 1
        // Predicated region
        $region13: #{tpu_custom_call.1} parent=11 // pred_check
          %p507 = pneg %p88
        $region14: #{tpu_custom_call.1} parent=11 // pred_check_branch
          %509 = sbr.rel (%p507) target = $region16
        $region15: #{tpu_custom_call.1} parent=11 // pred_region
          %s511 = ssub.s32 384, 384
          %512 = vsyncadd [#allocation10], %s511
          %s513 = sshll.u32 [#allocation9], 4
          %s514 = int_to_ptr.vmem [resolvable:$true] %s513
          %519 = dma.hbm_to_vmem [thread:$0]  %s1, 384, %s514, [#allocation10], 128, 128, 8
        $region16: #{tpu_custom_call.1} parent=11 // pred_fallthru
          _
        // Predicated region
        $region17: #{tpu_custom_call.1} parent=11 // pred_check
          %p520 = pneg %p109
        $region18: #{tpu_custom_call.1} parent=11 // pred_check_branch
          %522 = sbr.rel (%p520) target = $region20
        $region19: #{tpu_custom_call.1} parent=11 // pred_region
          _
        $region20: #{tpu_custom_call.1} parent=11 // pred_fallthru
          _
        // Predicated region
        $region21: #{tpu_custom_call.1} parent=11 // pred_check
          %p523 = pneg %p130
        $region22: #{tpu_custom_call.1} parent=11 // pred_check_branch
          %525 = sbr.rel (%p523) target = $region24
        $region23: #{tpu_custom_call.1} parent=11 // pred_region
          _
        $region24: #{tpu_custom_call.1} parent=11 // pred_fallthru
          _
        // Predicated region
        $region25: #{tpu_custom_call.1} parent=11 // pred_check
          %p526 = pneg %p151
        $region26: #{tpu_custom_call.1} parent=11 // pred_check_branch
          %528 = sbr.rel (%p526) target = $region28
        $region27: #{tpu_custom_call.1} parent=11 // pred_region
          _
        $region28: #{tpu_custom_call.1} parent=11 // pred_fallthru
          _
        // Predicated region
        $region29: #{tpu_custom_call.1} parent=11 // pred_check
          %p529 = pneg %p172
        $region30: #{tpu_custom_call.1} parent=11 // pred_check_branch
          %531 = sbr.rel (%p529) target = $region32
        $region31: #{tpu_custom_call.1} parent=11 // pred_region
          _
        $region32: #{tpu_custom_call.1} parent=11 // pred_fallthru
          _
        // Predicated region
        $region33: #{tpu_custom_call.1} parent=11 // pred_check
          %p532 = pneg %p193
        $region34: #{tpu_custom_call.1} parent=11 // pred_check_branch
          %534 = sbr.rel (%p532) target = $region36
        $region35: #{tpu_custom_call.1} parent=11 // pred_region
          _
        $region36: #{tpu_custom_call.1} parent=11 // pred_fallthru
          _
        // Predicated region
        $region37: #{tpu_custom_call.1} parent=11 // pred_check
          %p535 = pneg %p214
        $region38: #{tpu_custom_call.1} parent=11 // pred_check_branch
          %537 = sbr.rel (%p535) target = $region40
        $region39: #{tpu_custom_call.1} parent=11 // pred_region
          %s539 = ssub.s32 1536, 1536
          %540 = vsyncadd [#allocation10], %s539
          %s541 = sshll.u32 [#allocation11], 4
          %s542 = int_to_ptr.vmem [resolvable:$true] %s541
          %547 = dma.hbm_to_vmem [thread:$0]  %s7, 1536, %s542, [#allocation10], 512, 512, 32
        $region40: #{tpu_custom_call.1} parent=11 // pred_fallthru
          _
        // Predicated region
        $region41: #{tpu_custom_call.1} parent=11 // pred_check
          %p548 = pneg %p235
        $region42: #{tpu_custom_call.1} parent=11 // pred_check_branch
          %550 = sbr.rel (%p548) target = $region44
        $region43: #{tpu_custom_call.1} parent=11 // pred_region
          _
        $region44: #{tpu_custom_call.1} parent=11 // pred_fallthru
          _
        // Predicated region
        $region45: #{tpu_custom_call.1} parent=11 // pred_check
          %p551 = pneg %p256
        $region46: #{tpu_custom_call.1} parent=11 // pred_check_branch
          %553 = sbr.rel (%p551) target = $region48
        $region47: #{tpu_custom_call.1} parent=11 // pred_region
          %s555 = ssub.s32 64, 64
          %556 = vsyncadd [#allocation13], %s555
          %s558 = sshll.u32 [#allocation12], 4
          %s559 = int_to_ptr.vmem [resolvable:$true] %s558
          %561 = dma.hbm_to_vmem [thread:$0]  %s9, 64, %s559, [#allocation13]
        $region48: #{tpu_custom_call.1} parent=11 // pred_fallthru
          _
        // Predicated region
        $region49: #{tpu_custom_call.1} parent=11 // pred_check
          %p562 = pneg %p277
        $region50: #{tpu_custom_call.1} parent=11 // pred_check_branch
          %564 = sbr.rel (%p562) target = $region52
        $region51: #{tpu_custom_call.1} parent=11 // pred_region
          _
        $region52: #{tpu_custom_call.1} parent=11 // pred_fallthru
          _
        // Predicated region
        $region53: #{tpu_custom_call.1} parent=11 // pred_check
          %p565 = pneg %p298
        $region54: #{tpu_custom_call.1} parent=11 // pred_check_branch
          %567 = sbr.rel (%p565) target = $region56
        $region55: #{tpu_custom_call.1} parent=11 // pred_region
          %s569 = ssub.s32 16, 16
          %570 = vsyncadd [#allocation13], %s569
          %s572 = sshll.u32 [#allocation14], 4
          %s573 = int_to_ptr.vmem [resolvable:$true] %s572
          %575 = dma.hbm_to_vmem [thread:$0]  %s11, 16, %s573, [#allocation13]
        $region56: #{tpu_custom_call.1} parent=11 // pred_fallthru
          _
        // Predicated region
        $region57: #{tpu_custom_call.1} parent=11 // pred_check
          %p576 = pneg %p319
        $region58: #{tpu_custom_call.1} parent=11 // pred_check_branch
          %578 = sbr.rel (%p576) target = $region60
        $region59: #{tpu_custom_call.1} parent=11 // pred_region
          _
        $region60: #{tpu_custom_call.1} parent=11 // pred_fallthru
          _
        // Predicated region
        $region61: #{tpu_custom_call.1} parent=11 // pred_check
          %p579 = pneg %p340
        $region62: #{tpu_custom_call.1} parent=11 // pred_check_branch
          %581 = sbr.rel (%p579) target = $region64
        $region63: #{tpu_custom_call.1} parent=11 // pred_region
          _
        $region64: #{tpu_custom_call.1} parent=11 // pred_fallthru
          _
        // Predicated region
        $region65: #{tpu_custom_call.1} parent=11 // pred_check
          %p582 = pneg %p361
        $region66: #{tpu_custom_call.1} parent=11 // pred_check_branch
          %584 = sbr.rel (%p582) target = $region68
        $region67: #{tpu_custom_call.1} parent=11 // pred_region
          _
        $region68: #{tpu_custom_call.1} parent=11 // pred_fallthru
          _
        // Predicated region
        $region69: #{tpu_custom_call.1} parent=11 // pred_check
          %p585 = pneg %p382
        $region70: #{tpu_custom_call.1} parent=11 // pred_check_branch
          %587 = sbr.rel (%p585) target = $region72
        $region71: #{tpu_custom_call.1} parent=11 // pred_region
          _
        $region72: #{tpu_custom_call.1} parent=11 // pred_fallthru
          _
        // Predicated region
        $region73: #{tpu_custom_call.1} parent=11 // pred_check
          %p588 = pneg %p403
        $region74: #{tpu_custom_call.1} parent=11 // pred_check_branch
          %590 = sbr.rel (%p588) target = $region76
        $region75: #{tpu_custom_call.1} parent=11 // pred_region
          %s592 = ssub.s32 256, 256
          %593 = vsyncadd [#allocation16], %s592
          %s594 = sshll.u32 [#allocation15], 4
          %s595 = int_to_ptr.vmem [resolvable:$true] %s594
          %600 = dma.hbm_to_vmem [thread:$0]  %s16, 256, %s595, [#allocation16], 128, 128, 8
        $region76: #{tpu_custom_call.1} parent=11 // pred_fallthru
          _
        // Predicated region
        $region77: #{tpu_custom_call.1} parent=11 // pred_check
          %p601 = pneg %p424
        $region78: #{tpu_custom_call.1} parent=11 // pred_check_branch
          %603 = sbr.rel (%p601) target = $region80
        $region79: #{tpu_custom_call.1} parent=11 // pred_region
          _
        $region80: #{tpu_custom_call.1} parent=11 // pred_fallthru
          _
        // Predicated region
        $region81: #{tpu_custom_call.1} parent=11 // pred_check
          %p604 = pneg %p445
        $region82: #{tpu_custom_call.1} parent=11 // pred_check_branch
          %606 = sbr.rel (%p604) target = $region84
        $region83: #{tpu_custom_call.1} parent=11 // pred_region
          _
        $region84: #{tpu_custom_call.1} parent=11 // pred_fallthru
          _
        // Predicated region
        $region85: #{tpu_custom_call.1} parent=11 // pred_check
          %p607 = pneg %p466
        $region86: #{tpu_custom_call.1} parent=11 // pred_check_branch
          %609 = sbr.rel (%p607) target = $region88
        $region87: #{tpu_custom_call.1} parent=11 // pred_region
          _
        $region88: #{tpu_custom_call.1} parent=11 // pred_fallthru
          _
      $region12: #{tpu_custom_call.1} parent=5 // pred_fallthru
        _
      %p610 = scmp.lt.s32.totalorder %s41, 2
      // Predicated region
      $region89: #{tpu_custom_call.1} parent=5 // pred_check
        %p611 = pneg %p610
      $region90: #{tpu_custom_call.1} parent=5 // pred_check_branch
        %613 = sbr.rel (%p611) target = $region92
      $region91: #{tpu_custom_call.1} parent=5 // pred_region
        // Predicated region
        $region93: #{tpu_custom_call.1} parent=91 // pred_check
          %p614 = pneg %p61
        $region94: #{tpu_custom_call.1} parent=91 // pred_check_branch
          %616 = sbr.rel (%p614) target = $region96
        $region95: #{tpu_custom_call.1} parent=91 // pred_region
          %s617 = sand.u32 %s51, 1
          %s618 = scalar_lea.sflag [#allocation7], %s617
          %s619 = sand.u32 %s51, 1
          %s620 = scalar_lea.vmem [#allocation6], %s619
          %s622 = ssub.s32 16, 16
          %623 = vsyncadd %s618, %s622
          %s624 = smul.addr %s41, 16
          %s625 = scalar_lea.hbm %s0, %s624
          %s627 = sshll.u32 %s620, 4
          %s628 = int_to_ptr.vmem [resolvable:$true] %s627
          %630 = dma.hbm_to_vmem [thread:$0]  %s625, 16, %s628, %s618
        $region96: #{tpu_custom_call.1} parent=91 // pred_fallthru
          _
      $region92: #{tpu_custom_call.1} parent=5 // pred_fallthru
        _
      %p631 = scmp.le.s32.totalorder 1, %s41
      %p632 = scmp.lt.s32.totalorder %s41, 3
      %p633 = pnand %p631, %p632
      %p634 = pneg %p633
      // Predicated region
      $region97: #{tpu_custom_call.1} parent=5 // pred_check
        _
      $region98: #{tpu_custom_call.1} parent=5 // pred_check_branch
        %636 = sbr.rel (%p633) target = $region100
      $region99: #{tpu_custom_call.1} parent=5 // pred_region
        %s637 = ssub.s32 %s41, 1
        %s638 = sand.u32 %s54, 1
        %s639 = scalar_lea.sflag [#allocation7], %s638
        %s640 = sand.u32 %s54, 1
        %s641 = scalar_lea.vmem [#allocation6], %s640
        // Predicated region
        $region101: #{tpu_custom_call.1} parent=99 // pred_check
          %p642 = pneg %p67
        $region102: #{tpu_custom_call.1} parent=99 // pred_check_branch
          %644 = sbr.rel (%p642) target = $region104
        $region103: #{tpu_custom_call.1} parent=99 // pred_region
          %645 = dma.done %s639, 16
        $region104: #{tpu_custom_call.1} parent=99 // pred_fallthru
          _
        // Predicated region
        $region105: #{tpu_custom_call.1} parent=99 // pred_check
          %p646 = pneg %p88
        $region106: #{tpu_custom_call.1} parent=99 // pred_check_branch
          %648 = sbr.rel (%p646) target = $region108
        $region107: #{tpu_custom_call.1} parent=99 // pred_region
          %649 = dma.done [#allocation10], 384
        $region108: #{tpu_custom_call.1} parent=99 // pred_fallthru
          _
        // Predicated region
        $region109: #{tpu_custom_call.1} parent=99 // pred_check
          %p650 = pneg %p214
        $region110: #{tpu_custom_call.1} parent=99 // pred_check_branch
          %652 = sbr.rel (%p650) target = $region112
        $region111: #{tpu_custom_call.1} parent=99 // pred_region
          %653 = dma.done [#allocation10], 1536
        $region112: #{tpu_custom_call.1} parent=99 // pred_fallthru
          _
        // Predicated region
        $region113: #{tpu_custom_call.1} parent=99 // pred_check
          %p654 = pneg %p256
        $region114: #{tpu_custom_call.1} parent=99 // pred_check_branch
          %656 = sbr.rel (%p654) target = $region116
        $region115: #{tpu_custom_call.1} parent=99 // pred_region
          %657 = dma.done [#allocation13], 64
        $region116: #{tpu_custom_call.1} parent=99 // pred_fallthru
          _
        // Predicated region
        $region117: #{tpu_custom_call.1} parent=99 // pred_check
          %p658 = pneg %p298
        $region118: #{tpu_custom_call.1} parent=99 // pred_check_branch
          %660 = sbr.rel (%p658) target = $region120
        $region119: #{tpu_custom_call.1} parent=99 // pred_region
          %661 = dma.done [#allocation13], 16
        $region120: #{tpu_custom_call.1} parent=99 // pred_fallthru
          _
        // Predicated region
        $region121: #{tpu_custom_call.1} parent=99 // pred_check
          %p662 = pneg %p403
        $region122: #{tpu_custom_call.1} parent=99 // pred_check_branch
          %664 = sbr.rel (%p662) target = $region124
        $region123: #{tpu_custom_call.1} parent=99 // pred_region
          %665 = dma.done [#allocation16], 256
        $region124: #{tpu_custom_call.1} parent=99 // pred_fallthru
          _
        %s666 = sand.u32 %s54, 1
        %s667 = scalar_lea.sflag [#allocation7], %s666
        %s668 = sand.u32 %s54, 1
        %s669 = scalar_lea.vmem [#allocation6], %s668
        %p670 = pneg %p67
        %p671 = pneg %p64
        %p672 = pneg %p88
        %p673 = pneg %p85
        %p674 = pneg %p109
        %p675 = pneg %p106
        %p676 = pneg %p130
        %p677 = pneg %p127
        %p678 = pneg %p151
        %p679 = pneg %p148
        %p680 = pneg %p172
        %p681 = pneg %p169
        %p682 = pneg %p193
        %p683 = pneg %p190
        %p684 = pneg %p214
        %p685 = pneg %p211
        %p686 = pneg %p235
        %p687 = pneg %p232
        %p688 = pneg %p256
        %p689 = pneg %p253
        %p690 = pneg %p277
        %p691 = pneg %p274
        %p692 = pneg %p298
        %p693 = pneg %p295
        %p694 = pneg %p319
        %p695 = pneg %p316
        %p696 = pneg %p340
        %p697 = pneg %p337
        %p698 = pneg %p361
        %p699 = pneg %p358
        %p700 = pneg %p382
        %p701 = pneg %p379
        %p702 = pneg %p403
        %p703 = pneg %p400
        %p704 = pneg %p424
        %p705 = pneg %p421
        %p706 = pneg %p445
        %p707 = pneg %p442
        %p708 = pneg %p466
        %p709 = pneg %p463
        %p710 = pneg %p492
        %p711 = pneg %p489
        %s712 = sand.u32 %s479, 1
        %s713 = scalar_lea.sflag [#allocation8], %s712
        %s714 = sand.u32 %s479, 1
        %s715 = scalar_lea.vmem [#allocation17], %s714
        %v716 = vld [vmem:[%s641] sm:$0x1]
        %v717 = vld [vmem:[%s13] sm:$0xff]
        %v718 = vld [vmem:[%s13 + $0x8] sm:$0xff]
        %v719 = vld [vmem:[%s13 + $0x10] sm:$0xff]
        %v720 = vld [vmem:[%s13 + $0x18] sm:$0xff]
        %v721 = vld [vmem:[%s13 + $0x20] sm:$0xff]
        %v722 = vld [vmem:[%s13 + $0x28] sm:$0xff]
        %v723 = vld [vmem:[%s13 + $0x30] sm:$0xff]
        %v724 = vld [vmem:[%s13 + $0x38] sm:$0xff]
        %s725 = sld [smem:[#allocation4]]
        %v726 = vstv %s725
        %vm727 = vcmask 523264
        %v729 = vsel %vm727, %v716, 0
        %731 = vmatprep.subr.mxu0 0.0
        %732 = vmatpush1.msra.mxu0 0.0
        %733 = vmatprep.subr.mxu0 0.0
        %734 = vmatpush1.msra.mxu0 0.0
        %735 = vmatprep.subr.mxu0 0.0
        %736 = vmatpush1.msra.mxu0 0.0
        %737 = vmatprep.subr.mxu0 0.0
        %738 = vmatpush1.msra.mxu0 0.0
        %739 = vmatprep.subr.mxu0 0.0
        %740 = vmatpush1.msra.mxu0 0.0
        %741 = vmatprep.subr.mxu0 0.0
        %742 = vmatpush1.msra.mxu0 0.0
        %743 = vmatprep.subr.mxu0 0.0
        %744 = vmatpush1.msra.mxu0 0.0
        %745 = vmatprep.subr.mxu0 0.0
        %746 = vmatpush1.msra.mxu0 0.0
        %747 = vmatprep.subr.mxu0 0.0
        %748 = vmatpush1.msra.mxu0 %v724
        %749 = vmatprep.subr.mxu0 0.0
        %750 = vmatpush1.msra.mxu0 %v723
        %751 = vmatprep.subr.mxu0 0.0
        %752 = vmatpush1.msra.mxu0 %v722
        %753 = vmatprep.subr.mxu0 0.0
        %754 = vmatpush1.msra.mxu0 %v721
        %755 = vmatprep.subr.mxu0 0.0
        %756 = vmatpush1.msra.mxu0 %v720
        %757 = vmatprep.subr.mxu0 0.0
        %758 = vmatpush1.msra.mxu0 %v719
        %759 = vmatprep.subr.mxu0 0.0
        %760 = vmatpush1.msra.mxu0 %v718
        %761 = vmatprep.subr.mxu0 0.0
        %762 = vmatpush1.msra.mxu0 %v717
        %763 = vmatprep.subr.mxu0 0.0
        %764 = vmatpush2.msra.mxu0 0.0
        %765 = vmatprep.subr.mxu0 0.0
        %766 = vmatpush2.msra.mxu0 0.0
        %767 = vmatprep.subr.mxu0 0.0
        %768 = vmatpush2.msra.mxu0 0.0
        %769 = vmatprep.subr.mxu0 0.0
        %770 = vmatpush2.msra.mxu0 0.0
        %771 = vmatprep.subr.mxu0 0.0
        %772 = vmatpush2.msra.mxu0 0.0
        %773 = vmatprep.subr.mxu0 0.0
        %774 = vmatpush2.msra.mxu0 0.0
        %775 = vmatprep.subr.mxu0 0.0
        %776 = vmatpush2.msra.mxu0 0.0
        %777 = vmatprep.subr.mxu0 0.0
        %778 = vmatpush2.msra.mxu0 0.0
        %779 = vmatprep.subr.mxu0 0.0
        %780 = vmatpush2.msra.mxu0 0.0
        %781 = vmatprep.subr.mxu0 0.0
        %782 = vmatpush2.msra.mxu0 0.0
        %783 = vmatprep.subr.mxu0 0.0
        %784 = vmatpush2.msra.mxu0 0.0
        %785 = vmatprep.subr.mxu0 0.0
        %786 = vmatpush2.msra.mxu0 0.0
        %787 = vmatprep.subr.mxu0 0.0
        %788 = vmatpush2.msra.mxu0 0.0
        %789 = vmatprep.subr.mxu0 0.0
        %790 = vmatpush2.msra.mxu0 0.0
        %791 = vmatprep.subr.mxu0 0.0
        %792 = vmatpush2.msra.mxu0 0.0
        %793 = vmatprep.subr.mxu0 0.0
        %794 = vmatpush2.msra.mxu0 0.0
        %795 = vmatprep.mubr.f32.mxu0 0.0
        %796 = vmatmul.mubr.f32.gmra.mxu0 %v729
        %v797 = vpop.f32.mrf.mxu0
        %v798 = vadd.f32 %v726, %v797
        %v799 = vpop.f32.mrf.mxu0
        %800 = vdwg.mxu0
        %v801 = vld [vmem:[%s14] sm:$0xff]
        %v802 = vld [vmem:[%s14 + $0x8] sm:$0xff]
        %v803 = vld [vmem:[%s14 + $0x10] sm:$0xff]
        %v804 = vld [vmem:[%s14 + $0x18] sm:$0xff]
        %vm805 = vcmask 261120
        %v807 = vsel %vm805, %v798, 0
        %809 = vmatprep.subr.mxu0 0.0
        %810 = vmatpush1.msra.mxu0 0.0
        %811 = vmatprep.subr.mxu0 0.0
        %812 = vmatpush1.msra.mxu0 0.0
        %813 = vmatprep.subr.mxu0 0.0
        %814 = vmatpush1.msra.mxu0 0.0
        %815 = vmatprep.subr.mxu0 0.0
        %816 = vmatpush1.msra.mxu0 0.0
        %817 = vmatprep.subr.mxu0 0.0
        %818 = vmatpush1.msra.mxu0 0.0
        %819 = vmatprep.subr.mxu0 0.0
        %820 = vmatpush1.msra.mxu0 0.0
        %821 = vmatprep.subr.mxu0 0.0
        %822 = vmatpush1.msra.mxu0 0.0
        %823 = vmatprep.subr.mxu0 0.0
        %824 = vmatpush1.msra.mxu0 0.0
        %825 = vmatprep.subr.mxu0 0.0
        %826 = vmatpush1.msra.mxu0 0.0
        %827 = vmatprep.subr.mxu0 0.0
        %828 = vmatpush1.msra.mxu0 0.0
        %829 = vmatprep.subr.mxu0 0.0
        %830 = vmatpush1.msra.mxu0 0.0
        %831 = vmatprep.subr.mxu0 0.0
        %832 = vmatpush1.msra.mxu0 0.0
        %833 = vmatprep.subr.mxu0 0.0
        %834 = vmatpush1.msra.mxu0 %v804
        %835 = vmatprep.subr.mxu0 0.0
        %836 = vmatpush1.msra.mxu0 %v803
        %837 = vmatprep.subr.mxu0 0.0
        %838 = vmatpush1.msra.mxu0 %v802
        %839 = vmatprep.subr.mxu0 0.0
        %840 = vmatpush1.msra.mxu0 %v801
        %841 = vmatprep.subr.mxu0 0.0
        %842 = vmatpush2.msra.mxu0 0.0
        %843 = vmatprep.subr.mxu0 0.0
        %844 = vmatpush2.msra.mxu0 0.0
        %845 = vmatprep.subr.mxu0 0.0
        %846 = vmatpush2.msra.mxu0 0.0
        %847 = vmatprep.subr.mxu0 0.0
        %848 = vmatpush2.msra.mxu0 0.0
        %849 = vmatprep.subr.mxu0 0.0
        %850 = vmatpush2.msra.mxu0 0.0
        %851 = vmatprep.subr.mxu0 0.0
        %852 = vmatpush2.msra.mxu0 0.0
        %853 = vmatprep.subr.mxu0 0.0
        %854 = vmatpush2.msra.mxu0 0.0
        %855 = vmatprep.subr.mxu0 0.0
        %856 = vmatpush2.msra.mxu0 0.0
        %857 = vmatprep.subr.mxu0 0.0
        %858 = vmatpush2.msra.mxu0 0.0
        %859 = vmatprep.subr.mxu0 0.0
        %860 = vmatpush2.msra.mxu0 0.0
        %861 = vmatprep.subr.mxu0 0.0
        %862 = vmatpush2.msra.mxu0 0.0
        %863 = vmatprep.subr.mxu0 0.0
        %864 = vmatpush2.msra.mxu0 0.0
        %865 = vmatprep.subr.mxu0 0.0
        %866 = vmatpush2.msra.mxu0 0.0
        %867 = vmatprep.subr.mxu0 0.0
        %868 = vmatpush2.msra.mxu0 0.0
        %869 = vmatprep.subr.mxu0 0.0
        %870 = vmatpush2.msra.mxu0 0.0
        %871 = vmatprep.subr.mxu0 0.0
        %872 = vmatpush2.msra.mxu0 0.0
        %873 = vmatprep.mubr.f32.mxu0 0.0
        %874 = vmatmul.mubr.f32.gmra.mxu0 %v807
        %v875 = vpop.f32.mrf.mxu0
        %v876 = vadd.f32 %v726, %v875
        %v877 = vpop.f32.mrf.mxu0
        %878 = vdwg.mxu0
        %v879 = vlaneseq
        %v880 = vshrl.u32 %v879, 7
        %v881 = vsub.s32 0, %v880
        %v882 = vrot.slane %v716, %v881
        %883 = vrot.lane.b32.xlu0 %v882, 74
        %v884 = vpop.permute.xlu0 %883
        %886 = vrot.lane.b32.xlu0 %v882, 10
        %v887 = vpop.permute.xlu0 %886
        %vm889 = vcmask 80896
        %v890 = vsel %vm889, %v884, %v887
        %vm891 = vcmask 605184
        %v892 = vsel %vm891, %v890, %v884
        %v894 = vrot.slane %v892, 7
        %895 = vrot.lane.b32.xlu0 %v894, 127
        %v896 = vpop.permute.xlu0 %895
        %v898 = vrot.slane %v892, 6
        %899 = vrot.lane.b32.xlu0 %v898, 126
        %v900 = vpop.permute.xlu0 %899
        %v902 = vrot.slane %v892, 5
        %903 = vrot.lane.b32.xlu0 %v902, 125
        %v904 = vpop.permute.xlu0 %903
        %v906 = vrot.slane %v892, 4
        %907 = vrot.lane.b32.xlu0 %v906, 124
        %v908 = vpop.permute.xlu0 %907
        %v910 = vrot.slane %v892, 3
        %911 = vrot.lane.b32.xlu0 %v910, 123
        %v912 = vpop.permute.xlu0 %911
        %v914 = vrot.slane %v892, 2
        %915 = vrot.lane.b32.xlu0 %v914, 122
        %v916 = vpop.permute.xlu0 %915
        %v918 = vrot.slane %v892, 1
        %919 = vrot.lane.b32.xlu0 %v918, 121
        %v920 = vpop.permute.xlu0 %919
        %922 = vrot.lane.b32.xlu0 %v892, 120
        %v923 = vpop.permute.xlu0 %922
        %925 = vrot.lane.b32.xlu0 %v894, 119
        %v926 = vpop.permute.xlu0 %925
        %928 = vrot.lane.b32.xlu0 %v898, 118
        %v929 = vpop.permute.xlu0 %928
        %931 = vrot.lane.b32.xlu0 %v902, 117
        %v932 = vpop.permute.xlu0 %931
        %934 = vrot.lane.b32.xlu0 %v906, 116
        %v935 = vpop.permute.xlu0 %934
        %937 = vrot.lane.b32.xlu0 %v910, 115
        %v938 = vpop.permute.xlu0 %937
        %940 = vrot.lane.b32.xlu0 %v914, 114
        %v941 = vpop.permute.xlu0 %940
        %943 = vrot.lane.b32.xlu0 %v918, 113
        %v944 = vpop.permute.xlu0 %943
        %vm946 = vcmask 1040384
        %v947 = vsel %vm946, %v892, %v896
        %vm948 = vcmask 1041408
        %v949 = vsel %vm948, %v947, %v900
        %vm950 = vcmask 1042432
        %v951 = vsel %vm950, %v949, %v904
        %vm952 = vcmask 1043456
        %v953 = vsel %vm952, %v951, %v908
        %vm954 = vcmask 1044480
        %v955 = vsel %vm954, %v953, %v912
        %vm956 = vcmask 1045504
        %v957 = vsel %vm956, %v955, %v916
        %vm958 = vcmask 1046528
        %v959 = vsel %vm958, %v957, %v920
        %v960 = vsel %vm946, %v923, %v926
        %v961 = vsel %vm948, %v960, %v929
        %v962 = vsel %vm950, %v961, %v932
        %v963 = vsel %vm952, %v962, %v935
        %v964 = vsel %vm954, %v963, %v938
        %v965 = vsel %vm956, %v964, %v941
        %v966 = vsel %vm958, %v965, %v944
        %968 = vrot.lane.b32.xlu0 %v953, 112
        %v969 = vpop.permute.xlu0 %968
        %971 = vrot.lane.b32.xlu0 %v798, 106
        %v972 = vpop.permute.xlu0 %971
        %974 = vrot.lane.b32.xlu0 %v798, 10
        %v975 = vpop.permute.xlu0 %974
        %977 = vrot.lane.b32.xlu0 %v798, 42
        %v978 = vpop.permute.xlu0 %977
        %v980 = vsel %vm889, %v972, %v975
        %vm981 = vcmask 343040
        %v982 = vsel %vm981, %v980, %v978
        %v984 = vrot.slane %v982, 7
        %985 = vrot.lane.b32.xlu0 %v984, 127
        %v986 = vpop.permute.xlu0 %985
        %v988 = vrot.slane %v982, 6
        %989 = vrot.lane.b32.xlu0 %v988, 126
        %v990 = vpop.permute.xlu0 %989
        %v992 = vrot.slane %v982, 5
        %993 = vrot.lane.b32.xlu0 %v992, 125
        %v994 = vpop.permute.xlu0 %993
        %v996 = vrot.slane %v982, 4
        %997 = vrot.lane.b32.xlu0 %v996, 124
        %v998 = vpop.permute.xlu0 %997
        %v1000 = vrot.slane %v982, 3
        %1001 = vrot.lane.b32.xlu0 %v1000, 123
        %v1002 = vpop.permute.xlu0 %1001
        %v1004 = vrot.slane %v982, 2
        %1005 = vrot.lane.b32.xlu0 %v1004, 122
        %v1006 = vpop.permute.xlu0 %1005
        %v1008 = vrot.slane %v982, 1
        %1009 = vrot.lane.b32.xlu0 %v1008, 121
        %v1010 = vpop.permute.xlu0 %1009
        %1012 = vrot.lane.b32.xlu0 %v982, 120
        %v1013 = vpop.permute.xlu0 %1012
        %1015 = vrot.lane.b32.xlu0 %v984, 119
        %v1016 = vpop.permute.xlu0 %1015
        %1018 = vrot.lane.b32.xlu0 %v988, 118
        %v1019 = vpop.permute.xlu0 %1018
        %1021 = vrot.lane.b32.xlu0 %v992, 117
        %v1022 = vpop.permute.xlu0 %1021
        %1024 = vrot.lane.b32.xlu0 %v996, 116
        %v1025 = vpop.permute.xlu0 %1024
        %1027 = vrot.lane.b32.xlu0 %v1000, 115
        %v1028 = vpop.permute.xlu0 %1027
        %1030 = vrot.lane.b32.xlu0 %v1004, 114
        %v1031 = vpop.permute.xlu0 %1030
        %1033 = vrot.lane.b32.xlu0 %v1008, 113
        %v1034 = vpop.permute.xlu0 %1033
        %v1036 = vsel %vm946, %v982, %v986
        %v1037 = vsel %vm948, %v1036, %v990
        %v1038 = vsel %vm950, %v1037, %v994
        %v1039 = vsel %vm952, %v1038, %v998
        %v1040 = vsel %vm954, %v1039, %v1002
        %v1041 = vsel %vm956, %v1040, %v1006
        %v1042 = vsel %vm958, %v1041, %v1010
        %v1043 = vsel %vm946, %v1013, %v1016
        %v1044 = vsel %vm948, %v1043, %v1019
        %v1045 = vsel %vm950, %v1044, %v1022
        %v1046 = vsel %vm952, %v1045, %v1025
        %v1047 = vsel %vm954, %v1046, %v1028
        %v1048 = vsel %vm956, %v1047, %v1031
        %v1049 = vsel %vm958, %v1048, %v1034
        %1051 = vrot.lane.b32.xlu0 %v1039, 112
        %v1052 = vpop.permute.xlu0 %1051
        %1054 = vrot.lane.b32.xlu0 %v876, 122
        %v1055 = vpop.permute.xlu0 %1054
        %1057 = vrot.lane.b32.xlu0 %v876, 10
        %v1058 = vpop.permute.xlu0 %1057
        %1060 = vrot.lane.b32.xlu0 %v876, 26
        %v1061 = vpop.permute.xlu0 %1060
        %v1063 = vsel %vm889, %v1055, %v1058
        %vm1064 = vcmask 211968
        %v1065 = vsel %vm1064, %v1063, %v1061
        %v1067 = vrot.slane %v1065, 7
        %1068 = vrot.lane.b32.xlu0 %v1067, 127
        %v1069 = vpop.permute.xlu0 %1068
        %v1071 = vrot.slane %v1065, 6
        %1072 = vrot.lane.b32.xlu0 %v1071, 126
        %v1073 = vpop.permute.xlu0 %1072
        %v1075 = vrot.slane %v1065, 5
        %1076 = vrot.lane.b32.xlu0 %v1075, 125
        %v1077 = vpop.permute.xlu0 %1076
        %v1079 = vrot.slane %v1065, 4
        %1080 = vrot.lane.b32.xlu0 %v1079, 124
        %v1081 = vpop.permute.xlu0 %1080
        %v1083 = vrot.slane %v1065, 3
        %1084 = vrot.lane.b32.xlu0 %v1083, 123
        %v1085 = vpop.permute.xlu0 %1084
        %v1087 = vrot.slane %v1065, 2
        %1088 = vrot.lane.b32.xlu0 %v1087, 122
        %v1089 = vpop.permute.xlu0 %1088
        %v1091 = vrot.slane %v1065, 1
        %1092 = vrot.lane.b32.xlu0 %v1091, 121
        %v1093 = vpop.permute.xlu0 %1092
        %1095 = vrot.lane.b32.xlu0 %v1065, 120
        %v1096 = vpop.permute.xlu0 %1095
        %1098 = vrot.lane.b32.xlu0 %v1067, 119
        %v1099 = vpop.permute.xlu0 %1098
        %1101 = vrot.lane.b32.xlu0 %v1071, 118
        %v1102 = vpop.permute.xlu0 %1101
        %1104 = vrot.lane.b32.xlu0 %v1075, 117
        %v1105 = vpop.permute.xlu0 %1104
        %1107 = vrot.lane.b32.xlu0 %v1079, 116
        %v1108 = vpop.permute.xlu0 %1107
        %1110 = vrot.lane.b32.xlu0 %v1083, 115
        %v1111 = vpop.permute.xlu0 %1110
        %1113 = vrot.lane.b32.xlu0 %v1087, 114
        %v1114 = vpop.permute.xlu0 %1113
        %1116 = vrot.lane.b32.xlu0 %v1091, 113
        %v1117 = vpop.permute.xlu0 %1116
        %v1119 = vsel %vm946, %v1065, %v1069
        %v1120 = vsel %vm948, %v1119, %v1073
        %v1121 = vsel %vm950, %v1120, %v1077
        %v1122 = vsel %vm952, %v1121, %v1081
        %v1123 = vsel %vm954, %v1122, %v1085
        %v1124 = vsel %vm956, %v1123, %v1089
        %v1125 = vsel %vm958, %v1124, %v1093
        %v1126 = vsel %vm946, %v1096, %v1099
        %v1127 = vsel %vm948, %v1126, %v1102
        %v1128 = vsel %vm950, %v1127, %v1105
        %v1129 = vsel %vm952, %v1128, %v1108
        %v1130 = vsel %vm954, %v1129, %v1111
        %v1131 = vsel %vm956, %v1130, %v1114
        %v1132 = vsel %vm958, %v1131, %v1117
        %1134 = vrot.lane.b32.xlu0 %v1122, 112
        %v1135 = vpop.permute.xlu0 %1134
        %1138 = vrot.lane.b32.xlu0 %v1042, 64
        %v1139 = vpop.permute.xlu0 %1138
        %1140 = vrot.lane.b32.xlu0 %v1049, 64
        %v1141 = vpop.permute.xlu0 %1140
        %1142 = vrot.lane.b32.xlu0 %v1052, 64
        %v1143 = vpop.permute.xlu0 %1142
        %1149 = vrot.lane.b32.xlu0 %v1125, 96
        %v1150 = vpop.permute.xlu0 %1149
        %1151 = vrot.lane.b32.xlu0 %v1132, 96
        %v1152 = vpop.permute.xlu0 %1151
        %1153 = vrot.lane.b32.xlu0 %v1135, 96
        %v1154 = vpop.permute.xlu0 %1153
        %v1158 = vsel %vm727, %v959, %v1139
        %v1159 = vsel %vm727, %v966, %v1141
        %v1160 = vsel %vm727, %v969, %v1143
        %vm1161 = vcmask 785408
        %v1162 = vsel %vm1161, %v1158, %v1150
        %v1163 = vsel %vm1161, %v1159, %v1152
        %v1164 = vsel %vm1161, %v1160, %v1154
        %v1165 = vld [vmem:[#allocation9] sm:$0xff]
        %v1166 = vld [vmem:[#allocation9 + $0x8] sm:$0xff]
        %v1167 = vld [vmem:[#allocation9 + $0x10] sm:$0xff]
        %v1168 = vld [vmem:[%s2] sm:$0xff]
        %v1169 = vld [vmem:[%s2 + $0x8] sm:$0xff]
        %v1170 = vld [vmem:[%s2 + $0x10] sm:$0xff]
        %1172 = vset.pattern.permute.xlu0 0
        %1173 = vperm.xlu0 %1172, %v1168
        %v1174 = vpop.permute.xlu0 %1173
        %1177 = vset.pattern.permute.xlu0 0
        %1178 = vperm.xlu0 %1177, %v1169
        %v1179 = vpop.permute.xlu0 %1178
        %1182 = vset.pattern.permute.xlu0 0
        %1183 = vperm.xlu0 %1182, %v1170
        %v1184 = vpop.permute.xlu0 %1183
        %vm1186 = vcmask 171008
        %v1188 = vsel %vm1186, %v1165, 0
        %v1191 = vsel %vm1186, %v1166, 0
        %v1194 = vsel %vm1186, %v1167, 0
        %v1197 = vsel %vm954, %v1164, 0
        %1199 = vmatprep.subr.mxu0 0.0
        %1200 = vmatpush1.msra.mxu0 0.0
        %1201 = vmatprep.subr.mxu0 0.0
        %1202 = vmatpush1.msra.mxu0 0.0
        %1203 = vmatprep.subr.mxu0 0.0
        %1204 = vmatpush1.msra.mxu0 0.0
        %1205 = vmatprep.subr.mxu0 0.0
        %1206 = vmatpush1.msra.mxu0 0.0
        %1207 = vmatprep.subr.mxu0 0.0
        %1208 = vmatpush1.msra.mxu0 0.0
        %1209 = vmatprep.subr.mxu0 0.0
        %1210 = vmatpush1.msra.mxu0 0.0
        %1211 = vmatprep.subr.mxu0 0.0
        %1212 = vmatpush1.msra.mxu0 0.0
        %1213 = vmatprep.subr.mxu0 0.0
        %1214 = vmatpush1.msra.mxu0 0.0
        %1215 = vmatprep.subr.mxu0 0.0
        %1216 = vmatpush1.msra.mxu0 0.0
        %1217 = vmatprep.subr.mxu0 0.0
        %1218 = vmatpush1.msra.mxu0 0.0
        %1219 = vmatprep.subr.mxu0 0.0
        %1220 = vmatpush1.msra.mxu0 0.0
        %1221 = vmatprep.subr.mxu0 0.0
        %1222 = vmatpush1.msra.mxu0 0.0
        %1223 = vmatprep.subr.mxu0 0.0
        %1224 = vmatpush1.msra.mxu0 0.0
        %1225 = vmatprep.subr.mxu0 0.0
        %1226 = vmatpush1.msra.mxu0 %v1197
        %1227 = vmatprep.subr.mxu0 0.0
        %1228 = vmatpush1.msra.mxu0 %v1163
        %1229 = vmatprep.subr.mxu0 0.0
        %1230 = vmatpush1.msra.mxu0 %v1162
        %1231 = vmatprep.subr.mxu0 0.0
        %1232 = vmatpush2.msra.mxu0 0.0
        %1233 = vmatprep.subr.mxu0 0.0
        %1234 = vmatpush2.msra.mxu0 0.0
        %1235 = vmatprep.subr.mxu0 0.0
        %1236 = vmatpush2.msra.mxu0 0.0
        %1237 = vmatprep.subr.mxu0 0.0
        %1238 = vmatpush2.msra.mxu0 0.0
        %1239 = vmatprep.subr.mxu0 0.0
        %1240 = vmatpush2.msra.mxu0 0.0
        %1241 = vmatprep.subr.mxu0 0.0
        %1242 = vmatpush2.msra.mxu0 0.0
        %1243 = vmatprep.subr.mxu0 0.0
        %1244 = vmatpush2.msra.mxu0 0.0
        %1245 = vmatprep.subr.mxu0 0.0
        %1246 = vmatpush2.msra.mxu0 0.0
        %1247 = vmatprep.subr.mxu0 0.0
        %1248 = vmatpush2.msra.mxu0 0.0
        %1249 = vmatprep.subr.mxu0 0.0
        %1250 = vmatpush2.msra.mxu0 0.0
        %1251 = vmatprep.subr.mxu0 0.0
        %1252 = vmatpush2.msra.mxu0 0.0
        %1253 = vmatprep.subr.mxu0 0.0
        %1254 = vmatpush2.msra.mxu0 0.0
        %1255 = vmatprep.subr.mxu0 0.0
        %1256 = vmatpush2.msra.mxu0 0.0
        %1257 = vmatprep.subr.mxu0 0.0
        %1258 = vmatpush2.msra.mxu0 0.0
        %1259 = vmatprep.subr.mxu0 0.0
        %1260 = vmatpush2.msra.mxu0 0.0
        %1261 = vmatprep.subr.mxu0 0.0
        %1262 = vmatpush2.msra.mxu0 0.0
        %1263 = vmatprep.mubr.f32.mxu0 0.0
        %1264 = vmatmul.mubr.f32.gmra.mxu0 %v1188
        %v1265 = vpop.f32.mrf.mxu0
        %v1266 = vadd.f32 %v1174, %v1265
        %v1267 = vpop.f32.mrf.mxu0
        %1268 = vmatprep.mubr.f32.mxu0 0.0
        %1269 = vmatmul.mubr.f32.gmra.mxu0 %v1191
        %v1270 = vpop.f32.mrf.mxu0
        %v1271 = vadd.f32 %v1179, %v1270
        %v1272 = vpop.f32.mrf.mxu0
        %1273 = vmatprep.mubr.f32.mxu0 0.0
        %1274 = vmatmul.mubr.f32.gmra.mxu0 %v1194
        %v1275 = vpop.f32.mrf.mxu0
        %v1276 = vadd.f32 %v1184, %v1275
        %v1277 = vpop.f32.mrf.mxu0
        %1278 = vdwg.mxu0
        %v1279 = vtanh.pop %v1266
        %v1280 = vtanh.pop %v1271
        %v1281 = vtanh.pop %v1276
        %1285 = vrot.lane.b32.xlu0 %v1279, 74
        %v1286 = vpop.permute.xlu0 %1285
        %1287 = vrot.lane.b32.xlu0 %v1280, 74
        %v1288 = vpop.permute.xlu0 %1287
        %1289 = vrot.lane.b32.xlu0 %v1281, 74
        %v1290 = vpop.permute.xlu0 %1289
        %1294 = vrot.lane.b32.xlu0 %v1279, 10
        %v1295 = vpop.permute.xlu0 %1294
        %1296 = vrot.lane.b32.xlu0 %v1280, 10
        %v1297 = vpop.permute.xlu0 %1296
        %1298 = vrot.lane.b32.xlu0 %v1281, 10
        %v1299 = vpop.permute.xlu0 %1298
        %v1303 = vsel %vm889, %v1286, %v1295
        %v1304 = vsel %vm889, %v1288, %v1297
        %v1305 = vsel %vm889, %v1290, %v1299
        %v1306 = vsel %vm891, %v1303, %v1286
        %v1307 = vsel %vm891, %v1304, %v1288
        %v1308 = vsel %vm891, %v1305, %v1290
        %1312 = vrot.lane.b32.xlu0 %v1306, 127
        %v1313 = vpop.permute.xlu0 %1312
        %1314 = vrot.lane.b32.xlu0 %v1307, 127
        %v1315 = vpop.permute.xlu0 %1314
        %1316 = vrot.lane.b32.xlu0 %v1308, 127
        %v1317 = vpop.permute.xlu0 %1316
        %1321 = vrot.lane.b32.xlu0 %v1306, 126
        %v1322 = vpop.permute.xlu0 %1321
        %1323 = vrot.lane.b32.xlu0 %v1307, 126
        %v1324 = vpop.permute.xlu0 %1323
        %1325 = vrot.lane.b32.xlu0 %v1308, 126
        %v1326 = vpop.permute.xlu0 %1325
        %1330 = vrot.lane.b32.xlu0 %v1306, 125
        %v1331 = vpop.permute.xlu0 %1330
        %1332 = vrot.lane.b32.xlu0 %v1307, 125
        %v1333 = vpop.permute.xlu0 %1332
        %1334 = vrot.lane.b32.xlu0 %v1308, 125
        %v1335 = vpop.permute.xlu0 %1334
        %1339 = vrot.lane.b32.xlu0 %v1306, 124
        %v1340 = vpop.permute.xlu0 %1339
        %1341 = vrot.lane.b32.xlu0 %v1307, 124
        %v1342 = vpop.permute.xlu0 %1341
        %1343 = vrot.lane.b32.xlu0 %v1308, 124
        %v1344 = vpop.permute.xlu0 %1343
        %1348 = vrot.lane.b32.xlu0 %v1306, 123
        %v1349 = vpop.permute.xlu0 %1348
        %1350 = vrot.lane.b32.xlu0 %v1307, 123
        %v1351 = vpop.permute.xlu0 %1350
        %1352 = vrot.lane.b32.xlu0 %v1308, 123
        %v1353 = vpop.permute.xlu0 %1352
        %1357 = vrot.lane.b32.xlu0 %v1306, 122
        %v1358 = vpop.permute.xlu0 %1357
        %1359 = vrot.lane.b32.xlu0 %v1307, 122
        %v1360 = vpop.permute.xlu0 %1359
        %1361 = vrot.lane.b32.xlu0 %v1308, 122
        %v1362 = vpop.permute.xlu0 %1361
        %1366 = vrot.lane.b32.xlu0 %v1306, 121
        %v1367 = vpop.permute.xlu0 %1366
        %1368 = vrot.lane.b32.xlu0 %v1307, 121
        %v1369 = vpop.permute.xlu0 %1368
        %1370 = vrot.lane.b32.xlu0 %v1308, 121
        %v1371 = vpop.permute.xlu0 %1370
        %1375 = vrot.lane.b32.xlu0 %v1306, 120
        %v1376 = vpop.permute.xlu0 %1375
        %1377 = vrot.lane.b32.xlu0 %v1307, 120
        %v1378 = vpop.permute.xlu0 %1377
        %1379 = vrot.lane.b32.xlu0 %v1308, 120
        %v1380 = vpop.permute.xlu0 %1379
        %1384 = vrot.lane.b32.xlu0 %v1306, 119
        %v1385 = vpop.permute.xlu0 %1384
        %1386 = vrot.lane.b32.xlu0 %v1307, 119
        %v1387 = vpop.permute.xlu0 %1386
        %1388 = vrot.lane.b32.xlu0 %v1308, 119
        %v1389 = vpop.permute.xlu0 %1388
        %1393 = vrot.lane.b32.xlu0 %v1306, 118
        %v1394 = vpop.permute.xlu0 %1393
        %1395 = vrot.lane.b32.xlu0 %v1307, 118
        %v1396 = vpop.permute.xlu0 %1395
        %1397 = vrot.lane.b32.xlu0 %v1308, 118
        %v1398 = vpop.permute.xlu0 %1397
        %1402 = vrot.lane.b32.xlu0 %v1306, 117
        %v1403 = vpop.permute.xlu0 %1402
        %1404 = vrot.lane.b32.xlu0 %v1307, 117
        %v1405 = vpop.permute.xlu0 %1404
        %1406 = vrot.lane.b32.xlu0 %v1308, 117
        %v1407 = vpop.permute.xlu0 %1406
        %1411 = vrot.lane.b32.xlu0 %v1306, 116
        %v1412 = vpop.permute.xlu0 %1411
        %1413 = vrot.lane.b32.xlu0 %v1307, 116
        %v1414 = vpop.permute.xlu0 %1413
        %1415 = vrot.lane.b32.xlu0 %v1308, 116
        %v1416 = vpop.permute.xlu0 %1415
        %1420 = vrot.lane.b32.xlu0 %v1306, 115
        %v1421 = vpop.permute.xlu0 %1420
        %1422 = vrot.lane.b32.xlu0 %v1307, 115
        %v1423 = vpop.permute.xlu0 %1422
        %1424 = vrot.lane.b32.xlu0 %v1308, 115
        %v1425 = vpop.permute.xlu0 %1424
        %1429 = vrot.lane.b32.xlu0 %v1306, 114
        %v1430 = vpop.permute.xlu0 %1429
        %1431 = vrot.lane.b32.xlu0 %v1307, 114
        %v1432 = vpop.permute.xlu0 %1431
        %1433 = vrot.lane.b32.xlu0 %v1308, 114
        %v1434 = vpop.permute.xlu0 %1433
        %1438 = vrot.lane.b32.xlu0 %v1306, 113
        %v1439 = vpop.permute.xlu0 %1438
        %1440 = vrot.lane.b32.xlu0 %v1307, 113
        %v1441 = vpop.permute.xlu0 %1440
        %1442 = vrot.lane.b32.xlu0 %v1308, 113
        %v1443 = vpop.permute.xlu0 %1442
        %1447 = vrot.lane.b32.xlu0 %v1306, 112
        %v1448 = vpop.permute.xlu0 %1447
        %1449 = vrot.lane.b32.xlu0 %v1307, 112
        %v1450 = vpop.permute.xlu0 %1449
        %1451 = vrot.lane.b32.xlu0 %v1308, 112
        %v1452 = vpop.permute.xlu0 %1451
        %1453 = vrot.lane.b32.xlu0 %v1313, 112
        %v1454 = vpop.permute.xlu0 %1453
        %1455 = vrot.lane.b32.xlu0 %v1315, 112
        %v1456 = vpop.permute.xlu0 %1455
        %1457 = vrot.lane.b32.xlu0 %v1317, 112
        %v1458 = vpop.permute.xlu0 %1457
        %1459 = vrot.lane.b32.xlu0 %v1322, 112
        %v1460 = vpop.permute.xlu0 %1459
        %1461 = vrot.lane.b32.xlu0 %v1324, 112
        %v1462 = vpop.permute.xlu0 %1461
        %1463 = vrot.lane.b32.xlu0 %v1326, 112
        %v1464 = vpop.permute.xlu0 %1463
        %1465 = vrot.lane.b32.xlu0 %v1331, 112
        %v1466 = vpop.permute.xlu0 %1465
        %1467 = vrot.lane.b32.xlu0 %v1333, 112
        %v1468 = vpop.permute.xlu0 %1467
        %1469 = vrot.lane.b32.xlu0 %v1335, 112
        %v1470 = vpop.permute.xlu0 %1469
        %1471 = vrot.lane.b32.xlu0 %v1340, 112
        %v1472 = vpop.permute.xlu0 %1471
        %1473 = vrot.lane.b32.xlu0 %v1342, 112
        %v1474 = vpop.permute.xlu0 %1473
        %1475 = vrot.lane.b32.xlu0 %v1344, 112
        %v1476 = vpop.permute.xlu0 %1475
        %1492 = vrot.lane.b32.xlu0 %v1279, 42
        %v1493 = vpop.permute.xlu0 %1492
        %1494 = vrot.lane.b32.xlu0 %v1280, 42
        %v1495 = vpop.permute.xlu0 %1494
        %1496 = vrot.lane.b32.xlu0 %v1281, 42
        %v1497 = vpop.permute.xlu0 %1496
        %1501 = vrot.lane.b32.xlu0 %v1279, 106
        %v1502 = vpop.permute.xlu0 %1501
        %1503 = vrot.lane.b32.xlu0 %v1280, 106
        %v1504 = vpop.permute.xlu0 %1503
        %1505 = vrot.lane.b32.xlu0 %v1281, 106
        %v1506 = vpop.permute.xlu0 %1505
        %v1510 = vsel %vm889, %v1493, %v1286
        %v1511 = vsel %vm889, %v1495, %v1288
        %v1512 = vsel %vm889, %v1497, %v1290
        %v1513 = vsel %vm981, %v1510, %v1502
        %v1514 = vsel %vm981, %v1511, %v1504
        %v1515 = vsel %vm981, %v1512, %v1506
        %1519 = vrot.lane.b32.xlu0 %v1513, 127
        %v1520 = vpop.permute.xlu0 %1519
        %1521 = vrot.lane.b32.xlu0 %v1514, 127
        %v1522 = vpop.permute.xlu0 %1521
        %1523 = vrot.lane.b32.xlu0 %v1515, 127
        %v1524 = vpop.permute.xlu0 %1523
        %1525 = vrot.lane.b32.xlu0 %v1513, 126
        %v1526 = vpop.permute.xlu0 %1525
        %1527 = vrot.lane.b32.xlu0 %v1514, 126
        %v1528 = vpop.permute.xlu0 %1527
        %1529 = vrot.lane.b32.xlu0 %v1515, 126
        %v1530 = vpop.permute.xlu0 %1529
        %1531 = vrot.lane.b32.xlu0 %v1513, 125
        %v1532 = vpop.permute.xlu0 %1531
        %1533 = vrot.lane.b32.xlu0 %v1514, 125
        %v1534 = vpop.permute.xlu0 %1533
        %1535 = vrot.lane.b32.xlu0 %v1515, 125
        %v1536 = vpop.permute.xlu0 %1535
        %1537 = vrot.lane.b32.xlu0 %v1513, 124
        %v1538 = vpop.permute.xlu0 %1537
        %1539 = vrot.lane.b32.xlu0 %v1514, 124
        %v1540 = vpop.permute.xlu0 %1539
        %1541 = vrot.lane.b32.xlu0 %v1515, 124
        %v1542 = vpop.permute.xlu0 %1541
        %1543 = vrot.lane.b32.xlu0 %v1513, 123
        %v1544 = vpop.permute.xlu0 %1543
        %1545 = vrot.lane.b32.xlu0 %v1514, 123
        %v1546 = vpop.permute.xlu0 %1545
        %1547 = vrot.lane.b32.xlu0 %v1515, 123
        %v1548 = vpop.permute.xlu0 %1547
        %1549 = vrot.lane.b32.xlu0 %v1513, 122
        %v1550 = vpop.permute.xlu0 %1549
        %1551 = vrot.lane.b32.xlu0 %v1514, 122
        %v1552 = vpop.permute.xlu0 %1551
        %1553 = vrot.lane.b32.xlu0 %v1515, 122
        %v1554 = vpop.permute.xlu0 %1553
        %1555 = vrot.lane.b32.xlu0 %v1513, 121
        %v1556 = vpop.permute.xlu0 %1555
        %1557 = vrot.lane.b32.xlu0 %v1514, 121
        %v1558 = vpop.permute.xlu0 %1557
        %1559 = vrot.lane.b32.xlu0 %v1515, 121
        %v1560 = vpop.permute.xlu0 %1559
        %1561 = vrot.lane.b32.xlu0 %v1513, 120
        %v1562 = vpop.permute.xlu0 %1561
        %1563 = vrot.lane.b32.xlu0 %v1514, 120
        %v1564 = vpop.permute.xlu0 %1563
        %1565 = vrot.lane.b32.xlu0 %v1515, 120
        %v1566 = vpop.permute.xlu0 %1565
        %1567 = vrot.lane.b32.xlu0 %v1513, 119
        %v1568 = vpop.permute.xlu0 %1567
        %1569 = vrot.lane.b32.xlu0 %v1514, 119
        %v1570 = vpop.permute.xlu0 %1569
        %1571 = vrot.lane.b32.xlu0 %v1515, 119
        %v1572 = vpop.permute.xlu0 %1571
        %1573 = vrot.lane.b32.xlu0 %v1513, 118
        %v1574 = vpop.permute.xlu0 %1573
        %1575 = vrot.lane.b32.xlu0 %v1514, 118
        %v1576 = vpop.permute.xlu0 %1575
        %1577 = vrot.lane.b32.xlu0 %v1515, 118
        %v1578 = vpop.permute.xlu0 %1577
        %1579 = vrot.lane.b32.xlu0 %v1513, 117
        %v1580 = vpop.permute.xlu0 %1579
        %1581 = vrot.lane.b32.xlu0 %v1514, 117
        %v1582 = vpop.permute.xlu0 %1581
        %1583 = vrot.lane.b32.xlu0 %v1515, 117
        %v1584 = vpop.permute.xlu0 %1583
        %1585 = vrot.lane.b32.xlu0 %v1513, 116
        %v1586 = vpop.permute.xlu0 %1585
        %1587 = vrot.lane.b32.xlu0 %v1514, 116
        %v1588 = vpop.permute.xlu0 %1587
        %1589 = vrot.lane.b32.xlu0 %v1515, 116
        %v1590 = vpop.permute.xlu0 %1589
        %1591 = vrot.lane.b32.xlu0 %v1513, 115
        %v1592 = vpop.permute.xlu0 %1591
        %1593 = vrot.lane.b32.xlu0 %v1514, 115
        %v1594 = vpop.permute.xlu0 %1593
        %1595 = vrot.lane.b32.xlu0 %v1515, 115
        %v1596 = vpop.permute.xlu0 %1595
        %1597 = vrot.lane.b32.xlu0 %v1513, 114
        %v1598 = vpop.permute.xlu0 %1597
        %1599 = vrot.lane.b32.xlu0 %v1514, 114
        %v1600 = vpop.permute.xlu0 %1599
        %1601 = vrot.lane.b32.xlu0 %v1515, 114
        %v1602 = vpop.permute.xlu0 %1601
        %1603 = vrot.lane.b32.xlu0 %v1513, 113
        %v1604 = vpop.permute.xlu0 %1603
        %1605 = vrot.lane.b32.xlu0 %v1514, 113
        %v1606 = vpop.permute.xlu0 %1605
        %1607 = vrot.lane.b32.xlu0 %v1515, 113
        %v1608 = vpop.permute.xlu0 %1607
        %1609 = vrot.lane.b32.xlu0 %v1513, 112
        %v1610 = vpop.permute.xlu0 %1609
        %1611 = vrot.lane.b32.xlu0 %v1514, 112
        %v1612 = vpop.permute.xlu0 %1611
        %1613 = vrot.lane.b32.xlu0 %v1515, 112
        %v1614 = vpop.permute.xlu0 %1613
        %1615 = vrot.lane.b32.xlu0 %v1520, 112
        %v1616 = vpop.permute.xlu0 %1615
        %1617 = vrot.lane.b32.xlu0 %v1522, 112
        %v1618 = vpop.permute.xlu0 %1617
        %1619 = vrot.lane.b32.xlu0 %v1524, 112
        %v1620 = vpop.permute.xlu0 %1619
        %1621 = vrot.lane.b32.xlu0 %v1526, 112
        %v1622 = vpop.permute.xlu0 %1621
        %1623 = vrot.lane.b32.xlu0 %v1528, 112
        %v1624 = vpop.permute.xlu0 %1623
        %1625 = vrot.lane.b32.xlu0 %v1530, 112
        %v1626 = vpop.permute.xlu0 %1625
        %1627 = vrot.lane.b32.xlu0 %v1532, 112
        %v1628 = vpop.permute.xlu0 %1627
        %1629 = vrot.lane.b32.xlu0 %v1534, 112
        %v1630 = vpop.permute.xlu0 %1629
        %1631 = vrot.lane.b32.xlu0 %v1536, 112
        %v1632 = vpop.permute.xlu0 %1631
        %1633 = vrot.lane.b32.xlu0 %v1538, 112
        %v1634 = vpop.permute.xlu0 %1633
        %1635 = vrot.lane.b32.xlu0 %v1540, 112
        %v1636 = vpop.permute.xlu0 %1635
        %1637 = vrot.lane.b32.xlu0 %v1542, 112
        %v1638 = vpop.permute.xlu0 %1637
        %1639 = vrot.lane.b32.xlu0 %v1279, 26
        %v1640 = vpop.permute.xlu0 %1639
        %1641 = vrot.lane.b32.xlu0 %v1280, 26
        %v1642 = vpop.permute.xlu0 %1641
        %1643 = vrot.lane.b32.xlu0 %v1281, 26
        %v1644 = vpop.permute.xlu0 %1643
        %1648 = vrot.lane.b32.xlu0 %v1279, 58
        %v1649 = vpop.permute.xlu0 %1648
        %1650 = vrot.lane.b32.xlu0 %v1280, 58
        %v1651 = vpop.permute.xlu0 %1650
        %1652 = vrot.lane.b32.xlu0 %v1281, 58
        %v1653 = vpop.permute.xlu0 %1652
        %v1657 = vsel %vm889, %v1640, %v1493
        %v1658 = vsel %vm889, %v1642, %v1495
        %v1659 = vsel %vm889, %v1644, %v1497
        %v1660 = vsel %vm1064, %v1657, %v1649
        %v1661 = vsel %vm1064, %v1658, %v1651
        %v1662 = vsel %vm1064, %v1659, %v1653
        %1666 = vrot.lane.b32.xlu0 %v1660, 127
        %v1667 = vpop.permute.xlu0 %1666
        %1668 = vrot.lane.b32.xlu0 %v1661, 127
        %v1669 = vpop.permute.xlu0 %1668
        %1670 = vrot.lane.b32.xlu0 %v1662, 127
        %v1671 = vpop.permute.xlu0 %1670
        %1672 = vrot.lane.b32.xlu0 %v1660, 126
        %v1673 = vpop.permute.xlu0 %1672
        %1674 = vrot.lane.b32.xlu0 %v1661, 126
        %v1675 = vpop.permute.xlu0 %1674
        %1676 = vrot.lane.b32.xlu0 %v1662, 126
        %v1677 = vpop.permute.xlu0 %1676
        %1678 = vrot.lane.b32.xlu0 %v1660, 125
        %v1679 = vpop.permute.xlu0 %1678
        %1680 = vrot.lane.b32.xlu0 %v1661, 125
        %v1681 = vpop.permute.xlu0 %1680
        %1682 = vrot.lane.b32.xlu0 %v1662, 125
        %v1683 = vpop.permute.xlu0 %1682
        %1684 = vrot.lane.b32.xlu0 %v1660, 124
        %v1685 = vpop.permute.xlu0 %1684
        %1686 = vrot.lane.b32.xlu0 %v1661, 124
        %v1687 = vpop.permute.xlu0 %1686
        %1688 = vrot.lane.b32.xlu0 %v1662, 124
        %v1689 = vpop.permute.xlu0 %1688
        %1690 = vrot.lane.b32.xlu0 %v1660, 123
        %v1691 = vpop.permute.xlu0 %1690
        %1692 = vrot.lane.b32.xlu0 %v1661, 123
        %v1693 = vpop.permute.xlu0 %1692
        %1694 = vrot.lane.b32.xlu0 %v1662, 123
        %v1695 = vpop.permute.xlu0 %1694
        %1696 = vrot.lane.b32.xlu0 %v1660, 122
        %v1697 = vpop.permute.xlu0 %1696
        %1698 = vrot.lane.b32.xlu0 %v1661, 122
        %v1699 = vpop.permute.xlu0 %1698
        %1700 = vrot.lane.b32.xlu0 %v1662, 122
        %v1701 = vpop.permute.xlu0 %1700
        %1702 = vrot.lane.b32.xlu0 %v1660, 121
        %v1703 = vpop.permute.xlu0 %1702
        %1704 = vrot.lane.b32.xlu0 %v1661, 121
        %v1705 = vpop.permute.xlu0 %1704
        %1706 = vrot.lane.b32.xlu0 %v1662, 121
        %v1707 = vpop.permute.xlu0 %1706
        %1708 = vrot.lane.b32.xlu0 %v1660, 120
        %v1709 = vpop.permute.xlu0 %1708
        %1710 = vrot.lane.b32.xlu0 %v1661, 120
        %v1711 = vpop.permute.xlu0 %1710
        %1712 = vrot.lane.b32.xlu0 %v1662, 120
        %v1713 = vpop.permute.xlu0 %1712
        %1714 = vrot.lane.b32.xlu0 %v1660, 119
        %v1715 = vpop.permute.xlu0 %1714
        %1716 = vrot.lane.b32.xlu0 %v1661, 119
        %v1717 = vpop.permute.xlu0 %1716
        %1718 = vrot.lane.b32.xlu0 %v1662, 119
        %v1719 = vpop.permute.xlu0 %1718
        %1720 = vrot.lane.b32.xlu0 %v1660, 118
        %v1721 = vpop.permute.xlu0 %1720
        %1722 = vrot.lane.b32.xlu0 %v1661, 118
        %v1723 = vpop.permute.xlu0 %1722
        %1724 = vrot.lane.b32.xlu0 %v1662, 118
        %v1725 = vpop.permute.xlu0 %1724
        %1726 = vrot.lane.b32.xlu0 %v1660, 117
        %v1727 = vpop.permute.xlu0 %1726
        %1728 = vrot.lane.b32.xlu0 %v1661, 117
        %v1729 = vpop.permute.xlu0 %1728
        %1730 = vrot.lane.b32.xlu0 %v1662, 117
        %v1731 = vpop.permute.xlu0 %1730
        %1732 = vrot.lane.b32.xlu0 %v1660, 116
        %v1733 = vpop.permute.xlu0 %1732
        %1734 = vrot.lane.b32.xlu0 %v1661, 116
        %v1735 = vpop.permute.xlu0 %1734
        %1736 = vrot.lane.b32.xlu0 %v1662, 116
        %v1737 = vpop.permute.xlu0 %1736
        %1738 = vrot.lane.b32.xlu0 %v1660, 115
        %v1739 = vpop.permute.xlu0 %1738
        %1740 = vrot.lane.b32.xlu0 %v1661, 115
        %v1741 = vpop.permute.xlu0 %1740
        %1742 = vrot.lane.b32.xlu0 %v1662, 115
        %v1743 = vpop.permute.xlu0 %1742
        %1744 = vrot.lane.b32.xlu0 %v1660, 114
        %v1745 = vpop.permute.xlu0 %1744
        %1746 = vrot.lane.b32.xlu0 %v1661, 114
        %v1747 = vpop.permute.xlu0 %1746
        %1748 = vrot.lane.b32.xlu0 %v1662, 114
        %v1749 = vpop.permute.xlu0 %1748
        %1750 = vrot.lane.b32.xlu0 %v1660, 113
        %v1751 = vpop.permute.xlu0 %1750
        %1752 = vrot.lane.b32.xlu0 %v1661, 113
        %v1753 = vpop.permute.xlu0 %1752
        %1754 = vrot.lane.b32.xlu0 %v1662, 113
        %v1755 = vpop.permute.xlu0 %1754
        %1756 = vrot.lane.b32.xlu0 %v1660, 112
        %v1757 = vpop.permute.xlu0 %1756
        %1758 = vrot.lane.b32.xlu0 %v1661, 112
        %v1759 = vpop.permute.xlu0 %1758
        %1760 = vrot.lane.b32.xlu0 %v1662, 112
        %v1761 = vpop.permute.xlu0 %1760
        %1762 = vrot.lane.b32.xlu0 %v1667, 112
        %v1763 = vpop.permute.xlu0 %1762
        %1764 = vrot.lane.b32.xlu0 %v1669, 112
        %v1765 = vpop.permute.xlu0 %1764
        %1766 = vrot.lane.b32.xlu0 %v1671, 112
        %v1767 = vpop.permute.xlu0 %1766
        %1768 = vrot.lane.b32.xlu0 %v1673, 112
        %v1769 = vpop.permute.xlu0 %1768
        %1770 = vrot.lane.b32.xlu0 %v1675, 112
        %v1771 = vpop.permute.xlu0 %1770
        %1772 = vrot.lane.b32.xlu0 %v1677, 112
        %v1773 = vpop.permute.xlu0 %1772
        %1774 = vrot.lane.b32.xlu0 %v1679, 112
        %v1775 = vpop.permute.xlu0 %1774
        %1776 = vrot.lane.b32.xlu0 %v1681, 112
        %v1777 = vpop.permute.xlu0 %1776
        %1778 = vrot.lane.b32.xlu0 %v1683, 112
        %v1779 = vpop.permute.xlu0 %1778
        %1780 = vrot.lane.b32.xlu0 %v1685, 112
        %v1781 = vpop.permute.xlu0 %1780
        %1782 = vrot.lane.b32.xlu0 %v1687, 112
        %v1783 = vpop.permute.xlu0 %1782
        %1784 = vrot.lane.b32.xlu0 %v1689, 112
        %v1785 = vpop.permute.xlu0 %1784
        %1786 = vrot.lane.b32.xlu0 %v1513, 64
        %v1787 = vpop.permute.xlu0 %1786
        %1788 = vrot.lane.b32.xlu0 %v1514, 64
        %v1789 = vpop.permute.xlu0 %1788
        %1790 = vrot.lane.b32.xlu0 %v1515, 64
        %v1791 = vpop.permute.xlu0 %1790
        %1792 = vrot.lane.b32.xlu0 %v1520, 64
        %v1793 = vpop.permute.xlu0 %1792
        %1794 = vrot.lane.b32.xlu0 %v1522, 64
        %v1795 = vpop.permute.xlu0 %1794
        %1796 = vrot.lane.b32.xlu0 %v1524, 64
        %v1797 = vpop.permute.xlu0 %1796
        %1798 = vrot.lane.b32.xlu0 %v1526, 64
        %v1799 = vpop.permute.xlu0 %1798
        %1800 = vrot.lane.b32.xlu0 %v1528, 64
        %v1801 = vpop.permute.xlu0 %1800
        %1802 = vrot.lane.b32.xlu0 %v1530, 64
        %v1803 = vpop.permute.xlu0 %1802
        %1804 = vrot.lane.b32.xlu0 %v1532, 64
        %v1805 = vpop.permute.xlu0 %1804
        %1806 = vrot.lane.b32.xlu0 %v1534, 64
        %v1807 = vpop.permute.xlu0 %1806
        %1808 = vrot.lane.b32.xlu0 %v1536, 64
        %v1809 = vpop.permute.xlu0 %1808
        %1810 = vrot.lane.b32.xlu0 %v1538, 64
        %v1811 = vpop.permute.xlu0 %1810
        %1812 = vrot.lane.b32.xlu0 %v1540, 64
        %v1813 = vpop.permute.xlu0 %1812
        %1814 = vrot.lane.b32.xlu0 %v1542, 64
        %v1815 = vpop.permute.xlu0 %1814
        %1816 = vrot.lane.b32.xlu0 %v1544, 64
        %v1817 = vpop.permute.xlu0 %1816
        %1818 = vrot.lane.b32.xlu0 %v1546, 64
        %v1819 = vpop.permute.xlu0 %1818
        %1820 = vrot.lane.b32.xlu0 %v1548, 64
        %v1821 = vpop.permute.xlu0 %1820
        %1822 = vrot.lane.b32.xlu0 %v1550, 64
        %v1823 = vpop.permute.xlu0 %1822
        %1824 = vrot.lane.b32.xlu0 %v1552, 64
        %v1825 = vpop.permute.xlu0 %1824
        %1826 = vrot.lane.b32.xlu0 %v1554, 64
        %v1827 = vpop.permute.xlu0 %1826
        %1828 = vrot.lane.b32.xlu0 %v1556, 64
        %v1829 = vpop.permute.xlu0 %1828
        %1830 = vrot.lane.b32.xlu0 %v1558, 64
        %v1831 = vpop.permute.xlu0 %1830
        %1832 = vrot.lane.b32.xlu0 %v1560, 64
        %v1833 = vpop.permute.xlu0 %1832
        %1834 = vrot.lane.b32.xlu0 %v1562, 64
        %v1835 = vpop.permute.xlu0 %1834
        %1836 = vrot.lane.b32.xlu0 %v1564, 64
        %v1837 = vpop.permute.xlu0 %1836
        %1838 = vrot.lane.b32.xlu0 %v1566, 64
        %v1839 = vpop.permute.xlu0 %1838
        %1840 = vrot.lane.b32.xlu0 %v1568, 64
        %v1841 = vpop.permute.xlu0 %1840
        %1842 = vrot.lane.b32.xlu0 %v1570, 64
        %v1843 = vpop.permute.xlu0 %1842
        %1844 = vrot.lane.b32.xlu0 %v1572, 64
        %v1845 = vpop.permute.xlu0 %1844
        %1846 = vrot.lane.b32.xlu0 %v1574, 64
        %v1847 = vpop.permute.xlu0 %1846
        %1848 = vrot.lane.b32.xlu0 %v1576, 64
        %v1849 = vpop.permute.xlu0 %1848
        %1850 = vrot.lane.b32.xlu0 %v1578, 64
        %v1851 = vpop.permute.xlu0 %1850
        %1852 = vrot.lane.b32.xlu0 %v1580, 64
        %v1853 = vpop.permute.xlu0 %1852
        %1854 = vrot.lane.b32.xlu0 %v1582, 64
        %v1855 = vpop.permute.xlu0 %1854
        %1856 = vrot.lane.b32.xlu0 %v1584, 64
        %v1857 = vpop.permute.xlu0 %1856
        %1858 = vrot.lane.b32.xlu0 %v1586, 64
        %v1859 = vpop.permute.xlu0 %1858
        %1860 = vrot.lane.b32.xlu0 %v1588, 64
        %v1861 = vpop.permute.xlu0 %1860
        %1862 = vrot.lane.b32.xlu0 %v1590, 64
        %v1863 = vpop.permute.xlu0 %1862
        %1864 = vrot.lane.b32.xlu0 %v1592, 64
        %v1865 = vpop.permute.xlu0 %1864
        %1866 = vrot.lane.b32.xlu0 %v1594, 64
        %v1867 = vpop.permute.xlu0 %1866
        %1868 = vrot.lane.b32.xlu0 %v1596, 64
        %v1869 = vpop.permute.xlu0 %1868
        %1870 = vrot.lane.b32.xlu0 %v1598, 64
        %v1871 = vpop.permute.xlu0 %1870
        %1872 = vrot.lane.b32.xlu0 %v1600, 64
        %v1873 = vpop.permute.xlu0 %1872
        %1874 = vrot.lane.b32.xlu0 %v1602, 64
        %v1875 = vpop.permute.xlu0 %1874
        %1876 = vrot.lane.b32.xlu0 %v1604, 64
        %v1877 = vpop.permute.xlu0 %1876
        %1878 = vrot.lane.b32.xlu0 %v1606, 64
        %v1879 = vpop.permute.xlu0 %1878
        %1880 = vrot.lane.b32.xlu0 %v1608, 64
        %v1881 = vpop.permute.xlu0 %1880
        %1882 = vrot.lane.b32.xlu0 %v1610, 64
        %v1883 = vpop.permute.xlu0 %1882
        %1884 = vrot.lane.b32.xlu0 %v1612, 64
        %v1885 = vpop.permute.xlu0 %1884
        %1886 = vrot.lane.b32.xlu0 %v1614, 64
        %v1887 = vpop.permute.xlu0 %1886
        %1888 = vrot.lane.b32.xlu0 %v1616, 64
        %v1889 = vpop.permute.xlu0 %1888
        %1890 = vrot.lane.b32.xlu0 %v1618, 64
        %v1891 = vpop.permute.xlu0 %1890
        %1892 = vrot.lane.b32.xlu0 %v1620, 64
        %v1893 = vpop.permute.xlu0 %1892
        %1894 = vrot.lane.b32.xlu0 %v1622, 64
        %v1895 = vpop.permute.xlu0 %1894
        %1896 = vrot.lane.b32.xlu0 %v1624, 64
        %v1897 = vpop.permute.xlu0 %1896
        %1898 = vrot.lane.b32.xlu0 %v1626, 64
        %v1899 = vpop.permute.xlu0 %1898
        %1900 = vrot.lane.b32.xlu0 %v1628, 64
        %v1901 = vpop.permute.xlu0 %1900
        %1902 = vrot.lane.b32.xlu0 %v1630, 64
        %v1903 = vpop.permute.xlu0 %1902
        %1904 = vrot.lane.b32.xlu0 %v1632, 64
        %v1905 = vpop.permute.xlu0 %1904
        %1906 = vrot.lane.b32.xlu0 %v1634, 64
        %v1907 = vpop.permute.xlu0 %1906
        %1908 = vrot.lane.b32.xlu0 %v1636, 64
        %v1909 = vpop.permute.xlu0 %1908
        %1910 = vrot.lane.b32.xlu0 %v1638, 64
        %v1911 = vpop.permute.xlu0 %1910
        %1975 = vrot.lane.b32.xlu0 %v1660, 96
        %v1976 = vpop.permute.xlu0 %1975
        %1977 = vrot.lane.b32.xlu0 %v1661, 96
        %v1978 = vpop.permute.xlu0 %1977
        %1979 = vrot.lane.b32.xlu0 %v1662, 96
        %v1980 = vpop.permute.xlu0 %1979
        %1981 = vrot.lane.b32.xlu0 %v1667, 96
        %v1982 = vpop.permute.xlu0 %1981
        %1983 = vrot.lane.b32.xlu0 %v1669, 96
        %v1984 = vpop.permute.xlu0 %1983
        %1985 = vrot.lane.b32.xlu0 %v1671, 96
        %v1986 = vpop.permute.xlu0 %1985
        %1987 = vrot.lane.b32.xlu0 %v1673, 96
        %v1988 = vpop.permute.xlu0 %1987
        %1989 = vrot.lane.b32.xlu0 %v1675, 96
        %v1990 = vpop.permute.xlu0 %1989
        %1991 = vrot.lane.b32.xlu0 %v1677, 96
        %v1992 = vpop.permute.xlu0 %1991
        %1993 = vrot.lane.b32.xlu0 %v1679, 96
        %v1994 = vpop.permute.xlu0 %1993
        %1995 = vrot.lane.b32.xlu0 %v1681, 96
        %v1996 = vpop.permute.xlu0 %1995
        %1997 = vrot.lane.b32.xlu0 %v1683, 96
        %v1998 = vpop.permute.xlu0 %1997
        %1999 = vrot.lane.b32.xlu0 %v1685, 96
        %v2000 = vpop.permute.xlu0 %1999
        %2001 = vrot.lane.b32.xlu0 %v1687, 96
        %v2002 = vpop.permute.xlu0 %2001
        %2003 = vrot.lane.b32.xlu0 %v1689, 96
        %v2004 = vpop.permute.xlu0 %2003
        %2005 = vrot.lane.b32.xlu0 %v1691, 96
        %v2006 = vpop.permute.xlu0 %2005
        %2007 = vrot.lane.b32.xlu0 %v1693, 96
        %v2008 = vpop.permute.xlu0 %2007
        %2009 = vrot.lane.b32.xlu0 %v1695, 96
        %v2010 = vpop.permute.xlu0 %2009
        %2011 = vrot.lane.b32.xlu0 %v1697, 96
        %v2012 = vpop.permute.xlu0 %2011
        %2013 = vrot.lane.b32.xlu0 %v1699, 96
        %v2014 = vpop.permute.xlu0 %2013
        %2015 = vrot.lane.b32.xlu0 %v1701, 96
        %v2016 = vpop.permute.xlu0 %2015
        %2017 = vrot.lane.b32.xlu0 %v1703, 96
        %v2018 = vpop.permute.xlu0 %2017
        %2019 = vrot.lane.b32.xlu0 %v1705, 96
        %v2020 = vpop.permute.xlu0 %2019
        %2021 = vrot.lane.b32.xlu0 %v1707, 96
        %v2022 = vpop.permute.xlu0 %2021
        %2023 = vrot.lane.b32.xlu0 %v1709, 96
        %v2024 = vpop.permute.xlu0 %2023
        %2025 = vrot.lane.b32.xlu0 %v1711, 96
        %v2026 = vpop.permute.xlu0 %2025
        %2027 = vrot.lane.b32.xlu0 %v1713, 96
        %v2028 = vpop.permute.xlu0 %2027
        %2029 = vrot.lane.b32.xlu0 %v1715, 96
        %v2030 = vpop.permute.xlu0 %2029
        %2031 = vrot.lane.b32.xlu0 %v1717, 96
        %v2032 = vpop.permute.xlu0 %2031
        %2033 = vrot.lane.b32.xlu0 %v1719, 96
        %v2034 = vpop.permute.xlu0 %2033
        %2035 = vrot.lane.b32.xlu0 %v1721, 96
        %v2036 = vpop.permute.xlu0 %2035
        %2037 = vrot.lane.b32.xlu0 %v1723, 96
        %v2038 = vpop.permute.xlu0 %2037
        %2039 = vrot.lane.b32.xlu0 %v1725, 96
        %v2040 = vpop.permute.xlu0 %2039
        %2041 = vrot.lane.b32.xlu0 %v1727, 96
        %v2042 = vpop.permute.xlu0 %2041
        %2043 = vrot.lane.b32.xlu0 %v1729, 96
        %v2044 = vpop.permute.xlu0 %2043
        %2045 = vrot.lane.b32.xlu0 %v1731, 96
        %v2046 = vpop.permute.xlu0 %2045
        %2047 = vrot.lane.b32.xlu0 %v1733, 96
        %v2048 = vpop.permute.xlu0 %2047
        %2049 = vrot.lane.b32.xlu0 %v1735, 96
        %v2050 = vpop.permute.xlu0 %2049
        %2051 = vrot.lane.b32.xlu0 %v1737, 96
        %v2052 = vpop.permute.xlu0 %2051
        %2053 = vrot.lane.b32.xlu0 %v1739, 96
        %v2054 = vpop.permute.xlu0 %2053
        %2055 = vrot.lane.b32.xlu0 %v1741, 96
        %v2056 = vpop.permute.xlu0 %2055
        %2057 = vrot.lane.b32.xlu0 %v1743, 96
        %v2058 = vpop.permute.xlu0 %2057
        %2059 = vrot.lane.b32.xlu0 %v1745, 96
        %v2060 = vpop.permute.xlu0 %2059
        %2061 = vrot.lane.b32.xlu0 %v1747, 96
        %v2062 = vpop.permute.xlu0 %2061
        %2063 = vrot.lane.b32.xlu0 %v1749, 96
        %v2064 = vpop.permute.xlu0 %2063
        %2065 = vrot.lane.b32.xlu0 %v1751, 96
        %v2066 = vpop.permute.xlu0 %2065
        %2067 = vrot.lane.b32.xlu0 %v1753, 96
        %v2068 = vpop.permute.xlu0 %2067
        %2069 = vrot.lane.b32.xlu0 %v1755, 96
        %v2070 = vpop.permute.xlu0 %2069
        %2071 = vrot.lane.b32.xlu0 %v1757, 96
        %v2072 = vpop.permute.xlu0 %2071
        %2073 = vrot.lane.b32.xlu0 %v1759, 96
        %v2074 = vpop.permute.xlu0 %2073
        %2075 = vrot.lane.b32.xlu0 %v1761, 96
        %v2076 = vpop.permute.xlu0 %2075
        %2077 = vrot.lane.b32.xlu0 %v1763, 96
        %v2078 = vpop.permute.xlu0 %2077
        %2079 = vrot.lane.b32.xlu0 %v1765, 96
        %v2080 = vpop.permute.xlu0 %2079
        %2081 = vrot.lane.b32.xlu0 %v1767, 96
        %v2082 = vpop.permute.xlu0 %2081
        %2083 = vrot.lane.b32.xlu0 %v1769, 96
        %v2084 = vpop.permute.xlu0 %2083
        %2085 = vrot.lane.b32.xlu0 %v1771, 96
        %v2086 = vpop.permute.xlu0 %2085
        %2087 = vrot.lane.b32.xlu0 %v1773, 96
        %v2088 = vpop.permute.xlu0 %2087
        %2089 = vrot.lane.b32.xlu0 %v1775, 96
        %v2090 = vpop.permute.xlu0 %2089
        %2091 = vrot.lane.b32.xlu0 %v1777, 96
        %v2092 = vpop.permute.xlu0 %2091
        %2093 = vrot.lane.b32.xlu0 %v1779, 96
        %v2094 = vpop.permute.xlu0 %2093
        %2095 = vrot.lane.b32.xlu0 %v1781, 96
        %v2096 = vpop.permute.xlu0 %2095
        %2097 = vrot.lane.b32.xlu0 %v1783, 96
        %v2098 = vpop.permute.xlu0 %2097
        %2099 = vrot.lane.b32.xlu0 %v1785, 96
        %v2100 = vpop.permute.xlu0 %2099
        %v2164 = vsel %vm727, %v1306, %v1787
        %v2165 = vsel %vm727, %v1307, %v1789
        %v2166 = vsel %vm727, %v1308, %v1791
        %v2167 = vsel %vm727, %v1313, %v1793
        %v2168 = vsel %vm727, %v1315, %v1795
        %v2169 = vsel %vm727, %v1317, %v1797
        %v2170 = vsel %vm727, %v1322, %v1799
        %v2171 = vsel %vm727, %v1324, %v1801
        %v2172 = vsel %vm727, %v1326, %v1803
        %v2173 = vsel %vm727, %v1331, %v1805
        %v2174 = vsel %vm727, %v1333, %v1807
        %v2175 = vsel %vm727, %v1335, %v1809
        %v2176 = vsel %vm727, %v1340, %v1811
        %v2177 = vsel %vm727, %v1342, %v1813
        %v2178 = vsel %vm727, %v1344, %v1815
        %v2179 = vsel %vm727, %v1349, %v1817
        %v2180 = vsel %vm727, %v1351, %v1819
        %v2181 = vsel %vm727, %v1353, %v1821
        %v2182 = vsel %vm727, %v1358, %v1823
        %v2183 = vsel %vm727, %v1360, %v1825
        %v2184 = vsel %vm727, %v1362, %v1827
        %v2185 = vsel %vm727, %v1367, %v1829
        %v2186 = vsel %vm727, %v1369, %v1831
        %v2187 = vsel %vm727, %v1371, %v1833
        %v2188 = vsel %vm727, %v1376, %v1835
        %v2189 = vsel %vm727, %v1378, %v1837
        %v2190 = vsel %vm727, %v1380, %v1839
        %v2191 = vsel %vm727, %v1385, %v1841
        %v2192 = vsel %vm727, %v1387, %v1843
        %v2193 = vsel %vm727, %v1389, %v1845
        %v2194 = vsel %vm727, %v1394, %v1847
        %v2195 = vsel %vm727, %v1396, %v1849
        %v2196 = vsel %vm727, %v1398, %v1851
        %v2197 = vsel %vm727, %v1403, %v1853
        %v2198 = vsel %vm727, %v1405, %v1855
        %v2199 = vsel %vm727, %v1407, %v1857
        %v2200 = vsel %vm727, %v1412, %v1859
        %v2201 = vsel %vm727, %v1414, %v1861
        %v2202 = vsel %vm727, %v1416, %v1863
        %v2203 = vsel %vm727, %v1421, %v1865
        %v2204 = vsel %vm727, %v1423, %v1867
        %v2205 = vsel %vm727, %v1425, %v1869
        %v2206 = vsel %vm727, %v1430, %v1871
        %v2207 = vsel %vm727, %v1432, %v1873
        %v2208 = vsel %vm727, %v1434, %v1875
        %v2209 = vsel %vm727, %v1439, %v1877
        %v2210 = vsel %vm727, %v1441, %v1879
        %v2211 = vsel %vm727, %v1443, %v1881
        %v2212 = vsel %vm727, %v1448, %v1883
        %v2213 = vsel %vm727, %v1450, %v1885
        %v2214 = vsel %vm727, %v1452, %v1887
        %v2215 = vsel %vm727, %v1454, %v1889
        %v2216 = vsel %vm727, %v1456, %v1891
        %v2217 = vsel %vm727, %v1458, %v1893
        %v2218 = vsel %vm727, %v1460, %v1895
        %v2219 = vsel %vm727, %v1462, %v1897
        %v2220 = vsel %vm727, %v1464, %v1899
        %v2221 = vsel %vm727, %v1466, %v1901
        %v2222 = vsel %vm727, %v1468, %v1903
        %v2223 = vsel %vm727, %v1470, %v1905
        %v2224 = vsel %vm727, %v1472, %v1907
        %v2225 = vsel %vm727, %v1474, %v1909
        %v2226 = vsel %vm727, %v1476, %v1911
        %v2227 = vsel %vm1161, %v2164, %v1976
        %v2228 = vsel %vm1161, %v2165, %v1978
        %v2229 = vsel %vm1161, %v2166, %v1980
        %v2230 = vsel %vm1161, %v2167, %v1982
        %v2231 = vsel %vm1161, %v2168, %v1984
        %v2232 = vsel %vm1161, %v2169, %v1986
        %v2233 = vsel %vm1161, %v2170, %v1988
        %v2234 = vsel %vm1161, %v2171, %v1990
        %v2235 = vsel %vm1161, %v2172, %v1992
        %v2236 = vsel %vm1161, %v2173, %v1994
        %v2237 = vsel %vm1161, %v2174, %v1996
        %v2238 = vsel %vm1161, %v2175, %v1998
        %v2239 = vsel %vm1161, %v2176, %v2000
        %v2240 = vsel %vm1161, %v2177, %v2002
        %v2241 = vsel %vm1161, %v2178, %v2004
        %v2242 = vsel %vm1161, %v2179, %v2006
        %v2243 = vsel %vm1161, %v2180, %v2008
        %v2244 = vsel %vm1161, %v2181, %v2010
        %v2245 = vsel %vm1161, %v2182, %v2012
        %v2246 = vsel %vm1161, %v2183, %v2014
        %v2247 = vsel %vm1161, %v2184, %v2016
        %v2248 = vsel %vm1161, %v2185, %v2018
        %v2249 = vsel %vm1161, %v2186, %v2020
        %v2250 = vsel %vm1161, %v2187, %v2022
        %v2251 = vsel %vm1161, %v2188, %v2024
        %v2252 = vsel %vm1161, %v2189, %v2026
        %v2253 = vsel %vm1161, %v2190, %v2028
        %v2254 = vsel %vm1161, %v2191, %v2030
        %v2255 = vsel %vm1161, %v2192, %v2032
        %v2256 = vsel %vm1161, %v2193, %v2034
        %v2257 = vsel %vm1161, %v2194, %v2036
        %v2258 = vsel %vm1161, %v2195, %v2038
        %v2259 = vsel %vm1161, %v2196, %v2040
        %v2260 = vsel %vm1161, %v2197, %v2042
        %v2261 = vsel %vm1161, %v2198, %v2044
        %v2262 = vsel %vm1161, %v2199, %v2046
        %v2263 = vsel %vm1161, %v2200, %v2048
        %v2264 = vsel %vm1161, %v2201, %v2050
        %v2265 = vsel %vm1161, %v2202, %v2052
        %v2266 = vsel %vm1161, %v2203, %v2054
        %v2267 = vsel %vm1161, %v2204, %v2056
        %v2268 = vsel %vm1161, %v2205, %v2058
        %v2269 = vsel %vm1161, %v2206, %v2060
        %v2270 = vsel %vm1161, %v2207, %v2062
        %v2271 = vsel %vm1161, %v2208, %v2064
        %v2272 = vsel %vm1161, %v2209, %v2066
        %v2273 = vsel %vm1161, %v2210, %v2068
        %v2274 = vsel %vm1161, %v2211, %v2070
        %v2275 = vsel %vm1161, %v2212, %v2072
        %v2276 = vsel %vm1161, %v2213, %v2074
        %v2277 = vsel %vm1161, %v2214, %v2076
        %v2278 = vsel %vm1161, %v2215, %v2078
        %v2279 = vsel %vm1161, %v2216, %v2080
        %v2280 = vsel %vm1161, %v2217, %v2082
        %v2281 = vsel %vm1161, %v2218, %v2084
        %v2282 = vsel %vm1161, %v2219, %v2086
        %v2283 = vsel %vm1161, %v2220, %v2088
        %v2284 = vsel %vm1161, %v2221, %v2090
        %v2285 = vsel %vm1161, %v2222, %v2092
        %v2286 = vsel %vm1161, %v2223, %v2094
        %v2287 = vsel %vm1161, %v2224, %v2096
        %v2288 = vsel %vm1161, %v2225, %v2098
        %v2289 = vsel %vm1161, %v2226, %v2100
        %v2290 = vld [vmem:[%s3] sm:$0xff]
        %v2291 = vld [vmem:[%s3 + $0x8] sm:$0xff]
        %v2292 = vld [vmem:[%s3 + $0x10] sm:$0xff]
        %v2293 = vld [vmem:[%s3 + $0x18] sm:$0xff]
        %v2294 = vld [vmem:[%s3 + $0x20] sm:$0xff]
        %v2295 = vld [vmem:[%s3 + $0x28] sm:$0xff]
        %v2296 = vld [vmem:[%s3 + $0x30] sm:$0xff]
        %v2297 = vld [vmem:[%s3 + $0x38] sm:$0xff]
        %v2298 = vld [vmem:[%s3 + $0x40] sm:$0xff]
        %v2299 = vld [vmem:[%s3 + $0x48] sm:$0xff]
        %v2300 = vld [vmem:[%s3 + $0x50] sm:$0xff]
        %v2301 = vld [vmem:[%s3 + $0x58] sm:$0xff]
        %v2302 = vld [vmem:[%s4] sm:$0xff]
        %v2303 = vld [vmem:[%s4 + $0x8] sm:$0xff]
        %v2304 = vld [vmem:[%s4 + $0x10] sm:$0xff]
        %2306 = vset.pattern.permute.xlu0 0
        %2307 = vperm.xlu0 %2306, %v2302
        %v2308 = vpop.permute.xlu0 %2307
        %2311 = vset.pattern.permute.xlu0 0
        %2312 = vperm.xlu0 %2311, %v2303
        %v2313 = vpop.permute.xlu0 %2312
        %2316 = vset.pattern.permute.xlu0 0
        %2317 = vperm.xlu0 %2316, %v2304
        %v2318 = vpop.permute.xlu0 %2317
        %vm2320 = vcmask 982016
        %v2322 = vsel %vm2320, %v2293, 0
        %v2325 = vsel %vm2320, %v2297, 0
        %v2328 = vsel %vm2320, %v2301, 0
        %2330 = vmatprep.subr.mxu0 0.0
        %2331 = vmatpush1.msra.mxu0 %v2242
        %2332 = vmatprep.subr.mxu0 0.0
        %2333 = vmatpush1.msra.mxu0 %v2241
        %2334 = vmatprep.subr.mxu0 0.0
        %2335 = vmatpush1.msra.mxu0 %v2240
        %2336 = vmatprep.subr.mxu0 0.0
        %2337 = vmatpush1.msra.mxu0 %v2239
        %2338 = vmatprep.subr.mxu0 0.0
        %2339 = vmatpush1.msra.mxu0 %v2238
        %2340 = vmatprep.subr.mxu0 0.0
        %2341 = vmatpush1.msra.mxu0 %v2237
        %2342 = vmatprep.subr.mxu0 0.0
        %2343 = vmatpush1.msra.mxu0 %v2236
        %2344 = vmatprep.subr.mxu0 0.0
        %2345 = vmatpush1.msra.mxu0 %v2235
        %2346 = vmatprep.subr.mxu0 0.0
        %2347 = vmatpush1.msra.mxu0 %v2234
        %2348 = vmatprep.subr.mxu0 0.0
        %2349 = vmatpush1.msra.mxu0 %v2233
        %2350 = vmatprep.subr.mxu0 0.0
        %2351 = vmatpush1.msra.mxu0 %v2232
        %2352 = vmatprep.subr.mxu0 0.0
        %2353 = vmatpush1.msra.mxu0 %v2231
        %2354 = vmatprep.subr.mxu0 0.0
        %2355 = vmatpush1.msra.mxu0 %v2230
        %2356 = vmatprep.subr.mxu0 0.0
        %2357 = vmatpush1.msra.mxu0 %v2229
        %2358 = vmatprep.subr.mxu0 0.0
        %2359 = vmatpush1.msra.mxu0 %v2228
        %2360 = vmatprep.subr.mxu0 0.0
        %2361 = vmatpush1.msra.mxu0 %v2227
        %2362 = vmatprep.subr.mxu0 0.0
        %2363 = vmatpush2.msra.mxu0 %v2258
        %2364 = vmatprep.subr.mxu0 0.0
        %2365 = vmatpush2.msra.mxu0 %v2257
        %2366 = vmatprep.subr.mxu0 0.0
        %2367 = vmatpush2.msra.mxu0 %v2256
        %2368 = vmatprep.subr.mxu0 0.0
        %2369 = vmatpush2.msra.mxu0 %v2255
        %2370 = vmatprep.subr.mxu0 0.0
        %2371 = vmatpush2.msra.mxu0 %v2254
        %2372 = vmatprep.subr.mxu0 0.0
        %2373 = vmatpush2.msra.mxu0 %v2253
        %2374 = vmatprep.subr.mxu0 0.0
        %2375 = vmatpush2.msra.mxu0 %v2252
        %2376 = vmatprep.subr.mxu0 0.0
        %2377 = vmatpush2.msra.mxu0 %v2251
        %2378 = vmatprep.subr.mxu0 0.0
        %2379 = vmatpush2.msra.mxu0 %v2250
        %2380 = vmatprep.subr.mxu0 0.0
        %2381 = vmatpush2.msra.mxu0 %v2249
        %2382 = vmatprep.subr.mxu0 0.0
        %2383 = vmatpush2.msra.mxu0 %v2248
        %2384 = vmatprep.subr.mxu0 0.0
        %2385 = vmatpush2.msra.mxu0 %v2247
        %2386 = vmatprep.subr.mxu0 0.0
        %2387 = vmatpush2.msra.mxu0 %v2246
        %2388 = vmatprep.subr.mxu0 0.0
        %2389 = vmatpush2.msra.mxu0 %v2245
        %2390 = vmatprep.subr.mxu0 0.0
        %2391 = vmatpush2.msra.mxu0 %v2244
        %2392 = vmatprep.subr.mxu0 0.0
        %2393 = vmatpush2.msra.mxu0 %v2243
        %2394 = vmatprep.mubr.f32.mxu0 %v2291
        %2395 = vmatmul.mubr.f32.gmra.mxu0 %v2290
        %v2396 = vpop.f32.mrf.mxu0
        %v2397 = vadd.f32 %v2308, %v2396
        %v2398 = vpop.f32.mrf.mxu0
        %2399 = vmatprep.mubr.f32.mxu0 %v2295
        %2400 = vmatmul.mubr.f32.gmra.mxu0 %v2294
        %v2401 = vpop.f32.mrf.mxu0
        %v2402 = vadd.f32 %v2313, %v2401
        %v2403 = vpop.f32.mrf.mxu0
        %2404 = vmatprep.mubr.f32.mxu0 %v2299
        %2405 = vmatmul.mubr.f32.gmra.mxu0 %v2298
        %v2406 = vpop.f32.mrf.mxu0
        %v2407 = vadd.f32 %v2318, %v2406
        %v2408 = vpop.f32.mrf.mxu0
        %2409 = vdwg.mxu0
        %2410 = vmatprep.subr.mxu0 0.0
        %2411 = vmatpush1.msra.mxu0 %v2274
        %2412 = vmatprep.subr.mxu0 0.0
        %2413 = vmatpush1.msra.mxu0 %v2273
        %2414 = vmatprep.subr.mxu0 0.0
        %2415 = vmatpush1.msra.mxu0 %v2272
        %2416 = vmatprep.subr.mxu0 0.0
        %2417 = vmatpush1.msra.mxu0 %v2271
        %2418 = vmatprep.subr.mxu0 0.0
        %2419 = vmatpush1.msra.mxu0 %v2270
        %2420 = vmatprep.subr.mxu0 0.0
        %2421 = vmatpush1.msra.mxu0 %v2269
        %2422 = vmatprep.subr.mxu0 0.0
        %2423 = vmatpush1.msra.mxu0 %v2268
        %2424 = vmatprep.subr.mxu0 0.0
        %2425 = vmatpush1.msra.mxu0 %v2267
        %2426 = vmatprep.subr.mxu0 0.0
        %2427 = vmatpush1.msra.mxu0 %v2266
        %2428 = vmatprep.subr.mxu0 0.0
        %2429 = vmatpush1.msra.mxu0 %v2265
        %2430 = vmatprep.subr.mxu0 0.0
        %2431 = vmatpush1.msra.mxu0 %v2264
        %2432 = vmatprep.subr.mxu0 0.0
        %2433 = vmatpush1.msra.mxu0 %v2263
        %2434 = vmatprep.subr.mxu0 0.0
        %2435 = vmatpush1.msra.mxu0 %v2262
        %2436 = vmatprep.subr.mxu0 0.0
        %2437 = vmatpush1.msra.mxu0 %v2261
        %2438 = vmatprep.subr.mxu0 0.0
        %2439 = vmatpush1.msra.mxu0 %v2260
        %2440 = vmatprep.subr.mxu0 0.0
        %2441 = vmatpush1.msra.mxu0 %v2259
        %2442 = vmatprep.subr.mxu0 0.0
        %2443 = vmatpush2.msra.mxu0 0.0
        %2444 = vmatprep.subr.mxu0 0.0
        %2445 = vmatpush2.msra.mxu0 %v2289
        %2446 = vmatprep.subr.mxu0 0.0
        %2447 = vmatpush2.msra.mxu0 %v2288
        %2448 = vmatprep.subr.mxu0 0.0
        %2449 = vmatpush2.msra.mxu0 %v2287
        %2450 = vmatprep.subr.mxu0 0.0
        %2451 = vmatpush2.msra.mxu0 %v2286
        %2452 = vmatprep.subr.mxu0 0.0
        %2453 = vmatpush2.msra.mxu0 %v2285
        %2454 = vmatprep.subr.mxu0 0.0
        %2455 = vmatpush2.msra.mxu0 %v2284
        %2456 = vmatprep.subr.mxu0 0.0
        %2457 = vmatpush2.msra.mxu0 %v2283
        %2458 = vmatprep.subr.mxu0 0.0
        %2459 = vmatpush2.msra.mxu0 %v2282
        %2460 = vmatprep.subr.mxu0 0.0
        %2461 = vmatpush2.msra.mxu0 %v2281
        %2462 = vmatprep.subr.mxu0 0.0
        %2463 = vmatpush2.msra.mxu0 %v2280
        %2464 = vmatprep.subr.mxu0 0.0
        %2465 = vmatpush2.msra.mxu0 %v2279
        %2466 = vmatprep.subr.mxu0 0.0
        %2467 = vmatpush2.msra.mxu0 %v2278
        %2468 = vmatprep.subr.mxu0 0.0
        %2469 = vmatpush2.msra.mxu0 %v2277
        %2470 = vmatprep.subr.mxu0 0.0
        %2471 = vmatpush2.msra.mxu0 %v2276
        %2472 = vmatprep.subr.mxu0 0.0
        %2473 = vmatpush2.msra.mxu0 %v2275
        %2474 = vmatprep.mubr.f32.mxu0 %v2322
        %2475 = vmatmul.mubr.f32.gmra.mxu0 %v2292
        %v2476 = vpop.f32.mrf.mxu0
        %v2477 = vadd.f32 %v2397, %v2476
        %v2478 = vpop.f32.mrf.mxu0
        %2479 = vmatprep.mubr.f32.mxu0 %v2325
        %2480 = vmatmul.mubr.f32.gmra.mxu0 %v2296
        %v2481 = vpop.f32.mrf.mxu0
        %v2482 = vadd.f32 %v2402, %v2481
        %v2483 = vpop.f32.mrf.mxu0
        %2484 = vmatprep.mubr.f32.mxu0 %v2328
        %2485 = vmatmul.mubr.f32.gmra.mxu0 %v2300
        %v2486 = vpop.f32.mrf.mxu0
        %v2487 = vadd.f32 %v2407, %v2486
        %v2488 = vpop.f32.mrf.mxu0
        %2489 = vdwg.mxu0
        %v2490 = vtanh.pop %v2477
        %v2491 = vtanh.pop %v2482
        %v2492 = vtanh.pop %v2487
        %2496 = vrot.lane.b32.xlu0 %v2490, 74
        %v2497 = vpop.permute.xlu0 %2496
        %2498 = vrot.lane.b32.xlu0 %v2491, 74
        %v2499 = vpop.permute.xlu0 %2498
        %2500 = vrot.lane.b32.xlu0 %v2492, 74
        %v2501 = vpop.permute.xlu0 %2500
        %2505 = vrot.lane.b32.xlu0 %v2490, 10
        %v2506 = vpop.permute.xlu0 %2505
        %2507 = vrot.lane.b32.xlu0 %v2491, 10
        %v2508 = vpop.permute.xlu0 %2507
        %2509 = vrot.lane.b32.xlu0 %v2492, 10
        %v2510 = vpop.permute.xlu0 %2509
        %v2514 = vsel %vm889, %v2497, %v2506
        %v2515 = vsel %vm889, %v2499, %v2508
        %v2516 = vsel %vm889, %v2501, %v2510
        %v2517 = vsel %vm891, %v2514, %v2497
        %v2518 = vsel %vm891, %v2515, %v2499
        %v2519 = vsel %vm891, %v2516, %v2501
        %2523 = vrot.lane.b32.xlu0 %v2517, 127
        %v2524 = vpop.permute.xlu0 %2523
        %2525 = vrot.lane.b32.xlu0 %v2518, 127
        %v2526 = vpop.permute.xlu0 %2525
        %2527 = vrot.lane.b32.xlu0 %v2519, 127
        %v2528 = vpop.permute.xlu0 %2527
        %2532 = vrot.lane.b32.xlu0 %v2517, 126
        %v2533 = vpop.permute.xlu0 %2532
        %2534 = vrot.lane.b32.xlu0 %v2518, 126
        %v2535 = vpop.permute.xlu0 %2534
        %2536 = vrot.lane.b32.xlu0 %v2519, 126
        %v2537 = vpop.permute.xlu0 %2536
        %2541 = vrot.lane.b32.xlu0 %v2517, 125
        %v2542 = vpop.permute.xlu0 %2541
        %2543 = vrot.lane.b32.xlu0 %v2518, 125
        %v2544 = vpop.permute.xlu0 %2543
        %2545 = vrot.lane.b32.xlu0 %v2519, 125
        %v2546 = vpop.permute.xlu0 %2545
        %2550 = vrot.lane.b32.xlu0 %v2517, 124
        %v2551 = vpop.permute.xlu0 %2550
        %2552 = vrot.lane.b32.xlu0 %v2518, 124
        %v2553 = vpop.permute.xlu0 %2552
        %2554 = vrot.lane.b32.xlu0 %v2519, 124
        %v2555 = vpop.permute.xlu0 %2554
        %2559 = vrot.lane.b32.xlu0 %v2517, 123
        %v2560 = vpop.permute.xlu0 %2559
        %2561 = vrot.lane.b32.xlu0 %v2518, 123
        %v2562 = vpop.permute.xlu0 %2561
        %2563 = vrot.lane.b32.xlu0 %v2519, 123
        %v2564 = vpop.permute.xlu0 %2563
        %2568 = vrot.lane.b32.xlu0 %v2517, 122
        %v2569 = vpop.permute.xlu0 %2568
        %2570 = vrot.lane.b32.xlu0 %v2518, 122
        %v2571 = vpop.permute.xlu0 %2570
        %2572 = vrot.lane.b32.xlu0 %v2519, 122
        %v2573 = vpop.permute.xlu0 %2572
        %2577 = vrot.lane.b32.xlu0 %v2517, 121
        %v2578 = vpop.permute.xlu0 %2577
        %2579 = vrot.lane.b32.xlu0 %v2518, 121
        %v2580 = vpop.permute.xlu0 %2579
        %2581 = vrot.lane.b32.xlu0 %v2519, 121
        %v2582 = vpop.permute.xlu0 %2581
        %2586 = vrot.lane.b32.xlu0 %v2517, 120
        %v2587 = vpop.permute.xlu0 %2586
        %2588 = vrot.lane.b32.xlu0 %v2518, 120
        %v2589 = vpop.permute.xlu0 %2588
        %2590 = vrot.lane.b32.xlu0 %v2519, 120
        %v2591 = vpop.permute.xlu0 %2590
        %2595 = vrot.lane.b32.xlu0 %v2517, 119
        %v2596 = vpop.permute.xlu0 %2595
        %2597 = vrot.lane.b32.xlu0 %v2518, 119
        %v2598 = vpop.permute.xlu0 %2597
        %2599 = vrot.lane.b32.xlu0 %v2519, 119
        %v2600 = vpop.permute.xlu0 %2599
        %2604 = vrot.lane.b32.xlu0 %v2517, 118
        %v2605 = vpop.permute.xlu0 %2604
        %2606 = vrot.lane.b32.xlu0 %v2518, 118
        %v2607 = vpop.permute.xlu0 %2606
        %2608 = vrot.lane.b32.xlu0 %v2519, 118
        %v2609 = vpop.permute.xlu0 %2608
        %2613 = vrot.lane.b32.xlu0 %v2517, 117
        %v2614 = vpop.permute.xlu0 %2613
        %2615 = vrot.lane.b32.xlu0 %v2518, 117
        %v2616 = vpop.permute.xlu0 %2615
        %2617 = vrot.lane.b32.xlu0 %v2519, 117
        %v2618 = vpop.permute.xlu0 %2617
        %2622 = vrot.lane.b32.xlu0 %v2517, 116
        %v2623 = vpop.permute.xlu0 %2622
        %2624 = vrot.lane.b32.xlu0 %v2518, 116
        %v2625 = vpop.permute.xlu0 %2624
        %2626 = vrot.lane.b32.xlu0 %v2519, 116
        %v2627 = vpop.permute.xlu0 %2626
        %2631 = vrot.lane.b32.xlu0 %v2517, 115
        %v2632 = vpop.permute.xlu0 %2631
        %2633 = vrot.lane.b32.xlu0 %v2518, 115
        %v2634 = vpop.permute.xlu0 %2633
        %2635 = vrot.lane.b32.xlu0 %v2519, 115
        %v2636 = vpop.permute.xlu0 %2635
        %2640 = vrot.lane.b32.xlu0 %v2517, 114
        %v2641 = vpop.permute.xlu0 %2640
        %2642 = vrot.lane.b32.xlu0 %v2518, 114
        %v2643 = vpop.permute.xlu0 %2642
        %2644 = vrot.lane.b32.xlu0 %v2519, 114
        %v2645 = vpop.permute.xlu0 %2644
        %2649 = vrot.lane.b32.xlu0 %v2517, 113
        %v2650 = vpop.permute.xlu0 %2649
        %2651 = vrot.lane.b32.xlu0 %v2518, 113
        %v2652 = vpop.permute.xlu0 %2651
        %2653 = vrot.lane.b32.xlu0 %v2519, 113
        %v2654 = vpop.permute.xlu0 %2653
        %2658 = vrot.lane.b32.xlu0 %v2517, 112
        %v2659 = vpop.permute.xlu0 %2658
        %2660 = vrot.lane.b32.xlu0 %v2518, 112
        %v2661 = vpop.permute.xlu0 %2660
        %2662 = vrot.lane.b32.xlu0 %v2519, 112
        %v2663 = vpop.permute.xlu0 %2662
        %2664 = vrot.lane.b32.xlu0 %v2524, 112
        %v2665 = vpop.permute.xlu0 %2664
        %2666 = vrot.lane.b32.xlu0 %v2526, 112
        %v2667 = vpop.permute.xlu0 %2666
        %2668 = vrot.lane.b32.xlu0 %v2528, 112
        %v2669 = vpop.permute.xlu0 %2668
        %2670 = vrot.lane.b32.xlu0 %v2533, 112
        %v2671 = vpop.permute.xlu0 %2670
        %2672 = vrot.lane.b32.xlu0 %v2535, 112
        %v2673 = vpop.permute.xlu0 %2672
        %2674 = vrot.lane.b32.xlu0 %v2537, 112
        %v2675 = vpop.permute.xlu0 %2674
        %2676 = vrot.lane.b32.xlu0 %v2542, 112
        %v2677 = vpop.permute.xlu0 %2676
        %2678 = vrot.lane.b32.xlu0 %v2544, 112
        %v2679 = vpop.permute.xlu0 %2678
        %2680 = vrot.lane.b32.xlu0 %v2546, 112
        %v2681 = vpop.permute.xlu0 %2680
        %2682 = vrot.lane.b32.xlu0 %v2551, 112
        %v2683 = vpop.permute.xlu0 %2682
        %2684 = vrot.lane.b32.xlu0 %v2553, 112
        %v2685 = vpop.permute.xlu0 %2684
        %2686 = vrot.lane.b32.xlu0 %v2555, 112
        %v2687 = vpop.permute.xlu0 %2686
        %2703 = vrot.lane.b32.xlu0 %v2490, 42
        %v2704 = vpop.permute.xlu0 %2703
        %2705 = vrot.lane.b32.xlu0 %v2491, 42
        %v2706 = vpop.permute.xlu0 %2705
        %2707 = vrot.lane.b32.xlu0 %v2492, 42
        %v2708 = vpop.permute.xlu0 %2707
        %2712 = vrot.lane.b32.xlu0 %v2490, 106
        %v2713 = vpop.permute.xlu0 %2712
        %2714 = vrot.lane.b32.xlu0 %v2491, 106
        %v2715 = vpop.permute.xlu0 %2714
        %2716 = vrot.lane.b32.xlu0 %v2492, 106
        %v2717 = vpop.permute.xlu0 %2716
        %v2721 = vsel %vm889, %v2704, %v2497
        %v2722 = vsel %vm889, %v2706, %v2499
        %v2723 = vsel %vm889, %v2708, %v2501
        %v2724 = vsel %vm981, %v2721, %v2713
        %v2725 = vsel %vm981, %v2722, %v2715
        %v2726 = vsel %vm981, %v2723, %v2717
        %2730 = vrot.lane.b32.xlu0 %v2724, 127
        %v2731 = vpop.permute.xlu0 %2730
        %2732 = vrot.lane.b32.xlu0 %v2725, 127
        %v2733 = vpop.permute.xlu0 %2732
        %2734 = vrot.lane.b32.xlu0 %v2726, 127
        %v2735 = vpop.permute.xlu0 %2734
        %2736 = vrot.lane.b32.xlu0 %v2724, 126
        %v2737 = vpop.permute.xlu0 %2736
        %2738 = vrot.lane.b32.xlu0 %v2725, 126
        %v2739 = vpop.permute.xlu0 %2738
        %2740 = vrot.lane.b32.xlu0 %v2726, 126
        %v2741 = vpop.permute.xlu0 %2740
        %2742 = vrot.lane.b32.xlu0 %v2724, 125
        %v2743 = vpop.permute.xlu0 %2742
        %2744 = vrot.lane.b32.xlu0 %v2725, 125
        %v2745 = vpop.permute.xlu0 %2744
        %2746 = vrot.lane.b32.xlu0 %v2726, 125
        %v2747 = vpop.permute.xlu0 %2746
        %2748 = vrot.lane.b32.xlu0 %v2724, 124
        %v2749 = vpop.permute.xlu0 %2748
        %2750 = vrot.lane.b32.xlu0 %v2725, 124
        %v2751 = vpop.permute.xlu0 %2750
        %2752 = vrot.lane.b32.xlu0 %v2726, 124
        %v2753 = vpop.permute.xlu0 %2752
        %2754 = vrot.lane.b32.xlu0 %v2724, 123
        %v2755 = vpop.permute.xlu0 %2754
        %2756 = vrot.lane.b32.xlu0 %v2725, 123
        %v2757 = vpop.permute.xlu0 %2756
        %2758 = vrot.lane.b32.xlu0 %v2726, 123
        %v2759 = vpop.permute.xlu0 %2758
        %2760 = vrot.lane.b32.xlu0 %v2724, 122
        %v2761 = vpop.permute.xlu0 %2760
        %2762 = vrot.lane.b32.xlu0 %v2725, 122
        %v2763 = vpop.permute.xlu0 %2762
        %2764 = vrot.lane.b32.xlu0 %v2726, 122
        %v2765 = vpop.permute.xlu0 %2764
        %2766 = vrot.lane.b32.xlu0 %v2724, 121
        %v2767 = vpop.permute.xlu0 %2766
        %2768 = vrot.lane.b32.xlu0 %v2725, 121
        %v2769 = vpop.permute.xlu0 %2768
        %2770 = vrot.lane.b32.xlu0 %v2726, 121
        %v2771 = vpop.permute.xlu0 %2770
        %2772 = vrot.lane.b32.xlu0 %v2724, 120
        %v2773 = vpop.permute.xlu0 %2772
        %2774 = vrot.lane.b32.xlu0 %v2725, 120
        %v2775 = vpop.permute.xlu0 %2774
        %2776 = vrot.lane.b32.xlu0 %v2726, 120
        %v2777 = vpop.permute.xlu0 %2776
        %2778 = vrot.lane.b32.xlu0 %v2724, 119
        %v2779 = vpop.permute.xlu0 %2778
        %2780 = vrot.lane.b32.xlu0 %v2725, 119
        %v2781 = vpop.permute.xlu0 %2780
        %2782 = vrot.lane.b32.xlu0 %v2726, 119
        %v2783 = vpop.permute.xlu0 %2782
        %2784 = vrot.lane.b32.xlu0 %v2724, 118
        %v2785 = vpop.permute.xlu0 %2784
        %2786 = vrot.lane.b32.xlu0 %v2725, 118
        %v2787 = vpop.permute.xlu0 %2786
        %2788 = vrot.lane.b32.xlu0 %v2726, 118
        %v2789 = vpop.permute.xlu0 %2788
        %2790 = vrot.lane.b32.xlu0 %v2724, 117
        %v2791 = vpop.permute.xlu0 %2790
        %2792 = vrot.lane.b32.xlu0 %v2725, 117
        %v2793 = vpop.permute.xlu0 %2792
        %2794 = vrot.lane.b32.xlu0 %v2726, 117
        %v2795 = vpop.permute.xlu0 %2794
        %2796 = vrot.lane.b32.xlu0 %v2724, 116
        %v2797 = vpop.permute.xlu0 %2796
        %2798 = vrot.lane.b32.xlu0 %v2725, 116
        %v2799 = vpop.permute.xlu0 %2798
        %2800 = vrot.lane.b32.xlu0 %v2726, 116
        %v2801 = vpop.permute.xlu0 %2800
        %2802 = vrot.lane.b32.xlu0 %v2724, 115
        %v2803 = vpop.permute.xlu0 %2802
        %2804 = vrot.lane.b32.xlu0 %v2725, 115
        %v2805 = vpop.permute.xlu0 %2804
        %2806 = vrot.lane.b32.xlu0 %v2726, 115
        %v2807 = vpop.permute.xlu0 %2806
        %2808 = vrot.lane.b32.xlu0 %v2724, 114
        %v2809 = vpop.permute.xlu0 %2808
        %2810 = vrot.lane.b32.xlu0 %v2725, 114
        %v2811 = vpop.permute.xlu0 %2810
        %2812 = vrot.lane.b32.xlu0 %v2726, 114
        %v2813 = vpop.permute.xlu0 %2812
        %2814 = vrot.lane.b32.xlu0 %v2724, 113
        %v2815 = vpop.permute.xlu0 %2814
        %2816 = vrot.lane.b32.xlu0 %v2725, 113
        %v2817 = vpop.permute.xlu0 %2816
        %2818 = vrot.lane.b32.xlu0 %v2726, 113
        %v2819 = vpop.permute.xlu0 %2818
        %2820 = vrot.lane.b32.xlu0 %v2724, 112
        %v2821 = vpop.permute.xlu0 %2820
        %2822 = vrot.lane.b32.xlu0 %v2725, 112
        %v2823 = vpop.permute.xlu0 %2822
        %2824 = vrot.lane.b32.xlu0 %v2726, 112
        %v2825 = vpop.permute.xlu0 %2824
        %2826 = vrot.lane.b32.xlu0 %v2731, 112
        %v2827 = vpop.permute.xlu0 %2826
        %2828 = vrot.lane.b32.xlu0 %v2733, 112
        %v2829 = vpop.permute.xlu0 %2828
        %2830 = vrot.lane.b32.xlu0 %v2735, 112
        %v2831 = vpop.permute.xlu0 %2830
        %2832 = vrot.lane.b32.xlu0 %v2737, 112
        %v2833 = vpop.permute.xlu0 %2832
        %2834 = vrot.lane.b32.xlu0 %v2739, 112
        %v2835 = vpop.permute.xlu0 %2834
        %2836 = vrot.lane.b32.xlu0 %v2741, 112
        %v2837 = vpop.permute.xlu0 %2836
        %2838 = vrot.lane.b32.xlu0 %v2743, 112
        %v2839 = vpop.permute.xlu0 %2838
        %2840 = vrot.lane.b32.xlu0 %v2745, 112
        %v2841 = vpop.permute.xlu0 %2840
        %2842 = vrot.lane.b32.xlu0 %v2747, 112
        %v2843 = vpop.permute.xlu0 %2842
        %2844 = vrot.lane.b32.xlu0 %v2749, 112
        %v2845 = vpop.permute.xlu0 %2844
        %2846 = vrot.lane.b32.xlu0 %v2751, 112
        %v2847 = vpop.permute.xlu0 %2846
        %2848 = vrot.lane.b32.xlu0 %v2753, 112
        %v2849 = vpop.permute.xlu0 %2848
        %2850 = vrot.lane.b32.xlu0 %v2490, 26
        %v2851 = vpop.permute.xlu0 %2850
        %2852 = vrot.lane.b32.xlu0 %v2491, 26
        %v2853 = vpop.permute.xlu0 %2852
        %2854 = vrot.lane.b32.xlu0 %v2492, 26
        %v2855 = vpop.permute.xlu0 %2854
        %2859 = vrot.lane.b32.xlu0 %v2490, 58
        %v2860 = vpop.permute.xlu0 %2859
        %2861 = vrot.lane.b32.xlu0 %v2491, 58
        %v2862 = vpop.permute.xlu0 %2861
        %2863 = vrot.lane.b32.xlu0 %v2492, 58
        %v2864 = vpop.permute.xlu0 %2863
        %v2868 = vsel %vm889, %v2851, %v2704
        %v2869 = vsel %vm889, %v2853, %v2706
        %v2870 = vsel %vm889, %v2855, %v2708
        %v2871 = vsel %vm1064, %v2868, %v2860
        %v2872 = vsel %vm1064, %v2869, %v2862
        %v2873 = vsel %vm1064, %v2870, %v2864
        %2877 = vrot.lane.b32.xlu0 %v2871, 127
        %v2878 = vpop.permute.xlu0 %2877
        %2879 = vrot.lane.b32.xlu0 %v2872, 127
        %v2880 = vpop.permute.xlu0 %2879
        %2881 = vrot.lane.b32.xlu0 %v2873, 127
        %v2882 = vpop.permute.xlu0 %2881
        %2883 = vrot.lane.b32.xlu0 %v2871, 126
        %v2884 = vpop.permute.xlu0 %2883
        %2885 = vrot.lane.b32.xlu0 %v2872, 126
        %v2886 = vpop.permute.xlu0 %2885
        %2887 = vrot.lane.b32.xlu0 %v2873, 126
        %v2888 = vpop.permute.xlu0 %2887
        %2889 = vrot.lane.b32.xlu0 %v2871, 125
        %v2890 = vpop.permute.xlu0 %2889
        %2891 = vrot.lane.b32.xlu0 %v2872, 125
        %v2892 = vpop.permute.xlu0 %2891
        %2893 = vrot.lane.b32.xlu0 %v2873, 125
        %v2894 = vpop.permute.xlu0 %2893
        %2895 = vrot.lane.b32.xlu0 %v2871, 124
        %v2896 = vpop.permute.xlu0 %2895
        %2897 = vrot.lane.b32.xlu0 %v2872, 124
        %v2898 = vpop.permute.xlu0 %2897
        %2899 = vrot.lane.b32.xlu0 %v2873, 124
        %v2900 = vpop.permute.xlu0 %2899
        %2901 = vrot.lane.b32.xlu0 %v2871, 123
        %v2902 = vpop.permute.xlu0 %2901
        %2903 = vrot.lane.b32.xlu0 %v2872, 123
        %v2904 = vpop.permute.xlu0 %2903
        %2905 = vrot.lane.b32.xlu0 %v2873, 123
        %v2906 = vpop.permute.xlu0 %2905
        %2907 = vrot.lane.b32.xlu0 %v2871, 122
        %v2908 = vpop.permute.xlu0 %2907
        %2909 = vrot.lane.b32.xlu0 %v2872, 122
        %v2910 = vpop.permute.xlu0 %2909
        %2911 = vrot.lane.b32.xlu0 %v2873, 122
        %v2912 = vpop.permute.xlu0 %2911
        %2913 = vrot.lane.b32.xlu0 %v2871, 121
        %v2914 = vpop.permute.xlu0 %2913
        %2915 = vrot.lane.b32.xlu0 %v2872, 121
        %v2916 = vpop.permute.xlu0 %2915
        %2917 = vrot.lane.b32.xlu0 %v2873, 121
        %v2918 = vpop.permute.xlu0 %2917
        %2919 = vrot.lane.b32.xlu0 %v2871, 120
        %v2920 = vpop.permute.xlu0 %2919
        %2921 = vrot.lane.b32.xlu0 %v2872, 120
        %v2922 = vpop.permute.xlu0 %2921
        %2923 = vrot.lane.b32.xlu0 %v2873, 120
        %v2924 = vpop.permute.xlu0 %2923
        %2925 = vrot.lane.b32.xlu0 %v2871, 119
        %v2926 = vpop.permute.xlu0 %2925
        %2927 = vrot.lane.b32.xlu0 %v2872, 119
        %v2928 = vpop.permute.xlu0 %2927
        %2929 = vrot.lane.b32.xlu0 %v2873, 119
        %v2930 = vpop.permute.xlu0 %2929
        %2931 = vrot.lane.b32.xlu0 %v2871, 118
        %v2932 = vpop.permute.xlu0 %2931
        %2933 = vrot.lane.b32.xlu0 %v2872, 118
        %v2934 = vpop.permute.xlu0 %2933
        %2935 = vrot.lane.b32.xlu0 %v2873, 118
        %v2936 = vpop.permute.xlu0 %2935
        %2937 = vrot.lane.b32.xlu0 %v2871, 117
        %v2938 = vpop.permute.xlu0 %2937
        %2939 = vrot.lane.b32.xlu0 %v2872, 117
        %v2940 = vpop.permute.xlu0 %2939
        %2941 = vrot.lane.b32.xlu0 %v2873, 117
        %v2942 = vpop.permute.xlu0 %2941
        %2943 = vrot.lane.b32.xlu0 %v2871, 116
        %v2944 = vpop.permute.xlu0 %2943
        %2945 = vrot.lane.b32.xlu0 %v2872, 116
        %v2946 = vpop.permute.xlu0 %2945
        %2947 = vrot.lane.b32.xlu0 %v2873, 116
        %v2948 = vpop.permute.xlu0 %2947
        %2949 = vrot.lane.b32.xlu0 %v2871, 115
        %v2950 = vpop.permute.xlu0 %2949
        %2951 = vrot.lane.b32.xlu0 %v2872, 115
        %v2952 = vpop.permute.xlu0 %2951
        %2953 = vrot.lane.b32.xlu0 %v2873, 115
        %v2954 = vpop.permute.xlu0 %2953
        %2955 = vrot.lane.b32.xlu0 %v2871, 114
        %v2956 = vpop.permute.xlu0 %2955
        %2957 = vrot.lane.b32.xlu0 %v2872, 114
        %v2958 = vpop.permute.xlu0 %2957
        %2959 = vrot.lane.b32.xlu0 %v2873, 114
        %v2960 = vpop.permute.xlu0 %2959
        %2961 = vrot.lane.b32.xlu0 %v2871, 113
        %v2962 = vpop.permute.xlu0 %2961
        %2963 = vrot.lane.b32.xlu0 %v2872, 113
        %v2964 = vpop.permute.xlu0 %2963
        %2965 = vrot.lane.b32.xlu0 %v2873, 113
        %v2966 = vpop.permute.xlu0 %2965
        %2967 = vrot.lane.b32.xlu0 %v2871, 112
        %v2968 = vpop.permute.xlu0 %2967
        %2969 = vrot.lane.b32.xlu0 %v2872, 112
        %v2970 = vpop.permute.xlu0 %2969
        %2971 = vrot.lane.b32.xlu0 %v2873, 112
        %v2972 = vpop.permute.xlu0 %2971
        %2973 = vrot.lane.b32.xlu0 %v2878, 112
        %v2974 = vpop.permute.xlu0 %2973
        %2975 = vrot.lane.b32.xlu0 %v2880, 112
        %v2976 = vpop.permute.xlu0 %2975
        %2977 = vrot.lane.b32.xlu0 %v2882, 112
        %v2978 = vpop.permute.xlu0 %2977
        %2979 = vrot.lane.b32.xlu0 %v2884, 112
        %v2980 = vpop.permute.xlu0 %2979
        %2981 = vrot.lane.b32.xlu0 %v2886, 112
        %v2982 = vpop.permute.xlu0 %2981
        %2983 = vrot.lane.b32.xlu0 %v2888, 112
        %v2984 = vpop.permute.xlu0 %2983
        %2985 = vrot.lane.b32.xlu0 %v2890, 112
        %v2986 = vpop.permute.xlu0 %2985
        %2987 = vrot.lane.b32.xlu0 %v2892, 112
        %v2988 = vpop.permute.xlu0 %2987
        %2989 = vrot.lane.b32.xlu0 %v2894, 112
        %v2990 = vpop.permute.xlu0 %2989
        %2991 = vrot.lane.b32.xlu0 %v2896, 112
        %v2992 = vpop.permute.xlu0 %2991
        %2993 = vrot.lane.b32.xlu0 %v2898, 112
        %v2994 = vpop.permute.xlu0 %2993
        %2995 = vrot.lane.b32.xlu0 %v2900, 112
        %v2996 = vpop.permute.xlu0 %2995
        %2997 = vrot.lane.b32.xlu0 %v2724, 64
        %v2998 = vpop.permute.xlu0 %2997
        %2999 = vrot.lane.b32.xlu0 %v2725, 64
        %v3000 = vpop.permute.xlu0 %2999
        %3001 = vrot.lane.b32.xlu0 %v2726, 64
        %v3002 = vpop.permute.xlu0 %3001
        %3003 = vrot.lane.b32.xlu0 %v2731, 64
        %v3004 = vpop.permute.xlu0 %3003
        %3005 = vrot.lane.b32.xlu0 %v2733, 64
        %v3006 = vpop.permute.xlu0 %3005
        %3007 = vrot.lane.b32.xlu0 %v2735, 64
        %v3008 = vpop.permute.xlu0 %3007
        %3009 = vrot.lane.b32.xlu0 %v2737, 64
        %v3010 = vpop.permute.xlu0 %3009
        %3011 = vrot.lane.b32.xlu0 %v2739, 64
        %v3012 = vpop.permute.xlu0 %3011
        %3013 = vrot.lane.b32.xlu0 %v2741, 64
        %v3014 = vpop.permute.xlu0 %3013
        %3015 = vrot.lane.b32.xlu0 %v2743, 64
        %v3016 = vpop.permute.xlu0 %3015
        %3017 = vrot.lane.b32.xlu0 %v2745, 64
        %v3018 = vpop.permute.xlu0 %3017
        %3019 = vrot.lane.b32.xlu0 %v2747, 64
        %v3020 = vpop.permute.xlu0 %3019
        %3021 = vrot.lane.b32.xlu0 %v2749, 64
        %v3022 = vpop.permute.xlu0 %3021
        %3023 = vrot.lane.b32.xlu0 %v2751, 64
        %v3024 = vpop.permute.xlu0 %3023
        %3025 = vrot.lane.b32.xlu0 %v2753, 64
        %v3026 = vpop.permute.xlu0 %3025
        %3027 = vrot.lane.b32.xlu0 %v2755, 64
        %v3028 = vpop.permute.xlu0 %3027
        %3029 = vrot.lane.b32.xlu0 %v2757, 64
        %v3030 = vpop.permute.xlu0 %3029
        %3031 = vrot.lane.b32.xlu0 %v2759, 64
        %v3032 = vpop.permute.xlu0 %3031
        %3033 = vrot.lane.b32.xlu0 %v2761, 64
        %v3034 = vpop.permute.xlu0 %3033
        %3035 = vrot.lane.b32.xlu0 %v2763, 64
        %v3036 = vpop.permute.xlu0 %3035
        %3037 = vrot.lane.b32.xlu0 %v2765, 64
        %v3038 = vpop.permute.xlu0 %3037
        %3039 = vrot.lane.b32.xlu0 %v2767, 64
        %v3040 = vpop.permute.xlu0 %3039
        %3041 = vrot.lane.b32.xlu0 %v2769, 64
        %v3042 = vpop.permute.xlu0 %3041
        %3043 = vrot.lane.b32.xlu0 %v2771, 64
        %v3044 = vpop.permute.xlu0 %3043
        %3045 = vrot.lane.b32.xlu0 %v2773, 64
        %v3046 = vpop.permute.xlu0 %3045
        %3047 = vrot.lane.b32.xlu0 %v2775, 64
        %v3048 = vpop.permute.xlu0 %3047
        %3049 = vrot.lane.b32.xlu0 %v2777, 64
        %v3050 = vpop.permute.xlu0 %3049
        %3051 = vrot.lane.b32.xlu0 %v2779, 64
        %v3052 = vpop.permute.xlu0 %3051
        %3053 = vrot.lane.b32.xlu0 %v2781, 64
        %v3054 = vpop.permute.xlu0 %3053
        %3055 = vrot.lane.b32.xlu0 %v2783, 64
        %v3056 = vpop.permute.xlu0 %3055
        %3057 = vrot.lane.b32.xlu0 %v2785, 64
        %v3058 = vpop.permute.xlu0 %3057
        %3059 = vrot.lane.b32.xlu0 %v2787, 64
        %v3060 = vpop.permute.xlu0 %3059
        %3061 = vrot.lane.b32.xlu0 %v2789, 64
        %v3062 = vpop.permute.xlu0 %3061
        %3063 = vrot.lane.b32.xlu0 %v2791, 64
        %v3064 = vpop.permute.xlu0 %3063
        %3065 = vrot.lane.b32.xlu0 %v2793, 64
        %v3066 = vpop.permute.xlu0 %3065
        %3067 = vrot.lane.b32.xlu0 %v2795, 64
        %v3068 = vpop.permute.xlu0 %3067
        %3069 = vrot.lane.b32.xlu0 %v2797, 64
        %v3070 = vpop.permute.xlu0 %3069
        %3071 = vrot.lane.b32.xlu0 %v2799, 64
        %v3072 = vpop.permute.xlu0 %3071
        %3073 = vrot.lane.b32.xlu0 %v2801, 64
        %v3074 = vpop.permute.xlu0 %3073
        %3075 = vrot.lane.b32.xlu0 %v2803, 64
        %v3076 = vpop.permute.xlu0 %3075
        %3077 = vrot.lane.b32.xlu0 %v2805, 64
        %v3078 = vpop.permute.xlu0 %3077
        %3079 = vrot.lane.b32.xlu0 %v2807, 64
        %v3080 = vpop.permute.xlu0 %3079
        %3081 = vrot.lane.b32.xlu0 %v2809, 64
        %v3082 = vpop.permute.xlu0 %3081
        %3083 = vrot.lane.b32.xlu0 %v2811, 64
        %v3084 = vpop.permute.xlu0 %3083
        %3085 = vrot.lane.b32.xlu0 %v2813, 64
        %v3086 = vpop.permute.xlu0 %3085
        %3087 = vrot.lane.b32.xlu0 %v2815, 64
        %v3088 = vpop.permute.xlu0 %3087
        %3089 = vrot.lane.b32.xlu0 %v2817, 64
        %v3090 = vpop.permute.xlu0 %3089
        %3091 = vrot.lane.b32.xlu0 %v2819, 64
        %v3092 = vpop.permute.xlu0 %3091
        %3093 = vrot.lane.b32.xlu0 %v2821, 64
        %v3094 = vpop.permute.xlu0 %3093
        %3095 = vrot.lane.b32.xlu0 %v2823, 64
        %v3096 = vpop.permute.xlu0 %3095
        %3097 = vrot.lane.b32.xlu0 %v2825, 64
        %v3098 = vpop.permute.xlu0 %3097
        %3099 = vrot.lane.b32.xlu0 %v2827, 64
        %v3100 = vpop.permute.xlu0 %3099
        %3101 = vrot.lane.b32.xlu0 %v2829, 64
        %v3102 = vpop.permute.xlu0 %3101
        %3103 = vrot.lane.b32.xlu0 %v2831, 64
        %v3104 = vpop.permute.xlu0 %3103
        %3105 = vrot.lane.b32.xlu0 %v2833, 64
        %v3106 = vpop.permute.xlu0 %3105
        %3107 = vrot.lane.b32.xlu0 %v2835, 64
        %v3108 = vpop.permute.xlu0 %3107
        %3109 = vrot.lane.b32.xlu0 %v2837, 64
        %v3110 = vpop.permute.xlu0 %3109
        %3111 = vrot.lane.b32.xlu0 %v2839, 64
        %v3112 = vpop.permute.xlu0 %3111
        %3113 = vrot.lane.b32.xlu0 %v2841, 64
        %v3114 = vpop.permute.xlu0 %3113
        %3115 = vrot.lane.b32.xlu0 %v2843, 64
        %v3116 = vpop.permute.xlu0 %3115
        %3117 = vrot.lane.b32.xlu0 %v2845, 64
        %v3118 = vpop.permute.xlu0 %3117
        %3119 = vrot.lane.b32.xlu0 %v2847, 64
        %v3120 = vpop.permute.xlu0 %3119
        %3121 = vrot.lane.b32.xlu0 %v2849, 64
        %v3122 = vpop.permute.xlu0 %3121
        %3186 = vrot.lane.b32.xlu0 %v2871, 96
        %v3187 = vpop.permute.xlu0 %3186
        %3188 = vrot.lane.b32.xlu0 %v2872, 96
        %v3189 = vpop.permute.xlu0 %3188
        %3190 = vrot.lane.b32.xlu0 %v2873, 96
        %v3191 = vpop.permute.xlu0 %3190
        %3192 = vrot.lane.b32.xlu0 %v2878, 96
        %v3193 = vpop.permute.xlu0 %3192
        %3194 = vrot.lane.b32.xlu0 %v2880, 96
        %v3195 = vpop.permute.xlu0 %3194
        %3196 = vrot.lane.b32.xlu0 %v2882, 96
        %v3197 = vpop.permute.xlu0 %3196
        %3198 = vrot.lane.b32.xlu0 %v2884, 96
        %v3199 = vpop.permute.xlu0 %3198
        %3200 = vrot.lane.b32.xlu0 %v2886, 96
        %v3201 = vpop.permute.xlu0 %3200
        %3202 = vrot.lane.b32.xlu0 %v2888, 96
        %v3203 = vpop.permute.xlu0 %3202
        %3204 = vrot.lane.b32.xlu0 %v2890, 96
        %v3205 = vpop.permute.xlu0 %3204
        %3206 = vrot.lane.b32.xlu0 %v2892, 96
        %v3207 = vpop.permute.xlu0 %3206
        %3208 = vrot.lane.b32.xlu0 %v2894, 96
        %v3209 = vpop.permute.xlu0 %3208
        %3210 = vrot.lane.b32.xlu0 %v2896, 96
        %v3211 = vpop.permute.xlu0 %3210
        %3212 = vrot.lane.b32.xlu0 %v2898, 96
        %v3213 = vpop.permute.xlu0 %3212
        %3214 = vrot.lane.b32.xlu0 %v2900, 96
        %v3215 = vpop.permute.xlu0 %3214
        %3216 = vrot.lane.b32.xlu0 %v2902, 96
        %v3217 = vpop.permute.xlu0 %3216
        %3218 = vrot.lane.b32.xlu0 %v2904, 96
        %v3219 = vpop.permute.xlu0 %3218
        %3220 = vrot.lane.b32.xlu0 %v2906, 96
        %v3221 = vpop.permute.xlu0 %3220
        %3222 = vrot.lane.b32.xlu0 %v2908, 96
        %v3223 = vpop.permute.xlu0 %3222
        %3224 = vrot.lane.b32.xlu0 %v2910, 96
        %v3225 = vpop.permute.xlu0 %3224
        %3226 = vrot.lane.b32.xlu0 %v2912, 96
        %v3227 = vpop.permute.xlu0 %3226
        %3228 = vrot.lane.b32.xlu0 %v2914, 96
        %v3229 = vpop.permute.xlu0 %3228
        %3230 = vrot.lane.b32.xlu0 %v2916, 96
        %v3231 = vpop.permute.xlu0 %3230
        %3232 = vrot.lane.b32.xlu0 %v2918, 96
        %v3233 = vpop.permute.xlu0 %3232
        %3234 = vrot.lane.b32.xlu0 %v2920, 96
        %v3235 = vpop.permute.xlu0 %3234
        %3236 = vrot.lane.b32.xlu0 %v2922, 96
        %v3237 = vpop.permute.xlu0 %3236
        %3238 = vrot.lane.b32.xlu0 %v2924, 96
        %v3239 = vpop.permute.xlu0 %3238
        %3240 = vrot.lane.b32.xlu0 %v2926, 96
        %v3241 = vpop.permute.xlu0 %3240
        %3242 = vrot.lane.b32.xlu0 %v2928, 96
        %v3243 = vpop.permute.xlu0 %3242
        %3244 = vrot.lane.b32.xlu0 %v2930, 96
        %v3245 = vpop.permute.xlu0 %3244
        %3246 = vrot.lane.b32.xlu0 %v2932, 96
        %v3247 = vpop.permute.xlu0 %3246
        %3248 = vrot.lane.b32.xlu0 %v2934, 96
        %v3249 = vpop.permute.xlu0 %3248
        %3250 = vrot.lane.b32.xlu0 %v2936, 96
        %v3251 = vpop.permute.xlu0 %3250
        %3252 = vrot.lane.b32.xlu0 %v2938, 96
        %v3253 = vpop.permute.xlu0 %3252
        %3254 = vrot.lane.b32.xlu0 %v2940, 96
        %v3255 = vpop.permute.xlu0 %3254
        %3256 = vrot.lane.b32.xlu0 %v2942, 96
        %v3257 = vpop.permute.xlu0 %3256
        %3258 = vrot.lane.b32.xlu0 %v2944, 96
        %v3259 = vpop.permute.xlu0 %3258
        %3260 = vrot.lane.b32.xlu0 %v2946, 96
        %v3261 = vpop.permute.xlu0 %3260
        %3262 = vrot.lane.b32.xlu0 %v2948, 96
        %v3263 = vpop.permute.xlu0 %3262
        %3264 = vrot.lane.b32.xlu0 %v2950, 96
        %v3265 = vpop.permute.xlu0 %3264
        %3266 = vrot.lane.b32.xlu0 %v2952, 96
        %v3267 = vpop.permute.xlu0 %3266
        %3268 = vrot.lane.b32.xlu0 %v2954, 96
        %v3269 = vpop.permute.xlu0 %3268
        %3270 = vrot.lane.b32.xlu0 %v2956, 96
        %v3271 = vpop.permute.xlu0 %3270
        %3272 = vrot.lane.b32.xlu0 %v2958, 96
        %v3273 = vpop.permute.xlu0 %3272
        %3274 = vrot.lane.b32.xlu0 %v2960, 96
        %v3275 = vpop.permute.xlu0 %3274
        %3276 = vrot.lane.b32.xlu0 %v2962, 96
        %v3277 = vpop.permute.xlu0 %3276
        %3278 = vrot.lane.b32.xlu0 %v2964, 96
        %v3279 = vpop.permute.xlu0 %3278
        %3280 = vrot.lane.b32.xlu0 %v2966, 96
        %v3281 = vpop.permute.xlu0 %3280
        %3282 = vrot.lane.b32.xlu0 %v2968, 96
        %v3283 = vpop.permute.xlu0 %3282
        %3284 = vrot.lane.b32.xlu0 %v2970, 96
        %v3285 = vpop.permute.xlu0 %3284
        %3286 = vrot.lane.b32.xlu0 %v2972, 96
        %v3287 = vpop.permute.xlu0 %3286
        %3288 = vrot.lane.b32.xlu0 %v2974, 96
        %v3289 = vpop.permute.xlu0 %3288
        %3290 = vrot.lane.b32.xlu0 %v2976, 96
        %v3291 = vpop.permute.xlu0 %3290
        %3292 = vrot.lane.b32.xlu0 %v2978, 96
        %v3293 = vpop.permute.xlu0 %3292
        %3294 = vrot.lane.b32.xlu0 %v2980, 96
        %v3295 = vpop.permute.xlu0 %3294
        %3296 = vrot.lane.b32.xlu0 %v2982, 96
        %v3297 = vpop.permute.xlu0 %3296
        %3298 = vrot.lane.b32.xlu0 %v2984, 96
        %v3299 = vpop.permute.xlu0 %3298
        %3300 = vrot.lane.b32.xlu0 %v2986, 96
        %v3301 = vpop.permute.xlu0 %3300
        %3302 = vrot.lane.b32.xlu0 %v2988, 96
        %v3303 = vpop.permute.xlu0 %3302
        %3304 = vrot.lane.b32.xlu0 %v2990, 96
        %v3305 = vpop.permute.xlu0 %3304
        %3306 = vrot.lane.b32.xlu0 %v2992, 96
        %v3307 = vpop.permute.xlu0 %3306
        %3308 = vrot.lane.b32.xlu0 %v2994, 96
        %v3309 = vpop.permute.xlu0 %3308
        %3310 = vrot.lane.b32.xlu0 %v2996, 96
        %v3311 = vpop.permute.xlu0 %3310
        %v3375 = vsel %vm727, %v2517, %v2998
        %v3376 = vsel %vm727, %v2518, %v3000
        %v3377 = vsel %vm727, %v2519, %v3002
        %v3378 = vsel %vm727, %v2524, %v3004
        %v3379 = vsel %vm727, %v2526, %v3006
        %v3380 = vsel %vm727, %v2528, %v3008
        %v3381 = vsel %vm727, %v2533, %v3010
        %v3382 = vsel %vm727, %v2535, %v3012
        %v3383 = vsel %vm727, %v2537, %v3014
        %v3384 = vsel %vm727, %v2542, %v3016
        %v3385 = vsel %vm727, %v2544, %v3018
        %v3386 = vsel %vm727, %v2546, %v3020
        %v3387 = vsel %vm727, %v2551, %v3022
        %v3388 = vsel %vm727, %v2553, %v3024
        %v3389 = vsel %vm727, %v2555, %v3026
        %v3390 = vsel %vm727, %v2560, %v3028
        %v3391 = vsel %vm727, %v2562, %v3030
        %v3392 = vsel %vm727, %v2564, %v3032
        %v3393 = vsel %vm727, %v2569, %v3034
        %v3394 = vsel %vm727, %v2571, %v3036
        %v3395 = vsel %vm727, %v2573, %v3038
        %v3396 = vsel %vm727, %v2578, %v3040
        %v3397 = vsel %vm727, %v2580, %v3042
        %v3398 = vsel %vm727, %v2582, %v3044
        %v3399 = vsel %vm727, %v2587, %v3046
        %v3400 = vsel %vm727, %v2589, %v3048
        %v3401 = vsel %vm727, %v2591, %v3050
        %v3402 = vsel %vm727, %v2596, %v3052
        %v3403 = vsel %vm727, %v2598, %v3054
        %v3404 = vsel %vm727, %v2600, %v3056
        %v3405 = vsel %vm727, %v2605, %v3058
        %v3406 = vsel %vm727, %v2607, %v3060
        %v3407 = vsel %vm727, %v2609, %v3062
        %v3408 = vsel %vm727, %v2614, %v3064
        %v3409 = vsel %vm727, %v2616, %v3066
        %v3410 = vsel %vm727, %v2618, %v3068
        %v3411 = vsel %vm727, %v2623, %v3070
        %v3412 = vsel %vm727, %v2625, %v3072
        %v3413 = vsel %vm727, %v2627, %v3074
        %v3414 = vsel %vm727, %v2632, %v3076
        %v3415 = vsel %vm727, %v2634, %v3078
        %v3416 = vsel %vm727, %v2636, %v3080
        %v3417 = vsel %vm727, %v2641, %v3082
        %v3418 = vsel %vm727, %v2643, %v3084
        %v3419 = vsel %vm727, %v2645, %v3086
        %v3420 = vsel %vm727, %v2650, %v3088
        %v3421 = vsel %vm727, %v2652, %v3090
        %v3422 = vsel %vm727, %v2654, %v3092
        %v3423 = vsel %vm727, %v2659, %v3094
        %v3424 = vsel %vm727, %v2661, %v3096
        %v3425 = vsel %vm727, %v2663, %v3098
        %v3426 = vsel %vm727, %v2665, %v3100
        %v3427 = vsel %vm727, %v2667, %v3102
        %v3428 = vsel %vm727, %v2669, %v3104
        %v3429 = vsel %vm727, %v2671, %v3106
        %v3430 = vsel %vm727, %v2673, %v3108
        %v3431 = vsel %vm727, %v2675, %v3110
        %v3432 = vsel %vm727, %v2677, %v3112
        %v3433 = vsel %vm727, %v2679, %v3114
        %v3434 = vsel %vm727, %v2681, %v3116
        %v3435 = vsel %vm727, %v2683, %v3118
        %v3436 = vsel %vm727, %v2685, %v3120
        %v3437 = vsel %vm727, %v2687, %v3122
        %v3438 = vsel %vm1161, %v3375, %v3187
        %v3439 = vsel %vm1161, %v3376, %v3189
        %v3440 = vsel %vm1161, %v3377, %v3191
        %v3441 = vsel %vm1161, %v3378, %v3193
        %v3442 = vsel %vm1161, %v3379, %v3195
        %v3443 = vsel %vm1161, %v3380, %v3197
        %v3444 = vsel %vm1161, %v3381, %v3199
        %v3445 = vsel %vm1161, %v3382, %v3201
        %v3446 = vsel %vm1161, %v3383, %v3203
        %v3447 = vsel %vm1161, %v3384, %v3205
        %v3448 = vsel %vm1161, %v3385, %v3207
        %v3449 = vsel %vm1161, %v3386, %v3209
        %v3450 = vsel %vm1161, %v3387, %v3211
        %v3451 = vsel %vm1161, %v3388, %v3213
        %v3452 = vsel %vm1161, %v3389, %v3215
        %v3453 = vsel %vm1161, %v3390, %v3217
        %v3454 = vsel %vm1161, %v3391, %v3219
        %v3455 = vsel %vm1161, %v3392, %v3221
        %v3456 = vsel %vm1161, %v3393, %v3223
        %v3457 = vsel %vm1161, %v3394, %v3225
        %v3458 = vsel %vm1161, %v3395, %v3227
        %v3459 = vsel %vm1161, %v3396, %v3229
        %v3460 = vsel %vm1161, %v3397, %v3231
        %v3461 = vsel %vm1161, %v3398, %v3233
        %v3462 = vsel %vm1161, %v3399, %v3235
        %v3463 = vsel %vm1161, %v3400, %v3237
        %v3464 = vsel %vm1161, %v3401, %v3239
        %v3465 = vsel %vm1161, %v3402, %v3241
        %v3466 = vsel %vm1161, %v3403, %v3243
        %v3467 = vsel %vm1161, %v3404, %v3245
        %v3468 = vsel %vm1161, %v3405, %v3247
        %v3469 = vsel %vm1161, %v3406, %v3249
        %v3470 = vsel %vm1161, %v3407, %v3251
        %v3471 = vsel %vm1161, %v3408, %v3253
        %v3472 = vsel %vm1161, %v3409, %v3255
        %v3473 = vsel %vm1161, %v3410, %v3257
        %v3474 = vsel %vm1161, %v3411, %v3259
        %v3475 = vsel %vm1161, %v3412, %v3261
        %v3476 = vsel %vm1161, %v3413, %v3263
        %v3477 = vsel %vm1161, %v3414, %v3265
        %v3478 = vsel %vm1161, %v3415, %v3267
        %v3479 = vsel %vm1161, %v3416, %v3269
        %v3480 = vsel %vm1161, %v3417, %v3271
        %v3481 = vsel %vm1161, %v3418, %v3273
        %v3482 = vsel %vm1161, %v3419, %v3275
        %v3483 = vsel %vm1161, %v3420, %v3277
        %v3484 = vsel %vm1161, %v3421, %v3279
        %v3485 = vsel %vm1161, %v3422, %v3281
        %v3486 = vsel %vm1161, %v3423, %v3283
        %v3487 = vsel %vm1161, %v3424, %v3285
        %v3488 = vsel %vm1161, %v3425, %v3287
        %v3489 = vsel %vm1161, %v3426, %v3289
        %v3490 = vsel %vm1161, %v3427, %v3291
        %v3491 = vsel %vm1161, %v3428, %v3293
        %v3492 = vsel %vm1161, %v3429, %v3295
        %v3493 = vsel %vm1161, %v3430, %v3297
        %v3494 = vsel %vm1161, %v3431, %v3299
        %v3495 = vsel %vm1161, %v3432, %v3301
        %v3496 = vsel %vm1161, %v3433, %v3303
        %v3497 = vsel %vm1161, %v3434, %v3305
        %v3498 = vsel %vm1161, %v3435, %v3307
        %v3499 = vsel %vm1161, %v3436, %v3309
        %v3500 = vsel %vm1161, %v3437, %v3311
        %v3501 = vld [vmem:[%s5] sm:$0xff]
        %v3502 = vld [vmem:[%s5 + $0x8] sm:$0xff]
        %v3503 = vld [vmem:[%s5 + $0x10] sm:$0xff]
        %v3504 = vld [vmem:[%s5 + $0x18] sm:$0xff]
        %v3505 = vld [vmem:[%s5 + $0x20] sm:$0xff]
        %v3506 = vld [vmem:[%s5 + $0x28] sm:$0xff]
        %v3507 = vld [vmem:[%s5 + $0x30] sm:$0xff]
        %v3508 = vld [vmem:[%s5 + $0x38] sm:$0xff]
        %v3509 = vld [vmem:[%s5 + $0x40] sm:$0xff]
        %v3510 = vld [vmem:[%s5 + $0x48] sm:$0xff]
        %v3511 = vld [vmem:[%s5 + $0x50] sm:$0xff]
        %v3512 = vld [vmem:[%s5 + $0x58] sm:$0xff]
        %v3513 = vld [vmem:[%s6] sm:$0xff]
        %v3514 = vld [vmem:[%s6 + $0x8] sm:$0xff]
        %v3515 = vld [vmem:[%s6 + $0x10] sm:$0xff]
        %3517 = vset.pattern.permute.xlu0 0
        %3518 = vperm.xlu0 %3517, %v3513
        %v3519 = vpop.permute.xlu0 %3518
        %3522 = vset.pattern.permute.xlu0 0
        %3523 = vperm.xlu0 %3522, %v3514
        %v3524 = vpop.permute.xlu0 %3523
        %3527 = vset.pattern.permute.xlu0 0
        %3528 = vperm.xlu0 %3527, %v3515
        %v3529 = vpop.permute.xlu0 %3528
        %v3532 = vsel %vm2320, %v3504, 0
        %v3535 = vsel %vm2320, %v3508, 0
        %v3538 = vsel %vm2320, %v3512, 0
        %3540 = vmatprep.subr.mxu0 0.0
        %3541 = vmatpush1.msra.mxu0 %v3453
        %3542 = vmatprep.subr.mxu0 0.0
        %3543 = vmatpush1.msra.mxu0 %v3452
        %3544 = vmatprep.subr.mxu0 0.0
        %3545 = vmatpush1.msra.mxu0 %v3451
        %3546 = vmatprep.subr.mxu0 0.0
        %3547 = vmatpush1.msra.mxu0 %v3450
        %3548 = vmatprep.subr.mxu0 0.0
        %3549 = vmatpush1.msra.mxu0 %v3449
        %3550 = vmatprep.subr.mxu0 0.0
        %3551 = vmatpush1.msra.mxu0 %v3448
        %3552 = vmatprep.subr.mxu0 0.0
        %3553 = vmatpush1.msra.mxu0 %v3447
        %3554 = vmatprep.subr.mxu0 0.0
        %3555 = vmatpush1.msra.mxu0 %v3446
        %3556 = vmatprep.subr.mxu0 0.0
        %3557 = vmatpush1.msra.mxu0 %v3445
        %3558 = vmatprep.subr.mxu0 0.0
        %3559 = vmatpush1.msra.mxu0 %v3444
        %3560 = vmatprep.subr.mxu0 0.0
        %3561 = vmatpush1.msra.mxu0 %v3443
        %3562 = vmatprep.subr.mxu0 0.0
        %3563 = vmatpush1.msra.mxu0 %v3442
        %3564 = vmatprep.subr.mxu0 0.0
        %3565 = vmatpush1.msra.mxu0 %v3441
        %3566 = vmatprep.subr.mxu0 0.0
        %3567 = vmatpush1.msra.mxu0 %v3440
        %3568 = vmatprep.subr.mxu0 0.0
        %3569 = vmatpush1.msra.mxu0 %v3439
        %3570 = vmatprep.subr.mxu0 0.0
        %3571 = vmatpush1.msra.mxu0 %v3438
        %3572 = vmatprep.subr.mxu0 0.0
        %3573 = vmatpush2.msra.mxu0 %v3469
        %3574 = vmatprep.subr.mxu0 0.0
        %3575 = vmatpush2.msra.mxu0 %v3468
        %3576 = vmatprep.subr.mxu0 0.0
        %3577 = vmatpush2.msra.mxu0 %v3467
        %3578 = vmatprep.subr.mxu0 0.0
        %3579 = vmatpush2.msra.mxu0 %v3466
        %3580 = vmatprep.subr.mxu0 0.0
        %3581 = vmatpush2.msra.mxu0 %v3465
        %3582 = vmatprep.subr.mxu0 0.0
        %3583 = vmatpush2.msra.mxu0 %v3464
        %3584 = vmatprep.subr.mxu0 0.0
        %3585 = vmatpush2.msra.mxu0 %v3463
        %3586 = vmatprep.subr.mxu0 0.0
        %3587 = vmatpush2.msra.mxu0 %v3462
        %3588 = vmatprep.subr.mxu0 0.0
        %3589 = vmatpush2.msra.mxu0 %v3461
        %3590 = vmatprep.subr.mxu0 0.0
        %3591 = vmatpush2.msra.mxu0 %v3460
        %3592 = vmatprep.subr.mxu0 0.0
        %3593 = vmatpush2.msra.mxu0 %v3459
        %3594 = vmatprep.subr.mxu0 0.0
        %3595 = vmatpush2.msra.mxu0 %v3458
        %3596 = vmatprep.subr.mxu0 0.0
        %3597 = vmatpush2.msra.mxu0 %v3457
        %3598 = vmatprep.subr.mxu0 0.0
        %3599 = vmatpush2.msra.mxu0 %v3456
        %3600 = vmatprep.subr.mxu0 0.0
        %3601 = vmatpush2.msra.mxu0 %v3455
        %3602 = vmatprep.subr.mxu0 0.0
        %3603 = vmatpush2.msra.mxu0 %v3454
        %3604 = vmatprep.mubr.f32.mxu0 %v3502
        %3605 = vmatmul.mubr.f32.gmra.mxu0 %v3501
        %v3606 = vpop.f32.mrf.mxu0
        %v3607 = vadd.f32 %v3519, %v3606
        %v3608 = vpop.f32.mrf.mxu0
        %3609 = vmatprep.mubr.f32.mxu0 %v3506
        %3610 = vmatmul.mubr.f32.gmra.mxu0 %v3505
        %v3611 = vpop.f32.mrf.mxu0
        %v3612 = vadd.f32 %v3524, %v3611
        %v3613 = vpop.f32.mrf.mxu0
        %3614 = vmatprep.mubr.f32.mxu0 %v3510
        %3615 = vmatmul.mubr.f32.gmra.mxu0 %v3509
        %v3616 = vpop.f32.mrf.mxu0
        %v3617 = vadd.f32 %v3529, %v3616
        %v3618 = vpop.f32.mrf.mxu0
        %3619 = vdwg.mxu0
        %3620 = vmatprep.subr.mxu0 0.0
        %3621 = vmatpush1.msra.mxu0 %v3485
        %3622 = vmatprep.subr.mxu0 0.0
        %3623 = vmatpush1.msra.mxu0 %v3484
        %3624 = vmatprep.subr.mxu0 0.0
        %3625 = vmatpush1.msra.mxu0 %v3483
        %3626 = vmatprep.subr.mxu0 0.0
        %3627 = vmatpush1.msra.mxu0 %v3482
        %3628 = vmatprep.subr.mxu0 0.0
        %3629 = vmatpush1.msra.mxu0 %v3481
        %3630 = vmatprep.subr.mxu0 0.0
        %3631 = vmatpush1.msra.mxu0 %v3480
        %3632 = vmatprep.subr.mxu0 0.0
        %3633 = vmatpush1.msra.mxu0 %v3479
        %3634 = vmatprep.subr.mxu0 0.0
        %3635 = vmatpush1.msra.mxu0 %v3478
        %3636 = vmatprep.subr.mxu0 0.0
        %3637 = vmatpush1.msra.mxu0 %v3477
        %3638 = vmatprep.subr.mxu0 0.0
        %3639 = vmatpush1.msra.mxu0 %v3476
        %3640 = vmatprep.subr.mxu0 0.0
        %3641 = vmatpush1.msra.mxu0 %v3475
        %3642 = vmatprep.subr.mxu0 0.0
        %3643 = vmatpush1.msra.mxu0 %v3474
        %3644 = vmatprep.subr.mxu0 0.0
        %3645 = vmatpush1.msra.mxu0 %v3473
        %3646 = vmatprep.subr.mxu0 0.0
        %3647 = vmatpush1.msra.mxu0 %v3472
        %3648 = vmatprep.subr.mxu0 0.0
        %3649 = vmatpush1.msra.mxu0 %v3471
        %3650 = vmatprep.subr.mxu0 0.0
        %3651 = vmatpush1.msra.mxu0 %v3470
        %3652 = vmatprep.subr.mxu0 0.0
        %3653 = vmatpush2.msra.mxu0 0.0
        %3654 = vmatprep.subr.mxu0 0.0
        %3655 = vmatpush2.msra.mxu0 %v3500
        %3656 = vmatprep.subr.mxu0 0.0
        %3657 = vmatpush2.msra.mxu0 %v3499
        %3658 = vmatprep.subr.mxu0 0.0
        %3659 = vmatpush2.msra.mxu0 %v3498
        %3660 = vmatprep.subr.mxu0 0.0
        %3661 = vmatpush2.msra.mxu0 %v3497
        %3662 = vmatprep.subr.mxu0 0.0
        %3663 = vmatpush2.msra.mxu0 %v3496
        %3664 = vmatprep.subr.mxu0 0.0
        %3665 = vmatpush2.msra.mxu0 %v3495
        %3666 = vmatprep.subr.mxu0 0.0
        %3667 = vmatpush2.msra.mxu0 %v3494
        %3668 = vmatprep.subr.mxu0 0.0
        %3669 = vmatpush2.msra.mxu0 %v3493
        %3670 = vmatprep.subr.mxu0 0.0
        %3671 = vmatpush2.msra.mxu0 %v3492
        %3672 = vmatprep.subr.mxu0 0.0
        %3673 = vmatpush2.msra.mxu0 %v3491
        %3674 = vmatprep.subr.mxu0 0.0
        %3675 = vmatpush2.msra.mxu0 %v3490
        %3676 = vmatprep.subr.mxu0 0.0
        %3677 = vmatpush2.msra.mxu0 %v3489
        %3678 = vmatprep.subr.mxu0 0.0
        %3679 = vmatpush2.msra.mxu0 %v3488
        %3680 = vmatprep.subr.mxu0 0.0
        %3681 = vmatpush2.msra.mxu0 %v3487
        %3682 = vmatprep.subr.mxu0 0.0
        %3683 = vmatpush2.msra.mxu0 %v3486
        %3684 = vmatprep.mubr.f32.mxu0 %v3532
        %3685 = vmatmul.mubr.f32.gmra.mxu0 %v3503
        %v3686 = vpop.f32.mrf.mxu0
        %v3687 = vadd.f32 %v3607, %v3686
        %v3688 = vpop.f32.mrf.mxu0
        %3689 = vmatprep.mubr.f32.mxu0 %v3535
        %3690 = vmatmul.mubr.f32.gmra.mxu0 %v3507
        %v3691 = vpop.f32.mrf.mxu0
        %v3692 = vadd.f32 %v3612, %v3691
        %v3693 = vpop.f32.mrf.mxu0
        %3694 = vmatprep.mubr.f32.mxu0 %v3538
        %3695 = vmatmul.mubr.f32.gmra.mxu0 %v3511
        %v3696 = vpop.f32.mrf.mxu0
        %v3697 = vadd.f32 %v3617, %v3696
        %v3698 = vpop.f32.mrf.mxu0
        %3699 = vdwg.mxu0
        %v3700 = vtanh.pop %v3687
        %v3701 = vtanh.pop %v3692
        %v3702 = vtanh.pop %v3697
        %3706 = vrot.lane.b32.xlu0 %v3700, 74
        %v3707 = vpop.permute.xlu0 %3706
        %3708 = vrot.lane.b32.xlu0 %v3701, 74
        %v3709 = vpop.permute.xlu0 %3708
        %3710 = vrot.lane.b32.xlu0 %v3702, 74
        %v3711 = vpop.permute.xlu0 %3710
        %3715 = vrot.lane.b32.xlu0 %v3700, 10
        %v3716 = vpop.permute.xlu0 %3715
        %3717 = vrot.lane.b32.xlu0 %v3701, 10
        %v3718 = vpop.permute.xlu0 %3717
        %3719 = vrot.lane.b32.xlu0 %v3702, 10
        %v3720 = vpop.permute.xlu0 %3719
        %v3724 = vsel %vm889, %v3707, %v3716
        %v3725 = vsel %vm889, %v3709, %v3718
        %v3726 = vsel %vm889, %v3711, %v3720
        %v3727 = vsel %vm891, %v3724, %v3707
        %v3728 = vsel %vm891, %v3725, %v3709
        %v3729 = vsel %vm891, %v3726, %v3711
        %3733 = vrot.lane.b32.xlu0 %v3727, 127
        %v3734 = vpop.permute.xlu0 %3733
        %3735 = vrot.lane.b32.xlu0 %v3728, 127
        %v3736 = vpop.permute.xlu0 %3735
        %3737 = vrot.lane.b32.xlu0 %v3729, 127
        %v3738 = vpop.permute.xlu0 %3737
        %3742 = vrot.lane.b32.xlu0 %v3727, 126
        %v3743 = vpop.permute.xlu0 %3742
        %3744 = vrot.lane.b32.xlu0 %v3728, 126
        %v3745 = vpop.permute.xlu0 %3744
        %3746 = vrot.lane.b32.xlu0 %v3729, 126
        %v3747 = vpop.permute.xlu0 %3746
        %3751 = vrot.lane.b32.xlu0 %v3727, 125
        %v3752 = vpop.permute.xlu0 %3751
        %3753 = vrot.lane.b32.xlu0 %v3728, 125
        %v3754 = vpop.permute.xlu0 %3753
        %3755 = vrot.lane.b32.xlu0 %v3729, 125
        %v3756 = vpop.permute.xlu0 %3755
        %3760 = vrot.lane.b32.xlu0 %v3727, 124
        %v3761 = vpop.permute.xlu0 %3760
        %3762 = vrot.lane.b32.xlu0 %v3728, 124
        %v3763 = vpop.permute.xlu0 %3762
        %3764 = vrot.lane.b32.xlu0 %v3729, 124
        %v3765 = vpop.permute.xlu0 %3764
        %3769 = vrot.lane.b32.xlu0 %v3727, 123
        %v3770 = vpop.permute.xlu0 %3769
        %3771 = vrot.lane.b32.xlu0 %v3728, 123
        %v3772 = vpop.permute.xlu0 %3771
        %3773 = vrot.lane.b32.xlu0 %v3729, 123
        %v3774 = vpop.permute.xlu0 %3773
        %3778 = vrot.lane.b32.xlu0 %v3727, 122
        %v3779 = vpop.permute.xlu0 %3778
        %3780 = vrot.lane.b32.xlu0 %v3728, 122
        %v3781 = vpop.permute.xlu0 %3780
        %3782 = vrot.lane.b32.xlu0 %v3729, 122
        %v3783 = vpop.permute.xlu0 %3782
        %3787 = vrot.lane.b32.xlu0 %v3727, 121
        %v3788 = vpop.permute.xlu0 %3787
        %3789 = vrot.lane.b32.xlu0 %v3728, 121
        %v3790 = vpop.permute.xlu0 %3789
        %3791 = vrot.lane.b32.xlu0 %v3729, 121
        %v3792 = vpop.permute.xlu0 %3791
        %3796 = vrot.lane.b32.xlu0 %v3727, 120
        %v3797 = vpop.permute.xlu0 %3796
        %3798 = vrot.lane.b32.xlu0 %v3728, 120
        %v3799 = vpop.permute.xlu0 %3798
        %3800 = vrot.lane.b32.xlu0 %v3729, 120
        %v3801 = vpop.permute.xlu0 %3800
        %3805 = vrot.lane.b32.xlu0 %v3727, 119
        %v3806 = vpop.permute.xlu0 %3805
        %3807 = vrot.lane.b32.xlu0 %v3728, 119
        %v3808 = vpop.permute.xlu0 %3807
        %3809 = vrot.lane.b32.xlu0 %v3729, 119
        %v3810 = vpop.permute.xlu0 %3809
        %3814 = vrot.lane.b32.xlu0 %v3727, 118
        %v3815 = vpop.permute.xlu0 %3814
        %3816 = vrot.lane.b32.xlu0 %v3728, 118
        %v3817 = vpop.permute.xlu0 %3816
        %3818 = vrot.lane.b32.xlu0 %v3729, 118
        %v3819 = vpop.permute.xlu0 %3818
        %3823 = vrot.lane.b32.xlu0 %v3727, 117
        %v3824 = vpop.permute.xlu0 %3823
        %3825 = vrot.lane.b32.xlu0 %v3728, 117
        %v3826 = vpop.permute.xlu0 %3825
        %3827 = vrot.lane.b32.xlu0 %v3729, 117
        %v3828 = vpop.permute.xlu0 %3827
        %3832 = vrot.lane.b32.xlu0 %v3727, 116
        %v3833 = vpop.permute.xlu0 %3832
        %3834 = vrot.lane.b32.xlu0 %v3728, 116
        %v3835 = vpop.permute.xlu0 %3834
        %3836 = vrot.lane.b32.xlu0 %v3729, 116
        %v3837 = vpop.permute.xlu0 %3836
        %3841 = vrot.lane.b32.xlu0 %v3727, 115
        %v3842 = vpop.permute.xlu0 %3841
        %3843 = vrot.lane.b32.xlu0 %v3728, 115
        %v3844 = vpop.permute.xlu0 %3843
        %3845 = vrot.lane.b32.xlu0 %v3729, 115
        %v3846 = vpop.permute.xlu0 %3845
        %3850 = vrot.lane.b32.xlu0 %v3727, 114
        %v3851 = vpop.permute.xlu0 %3850
        %3852 = vrot.lane.b32.xlu0 %v3728, 114
        %v3853 = vpop.permute.xlu0 %3852
        %3854 = vrot.lane.b32.xlu0 %v3729, 114
        %v3855 = vpop.permute.xlu0 %3854
        %3859 = vrot.lane.b32.xlu0 %v3727, 113
        %v3860 = vpop.permute.xlu0 %3859
        %3861 = vrot.lane.b32.xlu0 %v3728, 113
        %v3862 = vpop.permute.xlu0 %3861
        %3863 = vrot.lane.b32.xlu0 %v3729, 113
        %v3864 = vpop.permute.xlu0 %3863
        %3868 = vrot.lane.b32.xlu0 %v3727, 112
        %v3869 = vpop.permute.xlu0 %3868
        %3870 = vrot.lane.b32.xlu0 %v3728, 112
        %v3871 = vpop.permute.xlu0 %3870
        %3872 = vrot.lane.b32.xlu0 %v3729, 112
        %v3873 = vpop.permute.xlu0 %3872
        %3874 = vrot.lane.b32.xlu0 %v3734, 112
        %v3875 = vpop.permute.xlu0 %3874
        %3876 = vrot.lane.b32.xlu0 %v3736, 112
        %v3877 = vpop.permute.xlu0 %3876
        %3878 = vrot.lane.b32.xlu0 %v3738, 112
        %v3879 = vpop.permute.xlu0 %3878
        %3880 = vrot.lane.b32.xlu0 %v3743, 112
        %v3881 = vpop.permute.xlu0 %3880
        %3882 = vrot.lane.b32.xlu0 %v3745, 112
        %v3883 = vpop.permute.xlu0 %3882
        %3884 = vrot.lane.b32.xlu0 %v3747, 112
        %v3885 = vpop.permute.xlu0 %3884
        %3886 = vrot.lane.b32.xlu0 %v3752, 112
        %v3887 = vpop.permute.xlu0 %3886
        %3888 = vrot.lane.b32.xlu0 %v3754, 112
        %v3889 = vpop.permute.xlu0 %3888
        %3890 = vrot.lane.b32.xlu0 %v3756, 112
        %v3891 = vpop.permute.xlu0 %3890
        %3892 = vrot.lane.b32.xlu0 %v3761, 112
        %v3893 = vpop.permute.xlu0 %3892
        %3894 = vrot.lane.b32.xlu0 %v3763, 112
        %v3895 = vpop.permute.xlu0 %3894
        %3896 = vrot.lane.b32.xlu0 %v3765, 112
        %v3897 = vpop.permute.xlu0 %3896
        %3913 = vrot.lane.b32.xlu0 %v3700, 42
        %v3914 = vpop.permute.xlu0 %3913
        %3915 = vrot.lane.b32.xlu0 %v3701, 42
        %v3916 = vpop.permute.xlu0 %3915
        %3917 = vrot.lane.b32.xlu0 %v3702, 42
        %v3918 = vpop.permute.xlu0 %3917
        %3922 = vrot.lane.b32.xlu0 %v3700, 106
        %v3923 = vpop.permute.xlu0 %3922
        %3924 = vrot.lane.b32.xlu0 %v3701, 106
        %v3925 = vpop.permute.xlu0 %3924
        %3926 = vrot.lane.b32.xlu0 %v3702, 106
        %v3927 = vpop.permute.xlu0 %3926
        %v3931 = vsel %vm889, %v3914, %v3707
        %v3932 = vsel %vm889, %v3916, %v3709
        %v3933 = vsel %vm889, %v3918, %v3711
        %v3934 = vsel %vm981, %v3931, %v3923
        %v3935 = vsel %vm981, %v3932, %v3925
        %v3936 = vsel %vm981, %v3933, %v3927
        %3940 = vrot.lane.b32.xlu0 %v3934, 127
        %v3941 = vpop.permute.xlu0 %3940
        %3942 = vrot.lane.b32.xlu0 %v3935, 127
        %v3943 = vpop.permute.xlu0 %3942
        %3944 = vrot.lane.b32.xlu0 %v3936, 127
        %v3945 = vpop.permute.xlu0 %3944
        %3946 = vrot.lane.b32.xlu0 %v3934, 126
        %v3947 = vpop.permute.xlu0 %3946
        %3948 = vrot.lane.b32.xlu0 %v3935, 126
        %v3949 = vpop.permute.xlu0 %3948
        %3950 = vrot.lane.b32.xlu0 %v3936, 126
        %v3951 = vpop.permute.xlu0 %3950
        %3952 = vrot.lane.b32.xlu0 %v3934, 125
        %v3953 = vpop.permute.xlu0 %3952
        %3954 = vrot.lane.b32.xlu0 %v3935, 125
        %v3955 = vpop.permute.xlu0 %3954
        %3956 = vrot.lane.b32.xlu0 %v3936, 125
        %v3957 = vpop.permute.xlu0 %3956
        %3958 = vrot.lane.b32.xlu0 %v3934, 124
        %v3959 = vpop.permute.xlu0 %3958
        %3960 = vrot.lane.b32.xlu0 %v3935, 124
        %v3961 = vpop.permute.xlu0 %3960
        %3962 = vrot.lane.b32.xlu0 %v3936, 124
        %v3963 = vpop.permute.xlu0 %3962
        %3964 = vrot.lane.b32.xlu0 %v3934, 123
        %v3965 = vpop.permute.xlu0 %3964
        %3966 = vrot.lane.b32.xlu0 %v3935, 123
        %v3967 = vpop.permute.xlu0 %3966
        %3968 = vrot.lane.b32.xlu0 %v3936, 123
        %v3969 = vpop.permute.xlu0 %3968
        %3970 = vrot.lane.b32.xlu0 %v3934, 122
        %v3971 = vpop.permute.xlu0 %3970
        %3972 = vrot.lane.b32.xlu0 %v3935, 122
        %v3973 = vpop.permute.xlu0 %3972
        %3974 = vrot.lane.b32.xlu0 %v3936, 122
        %v3975 = vpop.permute.xlu0 %3974
        %3976 = vrot.lane.b32.xlu0 %v3934, 121
        %v3977 = vpop.permute.xlu0 %3976
        %3978 = vrot.lane.b32.xlu0 %v3935, 121
        %v3979 = vpop.permute.xlu0 %3978
        %3980 = vrot.lane.b32.xlu0 %v3936, 121
        %v3981 = vpop.permute.xlu0 %3980
        %3982 = vrot.lane.b32.xlu0 %v3934, 120
        %v3983 = vpop.permute.xlu0 %3982
        %3984 = vrot.lane.b32.xlu0 %v3935, 120
        %v3985 = vpop.permute.xlu0 %3984
        %3986 = vrot.lane.b32.xlu0 %v3936, 120
        %v3987 = vpop.permute.xlu0 %3986
        %3988 = vrot.lane.b32.xlu0 %v3934, 119
        %v3989 = vpop.permute.xlu0 %3988
        %3990 = vrot.lane.b32.xlu0 %v3935, 119
        %v3991 = vpop.permute.xlu0 %3990
        %3992 = vrot.lane.b32.xlu0 %v3936, 119
        %v3993 = vpop.permute.xlu0 %3992
        %3994 = vrot.lane.b32.xlu0 %v3934, 118
        %v3995 = vpop.permute.xlu0 %3994
        %3996 = vrot.lane.b32.xlu0 %v3935, 118
        %v3997 = vpop.permute.xlu0 %3996
        %3998 = vrot.lane.b32.xlu0 %v3936, 118
        %v3999 = vpop.permute.xlu0 %3998
        %4000 = vrot.lane.b32.xlu0 %v3934, 117
        %v4001 = vpop.permute.xlu0 %4000
        %4002 = vrot.lane.b32.xlu0 %v3935, 117
        %v4003 = vpop.permute.xlu0 %4002
        %4004 = vrot.lane.b32.xlu0 %v3936, 117
        %v4005 = vpop.permute.xlu0 %4004
        %4006 = vrot.lane.b32.xlu0 %v3934, 116
        %v4007 = vpop.permute.xlu0 %4006
        %4008 = vrot.lane.b32.xlu0 %v3935, 116
        %v4009 = vpop.permute.xlu0 %4008
        %4010 = vrot.lane.b32.xlu0 %v3936, 116
        %v4011 = vpop.permute.xlu0 %4010
        %4012 = vrot.lane.b32.xlu0 %v3934, 115
        %v4013 = vpop.permute.xlu0 %4012
        %4014 = vrot.lane.b32.xlu0 %v3935, 115
        %v4015 = vpop.permute.xlu0 %4014
        %4016 = vrot.lane.b32.xlu0 %v3936, 115
        %v4017 = vpop.permute.xlu0 %4016
        %4018 = vrot.lane.b32.xlu0 %v3934, 114
        %v4019 = vpop.permute.xlu0 %4018
        %4020 = vrot.lane.b32.xlu0 %v3935, 114
        %v4021 = vpop.permute.xlu0 %4020
        %4022 = vrot.lane.b32.xlu0 %v3936, 114
        %v4023 = vpop.permute.xlu0 %4022
        %4024 = vrot.lane.b32.xlu0 %v3934, 113
        %v4025 = vpop.permute.xlu0 %4024
        %4026 = vrot.lane.b32.xlu0 %v3935, 113
        %v4027 = vpop.permute.xlu0 %4026
        %4028 = vrot.lane.b32.xlu0 %v3936, 113
        %v4029 = vpop.permute.xlu0 %4028
        %4030 = vrot.lane.b32.xlu0 %v3934, 112
        %v4031 = vpop.permute.xlu0 %4030
        %4032 = vrot.lane.b32.xlu0 %v3935, 112
        %v4033 = vpop.permute.xlu0 %4032
        %4034 = vrot.lane.b32.xlu0 %v3936, 112
        %v4035 = vpop.permute.xlu0 %4034
        %4036 = vrot.lane.b32.xlu0 %v3941, 112
        %v4037 = vpop.permute.xlu0 %4036
        %4038 = vrot.lane.b32.xlu0 %v3943, 112
        %v4039 = vpop.permute.xlu0 %4038
        %4040 = vrot.lane.b32.xlu0 %v3945, 112
        %v4041 = vpop.permute.xlu0 %4040
        %4042 = vrot.lane.b32.xlu0 %v3947, 112
        %v4043 = vpop.permute.xlu0 %4042
        %4044 = vrot.lane.b32.xlu0 %v3949, 112
        %v4045 = vpop.permute.xlu0 %4044
        %4046 = vrot.lane.b32.xlu0 %v3951, 112
        %v4047 = vpop.permute.xlu0 %4046
        %4048 = vrot.lane.b32.xlu0 %v3953, 112
        %v4049 = vpop.permute.xlu0 %4048
        %4050 = vrot.lane.b32.xlu0 %v3955, 112
        %v4051 = vpop.permute.xlu0 %4050
        %4052 = vrot.lane.b32.xlu0 %v3957, 112
        %v4053 = vpop.permute.xlu0 %4052
        %4054 = vrot.lane.b32.xlu0 %v3959, 112
        %v4055 = vpop.permute.xlu0 %4054
        %4056 = vrot.lane.b32.xlu0 %v3961, 112
        %v4057 = vpop.permute.xlu0 %4056
        %4058 = vrot.lane.b32.xlu0 %v3963, 112
        %v4059 = vpop.permute.xlu0 %4058
        %4060 = vrot.lane.b32.xlu0 %v3700, 26
        %v4061 = vpop.permute.xlu0 %4060
        %4062 = vrot.lane.b32.xlu0 %v3701, 26
        %v4063 = vpop.permute.xlu0 %4062
        %4064 = vrot.lane.b32.xlu0 %v3702, 26
        %v4065 = vpop.permute.xlu0 %4064
        %4069 = vrot.lane.b32.xlu0 %v3700, 58
        %v4070 = vpop.permute.xlu0 %4069
        %4071 = vrot.lane.b32.xlu0 %v3701, 58
        %v4072 = vpop.permute.xlu0 %4071
        %4073 = vrot.lane.b32.xlu0 %v3702, 58
        %v4074 = vpop.permute.xlu0 %4073
        %v4078 = vsel %vm889, %v4061, %v3914
        %v4079 = vsel %vm889, %v4063, %v3916
        %v4080 = vsel %vm889, %v4065, %v3918
        %v4081 = vsel %vm1064, %v4078, %v4070
        %v4082 = vsel %vm1064, %v4079, %v4072
        %v4083 = vsel %vm1064, %v4080, %v4074
        %4087 = vrot.lane.b32.xlu0 %v4081, 127
        %v4088 = vpop.permute.xlu0 %4087
        %4089 = vrot.lane.b32.xlu0 %v4082, 127
        %v4090 = vpop.permute.xlu0 %4089
        %4091 = vrot.lane.b32.xlu0 %v4083, 127
        %v4092 = vpop.permute.xlu0 %4091
        %4093 = vrot.lane.b32.xlu0 %v4081, 126
        %v4094 = vpop.permute.xlu0 %4093
        %4095 = vrot.lane.b32.xlu0 %v4082, 126
        %v4096 = vpop.permute.xlu0 %4095
        %4097 = vrot.lane.b32.xlu0 %v4083, 126
        %v4098 = vpop.permute.xlu0 %4097
        %4099 = vrot.lane.b32.xlu0 %v4081, 125
        %v4100 = vpop.permute.xlu0 %4099
        %4101 = vrot.lane.b32.xlu0 %v4082, 125
        %v4102 = vpop.permute.xlu0 %4101
        %4103 = vrot.lane.b32.xlu0 %v4083, 125
        %v4104 = vpop.permute.xlu0 %4103
        %4105 = vrot.lane.b32.xlu0 %v4081, 124
        %v4106 = vpop.permute.xlu0 %4105
        %4107 = vrot.lane.b32.xlu0 %v4082, 124
        %v4108 = vpop.permute.xlu0 %4107
        %4109 = vrot.lane.b32.xlu0 %v4083, 124
        %v4110 = vpop.permute.xlu0 %4109
        %4111 = vrot.lane.b32.xlu0 %v4081, 123
        %v4112 = vpop.permute.xlu0 %4111
        %4113 = vrot.lane.b32.xlu0 %v4082, 123
        %v4114 = vpop.permute.xlu0 %4113
        %4115 = vrot.lane.b32.xlu0 %v4083, 123
        %v4116 = vpop.permute.xlu0 %4115
        %4117 = vrot.lane.b32.xlu0 %v4081, 122
        %v4118 = vpop.permute.xlu0 %4117
        %4119 = vrot.lane.b32.xlu0 %v4082, 122
        %v4120 = vpop.permute.xlu0 %4119
        %4121 = vrot.lane.b32.xlu0 %v4083, 122
        %v4122 = vpop.permute.xlu0 %4121
        %4123 = vrot.lane.b32.xlu0 %v4081, 121
        %v4124 = vpop.permute.xlu0 %4123
        %4125 = vrot.lane.b32.xlu0 %v4082, 121
        %v4126 = vpop.permute.xlu0 %4125
        %4127 = vrot.lane.b32.xlu0 %v4083, 121
        %v4128 = vpop.permute.xlu0 %4127
        %4129 = vrot.lane.b32.xlu0 %v4081, 120
        %v4130 = vpop.permute.xlu0 %4129
        %4131 = vrot.lane.b32.xlu0 %v4082, 120
        %v4132 = vpop.permute.xlu0 %4131
        %4133 = vrot.lane.b32.xlu0 %v4083, 120
        %v4134 = vpop.permute.xlu0 %4133
        %4135 = vrot.lane.b32.xlu0 %v4081, 119
        %v4136 = vpop.permute.xlu0 %4135
        %4137 = vrot.lane.b32.xlu0 %v4082, 119
        %v4138 = vpop.permute.xlu0 %4137
        %4139 = vrot.lane.b32.xlu0 %v4083, 119
        %v4140 = vpop.permute.xlu0 %4139
        %4141 = vrot.lane.b32.xlu0 %v4081, 118
        %v4142 = vpop.permute.xlu0 %4141
        %4143 = vrot.lane.b32.xlu0 %v4082, 118
        %v4144 = vpop.permute.xlu0 %4143
        %4145 = vrot.lane.b32.xlu0 %v4083, 118
        %v4146 = vpop.permute.xlu0 %4145
        %4147 = vrot.lane.b32.xlu0 %v4081, 117
        %v4148 = vpop.permute.xlu0 %4147
        %4149 = vrot.lane.b32.xlu0 %v4082, 117
        %v4150 = vpop.permute.xlu0 %4149
        %4151 = vrot.lane.b32.xlu0 %v4083, 117
        %v4152 = vpop.permute.xlu0 %4151
        %4153 = vrot.lane.b32.xlu0 %v4081, 116
        %v4154 = vpop.permute.xlu0 %4153
        %4155 = vrot.lane.b32.xlu0 %v4082, 116
        %v4156 = vpop.permute.xlu0 %4155
        %4157 = vrot.lane.b32.xlu0 %v4083, 116
        %v4158 = vpop.permute.xlu0 %4157
        %4159 = vrot.lane.b32.xlu0 %v4081, 115
        %v4160 = vpop.permute.xlu0 %4159
        %4161 = vrot.lane.b32.xlu0 %v4082, 115
        %v4162 = vpop.permute.xlu0 %4161
        %4163 = vrot.lane.b32.xlu0 %v4083, 115
        %v4164 = vpop.permute.xlu0 %4163
        %4165 = vrot.lane.b32.xlu0 %v4081, 114
        %v4166 = vpop.permute.xlu0 %4165
        %4167 = vrot.lane.b32.xlu0 %v4082, 114
        %v4168 = vpop.permute.xlu0 %4167
        %4169 = vrot.lane.b32.xlu0 %v4083, 114
        %v4170 = vpop.permute.xlu0 %4169
        %4171 = vrot.lane.b32.xlu0 %v4081, 113
        %v4172 = vpop.permute.xlu0 %4171
        %4173 = vrot.lane.b32.xlu0 %v4082, 113
        %v4174 = vpop.permute.xlu0 %4173
        %4175 = vrot.lane.b32.xlu0 %v4083, 113
        %v4176 = vpop.permute.xlu0 %4175
        %4177 = vrot.lane.b32.xlu0 %v4081, 112
        %v4178 = vpop.permute.xlu0 %4177
        %4179 = vrot.lane.b32.xlu0 %v4082, 112
        %v4180 = vpop.permute.xlu0 %4179
        %4181 = vrot.lane.b32.xlu0 %v4083, 112
        %v4182 = vpop.permute.xlu0 %4181
        %4183 = vrot.lane.b32.xlu0 %v4088, 112
        %v4184 = vpop.permute.xlu0 %4183
        %4185 = vrot.lane.b32.xlu0 %v4090, 112
        %v4186 = vpop.permute.xlu0 %4185
        %4187 = vrot.lane.b32.xlu0 %v4092, 112
        %v4188 = vpop.permute.xlu0 %4187
        %4189 = vrot.lane.b32.xlu0 %v4094, 112
        %v4190 = vpop.permute.xlu0 %4189
        %4191 = vrot.lane.b32.xlu0 %v4096, 112
        %v4192 = vpop.permute.xlu0 %4191
        %4193 = vrot.lane.b32.xlu0 %v4098, 112
        %v4194 = vpop.permute.xlu0 %4193
        %4195 = vrot.lane.b32.xlu0 %v4100, 112
        %v4196 = vpop.permute.xlu0 %4195
        %4197 = vrot.lane.b32.xlu0 %v4102, 112
        %v4198 = vpop.permute.xlu0 %4197
        %4199 = vrot.lane.b32.xlu0 %v4104, 112
        %v4200 = vpop.permute.xlu0 %4199
        %4201 = vrot.lane.b32.xlu0 %v4106, 112
        %v4202 = vpop.permute.xlu0 %4201
        %4203 = vrot.lane.b32.xlu0 %v4108, 112
        %v4204 = vpop.permute.xlu0 %4203
        %4205 = vrot.lane.b32.xlu0 %v4110, 112
        %v4206 = vpop.permute.xlu0 %4205
        %4207 = vrot.lane.b32.xlu0 %v3934, 64
        %v4208 = vpop.permute.xlu0 %4207
        %4209 = vrot.lane.b32.xlu0 %v3935, 64
        %v4210 = vpop.permute.xlu0 %4209
        %4211 = vrot.lane.b32.xlu0 %v3936, 64
        %v4212 = vpop.permute.xlu0 %4211
        %4213 = vrot.lane.b32.xlu0 %v3941, 64
        %v4214 = vpop.permute.xlu0 %4213
        %4215 = vrot.lane.b32.xlu0 %v3943, 64
        %v4216 = vpop.permute.xlu0 %4215
        %4217 = vrot.lane.b32.xlu0 %v3945, 64
        %v4218 = vpop.permute.xlu0 %4217
        %4219 = vrot.lane.b32.xlu0 %v3947, 64
        %v4220 = vpop.permute.xlu0 %4219
        %4221 = vrot.lane.b32.xlu0 %v3949, 64
        %v4222 = vpop.permute.xlu0 %4221
        %4223 = vrot.lane.b32.xlu0 %v3951, 64
        %v4224 = vpop.permute.xlu0 %4223
        %4225 = vrot.lane.b32.xlu0 %v3953, 64
        %v4226 = vpop.permute.xlu0 %4225
        %4227 = vrot.lane.b32.xlu0 %v3955, 64
        %v4228 = vpop.permute.xlu0 %4227
        %4229 = vrot.lane.b32.xlu0 %v3957, 64
        %v4230 = vpop.permute.xlu0 %4229
        %4231 = vrot.lane.b32.xlu0 %v3959, 64
        %v4232 = vpop.permute.xlu0 %4231
        %4233 = vrot.lane.b32.xlu0 %v3961, 64
        %v4234 = vpop.permute.xlu0 %4233
        %4235 = vrot.lane.b32.xlu0 %v3963, 64
        %v4236 = vpop.permute.xlu0 %4235
        %4237 = vrot.lane.b32.xlu0 %v3965, 64
        %v4238 = vpop.permute.xlu0 %4237
        %4239 = vrot.lane.b32.xlu0 %v3967, 64
        %v4240 = vpop.permute.xlu0 %4239
        %4241 = vrot.lane.b32.xlu0 %v3969, 64
        %v4242 = vpop.permute.xlu0 %4241
        %4243 = vrot.lane.b32.xlu0 %v3971, 64
        %v4244 = vpop.permute.xlu0 %4243
        %4245 = vrot.lane.b32.xlu0 %v3973, 64
        %v4246 = vpop.permute.xlu0 %4245
        %4247 = vrot.lane.b32.xlu0 %v3975, 64
        %v4248 = vpop.permute.xlu0 %4247
        %4249 = vrot.lane.b32.xlu0 %v3977, 64
        %v4250 = vpop.permute.xlu0 %4249
        %4251 = vrot.lane.b32.xlu0 %v3979, 64
        %v4252 = vpop.permute.xlu0 %4251
        %4253 = vrot.lane.b32.xlu0 %v3981, 64
        %v4254 = vpop.permute.xlu0 %4253
        %4255 = vrot.lane.b32.xlu0 %v3983, 64
        %v4256 = vpop.permute.xlu0 %4255
        %4257 = vrot.lane.b32.xlu0 %v3985, 64
        %v4258 = vpop.permute.xlu0 %4257
        %4259 = vrot.lane.b32.xlu0 %v3987, 64
        %v4260 = vpop.permute.xlu0 %4259
        %4261 = vrot.lane.b32.xlu0 %v3989, 64
        %v4262 = vpop.permute.xlu0 %4261
        %4263 = vrot.lane.b32.xlu0 %v3991, 64
        %v4264 = vpop.permute.xlu0 %4263
        %4265 = vrot.lane.b32.xlu0 %v3993, 64
        %v4266 = vpop.permute.xlu0 %4265
        %4267 = vrot.lane.b32.xlu0 %v3995, 64
        %v4268 = vpop.permute.xlu0 %4267
        %4269 = vrot.lane.b32.xlu0 %v3997, 64
        %v4270 = vpop.permute.xlu0 %4269
        %4271 = vrot.lane.b32.xlu0 %v3999, 64
        %v4272 = vpop.permute.xlu0 %4271
        %4273 = vrot.lane.b32.xlu0 %v4001, 64
        %v4274 = vpop.permute.xlu0 %4273
        %4275 = vrot.lane.b32.xlu0 %v4003, 64
        %v4276 = vpop.permute.xlu0 %4275
        %4277 = vrot.lane.b32.xlu0 %v4005, 64
        %v4278 = vpop.permute.xlu0 %4277
        %4279 = vrot.lane.b32.xlu0 %v4007, 64
        %v4280 = vpop.permute.xlu0 %4279
        %4281 = vrot.lane.b32.xlu0 %v4009, 64
        %v4282 = vpop.permute.xlu0 %4281
        %4283 = vrot.lane.b32.xlu0 %v4011, 64
        %v4284 = vpop.permute.xlu0 %4283
        %4285 = vrot.lane.b32.xlu0 %v4013, 64
        %v4286 = vpop.permute.xlu0 %4285
        %4287 = vrot.lane.b32.xlu0 %v4015, 64
        %v4288 = vpop.permute.xlu0 %4287
        %4289 = vrot.lane.b32.xlu0 %v4017, 64
        %v4290 = vpop.permute.xlu0 %4289
        %4291 = vrot.lane.b32.xlu0 %v4019, 64
        %v4292 = vpop.permute.xlu0 %4291
        %4293 = vrot.lane.b32.xlu0 %v4021, 64
        %v4294 = vpop.permute.xlu0 %4293
        %4295 = vrot.lane.b32.xlu0 %v4023, 64
        %v4296 = vpop.permute.xlu0 %4295
        %4297 = vrot.lane.b32.xlu0 %v4025, 64
        %v4298 = vpop.permute.xlu0 %4297
        %4299 = vrot.lane.b32.xlu0 %v4027, 64
        %v4300 = vpop.permute.xlu0 %4299
        %4301 = vrot.lane.b32.xlu0 %v4029, 64
        %v4302 = vpop.permute.xlu0 %4301
        %4303 = vrot.lane.b32.xlu0 %v4031, 64
        %v4304 = vpop.permute.xlu0 %4303
        %4305 = vrot.lane.b32.xlu0 %v4033, 64
        %v4306 = vpop.permute.xlu0 %4305
        %4307 = vrot.lane.b32.xlu0 %v4035, 64
        %v4308 = vpop.permute.xlu0 %4307
        %4309 = vrot.lane.b32.xlu0 %v4037, 64
        %v4310 = vpop.permute.xlu0 %4309
        %4311 = vrot.lane.b32.xlu0 %v4039, 64
        %v4312 = vpop.permute.xlu0 %4311
        %4313 = vrot.lane.b32.xlu0 %v4041, 64
        %v4314 = vpop.permute.xlu0 %4313
        %4315 = vrot.lane.b32.xlu0 %v4043, 64
        %v4316 = vpop.permute.xlu0 %4315
        %4317 = vrot.lane.b32.xlu0 %v4045, 64
        %v4318 = vpop.permute.xlu0 %4317
        %4319 = vrot.lane.b32.xlu0 %v4047, 64
        %v4320 = vpop.permute.xlu0 %4319
        %4321 = vrot.lane.b32.xlu0 %v4049, 64
        %v4322 = vpop.permute.xlu0 %4321
        %4323 = vrot.lane.b32.xlu0 %v4051, 64
        %v4324 = vpop.permute.xlu0 %4323
        %4325 = vrot.lane.b32.xlu0 %v4053, 64
        %v4326 = vpop.permute.xlu0 %4325
        %4327 = vrot.lane.b32.xlu0 %v4055, 64
        %v4328 = vpop.permute.xlu0 %4327
        %4329 = vrot.lane.b32.xlu0 %v4057, 64
        %v4330 = vpop.permute.xlu0 %4329
        %4331 = vrot.lane.b32.xlu0 %v4059, 64
        %v4332 = vpop.permute.xlu0 %4331
        %4396 = vrot.lane.b32.xlu0 %v4081, 96
        %v4397 = vpop.permute.xlu0 %4396
        %4398 = vrot.lane.b32.xlu0 %v4082, 96
        %v4399 = vpop.permute.xlu0 %4398
        %4400 = vrot.lane.b32.xlu0 %v4083, 96
        %v4401 = vpop.permute.xlu0 %4400
        %4402 = vrot.lane.b32.xlu0 %v4088, 96
        %v4403 = vpop.permute.xlu0 %4402
        %4404 = vrot.lane.b32.xlu0 %v4090, 96
        %v4405 = vpop.permute.xlu0 %4404
        %4406 = vrot.lane.b32.xlu0 %v4092, 96
        %v4407 = vpop.permute.xlu0 %4406
        %4408 = vrot.lane.b32.xlu0 %v4094, 96
        %v4409 = vpop.permute.xlu0 %4408
        %4410 = vrot.lane.b32.xlu0 %v4096, 96
        %v4411 = vpop.permute.xlu0 %4410
        %4412 = vrot.lane.b32.xlu0 %v4098, 96
        %v4413 = vpop.permute.xlu0 %4412
        %4414 = vrot.lane.b32.xlu0 %v4100, 96
        %v4415 = vpop.permute.xlu0 %4414
        %4416 = vrot.lane.b32.xlu0 %v4102, 96
        %v4417 = vpop.permute.xlu0 %4416
        %4418 = vrot.lane.b32.xlu0 %v4104, 96
        %v4419 = vpop.permute.xlu0 %4418
        %4420 = vrot.lane.b32.xlu0 %v4106, 96
        %v4421 = vpop.permute.xlu0 %4420
        %4422 = vrot.lane.b32.xlu0 %v4108, 96
        %v4423 = vpop.permute.xlu0 %4422
        %4424 = vrot.lane.b32.xlu0 %v4110, 96
        %v4425 = vpop.permute.xlu0 %4424
        %4426 = vrot.lane.b32.xlu0 %v4112, 96
        %v4427 = vpop.permute.xlu0 %4426
        %4428 = vrot.lane.b32.xlu0 %v4114, 96
        %v4429 = vpop.permute.xlu0 %4428
        %4430 = vrot.lane.b32.xlu0 %v4116, 96
        %v4431 = vpop.permute.xlu0 %4430
        %4432 = vrot.lane.b32.xlu0 %v4118, 96
        %v4433 = vpop.permute.xlu0 %4432
        %4434 = vrot.lane.b32.xlu0 %v4120, 96
        %v4435 = vpop.permute.xlu0 %4434
        %4436 = vrot.lane.b32.xlu0 %v4122, 96
        %v4437 = vpop.permute.xlu0 %4436
        %4438 = vrot.lane.b32.xlu0 %v4124, 96
        %v4439 = vpop.permute.xlu0 %4438
        %4440 = vrot.lane.b32.xlu0 %v4126, 96
        %v4441 = vpop.permute.xlu0 %4440
        %4442 = vrot.lane.b32.xlu0 %v4128, 96
        %v4443 = vpop.permute.xlu0 %4442
        %4444 = vrot.lane.b32.xlu0 %v4130, 96
        %v4445 = vpop.permute.xlu0 %4444
        %4446 = vrot.lane.b32.xlu0 %v4132, 96
        %v4447 = vpop.permute.xlu0 %4446
        %4448 = vrot.lane.b32.xlu0 %v4134, 96
        %v4449 = vpop.permute.xlu0 %4448
        %4450 = vrot.lane.b32.xlu0 %v4136, 96
        %v4451 = vpop.permute.xlu0 %4450
        %4452 = vrot.lane.b32.xlu0 %v4138, 96
        %v4453 = vpop.permute.xlu0 %4452
        %4454 = vrot.lane.b32.xlu0 %v4140, 96
        %v4455 = vpop.permute.xlu0 %4454
        %4456 = vrot.lane.b32.xlu0 %v4142, 96
        %v4457 = vpop.permute.xlu0 %4456
        %4458 = vrot.lane.b32.xlu0 %v4144, 96
        %v4459 = vpop.permute.xlu0 %4458
        %4460 = vrot.lane.b32.xlu0 %v4146, 96
        %v4461 = vpop.permute.xlu0 %4460
        %4462 = vrot.lane.b32.xlu0 %v4148, 96
        %v4463 = vpop.permute.xlu0 %4462
        %4464 = vrot.lane.b32.xlu0 %v4150, 96
        %v4465 = vpop.permute.xlu0 %4464
        %4466 = vrot.lane.b32.xlu0 %v4152, 96
        %v4467 = vpop.permute.xlu0 %4466
        %4468 = vrot.lane.b32.xlu0 %v4154, 96
        %v4469 = vpop.permute.xlu0 %4468
        %4470 = vrot.lane.b32.xlu0 %v4156, 96
        %v4471 = vpop.permute.xlu0 %4470
        %4472 = vrot.lane.b32.xlu0 %v4158, 96
        %v4473 = vpop.permute.xlu0 %4472
        %4474 = vrot.lane.b32.xlu0 %v4160, 96
        %v4475 = vpop.permute.xlu0 %4474
        %4476 = vrot.lane.b32.xlu0 %v4162, 96
        %v4477 = vpop.permute.xlu0 %4476
        %4478 = vrot.lane.b32.xlu0 %v4164, 96
        %v4479 = vpop.permute.xlu0 %4478
        %4480 = vrot.lane.b32.xlu0 %v4166, 96
        %v4481 = vpop.permute.xlu0 %4480
        %4482 = vrot.lane.b32.xlu0 %v4168, 96
        %v4483 = vpop.permute.xlu0 %4482
        %4484 = vrot.lane.b32.xlu0 %v4170, 96
        %v4485 = vpop.permute.xlu0 %4484
        %4486 = vrot.lane.b32.xlu0 %v4172, 96
        %v4487 = vpop.permute.xlu0 %4486
        %4488 = vrot.lane.b32.xlu0 %v4174, 96
        %v4489 = vpop.permute.xlu0 %4488
        %4490 = vrot.lane.b32.xlu0 %v4176, 96
        %v4491 = vpop.permute.xlu0 %4490
        %4492 = vrot.lane.b32.xlu0 %v4178, 96
        %v4493 = vpop.permute.xlu0 %4492
        %4494 = vrot.lane.b32.xlu0 %v4180, 96
        %v4495 = vpop.permute.xlu0 %4494
        %4496 = vrot.lane.b32.xlu0 %v4182, 96
        %v4497 = vpop.permute.xlu0 %4496
        %4498 = vrot.lane.b32.xlu0 %v4184, 96
        %v4499 = vpop.permute.xlu0 %4498
        %4500 = vrot.lane.b32.xlu0 %v4186, 96
        %v4501 = vpop.permute.xlu0 %4500
        %4502 = vrot.lane.b32.xlu0 %v4188, 96
        %v4503 = vpop.permute.xlu0 %4502
        %4504 = vrot.lane.b32.xlu0 %v4190, 96
        %v4505 = vpop.permute.xlu0 %4504
        %4506 = vrot.lane.b32.xlu0 %v4192, 96
        %v4507 = vpop.permute.xlu0 %4506
        %4508 = vrot.lane.b32.xlu0 %v4194, 96
        %v4509 = vpop.permute.xlu0 %4508
        %4510 = vrot.lane.b32.xlu0 %v4196, 96
        %v4511 = vpop.permute.xlu0 %4510
        %4512 = vrot.lane.b32.xlu0 %v4198, 96
        %v4513 = vpop.permute.xlu0 %4512
        %4514 = vrot.lane.b32.xlu0 %v4200, 96
        %v4515 = vpop.permute.xlu0 %4514
        %4516 = vrot.lane.b32.xlu0 %v4202, 96
        %v4517 = vpop.permute.xlu0 %4516
        %4518 = vrot.lane.b32.xlu0 %v4204, 96
        %v4519 = vpop.permute.xlu0 %4518
        %4520 = vrot.lane.b32.xlu0 %v4206, 96
        %v4521 = vpop.permute.xlu0 %4520
        %v4585 = vsel %vm727, %v3727, %v4208
        %v4586 = vsel %vm727, %v3728, %v4210
        %v4587 = vsel %vm727, %v3729, %v4212
        %v4588 = vsel %vm727, %v3734, %v4214
        %v4589 = vsel %vm727, %v3736, %v4216
        %v4590 = vsel %vm727, %v3738, %v4218
        %v4591 = vsel %vm727, %v3743, %v4220
        %v4592 = vsel %vm727, %v3745, %v4222
        %v4593 = vsel %vm727, %v3747, %v4224
        %v4594 = vsel %vm727, %v3752, %v4226
        %v4595 = vsel %vm727, %v3754, %v4228
        %v4596 = vsel %vm727, %v3756, %v4230
        %v4597 = vsel %vm727, %v3761, %v4232
        %v4598 = vsel %vm727, %v3763, %v4234
        %v4599 = vsel %vm727, %v3765, %v4236
        %v4600 = vsel %vm727, %v3770, %v4238
        %v4601 = vsel %vm727, %v3772, %v4240
        %v4602 = vsel %vm727, %v3774, %v4242
        %v4603 = vsel %vm727, %v3779, %v4244
        %v4604 = vsel %vm727, %v3781, %v4246
        %v4605 = vsel %vm727, %v3783, %v4248
        %v4606 = vsel %vm727, %v3788, %v4250
        %v4607 = vsel %vm727, %v3790, %v4252
        %v4608 = vsel %vm727, %v3792, %v4254
        %v4609 = vsel %vm727, %v3797, %v4256
        %v4610 = vsel %vm727, %v3799, %v4258
        %v4611 = vsel %vm727, %v3801, %v4260
        %v4612 = vsel %vm727, %v3806, %v4262
        %v4613 = vsel %vm727, %v3808, %v4264
        %v4614 = vsel %vm727, %v3810, %v4266
        %v4615 = vsel %vm727, %v3815, %v4268
        %v4616 = vsel %vm727, %v3817, %v4270
        %v4617 = vsel %vm727, %v3819, %v4272
        %v4618 = vsel %vm727, %v3824, %v4274
        %v4619 = vsel %vm727, %v3826, %v4276
        %v4620 = vsel %vm727, %v3828, %v4278
        %v4621 = vsel %vm727, %v3833, %v4280
        %v4622 = vsel %vm727, %v3835, %v4282
        %v4623 = vsel %vm727, %v3837, %v4284
        %v4624 = vsel %vm727, %v3842, %v4286
        %v4625 = vsel %vm727, %v3844, %v4288
        %v4626 = vsel %vm727, %v3846, %v4290
        %v4627 = vsel %vm727, %v3851, %v4292
        %v4628 = vsel %vm727, %v3853, %v4294
        %v4629 = vsel %vm727, %v3855, %v4296
        %v4630 = vsel %vm727, %v3860, %v4298
        %v4631 = vsel %vm727, %v3862, %v4300
        %v4632 = vsel %vm727, %v3864, %v4302
        %v4633 = vsel %vm727, %v3869, %v4304
        %v4634 = vsel %vm727, %v3871, %v4306
        %v4635 = vsel %vm727, %v3873, %v4308
        %v4636 = vsel %vm727, %v3875, %v4310
        %v4637 = vsel %vm727, %v3877, %v4312
        %v4638 = vsel %vm727, %v3879, %v4314
        %v4639 = vsel %vm727, %v3881, %v4316
        %v4640 = vsel %vm727, %v3883, %v4318
        %v4641 = vsel %vm727, %v3885, %v4320
        %v4642 = vsel %vm727, %v3887, %v4322
        %v4643 = vsel %vm727, %v3889, %v4324
        %v4644 = vsel %vm727, %v3891, %v4326
        %v4645 = vsel %vm727, %v3893, %v4328
        %v4646 = vsel %vm727, %v3895, %v4330
        %v4647 = vsel %vm727, %v3897, %v4332
        %v4648 = vsel %vm1161, %v4585, %v4397
        %v4649 = vsel %vm1161, %v4586, %v4399
        %v4650 = vsel %vm1161, %v4587, %v4401
        %v4651 = vsel %vm1161, %v4588, %v4403
        %v4652 = vsel %vm1161, %v4589, %v4405
        %v4653 = vsel %vm1161, %v4590, %v4407
        %v4654 = vsel %vm1161, %v4591, %v4409
        %v4655 = vsel %vm1161, %v4592, %v4411
        %v4656 = vsel %vm1161, %v4593, %v4413
        %v4657 = vsel %vm1161, %v4594, %v4415
        %v4658 = vsel %vm1161, %v4595, %v4417
        %v4659 = vsel %vm1161, %v4596, %v4419
        %v4660 = vsel %vm1161, %v4597, %v4421
        %v4661 = vsel %vm1161, %v4598, %v4423
        %v4662 = vsel %vm1161, %v4599, %v4425
        %v4663 = vsel %vm1161, %v4600, %v4427
        %v4664 = vsel %vm1161, %v4601, %v4429
        %v4665 = vsel %vm1161, %v4602, %v4431
        %v4666 = vsel %vm1161, %v4603, %v4433
        %v4667 = vsel %vm1161, %v4604, %v4435
        %v4668 = vsel %vm1161, %v4605, %v4437
        %v4669 = vsel %vm1161, %v4606, %v4439
        %v4670 = vsel %vm1161, %v4607, %v4441
        %v4671 = vsel %vm1161, %v4608, %v4443
        %v4672 = vsel %vm1161, %v4609, %v4445
        %v4673 = vsel %vm1161, %v4610, %v4447
        %v4674 = vsel %vm1161, %v4611, %v4449
        %v4675 = vsel %vm1161, %v4612, %v4451
        %v4676 = vsel %vm1161, %v4613, %v4453
        %v4677 = vsel %vm1161, %v4614, %v4455
        %v4678 = vsel %vm1161, %v4615, %v4457
        %v4679 = vsel %vm1161, %v4616, %v4459
        %v4680 = vsel %vm1161, %v4617, %v4461
        %v4681 = vsel %vm1161, %v4618, %v4463
        %v4682 = vsel %vm1161, %v4619, %v4465
        %v4683 = vsel %vm1161, %v4620, %v4467
        %v4684 = vsel %vm1161, %v4621, %v4469
        %v4685 = vsel %vm1161, %v4622, %v4471
        %v4686 = vsel %vm1161, %v4623, %v4473
        %v4687 = vsel %vm1161, %v4624, %v4475
        %v4688 = vsel %vm1161, %v4625, %v4477
        %v4689 = vsel %vm1161, %v4626, %v4479
        %v4690 = vsel %vm1161, %v4627, %v4481
        %v4691 = vsel %vm1161, %v4628, %v4483
        %v4692 = vsel %vm1161, %v4629, %v4485
        %v4693 = vsel %vm1161, %v4630, %v4487
        %v4694 = vsel %vm1161, %v4631, %v4489
        %v4695 = vsel %vm1161, %v4632, %v4491
        %v4696 = vsel %vm1161, %v4633, %v4493
        %v4697 = vsel %vm1161, %v4634, %v4495
        %v4698 = vsel %vm1161, %v4635, %v4497
        %v4699 = vsel %vm1161, %v4636, %v4499
        %v4700 = vsel %vm1161, %v4637, %v4501
        %v4701 = vsel %vm1161, %v4638, %v4503
        %v4702 = vsel %vm1161, %v4639, %v4505
        %v4703 = vsel %vm1161, %v4640, %v4507
        %v4704 = vsel %vm1161, %v4641, %v4509
        %v4705 = vsel %vm1161, %v4642, %v4511
        %v4706 = vsel %vm1161, %v4643, %v4513
        %v4707 = vsel %vm1161, %v4644, %v4515
        %v4708 = vsel %vm1161, %v4645, %v4517
        %v4709 = vsel %vm1161, %v4646, %v4519
        %v4710 = vsel %vm1161, %v4647, %v4521
        %v4711 = vld [vmem:[#allocation11] sm:$0xff]
        %v4712 = vld [vmem:[#allocation11 + $0x8] sm:$0xff]
        %v4713 = vld [vmem:[#allocation11 + $0x10] sm:$0xff]
        %v4714 = vld [vmem:[#allocation11 + $0x18] sm:$0xff]
        %v4715 = vld [vmem:[#allocation11 + $0x20] sm:$0xff]
        %v4716 = vld [vmem:[#allocation11 + $0x28] sm:$0xff]
        %v4717 = vld [vmem:[#allocation11 + $0x30] sm:$0xff]
        %v4718 = vld [vmem:[#allocation11 + $0x38] sm:$0xff]
        %v4719 = vld [vmem:[#allocation11 + $0x40] sm:$0xff]
        %v4720 = vld [vmem:[#allocation11 + $0x48] sm:$0xff]
        %v4721 = vld [vmem:[#allocation11 + $0x50] sm:$0xff]
        %v4722 = vld [vmem:[#allocation11 + $0x58] sm:$0xff]
        %v4723 = vld [vmem:[%s8] sm:$0xff]
        %v4724 = vld [vmem:[%s8 + $0x8] sm:$0xff]
        %v4725 = vld [vmem:[%s8 + $0x10] sm:$0xff]
        %4727 = vset.pattern.permute.xlu0 0
        %4728 = vperm.xlu0 %4727, %v4723
        %v4729 = vpop.permute.xlu0 %4728
        %4732 = vset.pattern.permute.xlu0 0
        %4733 = vperm.xlu0 %4732, %v4724
        %v4734 = vpop.permute.xlu0 %4733
        %4737 = vset.pattern.permute.xlu0 0
        %4738 = vperm.xlu0 %4737, %v4725
        %v4739 = vpop.permute.xlu0 %4738
        %v4742 = vsel %vm2320, %v4714, 0
        %v4745 = vsel %vm2320, %v4718, 0
        %v4748 = vsel %vm2320, %v4722, 0
        %4750 = vmatprep.subr.mxu0 0.0
        %4751 = vmatpush1.msra.mxu0 %v4663
        %4752 = vmatprep.subr.mxu0 0.0
        %4753 = vmatpush1.msra.mxu0 %v4662
        %4754 = vmatprep.subr.mxu0 0.0
        %4755 = vmatpush1.msra.mxu0 %v4661
        %4756 = vmatprep.subr.mxu0 0.0
        %4757 = vmatpush1.msra.mxu0 %v4660
        %4758 = vmatprep.subr.mxu0 0.0
        %4759 = vmatpush1.msra.mxu0 %v4659
        %4760 = vmatprep.subr.mxu0 0.0
        %4761 = vmatpush1.msra.mxu0 %v4658
        %4762 = vmatprep.subr.mxu0 0.0
        %4763 = vmatpush1.msra.mxu0 %v4657
        %4764 = vmatprep.subr.mxu0 0.0
        %4765 = vmatpush1.msra.mxu0 %v4656
        %4766 = vmatprep.subr.mxu0 0.0
        %4767 = vmatpush1.msra.mxu0 %v4655
        %4768 = vmatprep.subr.mxu0 0.0
        %4769 = vmatpush1.msra.mxu0 %v4654
        %4770 = vmatprep.subr.mxu0 0.0
        %4771 = vmatpush1.msra.mxu0 %v4653
        %4772 = vmatprep.subr.mxu0 0.0
        %4773 = vmatpush1.msra.mxu0 %v4652
        %4774 = vmatprep.subr.mxu0 0.0
        %4775 = vmatpush1.msra.mxu0 %v4651
        %4776 = vmatprep.subr.mxu0 0.0
        %4777 = vmatpush1.msra.mxu0 %v4650
        %4778 = vmatprep.subr.mxu0 0.0
        %4779 = vmatpush1.msra.mxu0 %v4649
        %4780 = vmatprep.subr.mxu0 0.0
        %4781 = vmatpush1.msra.mxu0 %v4648
        %4782 = vmatprep.subr.mxu0 0.0
        %4783 = vmatpush2.msra.mxu0 %v4679
        %4784 = vmatprep.subr.mxu0 0.0
        %4785 = vmatpush2.msra.mxu0 %v4678
        %4786 = vmatprep.subr.mxu0 0.0
        %4787 = vmatpush2.msra.mxu0 %v4677
        %4788 = vmatprep.subr.mxu0 0.0
        %4789 = vmatpush2.msra.mxu0 %v4676
        %4790 = vmatprep.subr.mxu0 0.0
        %4791 = vmatpush2.msra.mxu0 %v4675
        %4792 = vmatprep.subr.mxu0 0.0
        %4793 = vmatpush2.msra.mxu0 %v4674
        %4794 = vmatprep.subr.mxu0 0.0
        %4795 = vmatpush2.msra.mxu0 %v4673
        %4796 = vmatprep.subr.mxu0 0.0
        %4797 = vmatpush2.msra.mxu0 %v4672
        %4798 = vmatprep.subr.mxu0 0.0
        %4799 = vmatpush2.msra.mxu0 %v4671
        %4800 = vmatprep.subr.mxu0 0.0
        %4801 = vmatpush2.msra.mxu0 %v4670
        %4802 = vmatprep.subr.mxu0 0.0
        %4803 = vmatpush2.msra.mxu0 %v4669
        %4804 = vmatprep.subr.mxu0 0.0
        %4805 = vmatpush2.msra.mxu0 %v4668
        %4806 = vmatprep.subr.mxu0 0.0
        %4807 = vmatpush2.msra.mxu0 %v4667
        %4808 = vmatprep.subr.mxu0 0.0
        %4809 = vmatpush2.msra.mxu0 %v4666
        %4810 = vmatprep.subr.mxu0 0.0
        %4811 = vmatpush2.msra.mxu0 %v4665
        %4812 = vmatprep.subr.mxu0 0.0
        %4813 = vmatpush2.msra.mxu0 %v4664
        %4814 = vmatprep.mubr.f32.mxu0 %v4712
        %4815 = vmatmul.mubr.f32.gmra.mxu0 %v4711
        %v4816 = vpop.f32.mrf.mxu0
        %v4817 = vadd.f32 %v4729, %v4816
        %v4818 = vpop.f32.mrf.mxu0
        %4819 = vmatprep.mubr.f32.mxu0 %v4716
        %4820 = vmatmul.mubr.f32.gmra.mxu0 %v4715
        %v4821 = vpop.f32.mrf.mxu0
        %v4822 = vadd.f32 %v4734, %v4821
        %v4823 = vpop.f32.mrf.mxu0
        %4824 = vmatprep.mubr.f32.mxu0 %v4720
        %4825 = vmatmul.mubr.f32.gmra.mxu0 %v4719
        %v4826 = vpop.f32.mrf.mxu0
        %v4827 = vadd.f32 %v4739, %v4826
        %v4828 = vpop.f32.mrf.mxu0
        %4829 = vdwg.mxu0
        %4830 = vmatprep.subr.mxu0 0.0
        %4831 = vmatpush1.msra.mxu0 %v4695
        %4832 = vmatprep.subr.mxu0 0.0
        %4833 = vmatpush1.msra.mxu0 %v4694
        %4834 = vmatprep.subr.mxu0 0.0
        %4835 = vmatpush1.msra.mxu0 %v4693
        %4836 = vmatprep.subr.mxu0 0.0
        %4837 = vmatpush1.msra.mxu0 %v4692
        %4838 = vmatprep.subr.mxu0 0.0
        %4839 = vmatpush1.msra.mxu0 %v4691
        %4840 = vmatprep.subr.mxu0 0.0
        %4841 = vmatpush1.msra.mxu0 %v4690
        %4842 = vmatprep.subr.mxu0 0.0
        %4843 = vmatpush1.msra.mxu0 %v4689
        %4844 = vmatprep.subr.mxu0 0.0
        %4845 = vmatpush1.msra.mxu0 %v4688
        %4846 = vmatprep.subr.mxu0 0.0
        %4847 = vmatpush1.msra.mxu0 %v4687
        %4848 = vmatprep.subr.mxu0 0.0
        %4849 = vmatpush1.msra.mxu0 %v4686
        %4850 = vmatprep.subr.mxu0 0.0
        %4851 = vmatpush1.msra.mxu0 %v4685
        %4852 = vmatprep.subr.mxu0 0.0
        %4853 = vmatpush1.msra.mxu0 %v4684
        %4854 = vmatprep.subr.mxu0 0.0
        %4855 = vmatpush1.msra.mxu0 %v4683
        %4856 = vmatprep.subr.mxu0 0.0
        %4857 = vmatpush1.msra.mxu0 %v4682
        %4858 = vmatprep.subr.mxu0 0.0
        %4859 = vmatpush1.msra.mxu0 %v4681
        %4860 = vmatprep.subr.mxu0 0.0
        %4861 = vmatpush1.msra.mxu0 %v4680
        %4862 = vmatprep.subr.mxu0 0.0
        %4863 = vmatpush2.msra.mxu0 0.0
        %4864 = vmatprep.subr.mxu0 0.0
        %4865 = vmatpush2.msra.mxu0 %v4710
        %4866 = vmatprep.subr.mxu0 0.0
        %4867 = vmatpush2.msra.mxu0 %v4709
        %4868 = vmatprep.subr.mxu0 0.0
        %4869 = vmatpush2.msra.mxu0 %v4708
        %4870 = vmatprep.subr.mxu0 0.0
        %4871 = vmatpush2.msra.mxu0 %v4707
        %4872 = vmatprep.subr.mxu0 0.0
        %4873 = vmatpush2.msra.mxu0 %v4706
        %4874 = vmatprep.subr.mxu0 0.0
        %4875 = vmatpush2.msra.mxu0 %v4705
        %4876 = vmatprep.subr.mxu0 0.0
        %4877 = vmatpush2.msra.mxu0 %v4704
        %4878 = vmatprep.subr.mxu0 0.0
        %4879 = vmatpush2.msra.mxu0 %v4703
        %4880 = vmatprep.subr.mxu0 0.0
        %4881 = vmatpush2.msra.mxu0 %v4702
        %4882 = vmatprep.subr.mxu0 0.0
        %4883 = vmatpush2.msra.mxu0 %v4701
        %4884 = vmatprep.subr.mxu0 0.0
        %4885 = vmatpush2.msra.mxu0 %v4700
        %4886 = vmatprep.subr.mxu0 0.0
        %4887 = vmatpush2.msra.mxu0 %v4699
        %4888 = vmatprep.subr.mxu0 0.0
        %4889 = vmatpush2.msra.mxu0 %v4698
        %4890 = vmatprep.subr.mxu0 0.0
        %4891 = vmatpush2.msra.mxu0 %v4697
        %4892 = vmatprep.subr.mxu0 0.0
        %4893 = vmatpush2.msra.mxu0 %v4696
        %4894 = vmatprep.mubr.f32.mxu0 %v4742
        %4895 = vmatmul.mubr.f32.gmra.mxu0 %v4713
        %v4896 = vpop.f32.mrf.mxu0
        %v4897 = vadd.f32 %v4817, %v4896
        %v4898 = vpop.f32.mrf.mxu0
        %4899 = vmatprep.mubr.f32.mxu0 %v4745
        %4900 = vmatmul.mubr.f32.gmra.mxu0 %v4717
        %v4901 = vpop.f32.mrf.mxu0
        %v4902 = vadd.f32 %v4822, %v4901
        %v4903 = vpop.f32.mrf.mxu0
        %4904 = vmatprep.mubr.f32.mxu0 %v4748
        %4905 = vmatmul.mubr.f32.gmra.mxu0 %v4721
        %v4906 = vpop.f32.mrf.mxu0
        %v4907 = vadd.f32 %v4827, %v4906
        %v4908 = vpop.f32.mrf.mxu0
        %4909 = vdwg.mxu0
        %v4910 = vtanh.pop %v4897
        %v4911 = vtanh.pop %v4902
        %v4912 = vtanh.pop %v4907
        %4916 = vrot.lane.b32.xlu0 %v4910, 74
        %v4917 = vpop.permute.xlu0 %4916
        %4918 = vrot.lane.b32.xlu0 %v4911, 74
        %v4919 = vpop.permute.xlu0 %4918
        %4920 = vrot.lane.b32.xlu0 %v4912, 74
        %v4921 = vpop.permute.xlu0 %4920
        %4925 = vrot.lane.b32.xlu0 %v4910, 10
        %v4926 = vpop.permute.xlu0 %4925
        %4927 = vrot.lane.b32.xlu0 %v4911, 10
        %v4928 = vpop.permute.xlu0 %4927
        %4929 = vrot.lane.b32.xlu0 %v4912, 10
        %v4930 = vpop.permute.xlu0 %4929
        %v4934 = vsel %vm889, %v4917, %v4926
        %v4935 = vsel %vm889, %v4919, %v4928
        %v4936 = vsel %vm889, %v4921, %v4930
        %v4937 = vsel %vm891, %v4934, %v4917
        %v4938 = vsel %vm891, %v4935, %v4919
        %v4939 = vsel %vm891, %v4936, %v4921
        %4943 = vrot.lane.b32.xlu0 %v4937, 127
        %v4944 = vpop.permute.xlu0 %4943
        %4945 = vrot.lane.b32.xlu0 %v4938, 127
        %v4946 = vpop.permute.xlu0 %4945
        %4947 = vrot.lane.b32.xlu0 %v4939, 127
        %v4948 = vpop.permute.xlu0 %4947
        %4952 = vrot.lane.b32.xlu0 %v4937, 126
        %v4953 = vpop.permute.xlu0 %4952
        %4954 = vrot.lane.b32.xlu0 %v4938, 126
        %v4955 = vpop.permute.xlu0 %4954
        %4956 = vrot.lane.b32.xlu0 %v4939, 126
        %v4957 = vpop.permute.xlu0 %4956
        %4961 = vrot.lane.b32.xlu0 %v4937, 125
        %v4962 = vpop.permute.xlu0 %4961
        %4963 = vrot.lane.b32.xlu0 %v4938, 125
        %v4964 = vpop.permute.xlu0 %4963
        %4965 = vrot.lane.b32.xlu0 %v4939, 125
        %v4966 = vpop.permute.xlu0 %4965
        %4970 = vrot.lane.b32.xlu0 %v4937, 124
        %v4971 = vpop.permute.xlu0 %4970
        %4972 = vrot.lane.b32.xlu0 %v4938, 124
        %v4973 = vpop.permute.xlu0 %4972
        %4974 = vrot.lane.b32.xlu0 %v4939, 124
        %v4975 = vpop.permute.xlu0 %4974
        %4979 = vrot.lane.b32.xlu0 %v4937, 123
        %v4980 = vpop.permute.xlu0 %4979
        %4981 = vrot.lane.b32.xlu0 %v4938, 123
        %v4982 = vpop.permute.xlu0 %4981
        %4983 = vrot.lane.b32.xlu0 %v4939, 123
        %v4984 = vpop.permute.xlu0 %4983
        %4988 = vrot.lane.b32.xlu0 %v4937, 122
        %v4989 = vpop.permute.xlu0 %4988
        %4990 = vrot.lane.b32.xlu0 %v4938, 122
        %v4991 = vpop.permute.xlu0 %4990
        %4992 = vrot.lane.b32.xlu0 %v4939, 122
        %v4993 = vpop.permute.xlu0 %4992
        %4997 = vrot.lane.b32.xlu0 %v4937, 121
        %v4998 = vpop.permute.xlu0 %4997
        %4999 = vrot.lane.b32.xlu0 %v4938, 121
        %v5000 = vpop.permute.xlu0 %4999
        %5001 = vrot.lane.b32.xlu0 %v4939, 121
        %v5002 = vpop.permute.xlu0 %5001
        %5006 = vrot.lane.b32.xlu0 %v4937, 120
        %v5007 = vpop.permute.xlu0 %5006
        %5008 = vrot.lane.b32.xlu0 %v4938, 120
        %v5009 = vpop.permute.xlu0 %5008
        %5010 = vrot.lane.b32.xlu0 %v4939, 120
        %v5011 = vpop.permute.xlu0 %5010
        %5015 = vrot.lane.b32.xlu0 %v4937, 119
        %v5016 = vpop.permute.xlu0 %5015
        %5017 = vrot.lane.b32.xlu0 %v4938, 119
        %v5018 = vpop.permute.xlu0 %5017
        %5019 = vrot.lane.b32.xlu0 %v4939, 119
        %v5020 = vpop.permute.xlu0 %5019
        %5024 = vrot.lane.b32.xlu0 %v4937, 118
        %v5025 = vpop.permute.xlu0 %5024
        %5026 = vrot.lane.b32.xlu0 %v4938, 118
        %v5027 = vpop.permute.xlu0 %5026
        %5028 = vrot.lane.b32.xlu0 %v4939, 118
        %v5029 = vpop.permute.xlu0 %5028
        %5033 = vrot.lane.b32.xlu0 %v4937, 117
        %v5034 = vpop.permute.xlu0 %5033
        %5035 = vrot.lane.b32.xlu0 %v4938, 117
        %v5036 = vpop.permute.xlu0 %5035
        %5037 = vrot.lane.b32.xlu0 %v4939, 117
        %v5038 = vpop.permute.xlu0 %5037
        %5042 = vrot.lane.b32.xlu0 %v4937, 116
        %v5043 = vpop.permute.xlu0 %5042
        %5044 = vrot.lane.b32.xlu0 %v4938, 116
        %v5045 = vpop.permute.xlu0 %5044
        %5046 = vrot.lane.b32.xlu0 %v4939, 116
        %v5047 = vpop.permute.xlu0 %5046
        %5051 = vrot.lane.b32.xlu0 %v4937, 115
        %v5052 = vpop.permute.xlu0 %5051
        %5053 = vrot.lane.b32.xlu0 %v4938, 115
        %v5054 = vpop.permute.xlu0 %5053
        %5055 = vrot.lane.b32.xlu0 %v4939, 115
        %v5056 = vpop.permute.xlu0 %5055
        %5060 = vrot.lane.b32.xlu0 %v4937, 114
        %v5061 = vpop.permute.xlu0 %5060
        %5062 = vrot.lane.b32.xlu0 %v4938, 114
        %v5063 = vpop.permute.xlu0 %5062
        %5064 = vrot.lane.b32.xlu0 %v4939, 114
        %v5065 = vpop.permute.xlu0 %5064
        %5069 = vrot.lane.b32.xlu0 %v4937, 113
        %v5070 = vpop.permute.xlu0 %5069
        %5071 = vrot.lane.b32.xlu0 %v4938, 113
        %v5072 = vpop.permute.xlu0 %5071
        %5073 = vrot.lane.b32.xlu0 %v4939, 113
        %v5074 = vpop.permute.xlu0 %5073
        %5078 = vrot.lane.b32.xlu0 %v4937, 112
        %v5079 = vpop.permute.xlu0 %5078
        %5080 = vrot.lane.b32.xlu0 %v4938, 112
        %v5081 = vpop.permute.xlu0 %5080
        %5082 = vrot.lane.b32.xlu0 %v4939, 112
        %v5083 = vpop.permute.xlu0 %5082
        %5084 = vrot.lane.b32.xlu0 %v4944, 112
        %v5085 = vpop.permute.xlu0 %5084
        %5086 = vrot.lane.b32.xlu0 %v4946, 112
        %v5087 = vpop.permute.xlu0 %5086
        %5088 = vrot.lane.b32.xlu0 %v4948, 112
        %v5089 = vpop.permute.xlu0 %5088
        %5090 = vrot.lane.b32.xlu0 %v4953, 112
        %v5091 = vpop.permute.xlu0 %5090
        %5092 = vrot.lane.b32.xlu0 %v4955, 112
        %v5093 = vpop.permute.xlu0 %5092
        %5094 = vrot.lane.b32.xlu0 %v4957, 112
        %v5095 = vpop.permute.xlu0 %5094
        %5096 = vrot.lane.b32.xlu0 %v4962, 112
        %v5097 = vpop.permute.xlu0 %5096
        %5098 = vrot.lane.b32.xlu0 %v4964, 112
        %v5099 = vpop.permute.xlu0 %5098
        %5100 = vrot.lane.b32.xlu0 %v4966, 112
        %v5101 = vpop.permute.xlu0 %5100
        %5102 = vrot.lane.b32.xlu0 %v4971, 112
        %v5103 = vpop.permute.xlu0 %5102
        %5104 = vrot.lane.b32.xlu0 %v4973, 112
        %v5105 = vpop.permute.xlu0 %5104
        %5106 = vrot.lane.b32.xlu0 %v4975, 112
        %v5107 = vpop.permute.xlu0 %5106
        %5123 = vrot.lane.b32.xlu0 %v4910, 42
        %v5124 = vpop.permute.xlu0 %5123
        %5125 = vrot.lane.b32.xlu0 %v4911, 42
        %v5126 = vpop.permute.xlu0 %5125
        %5127 = vrot.lane.b32.xlu0 %v4912, 42
        %v5128 = vpop.permute.xlu0 %5127
        %5132 = vrot.lane.b32.xlu0 %v4910, 106
        %v5133 = vpop.permute.xlu0 %5132
        %5134 = vrot.lane.b32.xlu0 %v4911, 106
        %v5135 = vpop.permute.xlu0 %5134
        %5136 = vrot.lane.b32.xlu0 %v4912, 106
        %v5137 = vpop.permute.xlu0 %5136
        %v5141 = vsel %vm889, %v5124, %v4917
        %v5142 = vsel %vm889, %v5126, %v4919
        %v5143 = vsel %vm889, %v5128, %v4921
        %v5144 = vsel %vm981, %v5141, %v5133
        %v5145 = vsel %vm981, %v5142, %v5135
        %v5146 = vsel %vm981, %v5143, %v5137
        %5150 = vrot.lane.b32.xlu0 %v5144, 127
        %v5151 = vpop.permute.xlu0 %5150
        %5152 = vrot.lane.b32.xlu0 %v5145, 127
        %v5153 = vpop.permute.xlu0 %5152
        %5154 = vrot.lane.b32.xlu0 %v5146, 127
        %v5155 = vpop.permute.xlu0 %5154
        %5156 = vrot.lane.b32.xlu0 %v5144, 126
        %v5157 = vpop.permute.xlu0 %5156
        %5158 = vrot.lane.b32.xlu0 %v5145, 126
        %v5159 = vpop.permute.xlu0 %5158
        %5160 = vrot.lane.b32.xlu0 %v5146, 126
        %v5161 = vpop.permute.xlu0 %5160
        %5162 = vrot.lane.b32.xlu0 %v5144, 125
        %v5163 = vpop.permute.xlu0 %5162
        %5164 = vrot.lane.b32.xlu0 %v5145, 125
        %v5165 = vpop.permute.xlu0 %5164
        %5166 = vrot.lane.b32.xlu0 %v5146, 125
        %v5167 = vpop.permute.xlu0 %5166
        %5168 = vrot.lane.b32.xlu0 %v5144, 124
        %v5169 = vpop.permute.xlu0 %5168
        %5170 = vrot.lane.b32.xlu0 %v5145, 124
        %v5171 = vpop.permute.xlu0 %5170
        %5172 = vrot.lane.b32.xlu0 %v5146, 124
        %v5173 = vpop.permute.xlu0 %5172
        %5174 = vrot.lane.b32.xlu0 %v5144, 123
        %v5175 = vpop.permute.xlu0 %5174
        %5176 = vrot.lane.b32.xlu0 %v5145, 123
        %v5177 = vpop.permute.xlu0 %5176
        %5178 = vrot.lane.b32.xlu0 %v5146, 123
        %v5179 = vpop.permute.xlu0 %5178
        %5180 = vrot.lane.b32.xlu0 %v5144, 122
        %v5181 = vpop.permute.xlu0 %5180
        %5182 = vrot.lane.b32.xlu0 %v5145, 122
        %v5183 = vpop.permute.xlu0 %5182
        %5184 = vrot.lane.b32.xlu0 %v5146, 122
        %v5185 = vpop.permute.xlu0 %5184
        %5186 = vrot.lane.b32.xlu0 %v5144, 121
        %v5187 = vpop.permute.xlu0 %5186
        %5188 = vrot.lane.b32.xlu0 %v5145, 121
        %v5189 = vpop.permute.xlu0 %5188
        %5190 = vrot.lane.b32.xlu0 %v5146, 121
        %v5191 = vpop.permute.xlu0 %5190
        %5192 = vrot.lane.b32.xlu0 %v5144, 120
        %v5193 = vpop.permute.xlu0 %5192
        %5194 = vrot.lane.b32.xlu0 %v5145, 120
        %v5195 = vpop.permute.xlu0 %5194
        %5196 = vrot.lane.b32.xlu0 %v5146, 120
        %v5197 = vpop.permute.xlu0 %5196
        %5198 = vrot.lane.b32.xlu0 %v5144, 119
        %v5199 = vpop.permute.xlu0 %5198
        %5200 = vrot.lane.b32.xlu0 %v5145, 119
        %v5201 = vpop.permute.xlu0 %5200
        %5202 = vrot.lane.b32.xlu0 %v5146, 119
        %v5203 = vpop.permute.xlu0 %5202
        %5204 = vrot.lane.b32.xlu0 %v5144, 118
        %v5205 = vpop.permute.xlu0 %5204
        %5206 = vrot.lane.b32.xlu0 %v5145, 118
        %v5207 = vpop.permute.xlu0 %5206
        %5208 = vrot.lane.b32.xlu0 %v5146, 118
        %v5209 = vpop.permute.xlu0 %5208
        %5210 = vrot.lane.b32.xlu0 %v5144, 117
        %v5211 = vpop.permute.xlu0 %5210
        %5212 = vrot.lane.b32.xlu0 %v5145, 117
        %v5213 = vpop.permute.xlu0 %5212
        %5214 = vrot.lane.b32.xlu0 %v5146, 117
        %v5215 = vpop.permute.xlu0 %5214
        %5216 = vrot.lane.b32.xlu0 %v5144, 116
        %v5217 = vpop.permute.xlu0 %5216
        %5218 = vrot.lane.b32.xlu0 %v5145, 116
        %v5219 = vpop.permute.xlu0 %5218
        %5220 = vrot.lane.b32.xlu0 %v5146, 116
        %v5221 = vpop.permute.xlu0 %5220
        %5222 = vrot.lane.b32.xlu0 %v5144, 115
        %v5223 = vpop.permute.xlu0 %5222
        %5224 = vrot.lane.b32.xlu0 %v5145, 115
        %v5225 = vpop.permute.xlu0 %5224
        %5226 = vrot.lane.b32.xlu0 %v5146, 115
        %v5227 = vpop.permute.xlu0 %5226
        %5228 = vrot.lane.b32.xlu0 %v5144, 114
        %v5229 = vpop.permute.xlu0 %5228
        %5230 = vrot.lane.b32.xlu0 %v5145, 114
        %v5231 = vpop.permute.xlu0 %5230
        %5232 = vrot.lane.b32.xlu0 %v5146, 114
        %v5233 = vpop.permute.xlu0 %5232
        %5234 = vrot.lane.b32.xlu0 %v5144, 113
        %v5235 = vpop.permute.xlu0 %5234
        %5236 = vrot.lane.b32.xlu0 %v5145, 113
        %v5237 = vpop.permute.xlu0 %5236
        %5238 = vrot.lane.b32.xlu0 %v5146, 113
        %v5239 = vpop.permute.xlu0 %5238
        %5240 = vrot.lane.b32.xlu0 %v5144, 112
        %v5241 = vpop.permute.xlu0 %5240
        %5242 = vrot.lane.b32.xlu0 %v5145, 112
        %v5243 = vpop.permute.xlu0 %5242
        %5244 = vrot.lane.b32.xlu0 %v5146, 112
        %v5245 = vpop.permute.xlu0 %5244
        %5246 = vrot.lane.b32.xlu0 %v5151, 112
        %v5247 = vpop.permute.xlu0 %5246
        %5248 = vrot.lane.b32.xlu0 %v5153, 112
        %v5249 = vpop.permute.xlu0 %5248
        %5250 = vrot.lane.b32.xlu0 %v5155, 112
        %v5251 = vpop.permute.xlu0 %5250
        %5252 = vrot.lane.b32.xlu0 %v5157, 112
        %v5253 = vpop.permute.xlu0 %5252
        %5254 = vrot.lane.b32.xlu0 %v5159, 112
        %v5255 = vpop.permute.xlu0 %5254
        %5256 = vrot.lane.b32.xlu0 %v5161, 112
        %v5257 = vpop.permute.xlu0 %5256
        %5258 = vrot.lane.b32.xlu0 %v5163, 112
        %v5259 = vpop.permute.xlu0 %5258
        %5260 = vrot.lane.b32.xlu0 %v5165, 112
        %v5261 = vpop.permute.xlu0 %5260
        %5262 = vrot.lane.b32.xlu0 %v5167, 112
        %v5263 = vpop.permute.xlu0 %5262
        %5264 = vrot.lane.b32.xlu0 %v5169, 112
        %v5265 = vpop.permute.xlu0 %5264
        %5266 = vrot.lane.b32.xlu0 %v5171, 112
        %v5267 = vpop.permute.xlu0 %5266
        %5268 = vrot.lane.b32.xlu0 %v5173, 112
        %v5269 = vpop.permute.xlu0 %5268
        %5270 = vrot.lane.b32.xlu0 %v4910, 26
        %v5271 = vpop.permute.xlu0 %5270
        %5272 = vrot.lane.b32.xlu0 %v4911, 26
        %v5273 = vpop.permute.xlu0 %5272
        %5274 = vrot.lane.b32.xlu0 %v4912, 26
        %v5275 = vpop.permute.xlu0 %5274
        %5279 = vrot.lane.b32.xlu0 %v4910, 58
        %v5280 = vpop.permute.xlu0 %5279
        %5281 = vrot.lane.b32.xlu0 %v4911, 58
        %v5282 = vpop.permute.xlu0 %5281
        %5283 = vrot.lane.b32.xlu0 %v4912, 58
        %v5284 = vpop.permute.xlu0 %5283
        %v5288 = vsel %vm889, %v5271, %v5124
        %v5289 = vsel %vm889, %v5273, %v5126
        %v5290 = vsel %vm889, %v5275, %v5128
        %v5291 = vsel %vm1064, %v5288, %v5280
        %v5292 = vsel %vm1064, %v5289, %v5282
        %v5293 = vsel %vm1064, %v5290, %v5284
        %5297 = vrot.lane.b32.xlu0 %v5291, 127
        %v5298 = vpop.permute.xlu0 %5297
        %5299 = vrot.lane.b32.xlu0 %v5292, 127
        %v5300 = vpop.permute.xlu0 %5299
        %5301 = vrot.lane.b32.xlu0 %v5293, 127
        %v5302 = vpop.permute.xlu0 %5301
        %5303 = vrot.lane.b32.xlu0 %v5291, 126
        %v5304 = vpop.permute.xlu0 %5303
        %5305 = vrot.lane.b32.xlu0 %v5292, 126
        %v5306 = vpop.permute.xlu0 %5305
        %5307 = vrot.lane.b32.xlu0 %v5293, 126
        %v5308 = vpop.permute.xlu0 %5307
        %5309 = vrot.lane.b32.xlu0 %v5291, 125
        %v5310 = vpop.permute.xlu0 %5309
        %5311 = vrot.lane.b32.xlu0 %v5292, 125
        %v5312 = vpop.permute.xlu0 %5311
        %5313 = vrot.lane.b32.xlu0 %v5293, 125
        %v5314 = vpop.permute.xlu0 %5313
        %5315 = vrot.lane.b32.xlu0 %v5291, 124
        %v5316 = vpop.permute.xlu0 %5315
        %5317 = vrot.lane.b32.xlu0 %v5292, 124
        %v5318 = vpop.permute.xlu0 %5317
        %5319 = vrot.lane.b32.xlu0 %v5293, 124
        %v5320 = vpop.permute.xlu0 %5319
        %5321 = vrot.lane.b32.xlu0 %v5291, 123
        %v5322 = vpop.permute.xlu0 %5321
        %5323 = vrot.lane.b32.xlu0 %v5292, 123
        %v5324 = vpop.permute.xlu0 %5323
        %5325 = vrot.lane.b32.xlu0 %v5293, 123
        %v5326 = vpop.permute.xlu0 %5325
        %5327 = vrot.lane.b32.xlu0 %v5291, 122
        %v5328 = vpop.permute.xlu0 %5327
        %5329 = vrot.lane.b32.xlu0 %v5292, 122
        %v5330 = vpop.permute.xlu0 %5329
        %5331 = vrot.lane.b32.xlu0 %v5293, 122
        %v5332 = vpop.permute.xlu0 %5331
        %5333 = vrot.lane.b32.xlu0 %v5291, 121
        %v5334 = vpop.permute.xlu0 %5333
        %5335 = vrot.lane.b32.xlu0 %v5292, 121
        %v5336 = vpop.permute.xlu0 %5335
        %5337 = vrot.lane.b32.xlu0 %v5293, 121
        %v5338 = vpop.permute.xlu0 %5337
        %5339 = vrot.lane.b32.xlu0 %v5291, 120
        %v5340 = vpop.permute.xlu0 %5339
        %5341 = vrot.lane.b32.xlu0 %v5292, 120
        %v5342 = vpop.permute.xlu0 %5341
        %5343 = vrot.lane.b32.xlu0 %v5293, 120
        %v5344 = vpop.permute.xlu0 %5343
        %5345 = vrot.lane.b32.xlu0 %v5291, 119
        %v5346 = vpop.permute.xlu0 %5345
        %5347 = vrot.lane.b32.xlu0 %v5292, 119
        %v5348 = vpop.permute.xlu0 %5347
        %5349 = vrot.lane.b32.xlu0 %v5293, 119
        %v5350 = vpop.permute.xlu0 %5349
        %5351 = vrot.lane.b32.xlu0 %v5291, 118
        %v5352 = vpop.permute.xlu0 %5351
        %5353 = vrot.lane.b32.xlu0 %v5292, 118
        %v5354 = vpop.permute.xlu0 %5353
        %5355 = vrot.lane.b32.xlu0 %v5293, 118
        %v5356 = vpop.permute.xlu0 %5355
        %5357 = vrot.lane.b32.xlu0 %v5291, 117
        %v5358 = vpop.permute.xlu0 %5357
        %5359 = vrot.lane.b32.xlu0 %v5292, 117
        %v5360 = vpop.permute.xlu0 %5359
        %5361 = vrot.lane.b32.xlu0 %v5293, 117
        %v5362 = vpop.permute.xlu0 %5361
        %5363 = vrot.lane.b32.xlu0 %v5291, 116
        %v5364 = vpop.permute.xlu0 %5363
        %5365 = vrot.lane.b32.xlu0 %v5292, 116
        %v5366 = vpop.permute.xlu0 %5365
        %5367 = vrot.lane.b32.xlu0 %v5293, 116
        %v5368 = vpop.permute.xlu0 %5367
        %5369 = vrot.lane.b32.xlu0 %v5291, 115
        %v5370 = vpop.permute.xlu0 %5369
        %5371 = vrot.lane.b32.xlu0 %v5292, 115
        %v5372 = vpop.permute.xlu0 %5371
        %5373 = vrot.lane.b32.xlu0 %v5293, 115
        %v5374 = vpop.permute.xlu0 %5373
        %5375 = vrot.lane.b32.xlu0 %v5291, 114
        %v5376 = vpop.permute.xlu0 %5375
        %5377 = vrot.lane.b32.xlu0 %v5292, 114
        %v5378 = vpop.permute.xlu0 %5377
        %5379 = vrot.lane.b32.xlu0 %v5293, 114
        %v5380 = vpop.permute.xlu0 %5379
        %5381 = vrot.lane.b32.xlu0 %v5291, 113
        %v5382 = vpop.permute.xlu0 %5381
        %5383 = vrot.lane.b32.xlu0 %v5292, 113
        %v5384 = vpop.permute.xlu0 %5383
        %5385 = vrot.lane.b32.xlu0 %v5293, 113
        %v5386 = vpop.permute.xlu0 %5385
        %5387 = vrot.lane.b32.xlu0 %v5291, 112
        %v5388 = vpop.permute.xlu0 %5387
        %5389 = vrot.lane.b32.xlu0 %v5292, 112
        %v5390 = vpop.permute.xlu0 %5389
        %5391 = vrot.lane.b32.xlu0 %v5293, 112
        %v5392 = vpop.permute.xlu0 %5391
        %5393 = vrot.lane.b32.xlu0 %v5298, 112
        %v5394 = vpop.permute.xlu0 %5393
        %5395 = vrot.lane.b32.xlu0 %v5300, 112
        %v5396 = vpop.permute.xlu0 %5395
        %5397 = vrot.lane.b32.xlu0 %v5302, 112
        %v5398 = vpop.permute.xlu0 %5397
        %5399 = vrot.lane.b32.xlu0 %v5304, 112
        %v5400 = vpop.permute.xlu0 %5399
        %5401 = vrot.lane.b32.xlu0 %v5306, 112
        %v5402 = vpop.permute.xlu0 %5401
        %5403 = vrot.lane.b32.xlu0 %v5308, 112
        %v5404 = vpop.permute.xlu0 %5403
        %5405 = vrot.lane.b32.xlu0 %v5310, 112
        %v5406 = vpop.permute.xlu0 %5405
        %5407 = vrot.lane.b32.xlu0 %v5312, 112
        %v5408 = vpop.permute.xlu0 %5407
        %5409 = vrot.lane.b32.xlu0 %v5314, 112
        %v5410 = vpop.permute.xlu0 %5409
        %5411 = vrot.lane.b32.xlu0 %v5316, 112
        %v5412 = vpop.permute.xlu0 %5411
        %5413 = vrot.lane.b32.xlu0 %v5318, 112
        %v5414 = vpop.permute.xlu0 %5413
        %5415 = vrot.lane.b32.xlu0 %v5320, 112
        %v5416 = vpop.permute.xlu0 %5415
        %5417 = vrot.lane.b32.xlu0 %v5144, 64
        %v5418 = vpop.permute.xlu0 %5417
        %5419 = vrot.lane.b32.xlu0 %v5145, 64
        %v5420 = vpop.permute.xlu0 %5419
        %5421 = vrot.lane.b32.xlu0 %v5146, 64
        %v5422 = vpop.permute.xlu0 %5421
        %5423 = vrot.lane.b32.xlu0 %v5151, 64
        %v5424 = vpop.permute.xlu0 %5423
        %5425 = vrot.lane.b32.xlu0 %v5153, 64
        %v5426 = vpop.permute.xlu0 %5425
        %5427 = vrot.lane.b32.xlu0 %v5155, 64
        %v5428 = vpop.permute.xlu0 %5427
        %5429 = vrot.lane.b32.xlu0 %v5157, 64
        %v5430 = vpop.permute.xlu0 %5429
        %5431 = vrot.lane.b32.xlu0 %v5159, 64
        %v5432 = vpop.permute.xlu0 %5431
        %5433 = vrot.lane.b32.xlu0 %v5161, 64
        %v5434 = vpop.permute.xlu0 %5433
        %5435 = vrot.lane.b32.xlu0 %v5163, 64
        %v5436 = vpop.permute.xlu0 %5435
        %5437 = vrot.lane.b32.xlu0 %v5165, 64
        %v5438 = vpop.permute.xlu0 %5437
        %5439 = vrot.lane.b32.xlu0 %v5167, 64
        %v5440 = vpop.permute.xlu0 %5439
        %5441 = vrot.lane.b32.xlu0 %v5169, 64
        %v5442 = vpop.permute.xlu0 %5441
        %5443 = vrot.lane.b32.xlu0 %v5171, 64
        %v5444 = vpop.permute.xlu0 %5443
        %5445 = vrot.lane.b32.xlu0 %v5173, 64
        %v5446 = vpop.permute.xlu0 %5445
        %5447 = vrot.lane.b32.xlu0 %v5175, 64
        %v5448 = vpop.permute.xlu0 %5447
        %5449 = vrot.lane.b32.xlu0 %v5177, 64
        %v5450 = vpop.permute.xlu0 %5449
        %5451 = vrot.lane.b32.xlu0 %v5179, 64
        %v5452 = vpop.permute.xlu0 %5451
        %5453 = vrot.lane.b32.xlu0 %v5181, 64
        %v5454 = vpop.permute.xlu0 %5453
        %5455 = vrot.lane.b32.xlu0 %v5183, 64
        %v5456 = vpop.permute.xlu0 %5455
        %5457 = vrot.lane.b32.xlu0 %v5185, 64
        %v5458 = vpop.permute.xlu0 %5457
        %5459 = vrot.lane.b32.xlu0 %v5187, 64
        %v5460 = vpop.permute.xlu0 %5459
        %5461 = vrot.lane.b32.xlu0 %v5189, 64
        %v5462 = vpop.permute.xlu0 %5461
        %5463 = vrot.lane.b32.xlu0 %v5191, 64
        %v5464 = vpop.permute.xlu0 %5463
        %5465 = vrot.lane.b32.xlu0 %v5193, 64
        %v5466 = vpop.permute.xlu0 %5465
        %5467 = vrot.lane.b32.xlu0 %v5195, 64
        %v5468 = vpop.permute.xlu0 %5467
        %5469 = vrot.lane.b32.xlu0 %v5197, 64
        %v5470 = vpop.permute.xlu0 %5469
        %5471 = vrot.lane.b32.xlu0 %v5199, 64
        %v5472 = vpop.permute.xlu0 %5471
        %5473 = vrot.lane.b32.xlu0 %v5201, 64
        %v5474 = vpop.permute.xlu0 %5473
        %5475 = vrot.lane.b32.xlu0 %v5203, 64
        %v5476 = vpop.permute.xlu0 %5475
        %5477 = vrot.lane.b32.xlu0 %v5205, 64
        %v5478 = vpop.permute.xlu0 %5477
        %5479 = vrot.lane.b32.xlu0 %v5207, 64
        %v5480 = vpop.permute.xlu0 %5479
        %5481 = vrot.lane.b32.xlu0 %v5209, 64
        %v5482 = vpop.permute.xlu0 %5481
        %5483 = vrot.lane.b32.xlu0 %v5211, 64
        %v5484 = vpop.permute.xlu0 %5483
        %5485 = vrot.lane.b32.xlu0 %v5213, 64
        %v5486 = vpop.permute.xlu0 %5485
        %5487 = vrot.lane.b32.xlu0 %v5215, 64
        %v5488 = vpop.permute.xlu0 %5487
        %5489 = vrot.lane.b32.xlu0 %v5217, 64
        %v5490 = vpop.permute.xlu0 %5489
        %5491 = vrot.lane.b32.xlu0 %v5219, 64
        %v5492 = vpop.permute.xlu0 %5491
        %5493 = vrot.lane.b32.xlu0 %v5221, 64
        %v5494 = vpop.permute.xlu0 %5493
        %5495 = vrot.lane.b32.xlu0 %v5223, 64
        %v5496 = vpop.permute.xlu0 %5495
        %5497 = vrot.lane.b32.xlu0 %v5225, 64
        %v5498 = vpop.permute.xlu0 %5497
        %5499 = vrot.lane.b32.xlu0 %v5227, 64
        %v5500 = vpop.permute.xlu0 %5499
        %5501 = vrot.lane.b32.xlu0 %v5229, 64
        %v5502 = vpop.permute.xlu0 %5501
        %5503 = vrot.lane.b32.xlu0 %v5231, 64
        %v5504 = vpop.permute.xlu0 %5503
        %5505 = vrot.lane.b32.xlu0 %v5233, 64
        %v5506 = vpop.permute.xlu0 %5505
        %5507 = vrot.lane.b32.xlu0 %v5235, 64
        %v5508 = vpop.permute.xlu0 %5507
        %5509 = vrot.lane.b32.xlu0 %v5237, 64
        %v5510 = vpop.permute.xlu0 %5509
        %5511 = vrot.lane.b32.xlu0 %v5239, 64
        %v5512 = vpop.permute.xlu0 %5511
        %5513 = vrot.lane.b32.xlu0 %v5241, 64
        %v5514 = vpop.permute.xlu0 %5513
        %5515 = vrot.lane.b32.xlu0 %v5243, 64
        %v5516 = vpop.permute.xlu0 %5515
        %5517 = vrot.lane.b32.xlu0 %v5245, 64
        %v5518 = vpop.permute.xlu0 %5517
        %5519 = vrot.lane.b32.xlu0 %v5247, 64
        %v5520 = vpop.permute.xlu0 %5519
        %5521 = vrot.lane.b32.xlu0 %v5249, 64
        %v5522 = vpop.permute.xlu0 %5521
        %5523 = vrot.lane.b32.xlu0 %v5251, 64
        %v5524 = vpop.permute.xlu0 %5523
        %5525 = vrot.lane.b32.xlu0 %v5253, 64
        %v5526 = vpop.permute.xlu0 %5525
        %5527 = vrot.lane.b32.xlu0 %v5255, 64
        %v5528 = vpop.permute.xlu0 %5527
        %5529 = vrot.lane.b32.xlu0 %v5257, 64
        %v5530 = vpop.permute.xlu0 %5529
        %5531 = vrot.lane.b32.xlu0 %v5259, 64
        %v5532 = vpop.permute.xlu0 %5531
        %5533 = vrot.lane.b32.xlu0 %v5261, 64
        %v5534 = vpop.permute.xlu0 %5533
        %5535 = vrot.lane.b32.xlu0 %v5263, 64
        %v5536 = vpop.permute.xlu0 %5535
        %5537 = vrot.lane.b32.xlu0 %v5265, 64
        %v5538 = vpop.permute.xlu0 %5537
        %5539 = vrot.lane.b32.xlu0 %v5267, 64
        %v5540 = vpop.permute.xlu0 %5539
        %5541 = vrot.lane.b32.xlu0 %v5269, 64
        %v5542 = vpop.permute.xlu0 %5541
        %5606 = vrot.lane.b32.xlu0 %v5291, 96
        %v5607 = vpop.permute.xlu0 %5606
        %5608 = vrot.lane.b32.xlu0 %v5292, 96
        %v5609 = vpop.permute.xlu0 %5608
        %5610 = vrot.lane.b32.xlu0 %v5293, 96
        %v5611 = vpop.permute.xlu0 %5610
        %5612 = vrot.lane.b32.xlu0 %v5298, 96
        %v5613 = vpop.permute.xlu0 %5612
        %5614 = vrot.lane.b32.xlu0 %v5300, 96
        %v5615 = vpop.permute.xlu0 %5614
        %5616 = vrot.lane.b32.xlu0 %v5302, 96
        %v5617 = vpop.permute.xlu0 %5616
        %5618 = vrot.lane.b32.xlu0 %v5304, 96
        %v5619 = vpop.permute.xlu0 %5618
        %5620 = vrot.lane.b32.xlu0 %v5306, 96
        %v5621 = vpop.permute.xlu0 %5620
        %5622 = vrot.lane.b32.xlu0 %v5308, 96
        %v5623 = vpop.permute.xlu0 %5622
        %5624 = vrot.lane.b32.xlu0 %v5310, 96
        %v5625 = vpop.permute.xlu0 %5624
        %5626 = vrot.lane.b32.xlu0 %v5312, 96
        %v5627 = vpop.permute.xlu0 %5626
        %5628 = vrot.lane.b32.xlu0 %v5314, 96
        %v5629 = vpop.permute.xlu0 %5628
        %5630 = vrot.lane.b32.xlu0 %v5316, 96
        %v5631 = vpop.permute.xlu0 %5630
        %5632 = vrot.lane.b32.xlu0 %v5318, 96
        %v5633 = vpop.permute.xlu0 %5632
        %5634 = vrot.lane.b32.xlu0 %v5320, 96
        %v5635 = vpop.permute.xlu0 %5634
        %5636 = vrot.lane.b32.xlu0 %v5322, 96
        %v5637 = vpop.permute.xlu0 %5636
        %5638 = vrot.lane.b32.xlu0 %v5324, 96
        %v5639 = vpop.permute.xlu0 %5638
        %5640 = vrot.lane.b32.xlu0 %v5326, 96
        %v5641 = vpop.permute.xlu0 %5640
        %5642 = vrot.lane.b32.xlu0 %v5328, 96
        %v5643 = vpop.permute.xlu0 %5642
        %5644 = vrot.lane.b32.xlu0 %v5330, 96
        %v5645 = vpop.permute.xlu0 %5644
        %5646 = vrot.lane.b32.xlu0 %v5332, 96
        %v5647 = vpop.permute.xlu0 %5646
        %5648 = vrot.lane.b32.xlu0 %v5334, 96
        %v5649 = vpop.permute.xlu0 %5648
        %5650 = vrot.lane.b32.xlu0 %v5336, 96
        %v5651 = vpop.permute.xlu0 %5650
        %5652 = vrot.lane.b32.xlu0 %v5338, 96
        %v5653 = vpop.permute.xlu0 %5652
        %5654 = vrot.lane.b32.xlu0 %v5340, 96
        %v5655 = vpop.permute.xlu0 %5654
        %5656 = vrot.lane.b32.xlu0 %v5342, 96
        %v5657 = vpop.permute.xlu0 %5656
        %5658 = vrot.lane.b32.xlu0 %v5344, 96
        %v5659 = vpop.permute.xlu0 %5658
        %5660 = vrot.lane.b32.xlu0 %v5346, 96
        %v5661 = vpop.permute.xlu0 %5660
        %5662 = vrot.lane.b32.xlu0 %v5348, 96
        %v5663 = vpop.permute.xlu0 %5662
        %5664 = vrot.lane.b32.xlu0 %v5350, 96
        %v5665 = vpop.permute.xlu0 %5664
        %5666 = vrot.lane.b32.xlu0 %v5352, 96
        %v5667 = vpop.permute.xlu0 %5666
        %5668 = vrot.lane.b32.xlu0 %v5354, 96
        %v5669 = vpop.permute.xlu0 %5668
        %5670 = vrot.lane.b32.xlu0 %v5356, 96
        %v5671 = vpop.permute.xlu0 %5670
        %5672 = vrot.lane.b32.xlu0 %v5358, 96
        %v5673 = vpop.permute.xlu0 %5672
        %5674 = vrot.lane.b32.xlu0 %v5360, 96
        %v5675 = vpop.permute.xlu0 %5674
        %5676 = vrot.lane.b32.xlu0 %v5362, 96
        %v5677 = vpop.permute.xlu0 %5676
        %5678 = vrot.lane.b32.xlu0 %v5364, 96
        %v5679 = vpop.permute.xlu0 %5678
        %5680 = vrot.lane.b32.xlu0 %v5366, 96
        %v5681 = vpop.permute.xlu0 %5680
        %5682 = vrot.lane.b32.xlu0 %v5368, 96
        %v5683 = vpop.permute.xlu0 %5682
        %5684 = vrot.lane.b32.xlu0 %v5370, 96
        %v5685 = vpop.permute.xlu0 %5684
        %5686 = vrot.lane.b32.xlu0 %v5372, 96
        %v5687 = vpop.permute.xlu0 %5686
        %5688 = vrot.lane.b32.xlu0 %v5374, 96
        %v5689 = vpop.permute.xlu0 %5688
        %5690 = vrot.lane.b32.xlu0 %v5376, 96
        %v5691 = vpop.permute.xlu0 %5690
        %5692 = vrot.lane.b32.xlu0 %v5378, 96
        %v5693 = vpop.permute.xlu0 %5692
        %5694 = vrot.lane.b32.xlu0 %v5380, 96
        %v5695 = vpop.permute.xlu0 %5694
        %5696 = vrot.lane.b32.xlu0 %v5382, 96
        %v5697 = vpop.permute.xlu0 %5696
        %5698 = vrot.lane.b32.xlu0 %v5384, 96
        %v5699 = vpop.permute.xlu0 %5698
        %5700 = vrot.lane.b32.xlu0 %v5386, 96
        %v5701 = vpop.permute.xlu0 %5700
        %5702 = vrot.lane.b32.xlu0 %v5388, 96
        %v5703 = vpop.permute.xlu0 %5702
        %5704 = vrot.lane.b32.xlu0 %v5390, 96
        %v5705 = vpop.permute.xlu0 %5704
        %5706 = vrot.lane.b32.xlu0 %v5392, 96
        %v5707 = vpop.permute.xlu0 %5706
        %5708 = vrot.lane.b32.xlu0 %v5394, 96
        %v5709 = vpop.permute.xlu0 %5708
        %5710 = vrot.lane.b32.xlu0 %v5396, 96
        %v5711 = vpop.permute.xlu0 %5710
        %5712 = vrot.lane.b32.xlu0 %v5398, 96
        %v5713 = vpop.permute.xlu0 %5712
        %5714 = vrot.lane.b32.xlu0 %v5400, 96
        %v5715 = vpop.permute.xlu0 %5714
        %5716 = vrot.lane.b32.xlu0 %v5402, 96
        %v5717 = vpop.permute.xlu0 %5716
        %5718 = vrot.lane.b32.xlu0 %v5404, 96
        %v5719 = vpop.permute.xlu0 %5718
        %5720 = vrot.lane.b32.xlu0 %v5406, 96
        %v5721 = vpop.permute.xlu0 %5720
        %5722 = vrot.lane.b32.xlu0 %v5408, 96
        %v5723 = vpop.permute.xlu0 %5722
        %5724 = vrot.lane.b32.xlu0 %v5410, 96
        %v5725 = vpop.permute.xlu0 %5724
        %5726 = vrot.lane.b32.xlu0 %v5412, 96
        %v5727 = vpop.permute.xlu0 %5726
        %5728 = vrot.lane.b32.xlu0 %v5414, 96
        %v5729 = vpop.permute.xlu0 %5728
        %5730 = vrot.lane.b32.xlu0 %v5416, 96
        %v5731 = vpop.permute.xlu0 %5730
        %v5795 = vsel %vm727, %v4937, %v5418
        %v5796 = vsel %vm727, %v4938, %v5420
        %v5797 = vsel %vm727, %v4939, %v5422
        %v5798 = vsel %vm727, %v4944, %v5424
        %v5799 = vsel %vm727, %v4946, %v5426
        %v5800 = vsel %vm727, %v4948, %v5428
        %v5801 = vsel %vm727, %v4953, %v5430
        %v5802 = vsel %vm727, %v4955, %v5432
        %v5803 = vsel %vm727, %v4957, %v5434
        %v5804 = vsel %vm727, %v4962, %v5436
        %v5805 = vsel %vm727, %v4964, %v5438
        %v5806 = vsel %vm727, %v4966, %v5440
        %v5807 = vsel %vm727, %v4971, %v5442
        %v5808 = vsel %vm727, %v4973, %v5444
        %v5809 = vsel %vm727, %v4975, %v5446
        %v5810 = vsel %vm727, %v4980, %v5448
        %v5811 = vsel %vm727, %v4982, %v5450
        %v5812 = vsel %vm727, %v4984, %v5452
        %v5813 = vsel %vm727, %v4989, %v5454
        %v5814 = vsel %vm727, %v4991, %v5456
        %v5815 = vsel %vm727, %v4993, %v5458
        %v5816 = vsel %vm727, %v4998, %v5460
        %v5817 = vsel %vm727, %v5000, %v5462
        %v5818 = vsel %vm727, %v5002, %v5464
        %v5819 = vsel %vm727, %v5007, %v5466
        %v5820 = vsel %vm727, %v5009, %v5468
        %v5821 = vsel %vm727, %v5011, %v5470
        %v5822 = vsel %vm727, %v5016, %v5472
        %v5823 = vsel %vm727, %v5018, %v5474
        %v5824 = vsel %vm727, %v5020, %v5476
        %v5825 = vsel %vm727, %v5025, %v5478
        %v5826 = vsel %vm727, %v5027, %v5480
        %v5827 = vsel %vm727, %v5029, %v5482
        %v5828 = vsel %vm727, %v5034, %v5484
        %v5829 = vsel %vm727, %v5036, %v5486
        %v5830 = vsel %vm727, %v5038, %v5488
        %v5831 = vsel %vm727, %v5043, %v5490
        %v5832 = vsel %vm727, %v5045, %v5492
        %v5833 = vsel %vm727, %v5047, %v5494
        %v5834 = vsel %vm727, %v5052, %v5496
        %v5835 = vsel %vm727, %v5054, %v5498
        %v5836 = vsel %vm727, %v5056, %v5500
        %v5837 = vsel %vm727, %v5061, %v5502
        %v5838 = vsel %vm727, %v5063, %v5504
        %v5839 = vsel %vm727, %v5065, %v5506
        %v5840 = vsel %vm727, %v5070, %v5508
        %v5841 = vsel %vm727, %v5072, %v5510
        %v5842 = vsel %vm727, %v5074, %v5512
        %v5843 = vsel %vm727, %v5079, %v5514
        %v5844 = vsel %vm727, %v5081, %v5516
        %v5845 = vsel %vm727, %v5083, %v5518
        %v5846 = vsel %vm727, %v5085, %v5520
        %v5847 = vsel %vm727, %v5087, %v5522
        %v5848 = vsel %vm727, %v5089, %v5524
        %v5849 = vsel %vm727, %v5091, %v5526
        %v5850 = vsel %vm727, %v5093, %v5528
        %v5851 = vsel %vm727, %v5095, %v5530
        %v5852 = vsel %vm727, %v5097, %v5532
        %v5853 = vsel %vm727, %v5099, %v5534
        %v5854 = vsel %vm727, %v5101, %v5536
        %v5855 = vsel %vm727, %v5103, %v5538
        %v5856 = vsel %vm727, %v5105, %v5540
        %v5857 = vsel %vm727, %v5107, %v5542
        %v5858 = vsel %vm1161, %v5795, %v5607
        %v5859 = vsel %vm1161, %v5796, %v5609
        %v5860 = vsel %vm1161, %v5797, %v5611
        %v5861 = vsel %vm1161, %v5798, %v5613
        %v5862 = vsel %vm1161, %v5799, %v5615
        %v5863 = vsel %vm1161, %v5800, %v5617
        %v5864 = vsel %vm1161, %v5801, %v5619
        %v5865 = vsel %vm1161, %v5802, %v5621
        %v5866 = vsel %vm1161, %v5803, %v5623
        %v5867 = vsel %vm1161, %v5804, %v5625
        %v5868 = vsel %vm1161, %v5805, %v5627
        %v5869 = vsel %vm1161, %v5806, %v5629
        %v5870 = vsel %vm1161, %v5807, %v5631
        %v5871 = vsel %vm1161, %v5808, %v5633
        %v5872 = vsel %vm1161, %v5809, %v5635
        %v5873 = vsel %vm1161, %v5810, %v5637
        %v5874 = vsel %vm1161, %v5811, %v5639
        %v5875 = vsel %vm1161, %v5812, %v5641
        %v5876 = vsel %vm1161, %v5813, %v5643
        %v5877 = vsel %vm1161, %v5814, %v5645
        %v5878 = vsel %vm1161, %v5815, %v5647
        %v5879 = vsel %vm1161, %v5816, %v5649
        %v5880 = vsel %vm1161, %v5817, %v5651
        %v5881 = vsel %vm1161, %v5818, %v5653
        %v5882 = vsel %vm1161, %v5819, %v5655
        %v5883 = vsel %vm1161, %v5820, %v5657
        %v5884 = vsel %vm1161, %v5821, %v5659
        %v5885 = vsel %vm1161, %v5822, %v5661
        %v5886 = vsel %vm1161, %v5823, %v5663
        %v5887 = vsel %vm1161, %v5824, %v5665
        %v5888 = vsel %vm1161, %v5825, %v5667
        %v5889 = vsel %vm1161, %v5826, %v5669
        %v5890 = vsel %vm1161, %v5827, %v5671
        %v5891 = vsel %vm1161, %v5828, %v5673
        %v5892 = vsel %vm1161, %v5829, %v5675
        %v5893 = vsel %vm1161, %v5830, %v5677
        %v5894 = vsel %vm1161, %v5831, %v5679
        %v5895 = vsel %vm1161, %v5832, %v5681
        %v5896 = vsel %vm1161, %v5833, %v5683
        %v5897 = vsel %vm1161, %v5834, %v5685
        %v5898 = vsel %vm1161, %v5835, %v5687
        %v5899 = vsel %vm1161, %v5836, %v5689
        %v5900 = vsel %vm1161, %v5837, %v5691
        %v5901 = vsel %vm1161, %v5838, %v5693
        %v5902 = vsel %vm1161, %v5839, %v5695
        %v5903 = vsel %vm1161, %v5840, %v5697
        %v5904 = vsel %vm1161, %v5841, %v5699
        %v5905 = vsel %vm1161, %v5842, %v5701
        %v5906 = vsel %vm1161, %v5843, %v5703
        %v5907 = vsel %vm1161, %v5844, %v5705
        %v5908 = vsel %vm1161, %v5845, %v5707
        %v5909 = vsel %vm1161, %v5846, %v5709
        %v5910 = vsel %vm1161, %v5847, %v5711
        %v5911 = vsel %vm1161, %v5848, %v5713
        %v5912 = vsel %vm1161, %v5849, %v5715
        %v5913 = vsel %vm1161, %v5850, %v5717
        %v5914 = vsel %vm1161, %v5851, %v5719
        %v5915 = vsel %vm1161, %v5852, %v5721
        %v5916 = vsel %vm1161, %v5853, %v5723
        %v5917 = vsel %vm1161, %v5854, %v5725
        %v5918 = vsel %vm1161, %v5855, %v5727
        %v5919 = vsel %vm1161, %v5856, %v5729
        %v5920 = vsel %vm1161, %v5857, %v5731
        %v5921 = vld [vmem:[#allocation12] sm:$0xf]
        %v5922 = vld [vmem:[#allocation2] sm:$0x1]
        %5924 = vset.pattern.permute.xlu0 0
        %5925 = vperm.xlu0 %5924, %v5922
        %v5926 = vpop.permute.xlu0 %5925
        %v5928 = vlaneseq
        %v5929 = vshrl.u32 %v5928, 7
        %v5930 = vsub.s32 0, %v5929
        %v5931 = vrot.slane %v5926, %v5930
        %v5933 = vlaneseq
        %v5934 = vshrl.u32 %v5933, 7
        %v5935 = vsub.s32 0, %v5934
        %v5936 = vrot.slane %v5921, %v5935
        %v5937 = vlaneseq
        %v5938 = vshrl.u32 %v5937, 7
        %v5939 = vsub.s32 1, %v5938
        %v5940 = vrot.slane %v5921, %v5939
        %v5941 = vlaneseq
        %v5942 = vshrl.u32 %v5941, 7
        %v5943 = vsub.s32 2, %v5942
        %v5944 = vrot.slane %v5921, %v5943
        %v5945 = vlaneseq
        %v5946 = vshrl.u32 %v5945, 7
        %v5947 = vsub.s32 3, %v5946
        %v5948 = vrot.slane %v5921, %v5947
        %v5952 = vsel %vm2320, %v5948, 0
        %5954 = vmatprep.subr.mxu0 0.0
        %5955 = vmatpush1.msra.mxu0 %v5873
        %5956 = vmatprep.subr.mxu0 0.0
        %5957 = vmatpush1.msra.mxu0 %v5872
        %5958 = vmatprep.subr.mxu0 0.0
        %5959 = vmatpush1.msra.mxu0 %v5871
        %5960 = vmatprep.subr.mxu0 0.0
        %5961 = vmatpush1.msra.mxu0 %v5870
        %5962 = vmatprep.subr.mxu0 0.0
        %5963 = vmatpush1.msra.mxu0 %v5869
        %5964 = vmatprep.subr.mxu0 0.0
        %5965 = vmatpush1.msra.mxu0 %v5868
        %5966 = vmatprep.subr.mxu0 0.0
        %5967 = vmatpush1.msra.mxu0 %v5867
        %5968 = vmatprep.subr.mxu0 0.0
        %5969 = vmatpush1.msra.mxu0 %v5866
        %5970 = vmatprep.subr.mxu0 0.0
        %5971 = vmatpush1.msra.mxu0 %v5865
        %5972 = vmatprep.subr.mxu0 0.0
        %5973 = vmatpush1.msra.mxu0 %v5864
        %5974 = vmatprep.subr.mxu0 0.0
        %5975 = vmatpush1.msra.mxu0 %v5863
        %5976 = vmatprep.subr.mxu0 0.0
        %5977 = vmatpush1.msra.mxu0 %v5862
        %5978 = vmatprep.subr.mxu0 0.0
        %5979 = vmatpush1.msra.mxu0 %v5861
        %5980 = vmatprep.subr.mxu0 0.0
        %5981 = vmatpush1.msra.mxu0 %v5860
        %5982 = vmatprep.subr.mxu0 0.0
        %5983 = vmatpush1.msra.mxu0 %v5859
        %5984 = vmatprep.subr.mxu0 0.0
        %5985 = vmatpush1.msra.mxu0 %v5858
        %5986 = vmatprep.subr.mxu0 0.0
        %5987 = vmatpush2.msra.mxu0 %v5889
        %5988 = vmatprep.subr.mxu0 0.0
        %5989 = vmatpush2.msra.mxu0 %v5888
        %5990 = vmatprep.subr.mxu0 0.0
        %5991 = vmatpush2.msra.mxu0 %v5887
        %5992 = vmatprep.subr.mxu0 0.0
        %5993 = vmatpush2.msra.mxu0 %v5886
        %5994 = vmatprep.subr.mxu0 0.0
        %5995 = vmatpush2.msra.mxu0 %v5885
        %5996 = vmatprep.subr.mxu0 0.0
        %5997 = vmatpush2.msra.mxu0 %v5884
        %5998 = vmatprep.subr.mxu0 0.0
        %5999 = vmatpush2.msra.mxu0 %v5883
        %6000 = vmatprep.subr.mxu0 0.0
        %6001 = vmatpush2.msra.mxu0 %v5882
        %6002 = vmatprep.subr.mxu0 0.0
        %6003 = vmatpush2.msra.mxu0 %v5881
        %6004 = vmatprep.subr.mxu0 0.0
        %6005 = vmatpush2.msra.mxu0 %v5880
        %6006 = vmatprep.subr.mxu0 0.0
        %6007 = vmatpush2.msra.mxu0 %v5879
        %6008 = vmatprep.subr.mxu0 0.0
        %6009 = vmatpush2.msra.mxu0 %v5878
        %6010 = vmatprep.subr.mxu0 0.0
        %6011 = vmatpush2.msra.mxu0 %v5877
        %6012 = vmatprep.subr.mxu0 0.0
        %6013 = vmatpush2.msra.mxu0 %v5876
        %6014 = vmatprep.subr.mxu0 0.0
        %6015 = vmatpush2.msra.mxu0 %v5875
        %6016 = vmatprep.subr.mxu0 0.0
        %6017 = vmatpush2.msra.mxu0 %v5874
        %6018 = vmatprep.mubr.f32.mxu0 %v5940
        %6019 = vmatmul.mubr.f32.gmra.mxu0 %v5936
        %v6020 = vpop.f32.mrf.mxu0
        %v6021 = vadd.f32 %v5931, %v6020
        %v6022 = vpop.f32.mrf.mxu0
        %6023 = vdwg.mxu0
        %6024 = vmatprep.subr.mxu0 0.0
        %6025 = vmatpush1.msra.mxu0 %v5905
        %6026 = vmatprep.subr.mxu0 0.0
        %6027 = vmatpush1.msra.mxu0 %v5904
        %6028 = vmatprep.subr.mxu0 0.0
        %6029 = vmatpush1.msra.mxu0 %v5903
        %6030 = vmatprep.subr.mxu0 0.0
        %6031 = vmatpush1.msra.mxu0 %v5902
        %6032 = vmatprep.subr.mxu0 0.0
        %6033 = vmatpush1.msra.mxu0 %v5901
        %6034 = vmatprep.subr.mxu0 0.0
        %6035 = vmatpush1.msra.mxu0 %v5900
        %6036 = vmatprep.subr.mxu0 0.0
        %6037 = vmatpush1.msra.mxu0 %v5899
        %6038 = vmatprep.subr.mxu0 0.0
        %6039 = vmatpush1.msra.mxu0 %v5898
        %6040 = vmatprep.subr.mxu0 0.0
        %6041 = vmatpush1.msra.mxu0 %v5897
        %6042 = vmatprep.subr.mxu0 0.0
        %6043 = vmatpush1.msra.mxu0 %v5896
        %6044 = vmatprep.subr.mxu0 0.0
        %6045 = vmatpush1.msra.mxu0 %v5895
        %6046 = vmatprep.subr.mxu0 0.0
        %6047 = vmatpush1.msra.mxu0 %v5894
        %6048 = vmatprep.subr.mxu0 0.0
        %6049 = vmatpush1.msra.mxu0 %v5893
        %6050 = vmatprep.subr.mxu0 0.0
        %6051 = vmatpush1.msra.mxu0 %v5892
        %6052 = vmatprep.subr.mxu0 0.0
        %6053 = vmatpush1.msra.mxu0 %v5891
        %6054 = vmatprep.subr.mxu0 0.0
        %6055 = vmatpush1.msra.mxu0 %v5890
        %6056 = vmatprep.subr.mxu0 0.0
        %6057 = vmatpush2.msra.mxu0 0.0
        %6058 = vmatprep.subr.mxu0 0.0
        %6059 = vmatpush2.msra.mxu0 %v5920
        %6060 = vmatprep.subr.mxu0 0.0
        %6061 = vmatpush2.msra.mxu0 %v5919
        %6062 = vmatprep.subr.mxu0 0.0
        %6063 = vmatpush2.msra.mxu0 %v5918
        %6064 = vmatprep.subr.mxu0 0.0
        %6065 = vmatpush2.msra.mxu0 %v5917
        %6066 = vmatprep.subr.mxu0 0.0
        %6067 = vmatpush2.msra.mxu0 %v5916
        %6068 = vmatprep.subr.mxu0 0.0
        %6069 = vmatpush2.msra.mxu0 %v5915
        %6070 = vmatprep.subr.mxu0 0.0
        %6071 = vmatpush2.msra.mxu0 %v5914
        %6072 = vmatprep.subr.mxu0 0.0
        %6073 = vmatpush2.msra.mxu0 %v5913
        %6074 = vmatprep.subr.mxu0 0.0
        %6075 = vmatpush2.msra.mxu0 %v5912
        %6076 = vmatprep.subr.mxu0 0.0
        %6077 = vmatpush2.msra.mxu0 %v5911
        %6078 = vmatprep.subr.mxu0 0.0
        %6079 = vmatpush2.msra.mxu0 %v5910
        %6080 = vmatprep.subr.mxu0 0.0
        %6081 = vmatpush2.msra.mxu0 %v5909
        %6082 = vmatprep.subr.mxu0 0.0
        %6083 = vmatpush2.msra.mxu0 %v5908
        %6084 = vmatprep.subr.mxu0 0.0
        %6085 = vmatpush2.msra.mxu0 %v5907
        %6086 = vmatprep.subr.mxu0 0.0
        %6087 = vmatpush2.msra.mxu0 %v5906
        %6088 = vmatprep.mubr.f32.mxu0 %v5952
        %6089 = vmatmul.mubr.f32.gmra.mxu0 %v5944
        %v6090 = vpop.f32.mrf.mxu0
        %v6091 = vadd.f32 %v6021, %v6090
        %v6092 = vpop.f32.mrf.mxu0
        %6093 = vdwg.mxu0
        %v6094 = vld [vmem:[%s15] sm:$0xff]
        %v6095 = vld [vmem:[%s15 + $0x8] sm:$0xff]
        %v6096 = vld [vmem:[%s15 + $0x10] sm:$0xff]
        %v6097 = vld [vmem:[%s15 + $0x18] sm:$0xff]
        %s6098 = sld [smem:[#allocation5]]
        %v6099 = vstv %s6098
        %6101 = vrot.lane.b32.xlu0 %v6091, 64
        %v6102 = vpop.permute.xlu0 %6101
        %v6103 = vsel %vm805, %v6102, 0
        %6105 = vmatprep.subr.mxu0 0.0
        %6106 = vmatpush1.msra.mxu0 0.0
        %6107 = vmatprep.subr.mxu0 0.0
        %6108 = vmatpush1.msra.mxu0 0.0
        %6109 = vmatprep.subr.mxu0 0.0
        %6110 = vmatpush1.msra.mxu0 0.0
        %6111 = vmatprep.subr.mxu0 0.0
        %6112 = vmatpush1.msra.mxu0 0.0
        %6113 = vmatprep.subr.mxu0 0.0
        %6114 = vmatpush1.msra.mxu0 0.0
        %6115 = vmatprep.subr.mxu0 0.0
        %6116 = vmatpush1.msra.mxu0 0.0
        %6117 = vmatprep.subr.mxu0 0.0
        %6118 = vmatpush1.msra.mxu0 0.0
        %6119 = vmatprep.subr.mxu0 0.0
        %6120 = vmatpush1.msra.mxu0 0.0
        %6121 = vmatprep.subr.mxu0 0.0
        %6122 = vmatpush1.msra.mxu0 0.0
        %6123 = vmatprep.subr.mxu0 0.0
        %6124 = vmatpush1.msra.mxu0 0.0
        %6125 = vmatprep.subr.mxu0 0.0
        %6126 = vmatpush1.msra.mxu0 0.0
        %6127 = vmatprep.subr.mxu0 0.0
        %6128 = vmatpush1.msra.mxu0 0.0
        %6129 = vmatprep.subr.mxu0 0.0
        %6130 = vmatpush1.msra.mxu0 %v6097
        %6131 = vmatprep.subr.mxu0 0.0
        %6132 = vmatpush1.msra.mxu0 %v6096
        %6133 = vmatprep.subr.mxu0 0.0
        %6134 = vmatpush1.msra.mxu0 %v6095
        %6135 = vmatprep.subr.mxu0 0.0
        %6136 = vmatpush1.msra.mxu0 %v6094
        %6137 = vmatprep.subr.mxu0 0.0
        %6138 = vmatpush2.msra.mxu0 0.0
        %6139 = vmatprep.subr.mxu0 0.0
        %6140 = vmatpush2.msra.mxu0 0.0
        %6141 = vmatprep.subr.mxu0 0.0
        %6142 = vmatpush2.msra.mxu0 0.0
        %6143 = vmatprep.subr.mxu0 0.0
        %6144 = vmatpush2.msra.mxu0 0.0
        %6145 = vmatprep.subr.mxu0 0.0
        %6146 = vmatpush2.msra.mxu0 0.0
        %6147 = vmatprep.subr.mxu0 0.0
        %6148 = vmatpush2.msra.mxu0 0.0
        %6149 = vmatprep.subr.mxu0 0.0
        %6150 = vmatpush2.msra.mxu0 0.0
        %6151 = vmatprep.subr.mxu0 0.0
        %6152 = vmatpush2.msra.mxu0 0.0
        %6153 = vmatprep.subr.mxu0 0.0
        %6154 = vmatpush2.msra.mxu0 0.0
        %6155 = vmatprep.subr.mxu0 0.0
        %6156 = vmatpush2.msra.mxu0 0.0
        %6157 = vmatprep.subr.mxu0 0.0
        %6158 = vmatpush2.msra.mxu0 0.0
        %6159 = vmatprep.subr.mxu0 0.0
        %6160 = vmatpush2.msra.mxu0 0.0
        %6161 = vmatprep.subr.mxu0 0.0
        %6162 = vmatpush2.msra.mxu0 0.0
        %6163 = vmatprep.subr.mxu0 0.0
        %6164 = vmatpush2.msra.mxu0 0.0
        %6165 = vmatprep.subr.mxu0 0.0
        %6166 = vmatpush2.msra.mxu0 0.0
        %6167 = vmatprep.subr.mxu0 0.0
        %6168 = vmatpush2.msra.mxu0 0.0
        %6169 = vmatprep.mubr.f32.mxu0 0.0
        %6170 = vmatmul.mubr.f32.gmra.mxu0 %v6103
        %v6171 = vpop.f32.mrf.mxu0
        %v6172 = vadd.f32 %v6099, %v6171
        %v6173 = vpop.f32.mrf.mxu0
        %6174 = vdwg.mxu0
        %v6175 = vld [vmem:[#allocation15] sm:$0xff]
        %v6176 = vld [vmem:[#allocation15 + $0x8] sm:$0xff]
        %v6177 = vld [vmem:[%s17] sm:$0x1]
        %6178 = vrot.lane.b32.xlu0 %v6091, 32
        %v6179 = vpop.permute.xlu0 %6178
        %vm6180 = vcmask 130048
        %v6181 = vsel %vm6180, %v6179, 0
        %6183 = vmatprep.subr.mxu0 0.0
        %6184 = vmatpush1.msra.mxu0 0.0
        %6185 = vmatprep.subr.mxu0 0.0
        %6186 = vmatpush1.msra.mxu0 0.0
        %6187 = vmatprep.subr.mxu0 0.0
        %6188 = vmatpush1.msra.mxu0 0.0
        %6189 = vmatprep.subr.mxu0 0.0
        %6190 = vmatpush1.msra.mxu0 0.0
        %6191 = vmatprep.subr.mxu0 0.0
        %6192 = vmatpush1.msra.mxu0 0.0
        %6193 = vmatprep.subr.mxu0 0.0
        %6194 = vmatpush1.msra.mxu0 0.0
        %6195 = vmatprep.subr.mxu0 0.0
        %6196 = vmatpush1.msra.mxu0 0.0
        %6197 = vmatprep.subr.mxu0 0.0
        %6198 = vmatpush1.msra.mxu0 0.0
        %6199 = vmatprep.subr.mxu0 0.0
        %6200 = vmatpush1.msra.mxu0 0.0
        %6201 = vmatprep.subr.mxu0 0.0
        %6202 = vmatpush1.msra.mxu0 0.0
        %6203 = vmatprep.subr.mxu0 0.0
        %6204 = vmatpush1.msra.mxu0 0.0
        %6205 = vmatprep.subr.mxu0 0.0
        %6206 = vmatpush1.msra.mxu0 0.0
        %6207 = vmatprep.subr.mxu0 0.0
        %6208 = vmatpush1.msra.mxu0 0.0
        %6209 = vmatprep.subr.mxu0 0.0
        %6210 = vmatpush1.msra.mxu0 0.0
        %6211 = vmatprep.subr.mxu0 0.0
        %6212 = vmatpush1.msra.mxu0 %v6176
        %6213 = vmatprep.subr.mxu0 0.0
        %6214 = vmatpush1.msra.mxu0 %v6175
        %6215 = vmatprep.subr.mxu0 0.0
        %6216 = vmatpush2.msra.mxu0 0.0
        %6217 = vmatprep.subr.mxu0 0.0
        %6218 = vmatpush2.msra.mxu0 0.0
        %6219 = vmatprep.subr.mxu0 0.0
        %6220 = vmatpush2.msra.mxu0 0.0
        %6221 = vmatprep.subr.mxu0 0.0
        %6222 = vmatpush2.msra.mxu0 0.0
        %6223 = vmatprep.subr.mxu0 0.0
        %6224 = vmatpush2.msra.mxu0 0.0
        %6225 = vmatprep.subr.mxu0 0.0
        %6226 = vmatpush2.msra.mxu0 0.0
        %6227 = vmatprep.subr.mxu0 0.0
        %6228 = vmatpush2.msra.mxu0 0.0
        %6229 = vmatprep.subr.mxu0 0.0
        %6230 = vmatpush2.msra.mxu0 0.0
        %6231 = vmatprep.subr.mxu0 0.0
        %6232 = vmatpush2.msra.mxu0 0.0
        %6233 = vmatprep.subr.mxu0 0.0
        %6234 = vmatpush2.msra.mxu0 0.0
        %6235 = vmatprep.subr.mxu0 0.0
        %6236 = vmatpush2.msra.mxu0 0.0
        %6237 = vmatprep.subr.mxu0 0.0
        %6238 = vmatpush2.msra.mxu0 0.0
        %6239 = vmatprep.subr.mxu0 0.0
        %6240 = vmatpush2.msra.mxu0 0.0
        %6241 = vmatprep.subr.mxu0 0.0
        %6242 = vmatpush2.msra.mxu0 0.0
        %6243 = vmatprep.subr.mxu0 0.0
        %6244 = vmatpush2.msra.mxu0 0.0
        %6245 = vmatprep.subr.mxu0 0.0
        %6246 = vmatpush2.msra.mxu0 0.0
        %6247 = vmatprep.mubr.f32.mxu0 0.0
        %6248 = vmatmul.mubr.f32.gmra.mxu0 %v6181
        %v6249 = vpop.f32.mrf.mxu0
        %v6250 = vadd.f32 %v6177, %v6249
        %v6251 = vpop.f32.mrf.mxu0
        %6252 = vdwg.mxu0
        %v6254 = vrot.slane %v6172, 7
        %v6257 = vrot.slane %v6250, 6
        %v6259 = vsel %vm946, %v6091, %v6254
        %v6260 = vsel %vm948, %v6259, %v6257
        %6262 = vrot.lane.b32.xlu0 %v6260, 74
        %v6263 = vpop.permute.xlu0 %6262
        %6265 = vrot.lane.b32.xlu0 %v6260, 10
        %v6266 = vpop.permute.xlu0 %6265
        %v6268 = vsel %vm889, %v6263, %v6266
        %v6269 = vsel %vm891, %v6268, %v6263
        %v6271 = vrot.slane %v6269, 5
        %6272 = vrot.lane.b32.xlu0 %v6271, 127
        %v6273 = vpop.permute.xlu0 %6272
        %v6275 = vrot.slane %v6269, 2
        %6276 = vrot.lane.b32.xlu0 %v6275, 126
        %v6277 = vpop.permute.xlu0 %6276
        %v6279 = vrot.slane %v6269, 7
        %6280 = vrot.lane.b32.xlu0 %v6279, 125
        %v6281 = vpop.permute.xlu0 %6280
        %v6283 = vrot.slane %v6269, 4
        %6284 = vrot.lane.b32.xlu0 %v6283, 124
        %v6285 = vpop.permute.xlu0 %6284
        %v6287 = vrot.slane %v6269, 1
        %6288 = vrot.lane.b32.xlu0 %v6287, 123
        %v6289 = vpop.permute.xlu0 %6288
        %v6291 = vrot.slane %v6269, 6
        %6292 = vrot.lane.b32.xlu0 %v6291, 122
        %v6293 = vpop.permute.xlu0 %6292
        %v6295 = vrot.slane %v6269, 3
        %6296 = vrot.lane.b32.xlu0 %v6295, 121
        %v6297 = vpop.permute.xlu0 %6296
        %6299 = vrot.lane.b32.xlu0 %v6269, 120
        %v6300 = vpop.permute.xlu0 %6299
        %6302 = vrot.lane.b32.xlu0 %v6271, 119
        %v6303 = vpop.permute.xlu0 %6302
        %6305 = vrot.lane.b32.xlu0 %v6275, 118
        %v6306 = vpop.permute.xlu0 %6305
        %6308 = vrot.lane.b32.xlu0 %v6279, 117
        %v6309 = vpop.permute.xlu0 %6308
        %6311 = vrot.lane.b32.xlu0 %v6283, 116
        %v6312 = vpop.permute.xlu0 %6311
        %6314 = vrot.lane.b32.xlu0 %v6287, 115
        %v6315 = vpop.permute.xlu0 %6314
        %6317 = vrot.lane.b32.xlu0 %v6291, 114
        %v6318 = vpop.permute.xlu0 %6317
        %6320 = vrot.lane.b32.xlu0 %v6295, 113
        %v6321 = vpop.permute.xlu0 %6320
        %v6323 = vsel %vm950, %v6269, %v6273
        %v6324 = vsel %vm956, %v6323, %v6277
        %v6325 = vsel %vm946, %v6277, %v6281
        %v6326 = vsel %vm952, %v6325, %v6285
        %v6327 = vsel %vm958, %v6326, %v6289
        %v6328 = vsel %vm948, %v6289, %v6293
        %v6329 = vsel %vm954, %v6328, %v6297
        %v6330 = vsel %vm950, %v6300, %v6303
        %v6331 = vsel %vm956, %v6330, %v6306
        %v6332 = vsel %vm946, %v6306, %v6309
        %v6333 = vsel %vm952, %v6332, %v6312
        %v6334 = vsel %vm958, %v6333, %v6315
        %v6335 = vsel %vm948, %v6315, %v6318
        %v6336 = vsel %vm954, %v6335, %v6321
        %6339 = vrot.lane.b32.xlu0 %v6324, 112
        %v6340 = vpop.permute.xlu0 %6339
        %6341 = vrot.lane.b32.xlu0 %v6326, 112
        %v6342 = vpop.permute.xlu0 %6341
        %v6344 = vld [vmem:[#allocation14] sm:$0x1]
        %v6345 = vld [vmem:[#allocation3] sm:$0x1]
        %6347 = vset.pattern.permute.xlu0 0
        %6348 = vperm.xlu0 %6347, %v6345
        %v6349 = vpop.permute.xlu0 %6348
        %v6351 = vlaneseq
        %v6352 = vshrl.u32 %v6351, 7
        %v6353 = vsub.s32 0, %v6352
        %v6354 = vrot.slane %v6349, %v6353
        %vm6355 = vcmask 515072
        %v6357 = vsel %vm6355, %v6344, 0
        %v6359 = vsel %vm958, %v6342, 0
        %6361 = vmatprep.subr.mxu0 0.0
        %6362 = vmatpush1.msra.mxu0 0.0
        %6363 = vmatprep.subr.mxu0 0.0
        %6364 = vmatpush1.msra.mxu0 0.0
        %6365 = vmatprep.subr.mxu0 0.0
        %6366 = vmatpush1.msra.mxu0 0.0
        %6367 = vmatprep.subr.mxu0 0.0
        %6368 = vmatpush1.msra.mxu0 0.0
        %6369 = vmatprep.subr.mxu0 0.0
        %6370 = vmatpush1.msra.mxu0 0.0
        %6371 = vmatprep.subr.mxu0 0.0
        %6372 = vmatpush1.msra.mxu0 0.0
        %6373 = vmatprep.subr.mxu0 0.0
        %6374 = vmatpush1.msra.mxu0 0.0
        %6375 = vmatprep.subr.mxu0 0.0
        %6376 = vmatpush1.msra.mxu0 0.0
        %6377 = vmatprep.subr.mxu0 0.0
        %6378 = vmatpush1.msra.mxu0 %v6359
        %6379 = vmatprep.subr.mxu0 0.0
        %6380 = vmatpush1.msra.mxu0 %v6340
        %6381 = vmatprep.subr.mxu0 0.0
        %6382 = vmatpush1.msra.mxu0 %v6336
        %6383 = vmatprep.subr.mxu0 0.0
        %6384 = vmatpush1.msra.mxu0 %v6334
        %6385 = vmatprep.subr.mxu0 0.0
        %6386 = vmatpush1.msra.mxu0 %v6331
        %6387 = vmatprep.subr.mxu0 0.0
        %6388 = vmatpush1.msra.mxu0 %v6329
        %6389 = vmatprep.subr.mxu0 0.0
        %6390 = vmatpush1.msra.mxu0 %v6327
        %6391 = vmatprep.subr.mxu0 0.0
        %6392 = vmatpush1.msra.mxu0 %v6324
        %6393 = vmatprep.subr.mxu0 0.0
        %6394 = vmatpush2.msra.mxu0 0.0
        %6395 = vmatprep.subr.mxu0 0.0
        %6396 = vmatpush2.msra.mxu0 0.0
        %6397 = vmatprep.subr.mxu0 0.0
        %6398 = vmatpush2.msra.mxu0 0.0
        %6399 = vmatprep.subr.mxu0 0.0
        %6400 = vmatpush2.msra.mxu0 0.0
        %6401 = vmatprep.subr.mxu0 0.0
        %6402 = vmatpush2.msra.mxu0 0.0
        %6403 = vmatprep.subr.mxu0 0.0
        %6404 = vmatpush2.msra.mxu0 0.0
        %6405 = vmatprep.subr.mxu0 0.0
        %6406 = vmatpush2.msra.mxu0 0.0
        %6407 = vmatprep.subr.mxu0 0.0
        %6408 = vmatpush2.msra.mxu0 0.0
        %6409 = vmatprep.subr.mxu0 0.0
        %6410 = vmatpush2.msra.mxu0 0.0
        %6411 = vmatprep.subr.mxu0 0.0
        %6412 = vmatpush2.msra.mxu0 0.0
        %6413 = vmatprep.subr.mxu0 0.0
        %6414 = vmatpush2.msra.mxu0 0.0
        %6415 = vmatprep.subr.mxu0 0.0
        %6416 = vmatpush2.msra.mxu0 0.0
        %6417 = vmatprep.subr.mxu0 0.0
        %6418 = vmatpush2.msra.mxu0 0.0
        %6419 = vmatprep.subr.mxu0 0.0
        %6420 = vmatpush2.msra.mxu0 0.0
        %6421 = vmatprep.subr.mxu0 0.0
        %6422 = vmatpush2.msra.mxu0 0.0
        %6423 = vmatprep.subr.mxu0 0.0
        %6424 = vmatpush2.msra.mxu0 0.0
        %6425 = vmatprep.mubr.f32.mxu0 0.0
        %6426 = vmatmul.mubr.f32.gmra.mxu0 %v6357
        %v6427 = vpop.f32.mrf.mxu0
        %v6428 = vadd.f32 %v6354, %v6427
        %v6429 = vpop.f32.mrf.mxu0
        %6430 = vdwg.mxu0
        %vm6431 = vcmask 516096
        %6432 = vst.msk [vmem:[%s715] sm:$0x1] %vm6431, %v6428
        %s6433 = sand.u32 %s479, 1
        %s6434 = scalar_lea.sflag [#allocation8], %s6433
        %s6435 = sand.u32 %s479, 1
        %s6436 = scalar_lea.vmem [#allocation17], %s6435
        // Predicated region
        $region125: #{tpu_custom_call.1} parent=99 // pred_check
          %p6437 = pneg %p489
        $region126: #{tpu_custom_call.1} parent=99 // pred_check_branch
          %6439 = sbr.rel (%p6437) target = $region128
        $region127: #{tpu_custom_call.1} parent=99 // pred_region
          %s6441 = ssub.s32 16, 16
          %6442 = vsyncadd %s6434, %s6441
          %s6443 = smul.addr %s46, 16
          %s6444 = scalar_lea.hbm %s20, %s6443
          %s6446 = sshll.u32 %s6436, 4
          %s6447 = int_to_ptr.vmem [resolvable:$true] %s6446
          %6449 = dma.vmem_to_hbm [thread:$0]  %s6447, 16, %s6444, %s6434
        $region128: #{tpu_custom_call.1} parent=99 // pred_fallthru
          _
      $region100: #{tpu_custom_call.1} parent=5 // pred_fallthru
        _
      %p6450 = scmp.le.s32.totalorder 2, %s41
      // Predicated region
      $region129: #{tpu_custom_call.1} parent=5 // pred_check
        %p6451 = pneg %p6450
      $region130: #{tpu_custom_call.1} parent=5 // pred_check_branch
        %6453 = sbr.rel (%p6451) target = $region132
      $region131: #{tpu_custom_call.1} parent=5 // pred_region
        %s6454 = ssub.s32 %s41, 2
        // Predicated region
        $region133: #{tpu_custom_call.1} parent=131 // pred_check
          %p6455 = pneg %p495
        $region134: #{tpu_custom_call.1} parent=131 // pred_check_branch
          %6457 = sbr.rel (%p6455) target = $region136
        $region135: #{tpu_custom_call.1} parent=131 // pred_region
          %s6458 = sand.u32 %s480, 1
          %s6459 = scalar_lea.sflag [#allocation8], %s6458
          %s6460 = sand.u32 %s480, 1
          %s6461 = scalar_lea.vmem [#allocation17], %s6460
          %6462 = dma.done %s6459, 16
        $region136: #{tpu_custom_call.1} parent=131 // pred_fallthru
          _
      $region132: #{tpu_custom_call.1} parent=5 // pred_fallthru
        _
    $region6: #{tpu_custom_call.1} parent=1 // loop_footer
      %s45 = sadd.s32 1, %s41
    $region7: #{tpu_custom_call.1} parent=1 // loop_footer_branch
      %40 = sbr.rel target = $region3
    $region8: #{tpu_custom_call.1} parent=1 // loop_exit
      _
    %6463 = vsyncpa [#allocation7], 1
    %s6464 = scalar_lea.sflag [#allocation7], 1
    %6465 = vsyncpa %s6464, 1
    %6466 = vsyncpa [#allocation10], 1
    %6467 = vsyncpa [#allocation13], 1
    %6468 = vsyncpa [#allocation16], 1
    %6469 = vsyncpa [#allocation8], 1
    %s6470 = scalar_lea.sflag [#allocation8], 1
    %6471 = vsyncpa %s6470, 1

</llo_original>
